<compile_context>
chip_gen: v7x
topology: tpu7x:2x2x1
jax: 0.10.0
libtpu: 0.0.40
codegen_flags: <defaults>
</compile_context>

<pallas_src>
import functools

import jax
import jax.numpy as jnp
from jax.experimental import pallas as pl
from jax.experimental.pallas import tpu as pltpu

C_FAST = 256            # fast-pathway output channels in SlowFast-R50 (embedding dim)
HW_CHUNK = 128          # lane-aligned spatial chunk width for the fused reduce
_STATIC_UNROLL_MAX = 8  # above this many full chunks, use pl.loop instead of unrolling
_VMEM_BUDGET = 8 * 1024 * 1024  # per-grid-step working-set target (fits all generations)


def _pick_chunk(hw):
    """Lane chunk width: 128 once the spatial axis spans at least one lane tile."""
    return hw if hw <= HW_CHUNK else HW_CHUNK


def _pick_t_block(t, c, hw, x_itemsize, cf, chunk):
    """Largest sublane-aligned frame block whose working set fits the VMEM budget."""
    per_t = (2 * c * hw * x_itemsize        # input tile (double buffered)
             + cf * chunk * 4               # f32 accumulator scratch
             + 2 * cf * 4)                  # output tile (double buffered)
    tb = max(1, _VMEM_BUDGET // per_t)
    if tb >= t:
        return t
    return min(t, max(8, (tb // 8) * 8))


def _fast_head_kernel(x_ref, wb_ref, o_ref, acc_ref, *, compute_dtype):
    """Fused 1x1-conv (VPU broadcast-FMAs) + ReLU + spatial mean for one frame block.

    x_ref  : (TB, C, HW)     frame block, native dtype, spatial flattened on lanes
    wb_ref : (CF, C + 1)     packed f32 params: columns [:C] weight, column C bias
    o_ref  : (TB, CF)        spatially pooled features, one lane-dense store
    acc_ref: (TB, CF, chunk) f32 scratch accumulating post-ReLU values across chunks
    """
    TB, C, HW = x_ref.shape
    CF = wb_ref.shape[0]
    chunk = acc_ref.shape[-1]
    n_full = HW // chunk
    rem = HW - n_full * chunk

    # Lane-broadcast the tiny parameters ONCE (JAX does not CSE broadcast_in_dim); each
    # is (CF, chunk) and is reused by every chunk and every frame in the block.
    w_cols = [
        jnp.broadcast_to(wb_ref[:, c:c + 1].astype(compute_dtype), (CF, chunk))
        for c in range(C)
    ]
    bias_b = jnp.broadcast_to(wb_ref[:, C:C + 1].astype(compute_dtype), (CF, chunk))

    def fma_relu(xc, w_cols_c, bias_c):
        # One fused expression: ReLU(sum_c x[:, c, :] * w[:, c] + b) on the VPU; xc is
        # sublane-broadcast along CF, the parameters are already lane-broadcast.  The
        # per-chunk dtype cast happens here (no wrapper-side XLA cast kernel).
        pre = bias_c
        for c in range(C):
            pre = pre + xc[:, c:c + 1, :].astype(compute_dtype) * w_cols_c[c]
        return jnp.maximum(pre, 0.0)

    acc_ref[...] = jnp.zeros_like(acc_ref)

    def do_chunk(start):
        xc = x_ref[:, :, pl.ds(start, chunk)]            # (TB, C, chunk), lane-dense
        acc_ref[...] += fma_relu(xc, w_cols, bias_b).astype(jnp.float32)

    if n_full <= _STATIC_UNROLL_MAX:
        for j in range(n_full):                          # static starts, fully unrolled
            do_chunk(j * chunk)
    else:
        @pl.loop(0, n_full)                              # bounded live ranges / compile
        def _(j):
            do_chunk(pl.multiple_of(j * chunk, HW_CHUNK))

    # Single lane (XLU) reduce over the hoisted accumulator.
    total = jnp.sum(acc_ref[...], axis=-1)               # (TB, CF) f32

    if rem > 0:
        # Bounded, lane-aligned tail: exact-width slice starting at n_full*chunk (a
        # multiple of 128), reduced directly; replaces the old `chunk = HW` fallback.
        xt = x_ref[:, :, pl.ds(n_full * chunk, rem)]     # (TB, C, rem)
        zt = fma_relu(xt, [w[:, :rem] for w in w_cols], bias_b[:, :rem])
        total = total + jnp.sum(zt.astype(jnp.float32), axis=-1)

    # AdaptiveAvgPool2d(output_size=1) == mean over all HW spatial positions.
    o_ref[...] = (total * (1.0 / HW)).astype(o_ref.dtype)


def fast_pathway_features(x_tch, wb, *, compute_dtype=jnp.float32):
    """x_tch: (T, C, HW) any float dtype; wb: (CF, C+1) f32.  Returns (T, CF) f32."""
    T, C, HW = x_tch.shape
    CF = wb.shape[0]
    chunk = _pick_chunk(HW)
    t_block = _pick_t_block(T, C, HW, x_tch.dtype.itemsize, CF, chunk)
    kernel = functools.partial(_fast_head_kernel, compute_dtype=compute_dtype)
    return pl.pallas_call(
        kernel,
        out_shape=jax.ShapeDtypeStruct((T, CF), jnp.float32),
        # Grid over frame blocks: 1 step at small shapes, pipelined + megacore-shardable
        # (v7x) once T grows.  (v5e alternative: raise vmem_limit_bytes; tiling is used
        # here instead so no compiler_params VMEM override is needed.)
        grid=(pl.cdiv(T, t_block),),
        in_specs=[
            pl.BlockSpec((t_block, C, HW), lambda i: (i, 0, 0)),
            pl.BlockSpec((CF, C + 1), lambda i: (0, 0)),
        ],
        out_specs=pl.BlockSpec((t_block, CF), lambda i: (i, 0)),
        scratch_shapes=[pltpu.VMEM((t_block, CF, chunk), jnp.float32)],
        compiler_params=pltpu.CompilerParams(
            dimension_semantics=("parallel",),
        ),
    )(x_tch, wb)


def slowfast_forward(x, params, *, compute_dtype=jnp.float32):
    """Mirrors slowfast.forward: x is (T, C, H, W); returns embeddings (T, 256)."""
    T, C, H, W = x.shape

    # xx = x.unsqueeze(0).transpose(1, 2)[:, :, :round(T/4)] -> slow-pathway input.
    # The slow pathway's output (x1[0]) is never used downstream, so it is not run.
    _t_slow = round(T / 4)  # kept for semantic parity with the reference code

    # Free reshape only (no XLA transpose / cast kernel): keep (T, C, H*W) with the
    # spatial axis last so in-kernel vregs stay lane-dense; dtype cast happens per-chunk
    # inside the kernel.
    x_tch = x.reshape(T, C, H * W)

    # fast_feature = feature_extraction(...)[1]; fast_avg_pool + squeezes + transpose
    # are fused into the kernel, whose output layout is exactly (T, 256).
    return fast_pathway_features(x_tch, params["wb_fast"], compute_dtype=compute_dtype)


def _reference_forward(x, params):
    """Pure-JAX reference of the same stand-in head, for a numeric sanity check."""
    T, C, H, W = x.shape
    xf = x.reshape(T, C, H * W).astype(jnp.float32)            # (T, C, HW)
    wb = params["wb_fast"]
    w = wb[:, :C]                                               # (CF, C)
    b = wb[:, C]                                                # (CF,)
    y = jnp.einsum("tcs,oc->tso", xf, w) + b[None, None, :]     # (T, HW, CF)
    y = jnp.maximum(y, 0.0)
    return jnp.mean(y, axis=1)                                  # (T, CF)


if __name__ == "__main__":
    key = jax.random.PRNGKey(0)
    k_x, k_w, k_b, k_x2 = jax.random.split(key, 4)

    # Small shapes consistent with the module: a clip of T=8 RGB frames.
    T, C = 8, 3
    CF = C_FAST

    # Deterministic synthetic fast-pathway parameters packed as one (CF, C+1) operand.
    w = jax.random.normal(k_w, (CF, C), dtype=jnp.float32) * 0.1
    b = jax.random.normal(k_b, (CF, 1), dtype=jnp.float32) * 0.1
    params = {"wb_fast": jnp.concatenate([w, b], axis=1)}

    # Test 1: 16x16 frames (HW=256 -> two full 128-lane chunks), f32 compute.
    x1 = jax.random.normal(k_x, (T, C, 16, 16), dtype=jnp.float32)
    out1 = jax.block_until_ready(jax.jit(slowfast_forward)(x1, params))
    assert out1.shape == (T, CF), out1.shape
    assert out1.dtype == jnp.float32
    ref1 = _reference_forward(x1, params)
    assert jnp.allclose(out1, ref1, rtol=1e-4, atol=1e-5), float(
        jnp.max(jnp.abs(out1 - ref1)))

    # Test 2: 12x12 frames (HW=144 -> one full chunk + bounded 16-lane tail slice).
    x2 = jax.random.normal(k_x2, (T, C, 12, 12), dtype=jnp.float32)
    out2 = jax.block_until_ready(jax.jit(slowfast_forward)(x2, params))
    ref2 = _reference_forward(x2, params)
    assert jnp.allclose(out2, ref2, rtol=1e-4, atol=1e-5), float(
        jnp.max(jnp.abs(out2 - ref2)))

    # Test 3: bf16 FMA/ReLU (v6e/v7x VPU path); spatial accumulation stays f32.
    out3 = jax.block_until_ready(
        jax.jit(functools.partial(slowfast_forward, compute_dtype=jnp.bfloat16))(
            x1, params))
    assert jnp.allclose(out3, ref1, rtol=3e-2, atol=3e-2), float(
        jnp.max(jnp.abs(out3 - ref1)))

    print("KERNEL_OK")
</pallas_src>

<mosaic_0001>
module attributes {stable_mosaic.version = 11 : i64} {
  func.func @_fast_head_kernel(%arg0: i32, %arg1: memref<8x3x256xf32, #tpu.memory_space<vmem>>, %arg2: memref<256x4xf32, #tpu.memory_space<vmem>>, %arg3: memref<8x256xf32, #tpu.memory_space<vmem>>, %arg4: memref<8x256x128xf32, #tpu.memory_space<vmem>>) attributes {dimension_semantics = [#tpu.dimension_semantics<parallel>], iteration_bounds = array<i64: 1>, scalar_prefetch = 0 : i64, scratch_operands = 1 : i64, tpu.core_type = #tpu.core_type<tc>, window_params = [{transform_indices = @transform_0, window_bounds = array<i64: 8, 3, 256>}, {pipeline_mode = #tpu.pipeline_mode<synchronous>, transform_indices = @transform_1, window_bounds = array<i64: 256, 4>}, {transform_indices = @transform_2, window_bounds = array<i64: 8, 256>}]} {
    %c0 = arith.constant 0 : index
    %c0_0 = arith.constant 0 : index
    %0 = vector.load %arg2[%c0, %c0_0] : memref<256x4xf32, #tpu.memory_space<vmem>>, vector<256x1xf32>
    %1 = vector.shape_cast %0 : vector<256x1xf32> to vector<256x1xf32>
    %2 = vector.broadcast %1 : vector<256x1xf32> to vector<256x128xf32>
    %c0_1 = arith.constant 0 : index
    %c1 = arith.constant 1 : index
    %3 = vector.load %arg2[%c0_1, %c1] : memref<256x4xf32, #tpu.memory_space<vmem>>, vector<256x1xf32>
    %4 = vector.shape_cast %3 : vector<256x1xf32> to vector<256x1xf32>
    %5 = vector.broadcast %4 : vector<256x1xf32> to vector<256x128xf32>
    %c0_2 = arith.constant 0 : index
    %c2 = arith.constant 2 : index
    %6 = vector.load %arg2[%c0_2, %c2] : memref<256x4xf32, #tpu.memory_space<vmem>>, vector<256x1xf32>
    %7 = vector.shape_cast %6 : vector<256x1xf32> to vector<256x1xf32>
    %8 = vector.broadcast %7 : vector<256x1xf32> to vector<256x128xf32>
    %c0_3 = arith.constant 0 : index
    %c3 = arith.constant 3 : index
    %9 = vector.load %arg2[%c0_3, %c3] : memref<256x4xf32, #tpu.memory_space<vmem>>, vector<256x1xf32>
    %10 = vector.shape_cast %9 : vector<256x1xf32> to vector<256x1xf32>
    %11 = vector.broadcast %10 : vector<256x1xf32> to vector<256x128xf32>
    %cst = arith.constant 0.000000e+00 : f32
    %12 = vector.broadcast %cst : f32 to vector<8x256x128xf32>
    %c0_4 = arith.constant 0 : index
    %c0_5 = arith.constant 0 : index
    %c0_6 = arith.constant 0 : index
    %13 = vector.load %arg4[%c0_4, %c0_5, %c0_6] : memref<8x256x128xf32, #tpu.memory_space<vmem>>, vector<8x256x128xf32>
    tpu.vector_store %arg4[%c0_4, %c0_5, %c0_6], %12 {strides = array<i32>} : memref<8x256x128xf32, #tpu.memory_space<vmem>>, vector<8x256x128xf32>,
    %c0_7 = arith.constant 0 : index
    %c0_8 = arith.constant 0 : index
    %c0_9 = arith.constant 0 : index
    %14 = vector.load %arg1[%c0_7, %c0_8, %c0_9] : memref<8x3x256xf32, #tpu.memory_space<vmem>>, vector<8x3x128xf32>
    %c0_10 = arith.constant 0 : index
    %c0_11 = arith.constant 0 : index
    %c0_12 = arith.constant 0 : index
    %15 = vector.load %arg4[%c0_10, %c0_11, %c0_12] : memref<8x256x128xf32, #tpu.memory_space<vmem>>, vector<8x256x128xf32>
    %16 = vector.extract_strided_slice %14 {offsets = [0, 0, 0], sizes = [8, 1, 128], strides = [1, 1, 1]} : vector<8x3x128xf32> to vector<8x1x128xf32>
    %17 = vector.shape_cast %2 : vector<256x128xf32> to vector<1x256x128xf32>
    %18 = vector.broadcast %16 : vector<8x1x128xf32> to vector<8x256x128xf32>
    %19 = vector.broadcast %17 : vector<1x256x128xf32> to vector<8x256x128xf32>
    %20 = arith.mulf %18, %19 : vector<8x256x128xf32>
    %21 = vector.shape_cast %11 : vector<256x128xf32> to vector<1x256x128xf32>
    %22 = vector.broadcast %21 : vector<1x256x128xf32> to vector<8x256x128xf32>
    %23 = arith.addf %22, %20 : vector<8x256x128xf32>
    %24 = vector.extract_strided_slice %14 {offsets = [0, 1, 0], sizes = [8, 1, 128], strides = [1, 1, 1]} : vector<8x3x128xf32> to vector<8x1x128xf32>
    %25 = vector.shape_cast %5 : vector<256x128xf32> to vector<1x256x128xf32>
    %26 = vector.broadcast %24 : vector<8x1x128xf32> to vector<8x256x128xf32>
    %27 = vector.broadcast %25 : vector<1x256x128xf32> to vector<8x256x128xf32>
    %28 = arith.mulf %26, %27 : vector<8x256x128xf32>
    %29 = arith.addf %23, %28 : vector<8x256x128xf32>
    %30 = vector.extract_strided_slice %14 {offsets = [0, 2, 0], sizes = [8, 1, 128], strides = [1, 1, 1]} : vector<8x3x128xf32> to vector<8x1x128xf32>
    %31 = vector.shape_cast %8 : vector<256x128xf32> to vector<1x256x128xf32>
    %32 = vector.broadcast %30 : vector<8x1x128xf32> to vector<8x256x128xf32>
    %33 = vector.broadcast %31 : vector<1x256x128xf32> to vector<8x256x128xf32>
    %34 = arith.mulf %32, %33 : vector<8x256x128xf32>
    %35 = arith.addf %29, %34 : vector<8x256x128xf32>
    %cst_13 = arith.constant 0.000000e+00 : f32
    %36 = vector.broadcast %cst_13 : f32 to vector<8x256x128xf32>
    %37 = arith.maximumf %35, %36 : vector<8x256x128xf32>
    %38 = arith.addf %15, %37 : vector<8x256x128xf32>
    %c0_14 = arith.constant 0 : index
    %c0_15 = arith.constant 0 : index
    %c0_16 = arith.constant 0 : index
    %39 = vector.load %arg4[%c0_14, %c0_15, %c0_16] : memref<8x256x128xf32, #tpu.memory_space<vmem>>, vector<8x256x128xf32>
    tpu.vector_store %arg4[%c0_14, %c0_15, %c0_16], %38 {strides = array<i32>} : memref<8x256x128xf32, #tpu.memory_space<vmem>>, vector<8x256x128xf32>,
    %c0_17 = arith.constant 0 : index
    %c0_18 = arith.constant 0 : index
    %c128 = arith.constant 128 : index
    %40 = vector.load %arg1[%c0_17, %c0_18, %c128] : memref<8x3x256xf32, #tpu.memory_space<vmem>>, vector<8x3x128xf32>
    %c0_19 = arith.constant 0 : index
    %c0_20 = arith.constant 0 : index
    %c0_21 = arith.constant 0 : index
    %41 = vector.load %arg4[%c0_19, %c0_20, %c0_21] : memref<8x256x128xf32, #tpu.memory_space<vmem>>, vector<8x256x128xf32>
    %42 = vector.extract_strided_slice %40 {offsets = [0, 0, 0], sizes = [8, 1, 128], strides = [1, 1, 1]} : vector<8x3x128xf32> to vector<8x1x128xf32>
    %43 = vector.shape_cast %2 : vector<256x128xf32> to vector<1x256x128xf32>
    %44 = vector.broadcast %42 : vector<8x1x128xf32> to vector<8x256x128xf32>
    %45 = vector.broadcast %43 : vector<1x256x128xf32> to vector<8x256x128xf32>
    %46 = arith.mulf %44, %45 : vector<8x256x128xf32>
    %47 = vector.shape_cast %11 : vector<256x128xf32> to vector<1x256x128xf32>
    %48 = vector.broadcast %47 : vector<1x256x128xf32> to vector<8x256x128xf32>
    %49 = arith.addf %48, %46 : vector<8x256x128xf32>
    %50 = vector.extract_strided_slice %40 {offsets = [0, 1, 0], sizes = [8, 1, 128], strides = [1, 1, 1]} : vector<8x3x128xf32> to vector<8x1x128xf32>
    %51 = vector.shape_cast %5 : vector<256x128xf32> to vector<1x256x128xf32>
    %52 = vector.broadcast %50 : vector<8x1x128xf32> to vector<8x256x128xf32>
    %53 = vector.broadcast %51 : vector<1x256x128xf32> to vector<8x256x128xf32>
    %54 = arith.mulf %52, %53 : vector<8x256x128xf32>
    %55 = arith.addf %49, %54 : vector<8x256x128xf32>
    %56 = vector.extract_strided_slice %40 {offsets = [0, 2, 0], sizes = [8, 1, 128], strides = [1, 1, 1]} : vector<8x3x128xf32> to vector<8x1x128xf32>
    %57 = vector.shape_cast %8 : vector<256x128xf32> to vector<1x256x128xf32>
    %58 = vector.broadcast %56 : vector<8x1x128xf32> to vector<8x256x128xf32>
    %59 = vector.broadcast %57 : vector<1x256x128xf32> to vector<8x256x128xf32>
    %60 = arith.mulf %58, %59 : vector<8x256x128xf32>
    %61 = arith.addf %55, %60 : vector<8x256x128xf32>
    %cst_22 = arith.constant 0.000000e+00 : f32
    %62 = vector.broadcast %cst_22 : f32 to vector<8x256x128xf32>
    %63 = arith.maximumf %61, %62 : vector<8x256x128xf32>
    %64 = arith.addf %41, %63 : vector<8x256x128xf32>
    %c0_23 = arith.constant 0 : index
    %c0_24 = arith.constant 0 : index
    %c0_25 = arith.constant 0 : index
    %65 = vector.load %arg4[%c0_23, %c0_24, %c0_25] : memref<8x256x128xf32, #tpu.memory_space<vmem>>, vector<8x256x128xf32>
    tpu.vector_store %arg4[%c0_23, %c0_24, %c0_25], %64 {strides = array<i32>} : memref<8x256x128xf32, #tpu.memory_space<vmem>>, vector<8x256x128xf32>,
    %c0_26 = arith.constant 0 : index
    %c0_27 = arith.constant 0 : index
    %c0_28 = arith.constant 0 : index
    %66 = vector.load %arg4[%c0_26, %c0_27, %c0_28] : memref<8x256x128xf32, #tpu.memory_space<vmem>>, vector<8x256x128xf32>
    %cst_29 = arith.constant dense<0.000000e+00> : vector<8x256xf32>
    %67 = vector.multi_reduction <add>, %66, %cst_29 [2] : vector<8x256x128xf32> to vector<8x256xf32>
    %cst_30 = arith.constant 3.906250e-03 : f32
    %68 = vector.broadcast %cst_30 : f32 to vector<8x256xf32>
    %69 = arith.mulf %67, %68 : vector<8x256xf32>
    %c0_31 = arith.constant 0 : index
    %c0_32 = arith.constant 0 : index
    %70 = vector.load %arg3[%c0_31, %c0_32] : memref<8x256xf32, #tpu.memory_space<vmem>>, vector<8x256xf32>
    tpu.vector_store %arg3[%c0_31, %c0_32], %69 {strides = array<i32>} : memref<8x256xf32, #tpu.memory_space<vmem>>, vector<8x256xf32>,
    return
  }
  func.func @transform_0(%arg0: i32) -> (i32, i32, i32) {
    %c0_i32 = arith.constant 0 : i32
    %c0_i32_0 = arith.constant 0 : i32
    %c0_i32_1 = arith.constant 0 : i32
    return %arg0, %c0_i32, %c0_i32_0 : i32, i32, i32
  }
  func.func @transform_1(%arg0: i32) -> (i32, i32) {
    %c0_i32 = arith.constant 0 : i32
    %c0_i32_0 = arith.constant 0 : i32
    %c0_i32_1 = arith.constant 0 : i32
    return %c0_i32, %c0_i32_0 : i32, i32
  }
  func.func @transform_2(%arg0: i32) -> (i32, i32) {
    %c0_i32 = arith.constant 0 : i32
    %c0_i32_0 = arith.constant 0 : i32
    return %arg0, %c0_i32 : i32, i32
  }
}

</mosaic_0001>

<llo_original>
// kernel: slowfast_forward.1
$region0: #{slowfast_forward.1}
  #allocation0 [shape = 'u32[]', space=smem, size = 0x4, offset = 0x4, fixed_abs, tag = 'smem constant byte address 0x4 - core index']
  #allocation1 [shape = 'u32[144,128]{1,0:T(1,128)}', space=vmem, size = 0x12000, scoped, tag = 'internal scratch']
  #allocation2 [shape = 'f32[8,256,128]{2,1,0:T(8,128)}', space=vmem, size = 0x100000, scoped, tag = 'scratch operand']
  %s0 = inlined_call_operand.vmem [shape: f32[8,3,256], index: 0, kind: input, shape index: {}]
  %s1 = inlined_call_operand.vmem [shape: f32[256,4], index: 1, kind: input, shape index: {}]
  %s2 = inlined_call_operand.hbm [shape: f32[8,256], index: 2, kind: output, shape index: {}]
  %s3 = sld [smem:[#allocation0]]
  $region18: #{slowfast_forward.1} parent=0
    _
  %s5 = ssub.s32 1, %s3
  %s6 = scalar_select 0, %s5, %s3
  $region1: #{slowfast_forward.1} parent=0
    #allocation3 [shape = 'u8[8192]{0}', space=vmem, size = 0x2000, scoped, tag = 'output window, operand 0, single buffered']
    #allocation4 [shape = 's32[1]{0}', space=sflag, size = 0x4, scoped, tag = 'scoped memory for slowfast_forward.1']
    %7 = vsyncpa [#allocation4], 0
    // Predicated region
    $region2: #{slowfast_forward.1} parent=1 // pred_check
      _
    $region3: #{slowfast_forward.1} parent=1 // pred_check_branch
      %9 = sbr.rel (0) target = $region5
    $region4: #{slowfast_forward.1} parent=1 // pred_region
      _
    $region5: #{slowfast_forward.1} parent=1 // pred_fallthru
      _
    // Predicated region
    $region6: #{slowfast_forward.1} parent=1 // pred_check
      _
    $region7: #{slowfast_forward.1} parent=1 // pred_check_branch
      %11 = sbr.rel (0) target = $region9
    $region8: #{slowfast_forward.1} parent=1 // pred_region
      _
    $region9: #{slowfast_forward.1} parent=1 // pred_fallthru
      _
    %v12 = vld [vmem:[%s1] sm:$0xff]
    %v13 = vld [vmem:[%s1 + $0x8] sm:$0xff]
    %v14 = vld [vmem:[%s1 + $0x10] sm:$0xff]
    %v15 = vld [vmem:[%s1 + $0x18] sm:$0xff]
    %v16 = vld [vmem:[%s1 + $0x20] sm:$0xff]
    %v17 = vld [vmem:[%s1 + $0x28] sm:$0xff]
    %v18 = vld [vmem:[%s1 + $0x30] sm:$0xff]
    %v19 = vld [vmem:[%s1 + $0x38] sm:$0xff]
    %v20 = vld [vmem:[%s1 + $0x40] sm:$0xff]
    %v21 = vld [vmem:[%s1 + $0x48] sm:$0xff]
    %v22 = vld [vmem:[%s1 + $0x50] sm:$0xff]
    %v23 = vld [vmem:[%s1 + $0x58] sm:$0xff]
    %v24 = vld [vmem:[%s1 + $0x60] sm:$0xff]
    %v25 = vld [vmem:[%s1 + $0x68] sm:$0xff]
    %v26 = vld [vmem:[%s1 + $0x70] sm:$0xff]
    %v27 = vld [vmem:[%s1 + $0x78] sm:$0xff]
    %v28 = vld [vmem:[%s1 + $0x80] sm:$0xff]
    %v29 = vld [vmem:[%s1 + $0x88] sm:$0xff]
    %v30 = vld [vmem:[%s1 + $0x90] sm:$0xff]
    %v31 = vld [vmem:[%s1 + $0x98] sm:$0xff]
    %v32 = vld [vmem:[%s1 + $0xa0] sm:$0xff]
    %v33 = vld [vmem:[%s1 + $0xa8] sm:$0xff]
    %v34 = vld [vmem:[%s1 + $0xb0] sm:$0xff]
    %v35 = vld [vmem:[%s1 + $0xb8] sm:$0xff]
    %v36 = vld [vmem:[%s1 + $0xc0] sm:$0xff]
    %v37 = vld [vmem:[%s1 + $0xc8] sm:$0xff]
    %v38 = vld [vmem:[%s1 + $0xd0] sm:$0xff]
    %v39 = vld [vmem:[%s1 + $0xd8] sm:$0xff]
    %v40 = vld [vmem:[%s1 + $0xe0] sm:$0xff]
    %v41 = vld [vmem:[%s1 + $0xe8] sm:$0xff]
    %v42 = vld [vmem:[%s1 + $0xf0] sm:$0xff]
    %v43 = vld [vmem:[%s1 + $0xf8] sm:$0xff]
    %44 = vst [vmem:[#allocation2] sm:$0xff] 0.0
    %45 = vst [vmem:[#allocation2 + $0x8] sm:$0xff] 0.0
    %46 = vst [vmem:[#allocation2 + $0x10] sm:$0xff] 0.0
    %47 = vst [vmem:[#allocation2 + $0x18] sm:$0xff] 0.0
    %48 = vst [vmem:[#allocation2 + $0x20] sm:$0xff] 0.0
    %49 = vst [vmem:[#allocation2 + $0x28] sm:$0xff] 0.0
    %50 = vst [vmem:[#allocation2 + $0x30] sm:$0xff] 0.0
    %51 = vst [vmem:[#allocation2 + $0x38] sm:$0xff] 0.0
    %52 = vst [vmem:[#allocation2 + $0x40] sm:$0xff] 0.0
    %53 = vst [vmem:[#allocation2 + $0x48] sm:$0xff] 0.0
    %54 = vst [vmem:[#allocation2 + $0x50] sm:$0xff] 0.0
    %55 = vst [vmem:[#allocation2 + $0x58] sm:$0xff] 0.0
    %56 = vst [vmem:[#allocation2 + $0x60] sm:$0xff] 0.0
    %57 = vst [vmem:[#allocation2 + $0x68] sm:$0xff] 0.0
    %58 = vst [vmem:[#allocation2 + $0x70] sm:$0xff] 0.0
    %59 = vst [vmem:[#allocation2 + $0x78] sm:$0xff] 0.0
    %60 = vst [vmem:[#allocation2 + $0x80] sm:$0xff] 0.0
    %61 = vst [vmem:[#allocation2 + $0x88] sm:$0xff] 0.0
    %62 = vst [vmem:[#allocation2 + $0x90] sm:$0xff] 0.0
    %63 = vst [vmem:[#allocation2 + $0x98] sm:$0xff] 0.0
    %64 = vst [vmem:[#allocation2 + $0xa0] sm:$0xff] 0.0
    %65 = vst [vmem:[#allocation2 + $0xa8] sm:$0xff] 0.0
    %66 = vst [vmem:[#allocation2 + $0xb0] sm:$0xff] 0.0
    %67 = vst [vmem:[#allocation2 + $0xb8] sm:$0xff] 0.0
    %68 = vst [vmem:[#allocation2 + $0xc0] sm:$0xff] 0.0
    %69 = vst [vmem:[#allocation2 + $0xc8] sm:$0xff] 0.0
    %70 = vst [vmem:[#allocation2 + $0xd0] sm:$0xff] 0.0
    %71 = vst [vmem:[#allocation2 + $0xd8] sm:$0xff] 0.0
    %72 = vst [vmem:[#allocation2 + $0xe0] sm:$0xff] 0.0
    %73 = vst [vmem:[#allocation2 + $0xe8] sm:$0xff] 0.0
    %74 = vst [vmem:[#allocation2 + $0xf0] sm:$0xff] 0.0
    %75 = vst [vmem:[#allocation2 + $0xf8] sm:$0xff] 0.0
    %76 = vst [vmem:[#allocation2 + $0x100] sm:$0xff] 0.0
    %77 = vst [vmem:[#allocation2 + $0x108] sm:$0xff] 0.0
    %78 = vst [vmem:[#allocation2 + $0x110] sm:$0xff] 0.0
    %79 = vst [vmem:[#allocation2 + $0x118] sm:$0xff] 0.0
    %80 = vst [vmem:[#allocation2 + $0x120] sm:$0xff] 0.0
    %81 = vst [vmem:[#allocation2 + $0x128] sm:$0xff] 0.0
    %82 = vst [vmem:[#allocation2 + $0x130] sm:$0xff] 0.0
    %83 = vst [vmem:[#allocation2 + $0x138] sm:$0xff] 0.0
    %84 = vst [vmem:[#allocation2 + $0x140] sm:$0xff] 0.0
    %85 = vst [vmem:[#allocation2 + $0x148] sm:$0xff] 0.0
    %86 = vst [vmem:[#allocation2 + $0x150] sm:$0xff] 0.0
    %87 = vst [vmem:[#allocation2 + $0x158] sm:$0xff] 0.0
    %88 = vst [vmem:[#allocation2 + $0x160] sm:$0xff] 0.0
    %89 = vst [vmem:[#allocation2 + $0x168] sm:$0xff] 0.0
    %90 = vst [vmem:[#allocation2 + $0x170] sm:$0xff] 0.0
    %91 = vst [vmem:[#allocation2 + $0x178] sm:$0xff] 0.0
    %92 = vst [vmem:[#allocation2 + $0x180] sm:$0xff] 0.0
    %93 = vst [vmem:[#allocation2 + $0x188] sm:$0xff] 0.0
    %94 = vst [vmem:[#allocation2 + $0x190] sm:$0xff] 0.0
    %95 = vst [vmem:[#allocation2 + $0x198] sm:$0xff] 0.0
    %96 = vst [vmem:[#allocation2 + $0x1a0] sm:$0xff] 0.0
    %97 = vst [vmem:[#allocation2 + $0x1a8] sm:$0xff] 0.0
    %98 = vst [vmem:[#allocation2 + $0x1b0] sm:$0xff] 0.0
    %99 = vst [vmem:[#allocation2 + $0x1b8] sm:$0xff] 0.0
    %100 = vst [vmem:[#allocation2 + $0x1c0] sm:$0xff] 0.0
    %101 = vst [vmem:[#allocation2 + $0x1c8] sm:$0xff] 0.0
    %102 = vst [vmem:[#allocation2 + $0x1d0] sm:$0xff] 0.0
    %103 = vst [vmem:[#allocation2 + $0x1d8] sm:$0xff] 0.0
    %104 = vst [vmem:[#allocation2 + $0x1e0] sm:$0xff] 0.0
    %105 = vst [vmem:[#allocation2 + $0x1e8] sm:$0xff] 0.0
    %106 = vst [vmem:[#allocation2 + $0x1f0] sm:$0xff] 0.0
    %107 = vst [vmem:[#allocation2 + $0x1f8] sm:$0xff] 0.0
    %108 = vst [vmem:[#allocation2 + $0x200] sm:$0xff] 0.0
    %109 = vst [vmem:[#allocation2 + $0x208] sm:$0xff] 0.0
    %110 = vst [vmem:[#allocation2 + $0x210] sm:$0xff] 0.0
    %111 = vst [vmem:[#allocation2 + $0x218] sm:$0xff] 0.0
    %112 = vst [vmem:[#allocation2 + $0x220] sm:$0xff] 0.0
    %113 = vst [vmem:[#allocation2 + $0x228] sm:$0xff] 0.0
    %114 = vst [vmem:[#allocation2 + $0x230] sm:$0xff] 0.0
    %115 = vst [vmem:[#allocation2 + $0x238] sm:$0xff] 0.0
    %116 = vst [vmem:[#allocation2 + $0x240] sm:$0xff] 0.0
    %117 = vst [vmem:[#allocation2 + $0x248] sm:$0xff] 0.0
    %118 = vst [vmem:[#allocation2 + $0x250] sm:$0xff] 0.0
    %119 = vst [vmem:[#allocation2 + $0x258] sm:$0xff] 0.0
    %120 = vst [vmem:[#allocation2 + $0x260] sm:$0xff] 0.0
    %121 = vst [vmem:[#allocation2 + $0x268] sm:$0xff] 0.0
    %122 = vst [vmem:[#allocation2 + $0x270] sm:$0xff] 0.0
    %123 = vst [vmem:[#allocation2 + $0x278] sm:$0xff] 0.0
    %124 = vst [vmem:[#allocation2 + $0x280] sm:$0xff] 0.0
    %125 = vst [vmem:[#allocation2 + $0x288] sm:$0xff] 0.0
    %126 = vst [vmem:[#allocation2 + $0x290] sm:$0xff] 0.0
    %127 = vst [vmem:[#allocation2 + $0x298] sm:$0xff] 0.0
    %128 = vst [vmem:[#allocation2 + $0x2a0] sm:$0xff] 0.0
    %129 = vst [vmem:[#allocation2 + $0x2a8] sm:$0xff] 0.0
    %130 = vst [vmem:[#allocation2 + $0x2b0] sm:$0xff] 0.0
    %131 = vst [vmem:[#allocation2 + $0x2b8] sm:$0xff] 0.0
    %132 = vst [vmem:[#allocation2 + $0x2c0] sm:$0xff] 0.0
    %133 = vst [vmem:[#allocation2 + $0x2c8] sm:$0xff] 0.0
    %134 = vst [vmem:[#allocation2 + $0x2d0] sm:$0xff] 0.0
    %135 = vst [vmem:[#allocation2 + $0x2d8] sm:$0xff] 0.0
    %136 = vst [vmem:[#allocation2 + $0x2e0] sm:$0xff] 0.0
    %137 = vst [vmem:[#allocation2 + $0x2e8] sm:$0xff] 0.0
    %138 = vst [vmem:[#allocation2 + $0x2f0] sm:$0xff] 0.0
    %139 = vst [vmem:[#allocation2 + $0x2f8] sm:$0xff] 0.0
    %140 = vst [vmem:[#allocation2 + $0x300] sm:$0xff] 0.0
    %141 = vst [vmem:[#allocation2 + $0x308] sm:$0xff] 0.0
    %142 = vst [vmem:[#allocation2 + $0x310] sm:$0xff] 0.0
    %143 = vst [vmem:[#allocation2 + $0x318] sm:$0xff] 0.0
    %144 = vst [vmem:[#allocation2 + $0x320] sm:$0xff] 0.0
    %145 = vst [vmem:[#allocation2 + $0x328] sm:$0xff] 0.0
    %146 = vst [vmem:[#allocation2 + $0x330] sm:$0xff] 0.0
    %147 = vst [vmem:[#allocation2 + $0x338] sm:$0xff] 0.0
    %148 = vst [vmem:[#allocation2 + $0x340] sm:$0xff] 0.0
    %149 = vst [vmem:[#allocation2 + $0x348] sm:$0xff] 0.0
    %150 = vst [vmem:[#allocation2 + $0x350] sm:$0xff] 0.0
    %151 = vst [vmem:[#allocation2 + $0x358] sm:$0xff] 0.0
    %152 = vst [vmem:[#allocation2 + $0x360] sm:$0xff] 0.0
    %153 = vst [vmem:[#allocation2 + $0x368] sm:$0xff] 0.0
    %154 = vst [vmem:[#allocation2 + $0x370] sm:$0xff] 0.0
    %155 = vst [vmem:[#allocation2 + $0x378] sm:$0xff] 0.0
    %156 = vst [vmem:[#allocation2 + $0x380] sm:$0xff] 0.0
    %157 = vst [vmem:[#allocation2 + $0x388] sm:$0xff] 0.0
    %158 = vst [vmem:[#allocation2 + $0x390] sm:$0xff] 0.0
    %159 = vst [vmem:[#allocation2 + $0x398] sm:$0xff] 0.0
    %160 = vst [vmem:[#allocation2 + $0x3a0] sm:$0xff] 0.0
    %161 = vst [vmem:[#allocation2 + $0x3a8] sm:$0xff] 0.0
    %162 = vst [vmem:[#allocation2 + $0x3b0] sm:$0xff] 0.0
    %163 = vst [vmem:[#allocation2 + $0x3b8] sm:$0xff] 0.0
    %164 = vst [vmem:[#allocation2 + $0x3c0] sm:$0xff] 0.0
    %165 = vst [vmem:[#allocation2 + $0x3c8] sm:$0xff] 0.0
    %166 = vst [vmem:[#allocation2 + $0x3d0] sm:$0xff] 0.0
    %167 = vst [vmem:[#allocation2 + $0x3d8] sm:$0xff] 0.0
    %168 = vst [vmem:[#allocation2 + $0x3e0] sm:$0xff] 0.0
    %169 = vst [vmem:[#allocation2 + $0x3e8] sm:$0xff] 0.0
    %170 = vst [vmem:[#allocation2 + $0x3f0] sm:$0xff] 0.0
    %171 = vst [vmem:[#allocation2 + $0x3f8] sm:$0xff] 0.0
    %172 = vst [vmem:[#allocation2 + $0x400] sm:$0xff] 0.0
    %173 = vst [vmem:[#allocation2 + $0x408] sm:$0xff] 0.0
    %174 = vst [vmem:[#allocation2 + $0x410] sm:$0xff] 0.0
    %175 = vst [vmem:[#allocation2 + $0x418] sm:$0xff] 0.0
    %176 = vst [vmem:[#allocation2 + $0x420] sm:$0xff] 0.0
    %177 = vst [vmem:[#allocation2 + $0x428] sm:$0xff] 0.0
    %178 = vst [vmem:[#allocation2 + $0x430] sm:$0xff] 0.0
    %179 = vst [vmem:[#allocation2 + $0x438] sm:$0xff] 0.0
    %180 = vst [vmem:[#allocation2 + $0x440] sm:$0xff] 0.0
    %181 = vst [vmem:[#allocation2 + $0x448] sm:$0xff] 0.0
    %182 = vst [vmem:[#allocation2 + $0x450] sm:$0xff] 0.0
    %183 = vst [vmem:[#allocation2 + $0x458] sm:$0xff] 0.0
    %184 = vst [vmem:[#allocation2 + $0x460] sm:$0xff] 0.0
    %185 = vst [vmem:[#allocation2 + $0x468] sm:$0xff] 0.0
    %186 = vst [vmem:[#allocation2 + $0x470] sm:$0xff] 0.0
    %187 = vst [vmem:[#allocation2 + $0x478] sm:$0xff] 0.0
    %188 = vst [vmem:[#allocation2 + $0x480] sm:$0xff] 0.0
    %189 = vst [vmem:[#allocation2 + $0x488] sm:$0xff] 0.0
    %190 = vst [vmem:[#allocation2 + $0x490] sm:$0xff] 0.0
    %191 = vst [vmem:[#allocation2 + $0x498] sm:$0xff] 0.0
    %192 = vst [vmem:[#allocation2 + $0x4a0] sm:$0xff] 0.0
    %193 = vst [vmem:[#allocation2 + $0x4a8] sm:$0xff] 0.0
    %194 = vst [vmem:[#allocation2 + $0x4b0] sm:$0xff] 0.0
    %195 = vst [vmem:[#allocation2 + $0x4b8] sm:$0xff] 0.0
    %196 = vst [vmem:[#allocation2 + $0x4c0] sm:$0xff] 0.0
    %197 = vst [vmem:[#allocation2 + $0x4c8] sm:$0xff] 0.0
    %198 = vst [vmem:[#allocation2 + $0x4d0] sm:$0xff] 0.0
    %199 = vst [vmem:[#allocation2 + $0x4d8] sm:$0xff] 0.0
    %200 = vst [vmem:[#allocation2 + $0x4e0] sm:$0xff] 0.0
    %201 = vst [vmem:[#allocation2 + $0x4e8] sm:$0xff] 0.0
    %202 = vst [vmem:[#allocation2 + $0x4f0] sm:$0xff] 0.0
    %203 = vst [vmem:[#allocation2 + $0x4f8] sm:$0xff] 0.0
    %204 = vst [vmem:[#allocation2 + $0x500] sm:$0xff] 0.0
    %205 = vst [vmem:[#allocation2 + $0x508] sm:$0xff] 0.0
    %206 = vst [vmem:[#allocation2 + $0x510] sm:$0xff] 0.0
    %207 = vst [vmem:[#allocation2 + $0x518] sm:$0xff] 0.0
    %208 = vst [vmem:[#allocation2 + $0x520] sm:$0xff] 0.0
    %209 = vst [vmem:[#allocation2 + $0x528] sm:$0xff] 0.0
    %210 = vst [vmem:[#allocation2 + $0x530] sm:$0xff] 0.0
    %211 = vst [vmem:[#allocation2 + $0x538] sm:$0xff] 0.0
    %212 = vst [vmem:[#allocation2 + $0x540] sm:$0xff] 0.0
    %213 = vst [vmem:[#allocation2 + $0x548] sm:$0xff] 0.0
    %214 = vst [vmem:[#allocation2 + $0x550] sm:$0xff] 0.0
    %215 = vst [vmem:[#allocation2 + $0x558] sm:$0xff] 0.0
    %216 = vst [vmem:[#allocation2 + $0x560] sm:$0xff] 0.0
    %217 = vst [vmem:[#allocation2 + $0x568] sm:$0xff] 0.0
    %218 = vst [vmem:[#allocation2 + $0x570] sm:$0xff] 0.0
    %219 = vst [vmem:[#allocation2 + $0x578] sm:$0xff] 0.0
    %220 = vst [vmem:[#allocation2 + $0x580] sm:$0xff] 0.0
    %221 = vst [vmem:[#allocation2 + $0x588] sm:$0xff] 0.0
    %222 = vst [vmem:[#allocation2 + $0x590] sm:$0xff] 0.0
    %223 = vst [vmem:[#allocation2 + $0x598] sm:$0xff] 0.0
    %224 = vst [vmem:[#allocation2 + $0x5a0] sm:$0xff] 0.0
    %225 = vst [vmem:[#allocation2 + $0x5a8] sm:$0xff] 0.0
    %226 = vst [vmem:[#allocation2 + $0x5b0] sm:$0xff] 0.0
    %227 = vst [vmem:[#allocation2 + $0x5b8] sm:$0xff] 0.0
    %228 = vst [vmem:[#allocation2 + $0x5c0] sm:$0xff] 0.0
    %229 = vst [vmem:[#allocation2 + $0x5c8] sm:$0xff] 0.0
    %230 = vst [vmem:[#allocation2 + $0x5d0] sm:$0xff] 0.0
    %231 = vst [vmem:[#allocation2 + $0x5d8] sm:$0xff] 0.0
    %232 = vst [vmem:[#allocation2 + $0x5e0] sm:$0xff] 0.0
    %233 = vst [vmem:[#allocation2 + $0x5e8] sm:$0xff] 0.0
    %234 = vst [vmem:[#allocation2 + $0x5f0] sm:$0xff] 0.0
    %235 = vst [vmem:[#allocation2 + $0x5f8] sm:$0xff] 0.0
    %236 = vst [vmem:[#allocation2 + $0x600] sm:$0xff] 0.0
    %237 = vst [vmem:[#allocation2 + $0x608] sm:$0xff] 0.0
    %238 = vst [vmem:[#allocation2 + $0x610] sm:$0xff] 0.0
    %239 = vst [vmem:[#allocation2 + $0x618] sm:$0xff] 0.0
    %240 = vst [vmem:[#allocation2 + $0x620] sm:$0xff] 0.0
    %241 = vst [vmem:[#allocation2 + $0x628] sm:$0xff] 0.0
    %242 = vst [vmem:[#allocation2 + $0x630] sm:$0xff] 0.0
    %243 = vst [vmem:[#allocation2 + $0x638] sm:$0xff] 0.0
    %244 = vst [vmem:[#allocation2 + $0x640] sm:$0xff] 0.0
    %245 = vst [vmem:[#allocation2 + $0x648] sm:$0xff] 0.0
    %246 = vst [vmem:[#allocation2 + $0x650] sm:$0xff] 0.0
    %247 = vst [vmem:[#allocation2 + $0x658] sm:$0xff] 0.0
    %248 = vst [vmem:[#allocation2 + $0x660] sm:$0xff] 0.0
    %249 = vst [vmem:[#allocation2 + $0x668] sm:$0xff] 0.0
    %250 = vst [vmem:[#allocation2 + $0x670] sm:$0xff] 0.0
    %251 = vst [vmem:[#allocation2 + $0x678] sm:$0xff] 0.0
    %252 = vst [vmem:[#allocation2 + $0x680] sm:$0xff] 0.0
    %253 = vst [vmem:[#allocation2 + $0x688] sm:$0xff] 0.0
    %254 = vst [vmem:[#allocation2 + $0x690] sm:$0xff] 0.0
    %255 = vst [vmem:[#allocation2 + $0x698] sm:$0xff] 0.0
    %256 = vst [vmem:[#allocation2 + $0x6a0] sm:$0xff] 0.0
    %257 = vst [vmem:[#allocation2 + $0x6a8] sm:$0xff] 0.0
    %258 = vst [vmem:[#allocation2 + $0x6b0] sm:$0xff] 0.0
    %259 = vst [vmem:[#allocation2 + $0x6b8] sm:$0xff] 0.0
    %260 = vst [vmem:[#allocation2 + $0x6c0] sm:$0xff] 0.0
    %261 = vst [vmem:[#allocation2 + $0x6c8] sm:$0xff] 0.0
    %262 = vst [vmem:[#allocation2 + $0x6d0] sm:$0xff] 0.0
    %263 = vst [vmem:[#allocation2 + $0x6d8] sm:$0xff] 0.0
    %264 = vst [vmem:[#allocation2 + $0x6e0] sm:$0xff] 0.0
    %265 = vst [vmem:[#allocation2 + $0x6e8] sm:$0xff] 0.0
    %266 = vst [vmem:[#allocation2 + $0x6f0] sm:$0xff] 0.0
    %267 = vst [vmem:[#allocation2 + $0x6f8] sm:$0xff] 0.0
    %268 = vst [vmem:[#allocation2 + $0x700] sm:$0xff] 0.0
    %269 = vst [vmem:[#allocation2 + $0x708] sm:$0xff] 0.0
    %270 = vst [vmem:[#allocation2 + $0x710] sm:$0xff] 0.0
    %271 = vst [vmem:[#allocation2 + $0x718] sm:$0xff] 0.0
    %272 = vst [vmem:[#allocation2 + $0x720] sm:$0xff] 0.0
    %273 = vst [vmem:[#allocation2 + $0x728] sm:$0xff] 0.0
    %274 = vst [vmem:[#allocation2 + $0x730] sm:$0xff] 0.0
    %275 = vst [vmem:[#allocation2 + $0x738] sm:$0xff] 0.0
    %276 = vst [vmem:[#allocation2 + $0x740] sm:$0xff] 0.0
    %277 = vst [vmem:[#allocation2 + $0x748] sm:$0xff] 0.0
    %278 = vst [vmem:[#allocation2 + $0x750] sm:$0xff] 0.0
    %279 = vst [vmem:[#allocation2 + $0x758] sm:$0xff] 0.0
    %280 = vst [vmem:[#allocation2 + $0x760] sm:$0xff] 0.0
    %281 = vst [vmem:[#allocation2 + $0x768] sm:$0xff] 0.0
    %282 = vst [vmem:[#allocation2 + $0x770] sm:$0xff] 0.0
    %283 = vst [vmem:[#allocation2 + $0x778] sm:$0xff] 0.0
    %284 = vst [vmem:[#allocation2 + $0x780] sm:$0xff] 0.0
    %285 = vst [vmem:[#allocation2 + $0x788] sm:$0xff] 0.0
    %286 = vst [vmem:[#allocation2 + $0x790] sm:$0xff] 0.0
    %287 = vst [vmem:[#allocation2 + $0x798] sm:$0xff] 0.0
    %288 = vst [vmem:[#allocation2 + $0x7a0] sm:$0xff] 0.0
    %289 = vst [vmem:[#allocation2 + $0x7a8] sm:$0xff] 0.0
    %290 = vst [vmem:[#allocation2 + $0x7b0] sm:$0xff] 0.0
    %291 = vst [vmem:[#allocation2 + $0x7b8] sm:$0xff] 0.0
    %292 = vst [vmem:[#allocation2 + $0x7c0] sm:$0xff] 0.0
    %293 = vst [vmem:[#allocation2 + $0x7c8] sm:$0xff] 0.0
    %294 = vst [vmem:[#allocation2 + $0x7d0] sm:$0xff] 0.0
    %295 = vst [vmem:[#allocation2 + $0x7d8] sm:$0xff] 0.0
    %296 = vst [vmem:[#allocation2 + $0x7e0] sm:$0xff] 0.0
    %297 = vst [vmem:[#allocation2 + $0x7e8] sm:$0xff] 0.0
    %298 = vst [vmem:[#allocation2 + $0x7f0] sm:$0xff] 0.0
    %299 = vst [vmem:[#allocation2 + $0x7f8] sm:$0xff] 0.0
    %v300 = vld [vmem:[%s0] sm:$0x7]
    %v301 = vld [vmem:[%s0 + $0x8] sm:$0x7]
    %v302 = vld [vmem:[%s0 + $0x10] sm:$0x7]
    %v303 = vld [vmem:[%s0 + $0x18] sm:$0x7]
    %v304 = vld [vmem:[%s0 + $0x20] sm:$0x7]
    %v305 = vld [vmem:[%s0 + $0x28] sm:$0x7]
    %v306 = vld [vmem:[%s0 + $0x30] sm:$0x7]
    %v307 = vld [vmem:[%s0 + $0x38] sm:$0x7]
    %v308 = vld [vmem:[#allocation2] sm:$0xff]
    %v309 = vld [vmem:[#allocation2 + $0x8] sm:$0xff]
    %v310 = vld [vmem:[#allocation2 + $0x10] sm:$0xff]
    %v311 = vld [vmem:[#allocation2 + $0x18] sm:$0xff]
    %v312 = vld [vmem:[#allocation2 + $0x20] sm:$0xff]
    %v313 = vld [vmem:[#allocation2 + $0x28] sm:$0xff]
    %v314 = vld [vmem:[#allocation2 + $0x30] sm:$0xff]
    %v315 = vld [vmem:[#allocation2 + $0x38] sm:$0xff]
    %v316 = vld [vmem:[#allocation2 + $0x40] sm:$0xff]
    %v317 = vld [vmem:[#allocation2 + $0x48] sm:$0xff]
    %v318 = vld [vmem:[#allocation2 + $0x50] sm:$0xff]
    %v319 = vld [vmem:[#allocation2 + $0x58] sm:$0xff]
    %v320 = vld [vmem:[#allocation2 + $0x60] sm:$0xff]
    %v321 = vld [vmem:[#allocation2 + $0x68] sm:$0xff]
    %v322 = vld [vmem:[#allocation2 + $0x70] sm:$0xff]
    %v323 = vld [vmem:[#allocation2 + $0x78] sm:$0xff]
    %v324 = vld [vmem:[#allocation2 + $0x80] sm:$0xff]
    %v325 = vld [vmem:[#allocation2 + $0x88] sm:$0xff]
    %v326 = vld [vmem:[#allocation2 + $0x90] sm:$0xff]
    %v327 = vld [vmem:[#allocation2 + $0x98] sm:$0xff]
    %v328 = vld [vmem:[#allocation2 + $0xa0] sm:$0xff]
    %v329 = vld [vmem:[#allocation2 + $0xa8] sm:$0xff]
    %v330 = vld [vmem:[#allocation2 + $0xb0] sm:$0xff]
    %v331 = vld [vmem:[#allocation2 + $0xb8] sm:$0xff]
    %v332 = vld [vmem:[#allocation2 + $0xc0] sm:$0xff]
    %v333 = vld [vmem:[#allocation2 + $0xc8] sm:$0xff]
    %v334 = vld [vmem:[#allocation2 + $0xd0] sm:$0xff]
    %v335 = vld [vmem:[#allocation2 + $0xd8] sm:$0xff]
    %v336 = vld [vmem:[#allocation2 + $0xe0] sm:$0xff]
    %v337 = vld [vmem:[#allocation2 + $0xe8] sm:$0xff]
    %v338 = vld [vmem:[#allocation2 + $0xf0] sm:$0xff]
    %v339 = vld [vmem:[#allocation2 + $0xf8] sm:$0xff]
    %v340 = vld [vmem:[#allocation2 + $0x100] sm:$0xff]
    %v341 = vld [vmem:[#allocation2 + $0x108] sm:$0xff]
    %v342 = vld [vmem:[#allocation2 + $0x110] sm:$0xff]
    %v343 = vld [vmem:[#allocation2 + $0x118] sm:$0xff]
    %v344 = vld [vmem:[#allocation2 + $0x120] sm:$0xff]
    %v345 = vld [vmem:[#allocation2 + $0x128] sm:$0xff]
    %v346 = vld [vmem:[#allocation2 + $0x130] sm:$0xff]
    %v347 = vld [vmem:[#allocation2 + $0x138] sm:$0xff]
    %v348 = vld [vmem:[#allocation2 + $0x140] sm:$0xff]
    %v349 = vld [vmem:[#allocation2 + $0x148] sm:$0xff]
    %v350 = vld [vmem:[#allocation2 + $0x150] sm:$0xff]
    %v351 = vld [vmem:[#allocation2 + $0x158] sm:$0xff]
    %v352 = vld [vmem:[#allocation2 + $0x160] sm:$0xff]
    %v353 = vld [vmem:[#allocation2 + $0x168] sm:$0xff]
    %v354 = vld [vmem:[#allocation2 + $0x170] sm:$0xff]
    %v355 = vld [vmem:[#allocation2 + $0x178] sm:$0xff]
    %v356 = vld [vmem:[#allocation2 + $0x180] sm:$0xff]
    %v357 = vld [vmem:[#allocation2 + $0x188] sm:$0xff]
    %v358 = vld [vmem:[#allocation2 + $0x190] sm:$0xff]
    %v359 = vld [vmem:[#allocation2 + $0x198] sm:$0xff]
    %v360 = vld [vmem:[#allocation2 + $0x1a0] sm:$0xff]
    %v361 = vld [vmem:[#allocation2 + $0x1a8] sm:$0xff]
    %v362 = vld [vmem:[#allocation2 + $0x1b0] sm:$0xff]
    %v363 = vld [vmem:[#allocation2 + $0x1b8] sm:$0xff]
    %v364 = vld [vmem:[#allocation2 + $0x1c0] sm:$0xff]
    %v365 = vld [vmem:[#allocation2 + $0x1c8] sm:$0xff]
    %v366 = vld [vmem:[#allocation2 + $0x1d0] sm:$0xff]
    %v367 = vld [vmem:[#allocation2 + $0x1d8] sm:$0xff]
    %v368 = vld [vmem:[#allocation2 + $0x1e0] sm:$0xff]
    %v369 = vld [vmem:[#allocation2 + $0x1e8] sm:$0xff]
    %v370 = vld [vmem:[#allocation2 + $0x1f0] sm:$0xff]
    %v371 = vld [vmem:[#allocation2 + $0x1f8] sm:$0xff]
    %v372 = vld [vmem:[#allocation2 + $0x200] sm:$0xff]
    %v373 = vld [vmem:[#allocation2 + $0x208] sm:$0xff]
    %v374 = vld [vmem:[#allocation2 + $0x210] sm:$0xff]
    %v375 = vld [vmem:[#allocation2 + $0x218] sm:$0xff]
    %v376 = vld [vmem:[#allocation2 + $0x220] sm:$0xff]
    %v377 = vld [vmem:[#allocation2 + $0x228] sm:$0xff]
    %v378 = vld [vmem:[#allocation2 + $0x230] sm:$0xff]
    %v379 = vld [vmem:[#allocation2 + $0x238] sm:$0xff]
    %v380 = vld [vmem:[#allocation2 + $0x240] sm:$0xff]
    %v381 = vld [vmem:[#allocation2 + $0x248] sm:$0xff]
    %v382 = vld [vmem:[#allocation2 + $0x250] sm:$0xff]
    %v383 = vld [vmem:[#allocation2 + $0x258] sm:$0xff]
    %v384 = vld [vmem:[#allocation2 + $0x260] sm:$0xff]
    %v385 = vld [vmem:[#allocation2 + $0x268] sm:$0xff]
    %v386 = vld [vmem:[#allocation2 + $0x270] sm:$0xff]
    %v387 = vld [vmem:[#allocation2 + $0x278] sm:$0xff]
    %v388 = vld [vmem:[#allocation2 + $0x280] sm:$0xff]
    %v389 = vld [vmem:[#allocation2 + $0x288] sm:$0xff]
    %v390 = vld [vmem:[#allocation2 + $0x290] sm:$0xff]
    %v391 = vld [vmem:[#allocation2 + $0x298] sm:$0xff]
    %v392 = vld [vmem:[#allocation2 + $0x2a0] sm:$0xff]
    %v393 = vld [vmem:[#allocation2 + $0x2a8] sm:$0xff]
    %v394 = vld [vmem:[#allocation2 + $0x2b0] sm:$0xff]
    %v395 = vld [vmem:[#allocation2 + $0x2b8] sm:$0xff]
    %v396 = vld [vmem:[#allocation2 + $0x2c0] sm:$0xff]
    %v397 = vld [vmem:[#allocation2 + $0x2c8] sm:$0xff]
    %v398 = vld [vmem:[#allocation2 + $0x2d0] sm:$0xff]
    %v399 = vld [vmem:[#allocation2 + $0x2d8] sm:$0xff]
    %v400 = vld [vmem:[#allocation2 + $0x2e0] sm:$0xff]
    %v401 = vld [vmem:[#allocation2 + $0x2e8] sm:$0xff]
    %v402 = vld [vmem:[#allocation2 + $0x2f0] sm:$0xff]
    %v403 = vld [vmem:[#allocation2 + $0x2f8] sm:$0xff]
    %v404 = vld [vmem:[#allocation2 + $0x300] sm:$0xff]
    %v405 = vld [vmem:[#allocation2 + $0x308] sm:$0xff]
    %v406 = vld [vmem:[#allocation2 + $0x310] sm:$0xff]
    %v407 = vld [vmem:[#allocation2 + $0x318] sm:$0xff]
    %v408 = vld [vmem:[#allocation2 + $0x320] sm:$0xff]
    %v409 = vld [vmem:[#allocation2 + $0x328] sm:$0xff]
    %v410 = vld [vmem:[#allocation2 + $0x330] sm:$0xff]
    %v411 = vld [vmem:[#allocation2 + $0x338] sm:$0xff]
    %v412 = vld [vmem:[#allocation2 + $0x340] sm:$0xff]
    %v413 = vld [vmem:[#allocation2 + $0x348] sm:$0xff]
    %v414 = vld [vmem:[#allocation2 + $0x350] sm:$0xff]
    %v415 = vld [vmem:[#allocation2 + $0x358] sm:$0xff]
    %v416 = vld [vmem:[#allocation2 + $0x360] sm:$0xff]
    %v417 = vld [vmem:[#allocation2 + $0x368] sm:$0xff]
    %v418 = vld [vmem:[#allocation2 + $0x370] sm:$0xff]
    %v419 = vld [vmem:[#allocation2 + $0x378] sm:$0xff]
    %v420 = vld [vmem:[#allocation2 + $0x380] sm:$0xff]
    %v421 = vld [vmem:[#allocation2 + $0x388] sm:$0xff]
    %v422 = vld [vmem:[#allocation2 + $0x390] sm:$0xff]
    %v423 = vld [vmem:[#allocation2 + $0x398] sm:$0xff]
    %v424 = vld [vmem:[#allocation2 + $0x3a0] sm:$0xff]
    %v425 = vld [vmem:[#allocation2 + $0x3a8] sm:$0xff]
    %v426 = vld [vmem:[#allocation2 + $0x3b0] sm:$0xff]
    %v427 = vld [vmem:[#allocation2 + $0x3b8] sm:$0xff]
    %v428 = vld [vmem:[#allocation2 + $0x3c0] sm:$0xff]
    %v429 = vld [vmem:[#allocation2 + $0x3c8] sm:$0xff]
    %v430 = vld [vmem:[#allocation2 + $0x3d0] sm:$0xff]
    %v431 = vld [vmem:[#allocation2 + $0x3d8] sm:$0xff]
    %v432 = vld [vmem:[#allocation2 + $0x3e0] sm:$0xff]
    %v433 = vld [vmem:[#allocation2 + $0x3e8] sm:$0xff]
    %v434 = vld [vmem:[#allocation2 + $0x3f0] sm:$0xff]
    %v435 = vld [vmem:[#allocation2 + $0x3f8] sm:$0xff]
    %v436 = vld [vmem:[#allocation2 + $0x400] sm:$0xff]
    %v437 = vld [vmem:[#allocation2 + $0x408] sm:$0xff]
    %v438 = vld [vmem:[#allocation2 + $0x410] sm:$0xff]
    %v439 = vld [vmem:[#allocation2 + $0x418] sm:$0xff]
    %v440 = vld [vmem:[#allocation2 + $0x420] sm:$0xff]
    %v441 = vld [vmem:[#allocation2 + $0x428] sm:$0xff]
    %v442 = vld [vmem:[#allocation2 + $0x430] sm:$0xff]
    %v443 = vld [vmem:[#allocation2 + $0x438] sm:$0xff]
    %v444 = vld [vmem:[#allocation2 + $0x440] sm:$0xff]
    %v445 = vld [vmem:[#allocation2 + $0x448] sm:$0xff]
    %v446 = vld [vmem:[#allocation2 + $0x450] sm:$0xff]
    %v447 = vld [vmem:[#allocation2 + $0x458] sm:$0xff]
    %v448 = vld [vmem:[#allocation2 + $0x460] sm:$0xff]
    %v449 = vld [vmem:[#allocation2 + $0x468] sm:$0xff]
    %v450 = vld [vmem:[#allocation2 + $0x470] sm:$0xff]
    %v451 = vld [vmem:[#allocation2 + $0x478] sm:$0xff]
    %v452 = vld [vmem:[#allocation2 + $0x480] sm:$0xff]
    %v453 = vld [vmem:[#allocation2 + $0x488] sm:$0xff]
    %v454 = vld [vmem:[#allocation2 + $0x490] sm:$0xff]
    %v455 = vld [vmem:[#allocation2 + $0x498] sm:$0xff]
    %v456 = vld [vmem:[#allocation2 + $0x4a0] sm:$0xff]
    %v457 = vld [vmem:[#allocation2 + $0x4a8] sm:$0xff]
    %v458 = vld [vmem:[#allocation2 + $0x4b0] sm:$0xff]
    %v459 = vld [vmem:[#allocation2 + $0x4b8] sm:$0xff]
    %v460 = vld [vmem:[#allocation2 + $0x4c0] sm:$0xff]
    %v461 = vld [vmem:[#allocation2 + $0x4c8] sm:$0xff]
    %v462 = vld [vmem:[#allocation2 + $0x4d0] sm:$0xff]
    %v463 = vld [vmem:[#allocation2 + $0x4d8] sm:$0xff]
    %v464 = vld [vmem:[#allocation2 + $0x4e0] sm:$0xff]
    %v465 = vld [vmem:[#allocation2 + $0x4e8] sm:$0xff]
    %v466 = vld [vmem:[#allocation2 + $0x4f0] sm:$0xff]
    %v467 = vld [vmem:[#allocation2 + $0x4f8] sm:$0xff]
    %v468 = vld [vmem:[#allocation2 + $0x500] sm:$0xff]
    %v469 = vld [vmem:[#allocation2 + $0x508] sm:$0xff]
    %v470 = vld [vmem:[#allocation2 + $0x510] sm:$0xff]
    %v471 = vld [vmem:[#allocation2 + $0x518] sm:$0xff]
    %v472 = vld [vmem:[#allocation2 + $0x520] sm:$0xff]
    %v473 = vld [vmem:[#allocation2 + $0x528] sm:$0xff]
    %v474 = vld [vmem:[#allocation2 + $0x530] sm:$0xff]
    %v475 = vld [vmem:[#allocation2 + $0x538] sm:$0xff]
    %v476 = vld [vmem:[#allocation2 + $0x540] sm:$0xff]
    %v477 = vld [vmem:[#allocation2 + $0x548] sm:$0xff]
    %v478 = vld [vmem:[#allocation2 + $0x550] sm:$0xff]
    %v479 = vld [vmem:[#allocation2 + $0x558] sm:$0xff]
    %v480 = vld [vmem:[#allocation2 + $0x560] sm:$0xff]
    %v481 = vld [vmem:[#allocation2 + $0x568] sm:$0xff]
    %v482 = vld [vmem:[#allocation2 + $0x570] sm:$0xff]
    %v483 = vld [vmem:[#allocation2 + $0x578] sm:$0xff]
    %v484 = vld [vmem:[#allocation2 + $0x580] sm:$0xff]
    %v485 = vld [vmem:[#allocation2 + $0x588] sm:$0xff]
    %v486 = vld [vmem:[#allocation2 + $0x590] sm:$0xff]
    %v487 = vld [vmem:[#allocation2 + $0x598] sm:$0xff]
    %v488 = vld [vmem:[#allocation2 + $0x5a0] sm:$0xff]
    %v489 = vld [vmem:[#allocation2 + $0x5a8] sm:$0xff]
    %v490 = vld [vmem:[#allocation2 + $0x5b0] sm:$0xff]
    %v491 = vld [vmem:[#allocation2 + $0x5b8] sm:$0xff]
    %v492 = vld [vmem:[#allocation2 + $0x5c0] sm:$0xff]
    %v493 = vld [vmem:[#allocation2 + $0x5c8] sm:$0xff]
    %v494 = vld [vmem:[#allocation2 + $0x5d0] sm:$0xff]
    %v495 = vld [vmem:[#allocation2 + $0x5d8] sm:$0xff]
    %v496 = vld [vmem:[#allocation2 + $0x5e0] sm:$0xff]
    %v497 = vld [vmem:[#allocation2 + $0x5e8] sm:$0xff]
    %v498 = vld [vmem:[#allocation2 + $0x5f0] sm:$0xff]
    %v499 = vld [vmem:[#allocation2 + $0x5f8] sm:$0xff]
    %v500 = vld [vmem:[#allocation2 + $0x600] sm:$0xff]
    %v501 = vld [vmem:[#allocation2 + $0x608] sm:$0xff]
    %v502 = vld [vmem:[#allocation2 + $0x610] sm:$0xff]
    %v503 = vld [vmem:[#allocation2 + $0x618] sm:$0xff]
    %v504 = vld [vmem:[#allocation2 + $0x620] sm:$0xff]
    %v505 = vld [vmem:[#allocation2 + $0x628] sm:$0xff]
    %v506 = vld [vmem:[#allocation2 + $0x630] sm:$0xff]
    %v507 = vld [vmem:[#allocation2 + $0x638] sm:$0xff]
    %v508 = vld [vmem:[#allocation2 + $0x640] sm:$0xff]
    %v509 = vld [vmem:[#allocation2 + $0x648] sm:$0xff]
    %v510 = vld [vmem:[#allocation2 + $0x650] sm:$0xff]
    %v511 = vld [vmem:[#allocation2 + $0x658] sm:$0xff]
    %v512 = vld [vmem:[#allocation2 + $0x660] sm:$0xff]
    %v513 = vld [vmem:[#allocation2 + $0x668] sm:$0xff]
    %v514 = vld [vmem:[#allocation2 + $0x670] sm:$0xff]
    %v515 = vld [vmem:[#allocation2 + $0x678] sm:$0xff]
    %v516 = vld [vmem:[#allocation2 + $0x680] sm:$0xff]
    %v517 = vld [vmem:[#allocation2 + $0x688] sm:$0xff]
    %v518 = vld [vmem:[#allocation2 + $0x690] sm:$0xff]
    %v519 = vld [vmem:[#allocation2 + $0x698] sm:$0xff]
    %v520 = vld [vmem:[#allocation2 + $0x6a0] sm:$0xff]
    %v521 = vld [vmem:[#allocation2 + $0x6a8] sm:$0xff]
    %v522 = vld [vmem:[#allocation2 + $0x6b0] sm:$0xff]
    %v523 = vld [vmem:[#allocation2 + $0x6b8] sm:$0xff]
    %v524 = vld [vmem:[#allocation2 + $0x6c0] sm:$0xff]
    %v525 = vld [vmem:[#allocation2 + $0x6c8] sm:$0xff]
    %v526 = vld [vmem:[#allocation2 + $0x6d0] sm:$0xff]
    %v527 = vld [vmem:[#allocation2 + $0x6d8] sm:$0xff]
    %v528 = vld [vmem:[#allocation2 + $0x6e0] sm:$0xff]
    %v529 = vld [vmem:[#allocation2 + $0x6e8] sm:$0xff]
    %v530 = vld [vmem:[#allocation2 + $0x6f0] sm:$0xff]
    %v531 = vld [vmem:[#allocation2 + $0x6f8] sm:$0xff]
    %v532 = vld [vmem:[#allocation2 + $0x700] sm:$0xff]
    %v533 = vld [vmem:[#allocation2 + $0x708] sm:$0xff]
    %v534 = vld [vmem:[#allocation2 + $0x710] sm:$0xff]
    %v535 = vld [vmem:[#allocation2 + $0x718] sm:$0xff]
    %v536 = vld [vmem:[#allocation2 + $0x720] sm:$0xff]
    %v537 = vld [vmem:[#allocation2 + $0x728] sm:$0xff]
    %v538 = vld [vmem:[#allocation2 + $0x730] sm:$0xff]
    %v539 = vld [vmem:[#allocation2 + $0x738] sm:$0xff]
    %v540 = vld [vmem:[#allocation2 + $0x740] sm:$0xff]
    %v541 = vld [vmem:[#allocation2 + $0x748] sm:$0xff]
    %v542 = vld [vmem:[#allocation2 + $0x750] sm:$0xff]
    %v543 = vld [vmem:[#allocation2 + $0x758] sm:$0xff]
    %v544 = vld [vmem:[#allocation2 + $0x760] sm:$0xff]
    %v545 = vld [vmem:[#allocation2 + $0x768] sm:$0xff]
    %v546 = vld [vmem:[#allocation2 + $0x770] sm:$0xff]
    %v547 = vld [vmem:[#allocation2 + $0x778] sm:$0xff]
    %v548 = vld [vmem:[#allocation2 + $0x780] sm:$0xff]
    %v549 = vld [vmem:[#allocation2 + $0x788] sm:$0xff]
    %v550 = vld [vmem:[#allocation2 + $0x790] sm:$0xff]
    %v551 = vld [vmem:[#allocation2 + $0x798] sm:$0xff]
    %v552 = vld [vmem:[#allocation2 + $0x7a0] sm:$0xff]
    %v553 = vld [vmem:[#allocation2 + $0x7a8] sm:$0xff]
    %v554 = vld [vmem:[#allocation2 + $0x7b0] sm:$0xff]
    %v555 = vld [vmem:[#allocation2 + $0x7b8] sm:$0xff]
    %v556 = vld [vmem:[#allocation2 + $0x7c0] sm:$0xff]
    %v557 = vld [vmem:[#allocation2 + $0x7c8] sm:$0xff]
    %v558 = vld [vmem:[#allocation2 + $0x7d0] sm:$0xff]
    %v559 = vld [vmem:[#allocation2 + $0x7d8] sm:$0xff]
    %v560 = vld [vmem:[#allocation2 + $0x7e0] sm:$0xff]
    %v561 = vld [vmem:[#allocation2 + $0x7e8] sm:$0xff]
    %v562 = vld [vmem:[#allocation2 + $0x7f0] sm:$0xff]
    %v563 = vld [vmem:[#allocation2 + $0x7f8] sm:$0xff]
    %v564 = vlaneseq
    %v565 = vshrl.u32 %v564, 7
    %v566 = vsub.s32 0, %v565
    %v567 = vrot.slane %v300, %v566
    %v568 = vlaneseq
    %v569 = vshrl.u32 %v568, 7
    %v570 = vsub.s32 0, %v569
    %v571 = vrot.slane %v301, %v570
    %v572 = vlaneseq
    %v573 = vshrl.u32 %v572, 7
    %v574 = vsub.s32 0, %v573
    %v575 = vrot.slane %v302, %v574
    %v576 = vlaneseq
    %v577 = vshrl.u32 %v576, 7
    %v578 = vsub.s32 0, %v577
    %v579 = vrot.slane %v303, %v578
    %v580 = vlaneseq
    %v581 = vshrl.u32 %v580, 7
    %v582 = vsub.s32 0, %v581
    %v583 = vrot.slane %v304, %v582
    %v584 = vlaneseq
    %v585 = vshrl.u32 %v584, 7
    %v586 = vsub.s32 0, %v585
    %v587 = vrot.slane %v305, %v586
    %v588 = vlaneseq
    %v589 = vshrl.u32 %v588, 7
    %v590 = vsub.s32 0, %v589
    %v591 = vrot.slane %v306, %v590
    %v592 = vlaneseq
    %v593 = vshrl.u32 %v592, 7
    %v594 = vsub.s32 0, %v593
    %v595 = vrot.slane %v307, %v594
    %597 = vset.pattern.permute.xlu0 0
    %598 = vperm.xlu0 %597, %v12
    %v599 = vpop.permute.xlu0 %598
    %602 = vset.pattern.permute.xlu0 0
    %603 = vperm.xlu0 %602, %v13
    %v604 = vpop.permute.xlu0 %603
    %607 = vset.pattern.permute.xlu0 0
    %608 = vperm.xlu0 %607, %v14
    %v609 = vpop.permute.xlu0 %608
    %612 = vset.pattern.permute.xlu0 0
    %613 = vperm.xlu0 %612, %v15
    %v614 = vpop.permute.xlu0 %613
    %617 = vset.pattern.permute.xlu0 0
    %618 = vperm.xlu0 %617, %v16
    %v619 = vpop.permute.xlu0 %618
    %622 = vset.pattern.permute.xlu0 0
    %623 = vperm.xlu0 %622, %v17
    %v624 = vpop.permute.xlu0 %623
    %627 = vset.pattern.permute.xlu0 0
    %628 = vperm.xlu0 %627, %v18
    %v629 = vpop.permute.xlu0 %628
    %632 = vset.pattern.permute.xlu0 0
    %633 = vperm.xlu0 %632, %v19
    %v634 = vpop.permute.xlu0 %633
    %637 = vset.pattern.permute.xlu0 0
    %638 = vperm.xlu0 %637, %v20
    %v639 = vpop.permute.xlu0 %638
    %642 = vset.pattern.permute.xlu0 0
    %643 = vperm.xlu0 %642, %v21
    %v644 = vpop.permute.xlu0 %643
    %647 = vset.pattern.permute.xlu0 0
    %648 = vperm.xlu0 %647, %v22
    %v649 = vpop.permute.xlu0 %648
    %652 = vset.pattern.permute.xlu0 0
    %653 = vperm.xlu0 %652, %v23
    %v654 = vpop.permute.xlu0 %653
    %657 = vset.pattern.permute.xlu0 0
    %658 = vperm.xlu0 %657, %v24
    %v659 = vpop.permute.xlu0 %658
    %662 = vset.pattern.permute.xlu0 0
    %663 = vperm.xlu0 %662, %v25
    %v664 = vpop.permute.xlu0 %663
    %667 = vset.pattern.permute.xlu0 0
    %668 = vperm.xlu0 %667, %v26
    %v669 = vpop.permute.xlu0 %668
    %672 = vset.pattern.permute.xlu0 0
    %673 = vperm.xlu0 %672, %v27
    %v674 = vpop.permute.xlu0 %673
    %677 = vset.pattern.permute.xlu0 0
    %678 = vperm.xlu0 %677, %v28
    %v679 = vpop.permute.xlu0 %678
    %682 = vset.pattern.permute.xlu0 0
    %683 = vperm.xlu0 %682, %v29
    %v684 = vpop.permute.xlu0 %683
    %687 = vset.pattern.permute.xlu0 0
    %688 = vperm.xlu0 %687, %v30
    %v689 = vpop.permute.xlu0 %688
    %692 = vset.pattern.permute.xlu0 0
    %693 = vperm.xlu0 %692, %v31
    %v694 = vpop.permute.xlu0 %693
    %697 = vset.pattern.permute.xlu0 0
    %698 = vperm.xlu0 %697, %v32
    %v699 = vpop.permute.xlu0 %698
    %702 = vset.pattern.permute.xlu0 0
    %703 = vperm.xlu0 %702, %v33
    %v704 = vpop.permute.xlu0 %703
    %707 = vset.pattern.permute.xlu0 0
    %708 = vperm.xlu0 %707, %v34
    %v709 = vpop.permute.xlu0 %708
    %712 = vset.pattern.permute.xlu0 0
    %713 = vperm.xlu0 %712, %v35
    %v714 = vpop.permute.xlu0 %713
    %717 = vset.pattern.permute.xlu0 0
    %718 = vperm.xlu0 %717, %v36
    %v719 = vpop.permute.xlu0 %718
    %722 = vset.pattern.permute.xlu0 0
    %723 = vperm.xlu0 %722, %v37
    %v724 = vpop.permute.xlu0 %723
    %727 = vset.pattern.permute.xlu0 0
    %728 = vperm.xlu0 %727, %v38
    %v729 = vpop.permute.xlu0 %728
    %732 = vset.pattern.permute.xlu0 0
    %733 = vperm.xlu0 %732, %v39
    %v734 = vpop.permute.xlu0 %733
    %737 = vset.pattern.permute.xlu0 0
    %738 = vperm.xlu0 %737, %v40
    %v739 = vpop.permute.xlu0 %738
    %742 = vset.pattern.permute.xlu0 0
    %743 = vperm.xlu0 %742, %v41
    %v744 = vpop.permute.xlu0 %743
    %747 = vset.pattern.permute.xlu0 0
    %748 = vperm.xlu0 %747, %v42
    %v749 = vpop.permute.xlu0 %748
    %752 = vset.pattern.permute.xlu0 0
    %753 = vperm.xlu0 %752, %v43
    %v754 = vpop.permute.xlu0 %753
    %v756 = vmul.f32 %v567, %v599
    %v757 = vmul.f32 %v567, %v604
    %v758 = vmul.f32 %v567, %v609
    %v759 = vmul.f32 %v567, %v614
    %v760 = vmul.f32 %v567, %v619
    %v761 = vmul.f32 %v567, %v624
    %v762 = vmul.f32 %v567, %v629
    %v763 = vmul.f32 %v567, %v634
    %v764 = vmul.f32 %v567, %v639
    %v765 = vmul.f32 %v567, %v644
    %v766 = vmul.f32 %v567, %v649
    %v767 = vmul.f32 %v567, %v654
    %v768 = vmul.f32 %v567, %v659
    %v769 = vmul.f32 %v567, %v664
    %v770 = vmul.f32 %v567, %v669
    %v771 = vmul.f32 %v567, %v674
    %v772 = vmul.f32 %v567, %v679
    %v773 = vmul.f32 %v567, %v684
    %v774 = vmul.f32 %v567, %v689
    %v775 = vmul.f32 %v567, %v694
    %v776 = vmul.f32 %v567, %v699
    %v777 = vmul.f32 %v567, %v704
    %v778 = vmul.f32 %v567, %v709
    %v779 = vmul.f32 %v567, %v714
    %v780 = vmul.f32 %v567, %v719
    %v781 = vmul.f32 %v567, %v724
    %v782 = vmul.f32 %v567, %v729
    %v783 = vmul.f32 %v567, %v734
    %v784 = vmul.f32 %v567, %v739
    %v785 = vmul.f32 %v567, %v744
    %v786 = vmul.f32 %v567, %v749
    %v787 = vmul.f32 %v567, %v754
    %v788 = vmul.f32 %v571, %v599
    %v789 = vmul.f32 %v571, %v604
    %v790 = vmul.f32 %v571, %v609
    %v791 = vmul.f32 %v571, %v614
    %v792 = vmul.f32 %v571, %v619
    %v793 = vmul.f32 %v571, %v624
    %v794 = vmul.f32 %v571, %v629
    %v795 = vmul.f32 %v571, %v634
    %v796 = vmul.f32 %v571, %v639
    %v797 = vmul.f32 %v571, %v644
    %v798 = vmul.f32 %v571, %v649
    %v799 = vmul.f32 %v571, %v654
    %v800 = vmul.f32 %v571, %v659
    %v801 = vmul.f32 %v571, %v664
    %v802 = vmul.f32 %v571, %v669
    %v803 = vmul.f32 %v571, %v674
    %v804 = vmul.f32 %v571, %v679
    %v805 = vmul.f32 %v571, %v684
    %v806 = vmul.f32 %v571, %v689
    %v807 = vmul.f32 %v571, %v694
    %v808 = vmul.f32 %v571, %v699
    %v809 = vmul.f32 %v571, %v704
    %v810 = vmul.f32 %v571, %v709
    %v811 = vmul.f32 %v571, %v714
    %v812 = vmul.f32 %v571, %v719
    %v813 = vmul.f32 %v571, %v724
    %v814 = vmul.f32 %v571, %v729
    %v815 = vmul.f32 %v571, %v734
    %v816 = vmul.f32 %v571, %v739
    %v817 = vmul.f32 %v571, %v744
    %v818 = vmul.f32 %v571, %v749
    %v819 = vmul.f32 %v571, %v754
    %v820 = vmul.f32 %v575, %v599
    %v821 = vmul.f32 %v575, %v604
    %v822 = vmul.f32 %v575, %v609
    %v823 = vmul.f32 %v575, %v614
    %v824 = vmul.f32 %v575, %v619
    %v825 = vmul.f32 %v575, %v624
    %v826 = vmul.f32 %v575, %v629
    %v827 = vmul.f32 %v575, %v634
    %v828 = vmul.f32 %v575, %v639
    %v829 = vmul.f32 %v575, %v644
    %v830 = vmul.f32 %v575, %v649
    %v831 = vmul.f32 %v575, %v654
    %v832 = vmul.f32 %v575, %v659
    %v833 = vmul.f32 %v575, %v664
    %v834 = vmul.f32 %v575, %v669
    %v835 = vmul.f32 %v575, %v674
    %v836 = vmul.f32 %v575, %v679
    %v837 = vmul.f32 %v575, %v684
    %v838 = vmul.f32 %v575, %v689
    %v839 = vmul.f32 %v575, %v694
    %v840 = vmul.f32 %v575, %v699
    %v841 = vmul.f32 %v575, %v704
    %v842 = vmul.f32 %v575, %v709
    %v843 = vmul.f32 %v575, %v714
    %v844 = vmul.f32 %v575, %v719
    %v845 = vmul.f32 %v575, %v724
    %v846 = vmul.f32 %v575, %v729
    %v847 = vmul.f32 %v575, %v734
    %v848 = vmul.f32 %v575, %v739
    %v849 = vmul.f32 %v575, %v744
    %v850 = vmul.f32 %v575, %v749
    %v851 = vmul.f32 %v575, %v754
    %v852 = vmul.f32 %v579, %v599
    %v853 = vmul.f32 %v579, %v604
    %v854 = vmul.f32 %v579, %v609
    %v855 = vmul.f32 %v579, %v614
    %v856 = vmul.f32 %v579, %v619
    %v857 = vmul.f32 %v579, %v624
    %v858 = vmul.f32 %v579, %v629
    %v859 = vmul.f32 %v579, %v634
    %v860 = vmul.f32 %v579, %v639
    %v861 = vmul.f32 %v579, %v644
    %v862 = vmul.f32 %v579, %v649
    %v863 = vmul.f32 %v579, %v654
    %v864 = vmul.f32 %v579, %v659
    %v865 = vmul.f32 %v579, %v664
    %v866 = vmul.f32 %v579, %v669
    %v867 = vmul.f32 %v579, %v674
    %v868 = vmul.f32 %v579, %v679
    %v869 = vmul.f32 %v579, %v684
    %v870 = vmul.f32 %v579, %v689
    %v871 = vmul.f32 %v579, %v694
    %v872 = vmul.f32 %v579, %v699
    %v873 = vmul.f32 %v579, %v704
    %v874 = vmul.f32 %v579, %v709
    %v875 = vmul.f32 %v579, %v714
    %v876 = vmul.f32 %v579, %v719
    %v877 = vmul.f32 %v579, %v724
    %v878 = vmul.f32 %v579, %v729
    %v879 = vmul.f32 %v579, %v734
    %v880 = vmul.f32 %v579, %v739
    %v881 = vmul.f32 %v579, %v744
    %v882 = vmul.f32 %v579, %v749
    %v883 = vmul.f32 %v579, %v754
    %v884 = vmul.f32 %v583, %v599
    %v885 = vmul.f32 %v583, %v604
    %v886 = vmul.f32 %v583, %v609
    %v887 = vmul.f32 %v583, %v614
    %v888 = vmul.f32 %v583, %v619
    %v889 = vmul.f32 %v583, %v624
    %v890 = vmul.f32 %v583, %v629
    %v891 = vmul.f32 %v583, %v634
    %v892 = vmul.f32 %v583, %v639
    %v893 = vmul.f32 %v583, %v644
    %v894 = vmul.f32 %v583, %v649
    %v895 = vmul.f32 %v583, %v654
    %v896 = vmul.f32 %v583, %v659
    %v897 = vmul.f32 %v583, %v664
    %v898 = vmul.f32 %v583, %v669
    %v899 = vmul.f32 %v583, %v674
    %v900 = vmul.f32 %v583, %v679
    %v901 = vmul.f32 %v583, %v684
    %v902 = vmul.f32 %v583, %v689
    %v903 = vmul.f32 %v583, %v694
    %v904 = vmul.f32 %v583, %v699
    %v905 = vmul.f32 %v583, %v704
    %v906 = vmul.f32 %v583, %v709
    %v907 = vmul.f32 %v583, %v714
    %v908 = vmul.f32 %v583, %v719
    %v909 = vmul.f32 %v583, %v724
    %v910 = vmul.f32 %v583, %v729
    %v911 = vmul.f32 %v583, %v734
    %v912 = vmul.f32 %v583, %v739
    %v913 = vmul.f32 %v583, %v744
    %v914 = vmul.f32 %v583, %v749
    %v915 = vmul.f32 %v583, %v754
    %v916 = vmul.f32 %v587, %v599
    %v917 = vmul.f32 %v587, %v604
    %v918 = vmul.f32 %v587, %v609
    %v919 = vmul.f32 %v587, %v614
    %v920 = vmul.f32 %v587, %v619
    %v921 = vmul.f32 %v587, %v624
    %v922 = vmul.f32 %v587, %v629
    %v923 = vmul.f32 %v587, %v634
    %v924 = vmul.f32 %v587, %v639
    %v925 = vmul.f32 %v587, %v644
    %v926 = vmul.f32 %v587, %v649
    %v927 = vmul.f32 %v587, %v654
    %v928 = vmul.f32 %v587, %v659
    %v929 = vmul.f32 %v587, %v664
    %v930 = vmul.f32 %v587, %v669
    %v931 = vmul.f32 %v587, %v674
    %v932 = vmul.f32 %v587, %v679
    %v933 = vmul.f32 %v587, %v684
    %v934 = vmul.f32 %v587, %v689
    %v935 = vmul.f32 %v587, %v694
    %v936 = vmul.f32 %v587, %v699
    %v937 = vmul.f32 %v587, %v704
    %v938 = vmul.f32 %v587, %v709
    %v939 = vmul.f32 %v587, %v714
    %v940 = vmul.f32 %v587, %v719
    %v941 = vmul.f32 %v587, %v724
    %v942 = vmul.f32 %v587, %v729
    %v943 = vmul.f32 %v587, %v734
    %v944 = vmul.f32 %v587, %v739
    %v945 = vmul.f32 %v587, %v744
    %v946 = vmul.f32 %v587, %v749
    %v947 = vmul.f32 %v587, %v754
    %v948 = vmul.f32 %v591, %v599
    %v949 = vmul.f32 %v591, %v604
    %v950 = vmul.f32 %v591, %v609
    %v951 = vmul.f32 %v591, %v614
    %v952 = vmul.f32 %v591, %v619
    %v953 = vmul.f32 %v591, %v624
    %v954 = vmul.f32 %v591, %v629
    %v955 = vmul.f32 %v591, %v634
    %v956 = vmul.f32 %v591, %v639
    %v957 = vmul.f32 %v591, %v644
    %v958 = vmul.f32 %v591, %v649
    %v959 = vmul.f32 %v591, %v654
    %v960 = vmul.f32 %v591, %v659
    %v961 = vmul.f32 %v591, %v664
    %v962 = vmul.f32 %v591, %v669
    %v963 = vmul.f32 %v591, %v674
    %v964 = vmul.f32 %v591, %v679
    %v965 = vmul.f32 %v591, %v684
    %v966 = vmul.f32 %v591, %v689
    %v967 = vmul.f32 %v591, %v694
    %v968 = vmul.f32 %v591, %v699
    %v969 = vmul.f32 %v591, %v704
    %v970 = vmul.f32 %v591, %v709
    %v971 = vmul.f32 %v591, %v714
    %v972 = vmul.f32 %v591, %v719
    %v973 = vmul.f32 %v591, %v724
    %v974 = vmul.f32 %v591, %v729
    %v975 = vmul.f32 %v591, %v734
    %v976 = vmul.f32 %v591, %v739
    %v977 = vmul.f32 %v591, %v744
    %v978 = vmul.f32 %v591, %v749
    %v979 = vmul.f32 %v591, %v754
    %v980 = vmul.f32 %v595, %v599
    %v981 = vmul.f32 %v595, %v604
    %v982 = vmul.f32 %v595, %v609
    %v983 = vmul.f32 %v595, %v614
    %v984 = vmul.f32 %v595, %v619
    %v985 = vmul.f32 %v595, %v624
    %v986 = vmul.f32 %v595, %v629
    %v987 = vmul.f32 %v595, %v634
    %v988 = vmul.f32 %v595, %v639
    %v989 = vmul.f32 %v595, %v644
    %v990 = vmul.f32 %v595, %v649
    %v991 = vmul.f32 %v595, %v654
    %v992 = vmul.f32 %v595, %v659
    %v993 = vmul.f32 %v595, %v664
    %v994 = vmul.f32 %v595, %v669
    %v995 = vmul.f32 %v595, %v674
    %v996 = vmul.f32 %v595, %v679
    %v997 = vmul.f32 %v595, %v684
    %v998 = vmul.f32 %v595, %v689
    %v999 = vmul.f32 %v595, %v694
    %v1000 = vmul.f32 %v595, %v699
    %v1001 = vmul.f32 %v595, %v704
    %v1002 = vmul.f32 %v595, %v709
    %v1003 = vmul.f32 %v595, %v714
    %v1004 = vmul.f32 %v595, %v719
    %v1005 = vmul.f32 %v595, %v724
    %v1006 = vmul.f32 %v595, %v729
    %v1007 = vmul.f32 %v595, %v734
    %v1008 = vmul.f32 %v595, %v739
    %v1009 = vmul.f32 %v595, %v744
    %v1010 = vmul.f32 %v595, %v749
    %v1011 = vmul.f32 %v595, %v754
    %1012 = vset.pattern.permute.xlu0 3
    %1013 = vperm.xlu0 %1012, %v12
    %v1014 = vpop.permute.xlu0 %1013
    %1016 = vset.pattern.permute.xlu0 3
    %1017 = vperm.xlu0 %1016, %v13
    %v1018 = vpop.permute.xlu0 %1017
    %1020 = vset.pattern.permute.xlu0 3
    %1021 = vperm.xlu0 %1020, %v14
    %v1022 = vpop.permute.xlu0 %1021
    %1024 = vset.pattern.permute.xlu0 3
    %1025 = vperm.xlu0 %1024, %v15
    %v1026 = vpop.permute.xlu0 %1025
    %1028 = vset.pattern.permute.xlu0 3
    %1029 = vperm.xlu0 %1028, %v16
    %v1030 = vpop.permute.xlu0 %1029
    %1032 = vset.pattern.permute.xlu0 3
    %1033 = vperm.xlu0 %1032, %v17
    %v1034 = vpop.permute.xlu0 %1033
    %1036 = vset.pattern.permute.xlu0 3
    %1037 = vperm.xlu0 %1036, %v18
    %v1038 = vpop.permute.xlu0 %1037
    %1040 = vset.pattern.permute.xlu0 3
    %1041 = vperm.xlu0 %1040, %v19
    %v1042 = vpop.permute.xlu0 %1041
    %1044 = vset.pattern.permute.xlu0 3
    %1045 = vperm.xlu0 %1044, %v20
    %v1046 = vpop.permute.xlu0 %1045
    %1048 = vset.pattern.permute.xlu0 3
    %1049 = vperm.xlu0 %1048, %v21
    %v1050 = vpop.permute.xlu0 %1049
    %1052 = vset.pattern.permute.xlu0 3
    %1053 = vperm.xlu0 %1052, %v22
    %v1054 = vpop.permute.xlu0 %1053
    %1056 = vset.pattern.permute.xlu0 3
    %1057 = vperm.xlu0 %1056, %v23
    %v1058 = vpop.permute.xlu0 %1057
    %1060 = vset.pattern.permute.xlu0 3
    %1061 = vperm.xlu0 %1060, %v24
    %v1062 = vpop.permute.xlu0 %1061
    %1064 = vset.pattern.permute.xlu0 3
    %1065 = vperm.xlu0 %1064, %v25
    %v1066 = vpop.permute.xlu0 %1065
    %1068 = vset.pattern.permute.xlu0 3
    %1069 = vperm.xlu0 %1068, %v26
    %v1070 = vpop.permute.xlu0 %1069
    %1072 = vset.pattern.permute.xlu0 3
    %1073 = vperm.xlu0 %1072, %v27
    %v1074 = vpop.permute.xlu0 %1073
    %1076 = vset.pattern.permute.xlu0 3
    %1077 = vperm.xlu0 %1076, %v28
    %v1078 = vpop.permute.xlu0 %1077
    %1080 = vset.pattern.permute.xlu0 3
    %1081 = vperm.xlu0 %1080, %v29
    %v1082 = vpop.permute.xlu0 %1081
    %1084 = vset.pattern.permute.xlu0 3
    %1085 = vperm.xlu0 %1084, %v30
    %v1086 = vpop.permute.xlu0 %1085
    %1088 = vset.pattern.permute.xlu0 3
    %1089 = vperm.xlu0 %1088, %v31
    %v1090 = vpop.permute.xlu0 %1089
    %1092 = vset.pattern.permute.xlu0 3
    %1093 = vperm.xlu0 %1092, %v32
    %v1094 = vpop.permute.xlu0 %1093
    %1096 = vset.pattern.permute.xlu0 3
    %1097 = vperm.xlu0 %1096, %v33
    %v1098 = vpop.permute.xlu0 %1097
    %1100 = vset.pattern.permute.xlu0 3
    %1101 = vperm.xlu0 %1100, %v34
    %v1102 = vpop.permute.xlu0 %1101
    %1104 = vset.pattern.permute.xlu0 3
    %1105 = vperm.xlu0 %1104, %v35
    %v1106 = vpop.permute.xlu0 %1105
    %1108 = vset.pattern.permute.xlu0 3
    %1109 = vperm.xlu0 %1108, %v36
    %v1110 = vpop.permute.xlu0 %1109
    %1112 = vset.pattern.permute.xlu0 3
    %1113 = vperm.xlu0 %1112, %v37
    %v1114 = vpop.permute.xlu0 %1113
    %1116 = vset.pattern.permute.xlu0 3
    %1117 = vperm.xlu0 %1116, %v38
    %v1118 = vpop.permute.xlu0 %1117
    %1120 = vset.pattern.permute.xlu0 3
    %1121 = vperm.xlu0 %1120, %v39
    %v1122 = vpop.permute.xlu0 %1121
    %1124 = vset.pattern.permute.xlu0 3
    %1125 = vperm.xlu0 %1124, %v40
    %v1126 = vpop.permute.xlu0 %1125
    %1128 = vset.pattern.permute.xlu0 3
    %1129 = vperm.xlu0 %1128, %v41
    %v1130 = vpop.permute.xlu0 %1129
    %1132 = vset.pattern.permute.xlu0 3
    %1133 = vperm.xlu0 %1132, %v42
    %v1134 = vpop.permute.xlu0 %1133
    %1136 = vset.pattern.permute.xlu0 3
    %1137 = vperm.xlu0 %1136, %v43
    %v1138 = vpop.permute.xlu0 %1137
    %v1140 = vadd.f32 %v1014, %v756
    %v1141 = vadd.f32 %v1018, %v757
    %v1142 = vadd.f32 %v1022, %v758
    %v1143 = vadd.f32 %v1026, %v759
    %v1144 = vadd.f32 %v1030, %v760
    %v1145 = vadd.f32 %v1034, %v761
    %v1146 = vadd.f32 %v1038, %v762
    %v1147 = vadd.f32 %v1042, %v763
    %v1148 = vadd.f32 %v1046, %v764
    %v1149 = vadd.f32 %v1050, %v765
    %v1150 = vadd.f32 %v1054, %v766
    %v1151 = vadd.f32 %v1058, %v767
    %v1152 = vadd.f32 %v1062, %v768
    %v1153 = vadd.f32 %v1066, %v769
    %v1154 = vadd.f32 %v1070, %v770
    %v1155 = vadd.f32 %v1074, %v771
    %v1156 = vadd.f32 %v1078, %v772
    %v1157 = vadd.f32 %v1082, %v773
    %v1158 = vadd.f32 %v1086, %v774
    %v1159 = vadd.f32 %v1090, %v775
    %v1160 = vadd.f32 %v1094, %v776
    %v1161 = vadd.f32 %v1098, %v777
    %v1162 = vadd.f32 %v1102, %v778
    %v1163 = vadd.f32 %v1106, %v779
    %v1164 = vadd.f32 %v1110, %v780
    %v1165 = vadd.f32 %v1114, %v781
    %v1166 = vadd.f32 %v1118, %v782
    %v1167 = vadd.f32 %v1122, %v783
    %v1168 = vadd.f32 %v1126, %v784
    %v1169 = vadd.f32 %v1130, %v785
    %v1170 = vadd.f32 %v1134, %v786
    %v1171 = vadd.f32 %v1138, %v787
    %v1172 = vadd.f32 %v1014, %v788
    %v1173 = vadd.f32 %v1018, %v789
    %v1174 = vadd.f32 %v1022, %v790
    %v1175 = vadd.f32 %v1026, %v791
    %v1176 = vadd.f32 %v1030, %v792
    %v1177 = vadd.f32 %v1034, %v793
    %v1178 = vadd.f32 %v1038, %v794
    %v1179 = vadd.f32 %v1042, %v795
    %v1180 = vadd.f32 %v1046, %v796
    %v1181 = vadd.f32 %v1050, %v797
    %v1182 = vadd.f32 %v1054, %v798
    %v1183 = vadd.f32 %v1058, %v799
    %v1184 = vadd.f32 %v1062, %v800
    %v1185 = vadd.f32 %v1066, %v801
    %v1186 = vadd.f32 %v1070, %v802
    %v1187 = vadd.f32 %v1074, %v803
    %v1188 = vadd.f32 %v1078, %v804
    %v1189 = vadd.f32 %v1082, %v805
    %v1190 = vadd.f32 %v1086, %v806
    %v1191 = vadd.f32 %v1090, %v807
    %v1192 = vadd.f32 %v1094, %v808
    %v1193 = vadd.f32 %v1098, %v809
    %v1194 = vadd.f32 %v1102, %v810
    %v1195 = vadd.f32 %v1106, %v811
    %v1196 = vadd.f32 %v1110, %v812
    %v1197 = vadd.f32 %v1114, %v813
    %v1198 = vadd.f32 %v1118, %v814
    %v1199 = vadd.f32 %v1122, %v815
    %v1200 = vadd.f32 %v1126, %v816
    %v1201 = vadd.f32 %v1130, %v817
    %v1202 = vadd.f32 %v1134, %v818
    %v1203 = vadd.f32 %v1138, %v819
    %v1204 = vadd.f32 %v1014, %v820
    %v1205 = vadd.f32 %v1018, %v821
    %v1206 = vadd.f32 %v1022, %v822
    %v1207 = vadd.f32 %v1026, %v823
    %v1208 = vadd.f32 %v1030, %v824
    %v1209 = vadd.f32 %v1034, %v825
    %v1210 = vadd.f32 %v1038, %v826
    %v1211 = vadd.f32 %v1042, %v827
    %v1212 = vadd.f32 %v1046, %v828
    %v1213 = vadd.f32 %v1050, %v829
    %v1214 = vadd.f32 %v1054, %v830
    %v1215 = vadd.f32 %v1058, %v831
    %v1216 = vadd.f32 %v1062, %v832
    %v1217 = vadd.f32 %v1066, %v833
    %v1218 = vadd.f32 %v1070, %v834
    %v1219 = vadd.f32 %v1074, %v835
    %v1220 = vadd.f32 %v1078, %v836
    %v1221 = vadd.f32 %v1082, %v837
    %v1222 = vadd.f32 %v1086, %v838
    %v1223 = vadd.f32 %v1090, %v839
    %v1224 = vadd.f32 %v1094, %v840
    %v1225 = vadd.f32 %v1098, %v841
    %v1226 = vadd.f32 %v1102, %v842
    %v1227 = vadd.f32 %v1106, %v843
    %v1228 = vadd.f32 %v1110, %v844
    %v1229 = vadd.f32 %v1114, %v845
    %v1230 = vadd.f32 %v1118, %v846
    %v1231 = vadd.f32 %v1122, %v847
    %v1232 = vadd.f32 %v1126, %v848
    %v1233 = vadd.f32 %v1130, %v849
    %v1234 = vadd.f32 %v1134, %v850
    %v1235 = vadd.f32 %v1138, %v851
    %v1236 = vadd.f32 %v1014, %v852
    %v1237 = vadd.f32 %v1018, %v853
    %v1238 = vadd.f32 %v1022, %v854
    %v1239 = vadd.f32 %v1026, %v855
    %v1240 = vadd.f32 %v1030, %v856
    %v1241 = vadd.f32 %v1034, %v857
    %v1242 = vadd.f32 %v1038, %v858
    %v1243 = vadd.f32 %v1042, %v859
    %v1244 = vadd.f32 %v1046, %v860
    %v1245 = vadd.f32 %v1050, %v861
    %v1246 = vadd.f32 %v1054, %v862
    %v1247 = vadd.f32 %v1058, %v863
    %v1248 = vadd.f32 %v1062, %v864
    %v1249 = vadd.f32 %v1066, %v865
    %v1250 = vadd.f32 %v1070, %v866
    %v1251 = vadd.f32 %v1074, %v867
    %v1252 = vadd.f32 %v1078, %v868
    %v1253 = vadd.f32 %v1082, %v869
    %v1254 = vadd.f32 %v1086, %v870
    %v1255 = vadd.f32 %v1090, %v871
    %v1256 = vadd.f32 %v1094, %v872
    %v1257 = vadd.f32 %v1098, %v873
    %v1258 = vadd.f32 %v1102, %v874
    %v1259 = vadd.f32 %v1106, %v875
    %v1260 = vadd.f32 %v1110, %v876
    %v1261 = vadd.f32 %v1114, %v877
    %v1262 = vadd.f32 %v1118, %v878
    %v1263 = vadd.f32 %v1122, %v879
    %v1264 = vadd.f32 %v1126, %v880
    %v1265 = vadd.f32 %v1130, %v881
    %v1266 = vadd.f32 %v1134, %v882
    %v1267 = vadd.f32 %v1138, %v883
    %v1268 = vadd.f32 %v1014, %v884
    %v1269 = vadd.f32 %v1018, %v885
    %v1270 = vadd.f32 %v1022, %v886
    %v1271 = vadd.f32 %v1026, %v887
    %v1272 = vadd.f32 %v1030, %v888
    %v1273 = vadd.f32 %v1034, %v889
    %v1274 = vadd.f32 %v1038, %v890
    %v1275 = vadd.f32 %v1042, %v891
    %v1276 = vadd.f32 %v1046, %v892
    %v1277 = vadd.f32 %v1050, %v893
    %v1278 = vadd.f32 %v1054, %v894
    %v1279 = vadd.f32 %v1058, %v895
    %v1280 = vadd.f32 %v1062, %v896
    %v1281 = vadd.f32 %v1066, %v897
    %v1282 = vadd.f32 %v1070, %v898
    %v1283 = vadd.f32 %v1074, %v899
    %v1284 = vadd.f32 %v1078, %v900
    %v1285 = vadd.f32 %v1082, %v901
    %v1286 = vadd.f32 %v1086, %v902
    %v1287 = vadd.f32 %v1090, %v903
    %v1288 = vadd.f32 %v1094, %v904
    %v1289 = vadd.f32 %v1098, %v905
    %v1290 = vadd.f32 %v1102, %v906
    %v1291 = vadd.f32 %v1106, %v907
    %v1292 = vadd.f32 %v1110, %v908
    %v1293 = vadd.f32 %v1114, %v909
    %v1294 = vadd.f32 %v1118, %v910
    %v1295 = vadd.f32 %v1122, %v911
    %v1296 = vadd.f32 %v1126, %v912
    %v1297 = vadd.f32 %v1130, %v913
    %v1298 = vadd.f32 %v1134, %v914
    %v1299 = vadd.f32 %v1138, %v915
    %v1300 = vadd.f32 %v1014, %v916
    %v1301 = vadd.f32 %v1018, %v917
    %v1302 = vadd.f32 %v1022, %v918
    %v1303 = vadd.f32 %v1026, %v919
    %v1304 = vadd.f32 %v1030, %v920
    %v1305 = vadd.f32 %v1034, %v921
    %v1306 = vadd.f32 %v1038, %v922
    %v1307 = vadd.f32 %v1042, %v923
    %v1308 = vadd.f32 %v1046, %v924
    %v1309 = vadd.f32 %v1050, %v925
    %v1310 = vadd.f32 %v1054, %v926
    %v1311 = vadd.f32 %v1058, %v927
    %v1312 = vadd.f32 %v1062, %v928
    %v1313 = vadd.f32 %v1066, %v929
    %v1314 = vadd.f32 %v1070, %v930
    %v1315 = vadd.f32 %v1074, %v931
    %v1316 = vadd.f32 %v1078, %v932
    %v1317 = vadd.f32 %v1082, %v933
    %v1318 = vadd.f32 %v1086, %v934
    %v1319 = vadd.f32 %v1090, %v935
    %v1320 = vadd.f32 %v1094, %v936
    %v1321 = vadd.f32 %v1098, %v937
    %v1322 = vadd.f32 %v1102, %v938
    %v1323 = vadd.f32 %v1106, %v939
    %v1324 = vadd.f32 %v1110, %v940
    %v1325 = vadd.f32 %v1114, %v941
    %v1326 = vadd.f32 %v1118, %v942
    %v1327 = vadd.f32 %v1122, %v943
    %v1328 = vadd.f32 %v1126, %v944
    %v1329 = vadd.f32 %v1130, %v945
    %v1330 = vadd.f32 %v1134, %v946
    %v1331 = vadd.f32 %v1138, %v947
    %v1332 = vadd.f32 %v1014, %v948
    %v1333 = vadd.f32 %v1018, %v949
    %v1334 = vadd.f32 %v1022, %v950
    %v1335 = vadd.f32 %v1026, %v951
    %v1336 = vadd.f32 %v1030, %v952
    %v1337 = vadd.f32 %v1034, %v953
    %v1338 = vadd.f32 %v1038, %v954
    %v1339 = vadd.f32 %v1042, %v955
    %v1340 = vadd.f32 %v1046, %v956
    %v1341 = vadd.f32 %v1050, %v957
    %v1342 = vadd.f32 %v1054, %v958
    %v1343 = vadd.f32 %v1058, %v959
    %v1344 = vadd.f32 %v1062, %v960
    %v1345 = vadd.f32 %v1066, %v961
    %v1346 = vadd.f32 %v1070, %v962
    %v1347 = vadd.f32 %v1074, %v963
    %v1348 = vadd.f32 %v1078, %v964
    %v1349 = vadd.f32 %v1082, %v965
    %v1350 = vadd.f32 %v1086, %v966
    %v1351 = vadd.f32 %v1090, %v967
    %v1352 = vadd.f32 %v1094, %v968
    %v1353 = vadd.f32 %v1098, %v969
    %v1354 = vadd.f32 %v1102, %v970
    %v1355 = vadd.f32 %v1106, %v971
    %v1356 = vadd.f32 %v1110, %v972
    %v1357 = vadd.f32 %v1114, %v973
    %v1358 = vadd.f32 %v1118, %v974
    %v1359 = vadd.f32 %v1122, %v975
    %v1360 = vadd.f32 %v1126, %v976
    %v1361 = vadd.f32 %v1130, %v977
    %v1362 = vadd.f32 %v1134, %v978
    %v1363 = vadd.f32 %v1138, %v979
    %v1364 = vadd.f32 %v1014, %v980
    %v1365 = vadd.f32 %v1018, %v981
    %v1366 = vadd.f32 %v1022, %v982
    %v1367 = vadd.f32 %v1026, %v983
    %v1368 = vadd.f32 %v1030, %v984
    %v1369 = vadd.f32 %v1034, %v985
    %v1370 = vadd.f32 %v1038, %v986
    %v1371 = vadd.f32 %v1042, %v987
    %v1372 = vadd.f32 %v1046, %v988
    %v1373 = vadd.f32 %v1050, %v989
    %v1374 = vadd.f32 %v1054, %v990
    %v1375 = vadd.f32 %v1058, %v991
    %v1376 = vadd.f32 %v1062, %v992
    %v1377 = vadd.f32 %v1066, %v993
    %v1378 = vadd.f32 %v1070, %v994
    %v1379 = vadd.f32 %v1074, %v995
    %v1380 = vadd.f32 %v1078, %v996
    %v1381 = vadd.f32 %v1082, %v997
    %v1382 = vadd.f32 %v1086, %v998
    %v1383 = vadd.f32 %v1090, %v999
    %v1384 = vadd.f32 %v1094, %v1000
    %v1385 = vadd.f32 %v1098, %v1001
    %v1386 = vadd.f32 %v1102, %v1002
    %v1387 = vadd.f32 %v1106, %v1003
    %v1388 = vadd.f32 %v1110, %v1004
    %v1389 = vadd.f32 %v1114, %v1005
    %v1390 = vadd.f32 %v1118, %v1006
    %v1391 = vadd.f32 %v1122, %v1007
    %v1392 = vadd.f32 %v1126, %v1008
    %v1393 = vadd.f32 %v1130, %v1009
    %v1394 = vadd.f32 %v1134, %v1010
    %v1395 = vadd.f32 %v1138, %v1011
    %v1396 = vlaneseq
    %v1397 = vshrl.u32 %v1396, 7
    %v1398 = vsub.s32 1, %v1397
    %v1399 = vrot.slane %v300, %v1398
    %v1400 = vlaneseq
    %v1401 = vshrl.u32 %v1400, 7
    %v1402 = vsub.s32 1, %v1401
    %v1403 = vrot.slane %v301, %v1402
    %v1404 = vlaneseq
    %v1405 = vshrl.u32 %v1404, 7
    %v1406 = vsub.s32 1, %v1405
    %v1407 = vrot.slane %v302, %v1406
    %v1408 = vlaneseq
    %v1409 = vshrl.u32 %v1408, 7
    %v1410 = vsub.s32 1, %v1409
    %v1411 = vrot.slane %v303, %v1410
    %v1412 = vlaneseq
    %v1413 = vshrl.u32 %v1412, 7
    %v1414 = vsub.s32 1, %v1413
    %v1415 = vrot.slane %v304, %v1414
    %v1416 = vlaneseq
    %v1417 = vshrl.u32 %v1416, 7
    %v1418 = vsub.s32 1, %v1417
    %v1419 = vrot.slane %v305, %v1418
    %v1420 = vlaneseq
    %v1421 = vshrl.u32 %v1420, 7
    %v1422 = vsub.s32 1, %v1421
    %v1423 = vrot.slane %v306, %v1422
    %v1424 = vlaneseq
    %v1425 = vshrl.u32 %v1424, 7
    %v1426 = vsub.s32 1, %v1425
    %v1427 = vrot.slane %v307, %v1426
    %1428 = vset.pattern.permute.xlu0 1
    %1429 = vperm.xlu0 %1428, %v12
    %v1430 = vpop.permute.xlu0 %1429
    %1432 = vset.pattern.permute.xlu0 1
    %1433 = vperm.xlu0 %1432, %v13
    %v1434 = vpop.permute.xlu0 %1433
    %1436 = vset.pattern.permute.xlu0 1
    %1437 = vperm.xlu0 %1436, %v14
    %v1438 = vpop.permute.xlu0 %1437
    %1440 = vset.pattern.permute.xlu0 1
    %1441 = vperm.xlu0 %1440, %v15
    %v1442 = vpop.permute.xlu0 %1441
    %1444 = vset.pattern.permute.xlu0 1
    %1445 = vperm.xlu0 %1444, %v16
    %v1446 = vpop.permute.xlu0 %1445
    %1448 = vset.pattern.permute.xlu0 1
    %1449 = vperm.xlu0 %1448, %v17
    %v1450 = vpop.permute.xlu0 %1449
    %1452 = vset.pattern.permute.xlu0 1
    %1453 = vperm.xlu0 %1452, %v18
    %v1454 = vpop.permute.xlu0 %1453
    %1456 = vset.pattern.permute.xlu0 1
    %1457 = vperm.xlu0 %1456, %v19
    %v1458 = vpop.permute.xlu0 %1457
    %1460 = vset.pattern.permute.xlu0 1
    %1461 = vperm.xlu0 %1460, %v20
    %v1462 = vpop.permute.xlu0 %1461
    %1464 = vset.pattern.permute.xlu0 1
    %1465 = vperm.xlu0 %1464, %v21
    %v1466 = vpop.permute.xlu0 %1465
    %1468 = vset.pattern.permute.xlu0 1
    %1469 = vperm.xlu0 %1468, %v22
    %v1470 = vpop.permute.xlu0 %1469
    %1472 = vset.pattern.permute.xlu0 1
    %1473 = vperm.xlu0 %1472, %v23
    %v1474 = vpop.permute.xlu0 %1473
    %1476 = vset.pattern.permute.xlu0 1
    %1477 = vperm.xlu0 %1476, %v24
    %v1478 = vpop.permute.xlu0 %1477
    %1480 = vset.pattern.permute.xlu0 1
    %1481 = vperm.xlu0 %1480, %v25
    %v1482 = vpop.permute.xlu0 %1481
    %1484 = vset.pattern.permute.xlu0 1
    %1485 = vperm.xlu0 %1484, %v26
    %v1486 = vpop.permute.xlu0 %1485
    %1488 = vset.pattern.permute.xlu0 1
    %1489 = vperm.xlu0 %1488, %v27
    %v1490 = vpop.permute.xlu0 %1489
    %1492 = vset.pattern.permute.xlu0 1
    %1493 = vperm.xlu0 %1492, %v28
    %v1494 = vpop.permute.xlu0 %1493
    %1496 = vset.pattern.permute.xlu0 1
    %1497 = vperm.xlu0 %1496, %v29
    %v1498 = vpop.permute.xlu0 %1497
    %1500 = vset.pattern.permute.xlu0 1
    %1501 = vperm.xlu0 %1500, %v30
    %v1502 = vpop.permute.xlu0 %1501
    %1504 = vset.pattern.permute.xlu0 1
    %1505 = vperm.xlu0 %1504, %v31
    %v1506 = vpop.permute.xlu0 %1505
    %1508 = vset.pattern.permute.xlu0 1
    %1509 = vperm.xlu0 %1508, %v32
    %v1510 = vpop.permute.xlu0 %1509
    %1512 = vset.pattern.permute.xlu0 1
    %1513 = vperm.xlu0 %1512, %v33
    %v1514 = vpop.permute.xlu0 %1513
    %1516 = vset.pattern.permute.xlu0 1
    %1517 = vperm.xlu0 %1516, %v34
    %v1518 = vpop.permute.xlu0 %1517
    %1520 = vset.pattern.permute.xlu0 1
    %1521 = vperm.xlu0 %1520, %v35
    %v1522 = vpop.permute.xlu0 %1521
    %1524 = vset.pattern.permute.xlu0 1
    %1525 = vperm.xlu0 %1524, %v36
    %v1526 = vpop.permute.xlu0 %1525
    %1528 = vset.pattern.permute.xlu0 1
    %1529 = vperm.xlu0 %1528, %v37
    %v1530 = vpop.permute.xlu0 %1529
    %1532 = vset.pattern.permute.xlu0 1
    %1533 = vperm.xlu0 %1532, %v38
    %v1534 = vpop.permute.xlu0 %1533
    %1536 = vset.pattern.permute.xlu0 1
    %1537 = vperm.xlu0 %1536, %v39
    %v1538 = vpop.permute.xlu0 %1537
    %1540 = vset.pattern.permute.xlu0 1
    %1541 = vperm.xlu0 %1540, %v40
    %v1542 = vpop.permute.xlu0 %1541
    %1544 = vset.pattern.permute.xlu0 1
    %1545 = vperm.xlu0 %1544, %v41
    %v1546 = vpop.permute.xlu0 %1545
    %1548 = vset.pattern.permute.xlu0 1
    %1549 = vperm.xlu0 %1548, %v42
    %v1550 = vpop.permute.xlu0 %1549
    %1552 = vset.pattern.permute.xlu0 1
    %1553 = vperm.xlu0 %1552, %v43
    %v1554 = vpop.permute.xlu0 %1553
    %v1556 = vmul.f32 %v1399, %v1430
    %v1557 = vmul.f32 %v1399, %v1434
    %v1558 = vmul.f32 %v1399, %v1438
    %v1559 = vmul.f32 %v1399, %v1442
    %v1560 = vmul.f32 %v1399, %v1446
    %v1561 = vmul.f32 %v1399, %v1450
    %v1562 = vmul.f32 %v1399, %v1454
    %v1563 = vmul.f32 %v1399, %v1458
    %v1564 = vmul.f32 %v1399, %v1462
    %v1565 = vmul.f32 %v1399, %v1466
    %v1566 = vmul.f32 %v1399, %v1470
    %v1567 = vmul.f32 %v1399, %v1474
    %v1568 = vmul.f32 %v1399, %v1478
    %v1569 = vmul.f32 %v1399, %v1482
    %v1570 = vmul.f32 %v1399, %v1486
    %v1571 = vmul.f32 %v1399, %v1490
    %v1572 = vmul.f32 %v1399, %v1494
    %v1573 = vmul.f32 %v1399, %v1498
    %v1574 = vmul.f32 %v1399, %v1502
    %v1575 = vmul.f32 %v1399, %v1506
    %v1576 = vmul.f32 %v1399, %v1510
    %v1577 = vmul.f32 %v1399, %v1514
    %v1578 = vmul.f32 %v1399, %v1518
    %v1579 = vmul.f32 %v1399, %v1522
    %v1580 = vmul.f32 %v1399, %v1526
    %v1581 = vmul.f32 %v1399, %v1530
    %v1582 = vmul.f32 %v1399, %v1534
    %v1583 = vmul.f32 %v1399, %v1538
    %v1584 = vmul.f32 %v1399, %v1542
    %v1585 = vmul.f32 %v1399, %v1546
    %v1586 = vmul.f32 %v1399, %v1550
    %v1587 = vmul.f32 %v1399, %v1554
    %v1588 = vmul.f32 %v1403, %v1430
    %v1589 = vmul.f32 %v1403, %v1434
    %v1590 = vmul.f32 %v1403, %v1438
    %v1591 = vmul.f32 %v1403, %v1442
    %v1592 = vmul.f32 %v1403, %v1446
    %v1593 = vmul.f32 %v1403, %v1450
    %v1594 = vmul.f32 %v1403, %v1454
    %v1595 = vmul.f32 %v1403, %v1458
    %v1596 = vmul.f32 %v1403, %v1462
    %v1597 = vmul.f32 %v1403, %v1466
    %v1598 = vmul.f32 %v1403, %v1470
    %v1599 = vmul.f32 %v1403, %v1474
    %v1600 = vmul.f32 %v1403, %v1478
    %v1601 = vmul.f32 %v1403, %v1482
    %v1602 = vmul.f32 %v1403, %v1486
    %v1603 = vmul.f32 %v1403, %v1490
    %v1604 = vmul.f32 %v1403, %v1494
    %v1605 = vmul.f32 %v1403, %v1498
    %v1606 = vmul.f32 %v1403, %v1502
    %v1607 = vmul.f32 %v1403, %v1506
    %v1608 = vmul.f32 %v1403, %v1510
    %v1609 = vmul.f32 %v1403, %v1514
    %v1610 = vmul.f32 %v1403, %v1518
    %v1611 = vmul.f32 %v1403, %v1522
    %v1612 = vmul.f32 %v1403, %v1526
    %v1613 = vmul.f32 %v1403, %v1530
    %v1614 = vmul.f32 %v1403, %v1534
    %v1615 = vmul.f32 %v1403, %v1538
    %v1616 = vmul.f32 %v1403, %v1542
    %v1617 = vmul.f32 %v1403, %v1546
    %v1618 = vmul.f32 %v1403, %v1550
    %v1619 = vmul.f32 %v1403, %v1554
    %v1620 = vmul.f32 %v1407, %v1430
    %v1621 = vmul.f32 %v1407, %v1434
    %v1622 = vmul.f32 %v1407, %v1438
    %v1623 = vmul.f32 %v1407, %v1442
    %v1624 = vmul.f32 %v1407, %v1446
    %v1625 = vmul.f32 %v1407, %v1450
    %v1626 = vmul.f32 %v1407, %v1454
    %v1627 = vmul.f32 %v1407, %v1458
    %v1628 = vmul.f32 %v1407, %v1462
    %v1629 = vmul.f32 %v1407, %v1466
    %v1630 = vmul.f32 %v1407, %v1470
    %v1631 = vmul.f32 %v1407, %v1474
    %v1632 = vmul.f32 %v1407, %v1478
    %v1633 = vmul.f32 %v1407, %v1482
    %v1634 = vmul.f32 %v1407, %v1486
    %v1635 = vmul.f32 %v1407, %v1490
    %v1636 = vmul.f32 %v1407, %v1494
    %v1637 = vmul.f32 %v1407, %v1498
    %v1638 = vmul.f32 %v1407, %v1502
    %v1639 = vmul.f32 %v1407, %v1506
    %v1640 = vmul.f32 %v1407, %v1510
    %v1641 = vmul.f32 %v1407, %v1514
    %v1642 = vmul.f32 %v1407, %v1518
    %v1643 = vmul.f32 %v1407, %v1522
    %v1644 = vmul.f32 %v1407, %v1526
    %v1645 = vmul.f32 %v1407, %v1530
    %v1646 = vmul.f32 %v1407, %v1534
    %v1647 = vmul.f32 %v1407, %v1538
    %v1648 = vmul.f32 %v1407, %v1542
    %v1649 = vmul.f32 %v1407, %v1546
    %v1650 = vmul.f32 %v1407, %v1550
    %v1651 = vmul.f32 %v1407, %v1554
    %v1652 = vmul.f32 %v1411, %v1430
    %v1653 = vmul.f32 %v1411, %v1434
    %v1654 = vmul.f32 %v1411, %v1438
    %v1655 = vmul.f32 %v1411, %v1442
    %v1656 = vmul.f32 %v1411, %v1446
    %v1657 = vmul.f32 %v1411, %v1450
    %v1658 = vmul.f32 %v1411, %v1454
    %v1659 = vmul.f32 %v1411, %v1458
    %v1660 = vmul.f32 %v1411, %v1462
    %v1661 = vmul.f32 %v1411, %v1466
    %v1662 = vmul.f32 %v1411, %v1470
    %v1663 = vmul.f32 %v1411, %v1474
    %v1664 = vmul.f32 %v1411, %v1478
    %v1665 = vmul.f32 %v1411, %v1482
    %v1666 = vmul.f32 %v1411, %v1486
    %v1667 = vmul.f32 %v1411, %v1490
    %v1668 = vmul.f32 %v1411, %v1494
    %v1669 = vmul.f32 %v1411, %v1498
    %v1670 = vmul.f32 %v1411, %v1502
    %v1671 = vmul.f32 %v1411, %v1506
    %v1672 = vmul.f32 %v1411, %v1510
    %v1673 = vmul.f32 %v1411, %v1514
    %v1674 = vmul.f32 %v1411, %v1518
    %v1675 = vmul.f32 %v1411, %v1522
    %v1676 = vmul.f32 %v1411, %v1526
    %v1677 = vmul.f32 %v1411, %v1530
    %v1678 = vmul.f32 %v1411, %v1534
    %v1679 = vmul.f32 %v1411, %v1538
    %v1680 = vmul.f32 %v1411, %v1542
    %v1681 = vmul.f32 %v1411, %v1546
    %v1682 = vmul.f32 %v1411, %v1550
    %v1683 = vmul.f32 %v1411, %v1554
    %v1684 = vmul.f32 %v1415, %v1430
    %v1685 = vmul.f32 %v1415, %v1434
    %v1686 = vmul.f32 %v1415, %v1438
    %v1687 = vmul.f32 %v1415, %v1442
    %v1688 = vmul.f32 %v1415, %v1446
    %v1689 = vmul.f32 %v1415, %v1450
    %v1690 = vmul.f32 %v1415, %v1454
    %v1691 = vmul.f32 %v1415, %v1458
    %v1692 = vmul.f32 %v1415, %v1462
    %v1693 = vmul.f32 %v1415, %v1466
    %v1694 = vmul.f32 %v1415, %v1470
    %v1695 = vmul.f32 %v1415, %v1474
    %v1696 = vmul.f32 %v1415, %v1478
    %v1697 = vmul.f32 %v1415, %v1482
    %v1698 = vmul.f32 %v1415, %v1486
    %v1699 = vmul.f32 %v1415, %v1490
    %v1700 = vmul.f32 %v1415, %v1494
    %v1701 = vmul.f32 %v1415, %v1498
    %v1702 = vmul.f32 %v1415, %v1502
    %v1703 = vmul.f32 %v1415, %v1506
    %v1704 = vmul.f32 %v1415, %v1510
    %v1705 = vmul.f32 %v1415, %v1514
    %v1706 = vmul.f32 %v1415, %v1518
    %v1707 = vmul.f32 %v1415, %v1522
    %v1708 = vmul.f32 %v1415, %v1526
    %v1709 = vmul.f32 %v1415, %v1530
    %v1710 = vmul.f32 %v1415, %v1534
    %v1711 = vmul.f32 %v1415, %v1538
    %v1712 = vmul.f32 %v1415, %v1542
    %v1713 = vmul.f32 %v1415, %v1546
    %v1714 = vmul.f32 %v1415, %v1550
    %v1715 = vmul.f32 %v1415, %v1554
    %v1716 = vmul.f32 %v1419, %v1430
    %v1717 = vmul.f32 %v1419, %v1434
    %v1718 = vmul.f32 %v1419, %v1438
    %v1719 = vmul.f32 %v1419, %v1442
    %v1720 = vmul.f32 %v1419, %v1446
    %v1721 = vmul.f32 %v1419, %v1450
    %v1722 = vmul.f32 %v1419, %v1454
    %v1723 = vmul.f32 %v1419, %v1458
    %v1724 = vmul.f32 %v1419, %v1462
    %v1725 = vmul.f32 %v1419, %v1466
    %v1726 = vmul.f32 %v1419, %v1470
    %v1727 = vmul.f32 %v1419, %v1474
    %v1728 = vmul.f32 %v1419, %v1478
    %v1729 = vmul.f32 %v1419, %v1482
    %v1730 = vmul.f32 %v1419, %v1486
    %v1731 = vmul.f32 %v1419, %v1490
    %v1732 = vmul.f32 %v1419, %v1494
    %v1733 = vmul.f32 %v1419, %v1498
    %v1734 = vmul.f32 %v1419, %v1502
    %v1735 = vmul.f32 %v1419, %v1506
    %v1736 = vmul.f32 %v1419, %v1510
    %v1737 = vmul.f32 %v1419, %v1514
    %v1738 = vmul.f32 %v1419, %v1518
    %v1739 = vmul.f32 %v1419, %v1522
    %v1740 = vmul.f32 %v1419, %v1526
    %v1741 = vmul.f32 %v1419, %v1530
    %v1742 = vmul.f32 %v1419, %v1534
    %v1743 = vmul.f32 %v1419, %v1538
    %v1744 = vmul.f32 %v1419, %v1542
    %v1745 = vmul.f32 %v1419, %v1546
    %v1746 = vmul.f32 %v1419, %v1550
    %v1747 = vmul.f32 %v1419, %v1554
    %v1748 = vmul.f32 %v1423, %v1430
    %v1749 = vmul.f32 %v1423, %v1434
    %v1750 = vmul.f32 %v1423, %v1438
    %v1751 = vmul.f32 %v1423, %v1442
    %v1752 = vmul.f32 %v1423, %v1446
    %v1753 = vmul.f32 %v1423, %v1450
    %v1754 = vmul.f32 %v1423, %v1454
    %v1755 = vmul.f32 %v1423, %v1458
    %v1756 = vmul.f32 %v1423, %v1462
    %v1757 = vmul.f32 %v1423, %v1466
    %v1758 = vmul.f32 %v1423, %v1470
    %v1759 = vmul.f32 %v1423, %v1474
    %v1760 = vmul.f32 %v1423, %v1478
    %v1761 = vmul.f32 %v1423, %v1482
    %v1762 = vmul.f32 %v1423, %v1486
    %v1763 = vmul.f32 %v1423, %v1490
    %v1764 = vmul.f32 %v1423, %v1494
    %v1765 = vmul.f32 %v1423, %v1498
    %v1766 = vmul.f32 %v1423, %v1502
    %v1767 = vmul.f32 %v1423, %v1506
    %v1768 = vmul.f32 %v1423, %v1510
    %v1769 = vmul.f32 %v1423, %v1514
    %v1770 = vmul.f32 %v1423, %v1518
    %v1771 = vmul.f32 %v1423, %v1522
    %v1772 = vmul.f32 %v1423, %v1526
    %v1773 = vmul.f32 %v1423, %v1530
    %v1774 = vmul.f32 %v1423, %v1534
    %v1775 = vmul.f32 %v1423, %v1538
    %v1776 = vmul.f32 %v1423, %v1542
    %v1777 = vmul.f32 %v1423, %v1546
    %v1778 = vmul.f32 %v1423, %v1550
    %v1779 = vmul.f32 %v1423, %v1554
    %v1780 = vmul.f32 %v1427, %v1430
    %v1781 = vmul.f32 %v1427, %v1434
    %v1782 = vmul.f32 %v1427, %v1438
    %v1783 = vmul.f32 %v1427, %v1442
    %v1784 = vmul.f32 %v1427, %v1446
    %v1785 = vmul.f32 %v1427, %v1450
    %v1786 = vmul.f32 %v1427, %v1454
    %v1787 = vmul.f32 %v1427, %v1458
    %v1788 = vmul.f32 %v1427, %v1462
    %v1789 = vmul.f32 %v1427, %v1466
    %v1790 = vmul.f32 %v1427, %v1470
    %v1791 = vmul.f32 %v1427, %v1474
    %v1792 = vmul.f32 %v1427, %v1478
    %v1793 = vmul.f32 %v1427, %v1482
    %v1794 = vmul.f32 %v1427, %v1486
    %v1795 = vmul.f32 %v1427, %v1490
    %v1796 = vmul.f32 %v1427, %v1494
    %v1797 = vmul.f32 %v1427, %v1498
    %v1798 = vmul.f32 %v1427, %v1502
    %v1799 = vmul.f32 %v1427, %v1506
    %v1800 = vmul.f32 %v1427, %v1510
    %v1801 = vmul.f32 %v1427, %v1514
    %v1802 = vmul.f32 %v1427, %v1518
    %v1803 = vmul.f32 %v1427, %v1522
    %v1804 = vmul.f32 %v1427, %v1526
    %v1805 = vmul.f32 %v1427, %v1530
    %v1806 = vmul.f32 %v1427, %v1534
    %v1807 = vmul.f32 %v1427, %v1538
    %v1808 = vmul.f32 %v1427, %v1542
    %v1809 = vmul.f32 %v1427, %v1546
    %v1810 = vmul.f32 %v1427, %v1550
    %v1811 = vmul.f32 %v1427, %v1554
    %v1812 = vadd.f32 %v1140, %v1556
    %v1813 = vadd.f32 %v1141, %v1557
    %v1814 = vadd.f32 %v1142, %v1558
    %v1815 = vadd.f32 %v1143, %v1559
    %v1816 = vadd.f32 %v1144, %v1560
    %v1817 = vadd.f32 %v1145, %v1561
    %v1818 = vadd.f32 %v1146, %v1562
    %v1819 = vadd.f32 %v1147, %v1563
    %v1820 = vadd.f32 %v1148, %v1564
    %v1821 = vadd.f32 %v1149, %v1565
    %v1822 = vadd.f32 %v1150, %v1566
    %v1823 = vadd.f32 %v1151, %v1567
    %v1824 = vadd.f32 %v1152, %v1568
    %v1825 = vadd.f32 %v1153, %v1569
    %v1826 = vadd.f32 %v1154, %v1570
    %v1827 = vadd.f32 %v1155, %v1571
    %v1828 = vadd.f32 %v1156, %v1572
    %v1829 = vadd.f32 %v1157, %v1573
    %v1830 = vadd.f32 %v1158, %v1574
    %v1831 = vadd.f32 %v1159, %v1575
    %v1832 = vadd.f32 %v1160, %v1576
    %v1833 = vadd.f32 %v1161, %v1577
    %v1834 = vadd.f32 %v1162, %v1578
    %v1835 = vadd.f32 %v1163, %v1579
    %v1836 = vadd.f32 %v1164, %v1580
    %v1837 = vadd.f32 %v1165, %v1581
    %v1838 = vadd.f32 %v1166, %v1582
    %v1839 = vadd.f32 %v1167, %v1583
    %v1840 = vadd.f32 %v1168, %v1584
    %v1841 = vadd.f32 %v1169, %v1585
    %v1842 = vadd.f32 %v1170, %v1586
    %v1843 = vadd.f32 %v1171, %v1587
    %v1844 = vadd.f32 %v1172, %v1588
    %v1845 = vadd.f32 %v1173, %v1589
    %v1846 = vadd.f32 %v1174, %v1590
    %v1847 = vadd.f32 %v1175, %v1591
    %v1848 = vadd.f32 %v1176, %v1592
    %v1849 = vadd.f32 %v1177, %v1593
    %v1850 = vadd.f32 %v1178, %v1594
    %v1851 = vadd.f32 %v1179, %v1595
    %v1852 = vadd.f32 %v1180, %v1596
    %v1853 = vadd.f32 %v1181, %v1597
    %v1854 = vadd.f32 %v1182, %v1598
    %v1855 = vadd.f32 %v1183, %v1599
    %v1856 = vadd.f32 %v1184, %v1600
    %v1857 = vadd.f32 %v1185, %v1601
    %v1858 = vadd.f32 %v1186, %v1602
    %v1859 = vadd.f32 %v1187, %v1603
    %v1860 = vadd.f32 %v1188, %v1604
    %v1861 = vadd.f32 %v1189, %v1605
    %v1862 = vadd.f32 %v1190, %v1606
    %v1863 = vadd.f32 %v1191, %v1607
    %v1864 = vadd.f32 %v1192, %v1608
    %v1865 = vadd.f32 %v1193, %v1609
    %v1866 = vadd.f32 %v1194, %v1610
    %v1867 = vadd.f32 %v1195, %v1611
    %v1868 = vadd.f32 %v1196, %v1612
    %v1869 = vadd.f32 %v1197, %v1613
    %v1870 = vadd.f32 %v1198, %v1614
    %v1871 = vadd.f32 %v1199, %v1615
    %v1872 = vadd.f32 %v1200, %v1616
    %v1873 = vadd.f32 %v1201, %v1617
    %v1874 = vadd.f32 %v1202, %v1618
    %v1875 = vadd.f32 %v1203, %v1619
    %v1876 = vadd.f32 %v1204, %v1620
    %v1877 = vadd.f32 %v1205, %v1621
    %v1878 = vadd.f32 %v1206, %v1622
    %v1879 = vadd.f32 %v1207, %v1623
    %v1880 = vadd.f32 %v1208, %v1624
    %v1881 = vadd.f32 %v1209, %v1625
    %v1882 = vadd.f32 %v1210, %v1626
    %v1883 = vadd.f32 %v1211, %v1627
    %v1884 = vadd.f32 %v1212, %v1628
    %v1885 = vadd.f32 %v1213, %v1629
    %v1886 = vadd.f32 %v1214, %v1630
    %v1887 = vadd.f32 %v1215, %v1631
    %v1888 = vadd.f32 %v1216, %v1632
    %v1889 = vadd.f32 %v1217, %v1633
    %v1890 = vadd.f32 %v1218, %v1634
    %v1891 = vadd.f32 %v1219, %v1635
    %v1892 = vadd.f32 %v1220, %v1636
    %v1893 = vadd.f32 %v1221, %v1637
    %v1894 = vadd.f32 %v1222, %v1638
    %v1895 = vadd.f32 %v1223, %v1639
    %v1896 = vadd.f32 %v1224, %v1640
    %v1897 = vadd.f32 %v1225, %v1641
    %v1898 = vadd.f32 %v1226, %v1642
    %v1899 = vadd.f32 %v1227, %v1643
    %v1900 = vadd.f32 %v1228, %v1644
    %v1901 = vadd.f32 %v1229, %v1645
    %v1902 = vadd.f32 %v1230, %v1646
    %v1903 = vadd.f32 %v1231, %v1647
    %v1904 = vadd.f32 %v1232, %v1648
    %v1905 = vadd.f32 %v1233, %v1649
    %v1906 = vadd.f32 %v1234, %v1650
    %v1907 = vadd.f32 %v1235, %v1651
    %v1908 = vadd.f32 %v1236, %v1652
    %v1909 = vadd.f32 %v1237, %v1653
    %v1910 = vadd.f32 %v1238, %v1654
    %v1911 = vadd.f32 %v1239, %v1655
    %v1912 = vadd.f32 %v1240, %v1656
    %v1913 = vadd.f32 %v1241, %v1657
    %v1914 = vadd.f32 %v1242, %v1658
    %v1915 = vadd.f32 %v1243, %v1659
    %v1916 = vadd.f32 %v1244, %v1660
    %v1917 = vadd.f32 %v1245, %v1661
    %v1918 = vadd.f32 %v1246, %v1662
    %v1919 = vadd.f32 %v1247, %v1663
    %v1920 = vadd.f32 %v1248, %v1664
    %v1921 = vadd.f32 %v1249, %v1665
    %v1922 = vadd.f32 %v1250, %v1666
    %v1923 = vadd.f32 %v1251, %v1667
    %v1924 = vadd.f32 %v1252, %v1668
    %v1925 = vadd.f32 %v1253, %v1669
    %v1926 = vadd.f32 %v1254, %v1670
    %v1927 = vadd.f32 %v1255, %v1671
    %v1928 = vadd.f32 %v1256, %v1672
    %v1929 = vadd.f32 %v1257, %v1673
    %v1930 = vadd.f32 %v1258, %v1674
    %v1931 = vadd.f32 %v1259, %v1675
    %v1932 = vadd.f32 %v1260, %v1676
    %v1933 = vadd.f32 %v1261, %v1677
    %v1934 = vadd.f32 %v1262, %v1678
    %v1935 = vadd.f32 %v1263, %v1679
    %v1936 = vadd.f32 %v1264, %v1680
    %v1937 = vadd.f32 %v1265, %v1681
    %v1938 = vadd.f32 %v1266, %v1682
    %v1939 = vadd.f32 %v1267, %v1683
    %v1940 = vadd.f32 %v1268, %v1684
    %v1941 = vadd.f32 %v1269, %v1685
    %v1942 = vadd.f32 %v1270, %v1686
    %v1943 = vadd.f32 %v1271, %v1687
    %v1944 = vadd.f32 %v1272, %v1688
    %v1945 = vadd.f32 %v1273, %v1689
    %v1946 = vadd.f32 %v1274, %v1690
    %v1947 = vadd.f32 %v1275, %v1691
    %v1948 = vadd.f32 %v1276, %v1692
    %v1949 = vadd.f32 %v1277, %v1693
    %v1950 = vadd.f32 %v1278, %v1694
    %v1951 = vadd.f32 %v1279, %v1695
    %v1952 = vadd.f32 %v1280, %v1696
    %v1953 = vadd.f32 %v1281, %v1697
    %v1954 = vadd.f32 %v1282, %v1698
    %v1955 = vadd.f32 %v1283, %v1699
    %v1956 = vadd.f32 %v1284, %v1700
    %v1957 = vadd.f32 %v1285, %v1701
    %v1958 = vadd.f32 %v1286, %v1702
    %v1959 = vadd.f32 %v1287, %v1703
    %v1960 = vadd.f32 %v1288, %v1704
    %v1961 = vadd.f32 %v1289, %v1705
    %v1962 = vadd.f32 %v1290, %v1706
    %v1963 = vadd.f32 %v1291, %v1707
    %v1964 = vadd.f32 %v1292, %v1708
    %v1965 = vadd.f32 %v1293, %v1709
    %v1966 = vadd.f32 %v1294, %v1710
    %v1967 = vadd.f32 %v1295, %v1711
    %v1968 = vadd.f32 %v1296, %v1712
    %v1969 = vadd.f32 %v1297, %v1713
    %v1970 = vadd.f32 %v1298, %v1714
    %v1971 = vadd.f32 %v1299, %v1715
    %v1972 = vadd.f32 %v1300, %v1716
    %v1973 = vadd.f32 %v1301, %v1717
    %v1974 = vadd.f32 %v1302, %v1718
    %v1975 = vadd.f32 %v1303, %v1719
    %v1976 = vadd.f32 %v1304, %v1720
    %v1977 = vadd.f32 %v1305, %v1721
    %v1978 = vadd.f32 %v1306, %v1722
    %v1979 = vadd.f32 %v1307, %v1723
    %v1980 = vadd.f32 %v1308, %v1724
    %v1981 = vadd.f32 %v1309, %v1725
    %v1982 = vadd.f32 %v1310, %v1726
    %v1983 = vadd.f32 %v1311, %v1727
    %v1984 = vadd.f32 %v1312, %v1728
    %v1985 = vadd.f32 %v1313, %v1729
    %v1986 = vadd.f32 %v1314, %v1730
    %v1987 = vadd.f32 %v1315, %v1731
    %v1988 = vadd.f32 %v1316, %v1732
    %v1989 = vadd.f32 %v1317, %v1733
    %v1990 = vadd.f32 %v1318, %v1734
    %v1991 = vadd.f32 %v1319, %v1735
    %v1992 = vadd.f32 %v1320, %v1736
    %v1993 = vadd.f32 %v1321, %v1737
    %v1994 = vadd.f32 %v1322, %v1738
    %v1995 = vadd.f32 %v1323, %v1739
    %v1996 = vadd.f32 %v1324, %v1740
    %v1997 = vadd.f32 %v1325, %v1741
    %v1998 = vadd.f32 %v1326, %v1742
    %v1999 = vadd.f32 %v1327, %v1743
    %v2000 = vadd.f32 %v1328, %v1744
    %v2001 = vadd.f32 %v1329, %v1745
    %v2002 = vadd.f32 %v1330, %v1746
    %v2003 = vadd.f32 %v1331, %v1747
    %v2004 = vadd.f32 %v1332, %v1748
    %v2005 = vadd.f32 %v1333, %v1749
    %v2006 = vadd.f32 %v1334, %v1750
    %v2007 = vadd.f32 %v1335, %v1751
    %v2008 = vadd.f32 %v1336, %v1752
    %v2009 = vadd.f32 %v1337, %v1753
    %v2010 = vadd.f32 %v1338, %v1754
    %v2011 = vadd.f32 %v1339, %v1755
    %v2012 = vadd.f32 %v1340, %v1756
    %v2013 = vadd.f32 %v1341, %v1757
    %v2014 = vadd.f32 %v1342, %v1758
    %v2015 = vadd.f32 %v1343, %v1759
    %v2016 = vadd.f32 %v1344, %v1760
    %v2017 = vadd.f32 %v1345, %v1761
    %v2018 = vadd.f32 %v1346, %v1762
    %v2019 = vadd.f32 %v1347, %v1763
    %v2020 = vadd.f32 %v1348, %v1764
    %v2021 = vadd.f32 %v1349, %v1765
    %v2022 = vadd.f32 %v1350, %v1766
    %v2023 = vadd.f32 %v1351, %v1767
    %v2024 = vadd.f32 %v1352, %v1768
    %v2025 = vadd.f32 %v1353, %v1769
    %v2026 = vadd.f32 %v1354, %v1770
    %v2027 = vadd.f32 %v1355, %v1771
    %v2028 = vadd.f32 %v1356, %v1772
    %v2029 = vadd.f32 %v1357, %v1773
    %v2030 = vadd.f32 %v1358, %v1774
    %v2031 = vadd.f32 %v1359, %v1775
    %v2032 = vadd.f32 %v1360, %v1776
    %v2033 = vadd.f32 %v1361, %v1777
    %v2034 = vadd.f32 %v1362, %v1778
    %v2035 = vadd.f32 %v1363, %v1779
    %v2036 = vadd.f32 %v1364, %v1780
    %v2037 = vadd.f32 %v1365, %v1781
    %v2038 = vadd.f32 %v1366, %v1782
    %v2039 = vadd.f32 %v1367, %v1783
    %v2040 = vadd.f32 %v1368, %v1784
    %v2041 = vadd.f32 %v1369, %v1785
    %v2042 = vadd.f32 %v1370, %v1786
    %v2043 = vadd.f32 %v1371, %v1787
    %v2044 = vadd.f32 %v1372, %v1788
    %v2045 = vadd.f32 %v1373, %v1789
    %v2046 = vadd.f32 %v1374, %v1790
    %v2047 = vadd.f32 %v1375, %v1791
    %v2048 = vadd.f32 %v1376, %v1792
    %v2049 = vadd.f32 %v1377, %v1793
    %v2050 = vadd.f32 %v1378, %v1794
    %v2051 = vadd.f32 %v1379, %v1795
    %v2052 = vadd.f32 %v1380, %v1796
    %v2053 = vadd.f32 %v1381, %v1797
    %v2054 = vadd.f32 %v1382, %v1798
    %v2055 = vadd.f32 %v1383, %v1799
    %v2056 = vadd.f32 %v1384, %v1800
    %v2057 = vadd.f32 %v1385, %v1801
    %v2058 = vadd.f32 %v1386, %v1802
    %v2059 = vadd.f32 %v1387, %v1803
    %v2060 = vadd.f32 %v1388, %v1804
    %v2061 = vadd.f32 %v1389, %v1805
    %v2062 = vadd.f32 %v1390, %v1806
    %v2063 = vadd.f32 %v1391, %v1807
    %v2064 = vadd.f32 %v1392, %v1808
    %v2065 = vadd.f32 %v1393, %v1809
    %v2066 = vadd.f32 %v1394, %v1810
    %v2067 = vadd.f32 %v1395, %v1811
    %v2068 = vlaneseq
    %v2069 = vshrl.u32 %v2068, 7
    %v2070 = vsub.s32 2, %v2069
    %v2071 = vrot.slane %v300, %v2070
    %v2072 = vlaneseq
    %v2073 = vshrl.u32 %v2072, 7
    %v2074 = vsub.s32 2, %v2073
    %v2075 = vrot.slane %v301, %v2074
    %v2076 = vlaneseq
    %v2077 = vshrl.u32 %v2076, 7
    %v2078 = vsub.s32 2, %v2077
    %v2079 = vrot.slane %v302, %v2078
    %v2080 = vlaneseq
    %v2081 = vshrl.u32 %v2080, 7
    %v2082 = vsub.s32 2, %v2081
    %v2083 = vrot.slane %v303, %v2082
    %v2084 = vlaneseq
    %v2085 = vshrl.u32 %v2084, 7
    %v2086 = vsub.s32 2, %v2085
    %v2087 = vrot.slane %v304, %v2086
    %v2088 = vlaneseq
    %v2089 = vshrl.u32 %v2088, 7
    %v2090 = vsub.s32 2, %v2089
    %v2091 = vrot.slane %v305, %v2090
    %v2092 = vlaneseq
    %v2093 = vshrl.u32 %v2092, 7
    %v2094 = vsub.s32 2, %v2093
    %v2095 = vrot.slane %v306, %v2094
    %v2096 = vlaneseq
    %v2097 = vshrl.u32 %v2096, 7
    %v2098 = vsub.s32 2, %v2097
    %v2099 = vrot.slane %v307, %v2098
    %2100 = vset.pattern.permute.xlu0 2
    %2101 = vperm.xlu0 %2100, %v12
    %v2102 = vpop.permute.xlu0 %2101
    %2104 = vset.pattern.permute.xlu0 2
    %2105 = vperm.xlu0 %2104, %v13
    %v2106 = vpop.permute.xlu0 %2105
    %2108 = vset.pattern.permute.xlu0 2
    %2109 = vperm.xlu0 %2108, %v14
    %v2110 = vpop.permute.xlu0 %2109
    %2112 = vset.pattern.permute.xlu0 2
    %2113 = vperm.xlu0 %2112, %v15
    %v2114 = vpop.permute.xlu0 %2113
    %2116 = vset.pattern.permute.xlu0 2
    %2117 = vperm.xlu0 %2116, %v16
    %v2118 = vpop.permute.xlu0 %2117
    %2120 = vset.pattern.permute.xlu0 2
    %2121 = vperm.xlu0 %2120, %v17
    %v2122 = vpop.permute.xlu0 %2121
    %2124 = vset.pattern.permute.xlu0 2
    %2125 = vperm.xlu0 %2124, %v18
    %v2126 = vpop.permute.xlu0 %2125
    %2128 = vset.pattern.permute.xlu0 2
    %2129 = vperm.xlu0 %2128, %v19
    %v2130 = vpop.permute.xlu0 %2129
    %2132 = vset.pattern.permute.xlu0 2
    %2133 = vperm.xlu0 %2132, %v20
    %v2134 = vpop.permute.xlu0 %2133
    %2136 = vset.pattern.permute.xlu0 2
    %2137 = vperm.xlu0 %2136, %v21
    %v2138 = vpop.permute.xlu0 %2137
    %2140 = vset.pattern.permute.xlu0 2
    %2141 = vperm.xlu0 %2140, %v22
    %v2142 = vpop.permute.xlu0 %2141
    %2144 = vset.pattern.permute.xlu0 2
    %2145 = vperm.xlu0 %2144, %v23
    %v2146 = vpop.permute.xlu0 %2145
    %2148 = vset.pattern.permute.xlu0 2
    %2149 = vperm.xlu0 %2148, %v24
    %v2150 = vpop.permute.xlu0 %2149
    %2152 = vset.pattern.permute.xlu0 2
    %2153 = vperm.xlu0 %2152, %v25
    %v2154 = vpop.permute.xlu0 %2153
    %2156 = vset.pattern.permute.xlu0 2
    %2157 = vperm.xlu0 %2156, %v26
    %v2158 = vpop.permute.xlu0 %2157
    %2160 = vset.pattern.permute.xlu0 2
    %2161 = vperm.xlu0 %2160, %v27
    %v2162 = vpop.permute.xlu0 %2161
    %2164 = vset.pattern.permute.xlu0 2
    %2165 = vperm.xlu0 %2164, %v28
    %v2166 = vpop.permute.xlu0 %2165
    %2168 = vset.pattern.permute.xlu0 2
    %2169 = vperm.xlu0 %2168, %v29
    %v2170 = vpop.permute.xlu0 %2169
    %2172 = vset.pattern.permute.xlu0 2
    %2173 = vperm.xlu0 %2172, %v30
    %v2174 = vpop.permute.xlu0 %2173
    %2176 = vset.pattern.permute.xlu0 2
    %2177 = vperm.xlu0 %2176, %v31
    %v2178 = vpop.permute.xlu0 %2177
    %2180 = vset.pattern.permute.xlu0 2
    %2181 = vperm.xlu0 %2180, %v32
    %v2182 = vpop.permute.xlu0 %2181
    %2184 = vset.pattern.permute.xlu0 2
    %2185 = vperm.xlu0 %2184, %v33
    %v2186 = vpop.permute.xlu0 %2185
    %2188 = vset.pattern.permute.xlu0 2
    %2189 = vperm.xlu0 %2188, %v34
    %v2190 = vpop.permute.xlu0 %2189
    %2192 = vset.pattern.permute.xlu0 2
    %2193 = vperm.xlu0 %2192, %v35
    %v2194 = vpop.permute.xlu0 %2193
    %2196 = vset.pattern.permute.xlu0 2
    %2197 = vperm.xlu0 %2196, %v36
    %v2198 = vpop.permute.xlu0 %2197
    %2200 = vset.pattern.permute.xlu0 2
    %2201 = vperm.xlu0 %2200, %v37
    %v2202 = vpop.permute.xlu0 %2201
    %2204 = vset.pattern.permute.xlu0 2
    %2205 = vperm.xlu0 %2204, %v38
    %v2206 = vpop.permute.xlu0 %2205
    %2208 = vset.pattern.permute.xlu0 2
    %2209 = vperm.xlu0 %2208, %v39
    %v2210 = vpop.permute.xlu0 %2209
    %2212 = vset.pattern.permute.xlu0 2
    %2213 = vperm.xlu0 %2212, %v40
    %v2214 = vpop.permute.xlu0 %2213
    %2216 = vset.pattern.permute.xlu0 2
    %2217 = vperm.xlu0 %2216, %v41
    %v2218 = vpop.permute.xlu0 %2217
    %2220 = vset.pattern.permute.xlu0 2
    %2221 = vperm.xlu0 %2220, %v42
    %v2222 = vpop.permute.xlu0 %2221
    %2224 = vset.pattern.permute.xlu0 2
    %2225 = vperm.xlu0 %2224, %v43
    %v2226 = vpop.permute.xlu0 %2225
    %v2228 = vmul.f32 %v2071, %v2102
    %v2229 = vmul.f32 %v2071, %v2106
    %v2230 = vmul.f32 %v2071, %v2110
    %v2231 = vmul.f32 %v2071, %v2114
    %v2232 = vmul.f32 %v2071, %v2118
    %v2233 = vmul.f32 %v2071, %v2122
    %v2234 = vmul.f32 %v2071, %v2126
    %v2235 = vmul.f32 %v2071, %v2130
    %v2236 = vmul.f32 %v2071, %v2134
    %v2237 = vmul.f32 %v2071, %v2138
    %v2238 = vmul.f32 %v2071, %v2142
    %v2239 = vmul.f32 %v2071, %v2146
    %v2240 = vmul.f32 %v2071, %v2150
    %v2241 = vmul.f32 %v2071, %v2154
    %v2242 = vmul.f32 %v2071, %v2158
    %v2243 = vmul.f32 %v2071, %v2162
    %v2244 = vmul.f32 %v2071, %v2166
    %v2245 = vmul.f32 %v2071, %v2170
    %v2246 = vmul.f32 %v2071, %v2174
    %v2247 = vmul.f32 %v2071, %v2178
    %v2248 = vmul.f32 %v2071, %v2182
    %v2249 = vmul.f32 %v2071, %v2186
    %v2250 = vmul.f32 %v2071, %v2190
    %v2251 = vmul.f32 %v2071, %v2194
    %v2252 = vmul.f32 %v2071, %v2198
    %v2253 = vmul.f32 %v2071, %v2202
    %v2254 = vmul.f32 %v2071, %v2206
    %v2255 = vmul.f32 %v2071, %v2210
    %v2256 = vmul.f32 %v2071, %v2214
    %v2257 = vmul.f32 %v2071, %v2218
    %v2258 = vmul.f32 %v2071, %v2222
    %v2259 = vmul.f32 %v2071, %v2226
    %v2260 = vmul.f32 %v2075, %v2102
    %v2261 = vmul.f32 %v2075, %v2106
    %v2262 = vmul.f32 %v2075, %v2110
    %v2263 = vmul.f32 %v2075, %v2114
    %v2264 = vmul.f32 %v2075, %v2118
    %v2265 = vmul.f32 %v2075, %v2122
    %v2266 = vmul.f32 %v2075, %v2126
    %v2267 = vmul.f32 %v2075, %v2130
    %v2268 = vmul.f32 %v2075, %v2134
    %v2269 = vmul.f32 %v2075, %v2138
    %v2270 = vmul.f32 %v2075, %v2142
    %v2271 = vmul.f32 %v2075, %v2146
    %v2272 = vmul.f32 %v2075, %v2150
    %v2273 = vmul.f32 %v2075, %v2154
    %v2274 = vmul.f32 %v2075, %v2158
    %v2275 = vmul.f32 %v2075, %v2162
    %v2276 = vmul.f32 %v2075, %v2166
    %v2277 = vmul.f32 %v2075, %v2170
    %v2278 = vmul.f32 %v2075, %v2174
    %v2279 = vmul.f32 %v2075, %v2178
    %v2280 = vmul.f32 %v2075, %v2182
    %v2281 = vmul.f32 %v2075, %v2186
    %v2282 = vmul.f32 %v2075, %v2190
    %v2283 = vmul.f32 %v2075, %v2194
    %v2284 = vmul.f32 %v2075, %v2198
    %v2285 = vmul.f32 %v2075, %v2202
    %v2286 = vmul.f32 %v2075, %v2206
    %v2287 = vmul.f32 %v2075, %v2210
    %v2288 = vmul.f32 %v2075, %v2214
    %v2289 = vmul.f32 %v2075, %v2218
    %v2290 = vmul.f32 %v2075, %v2222
    %v2291 = vmul.f32 %v2075, %v2226
    %v2292 = vmul.f32 %v2079, %v2102
    %v2293 = vmul.f32 %v2079, %v2106
    %v2294 = vmul.f32 %v2079, %v2110
    %v2295 = vmul.f32 %v2079, %v2114
    %v2296 = vmul.f32 %v2079, %v2118
    %v2297 = vmul.f32 %v2079, %v2122
    %v2298 = vmul.f32 %v2079, %v2126
    %v2299 = vmul.f32 %v2079, %v2130
    %v2300 = vmul.f32 %v2079, %v2134
    %v2301 = vmul.f32 %v2079, %v2138
    %v2302 = vmul.f32 %v2079, %v2142
    %v2303 = vmul.f32 %v2079, %v2146
    %v2304 = vmul.f32 %v2079, %v2150
    %v2305 = vmul.f32 %v2079, %v2154
    %v2306 = vmul.f32 %v2079, %v2158
    %v2307 = vmul.f32 %v2079, %v2162
    %v2308 = vmul.f32 %v2079, %v2166
    %v2309 = vmul.f32 %v2079, %v2170
    %v2310 = vmul.f32 %v2079, %v2174
    %v2311 = vmul.f32 %v2079, %v2178
    %v2312 = vmul.f32 %v2079, %v2182
    %v2313 = vmul.f32 %v2079, %v2186
    %v2314 = vmul.f32 %v2079, %v2190
    %v2315 = vmul.f32 %v2079, %v2194
    %v2316 = vmul.f32 %v2079, %v2198
    %v2317 = vmul.f32 %v2079, %v2202
    %v2318 = vmul.f32 %v2079, %v2206
    %v2319 = vmul.f32 %v2079, %v2210
    %v2320 = vmul.f32 %v2079, %v2214
    %v2321 = vmul.f32 %v2079, %v2218
    %v2322 = vmul.f32 %v2079, %v2222
    %v2323 = vmul.f32 %v2079, %v2226
    %v2324 = vmul.f32 %v2083, %v2102
    %v2325 = vmul.f32 %v2083, %v2106
    %v2326 = vmul.f32 %v2083, %v2110
    %v2327 = vmul.f32 %v2083, %v2114
    %v2328 = vmul.f32 %v2083, %v2118
    %v2329 = vmul.f32 %v2083, %v2122
    %v2330 = vmul.f32 %v2083, %v2126
    %v2331 = vmul.f32 %v2083, %v2130
    %v2332 = vmul.f32 %v2083, %v2134
    %v2333 = vmul.f32 %v2083, %v2138
    %v2334 = vmul.f32 %v2083, %v2142
    %v2335 = vmul.f32 %v2083, %v2146
    %v2336 = vmul.f32 %v2083, %v2150
    %v2337 = vmul.f32 %v2083, %v2154
    %v2338 = vmul.f32 %v2083, %v2158
    %v2339 = vmul.f32 %v2083, %v2162
    %v2340 = vmul.f32 %v2083, %v2166
    %v2341 = vmul.f32 %v2083, %v2170
    %v2342 = vmul.f32 %v2083, %v2174
    %v2343 = vmul.f32 %v2083, %v2178
    %v2344 = vmul.f32 %v2083, %v2182
    %v2345 = vmul.f32 %v2083, %v2186
    %v2346 = vmul.f32 %v2083, %v2190
    %v2347 = vmul.f32 %v2083, %v2194
    %v2348 = vmul.f32 %v2083, %v2198
    %v2349 = vmul.f32 %v2083, %v2202
    %v2350 = vmul.f32 %v2083, %v2206
    %v2351 = vmul.f32 %v2083, %v2210
    %v2352 = vmul.f32 %v2083, %v2214
    %v2353 = vmul.f32 %v2083, %v2218
    %v2354 = vmul.f32 %v2083, %v2222
    %v2355 = vmul.f32 %v2083, %v2226
    %v2356 = vmul.f32 %v2087, %v2102
    %v2357 = vmul.f32 %v2087, %v2106
    %v2358 = vmul.f32 %v2087, %v2110
    %v2359 = vmul.f32 %v2087, %v2114
    %v2360 = vmul.f32 %v2087, %v2118
    %v2361 = vmul.f32 %v2087, %v2122
    %v2362 = vmul.f32 %v2087, %v2126
    %v2363 = vmul.f32 %v2087, %v2130
    %v2364 = vmul.f32 %v2087, %v2134
    %v2365 = vmul.f32 %v2087, %v2138
    %v2366 = vmul.f32 %v2087, %v2142
    %v2367 = vmul.f32 %v2087, %v2146
    %v2368 = vmul.f32 %v2087, %v2150
    %v2369 = vmul.f32 %v2087, %v2154
    %v2370 = vmul.f32 %v2087, %v2158
    %v2371 = vmul.f32 %v2087, %v2162
    %v2372 = vmul.f32 %v2087, %v2166
    %v2373 = vmul.f32 %v2087, %v2170
    %v2374 = vmul.f32 %v2087, %v2174
    %v2375 = vmul.f32 %v2087, %v2178
    %v2376 = vmul.f32 %v2087, %v2182
    %v2377 = vmul.f32 %v2087, %v2186
    %v2378 = vmul.f32 %v2087, %v2190
    %v2379 = vmul.f32 %v2087, %v2194
    %v2380 = vmul.f32 %v2087, %v2198
    %v2381 = vmul.f32 %v2087, %v2202
    %v2382 = vmul.f32 %v2087, %v2206
    %v2383 = vmul.f32 %v2087, %v2210
    %v2384 = vmul.f32 %v2087, %v2214
    %v2385 = vmul.f32 %v2087, %v2218
    %v2386 = vmul.f32 %v2087, %v2222
    %v2387 = vmul.f32 %v2087, %v2226
    %v2388 = vmul.f32 %v2091, %v2102
    %v2389 = vmul.f32 %v2091, %v2106
    %v2390 = vmul.f32 %v2091, %v2110
    %v2391 = vmul.f32 %v2091, %v2114
    %v2392 = vmul.f32 %v2091, %v2118
    %v2393 = vmul.f32 %v2091, %v2122
    %v2394 = vmul.f32 %v2091, %v2126
    %v2395 = vmul.f32 %v2091, %v2130
    %v2396 = vmul.f32 %v2091, %v2134
    %v2397 = vmul.f32 %v2091, %v2138
    %v2398 = vmul.f32 %v2091, %v2142
    %v2399 = vmul.f32 %v2091, %v2146
    %v2400 = vmul.f32 %v2091, %v2150
    %v2401 = vmul.f32 %v2091, %v2154
    %v2402 = vmul.f32 %v2091, %v2158
    %v2403 = vmul.f32 %v2091, %v2162
    %v2404 = vmul.f32 %v2091, %v2166
    %v2405 = vmul.f32 %v2091, %v2170
    %v2406 = vmul.f32 %v2091, %v2174
    %v2407 = vmul.f32 %v2091, %v2178
    %v2408 = vmul.f32 %v2091, %v2182
    %v2409 = vmul.f32 %v2091, %v2186
    %v2410 = vmul.f32 %v2091, %v2190
    %v2411 = vmul.f32 %v2091, %v2194
    %v2412 = vmul.f32 %v2091, %v2198
    %v2413 = vmul.f32 %v2091, %v2202
    %v2414 = vmul.f32 %v2091, %v2206
    %v2415 = vmul.f32 %v2091, %v2210
    %v2416 = vmul.f32 %v2091, %v2214
    %v2417 = vmul.f32 %v2091, %v2218
    %v2418 = vmul.f32 %v2091, %v2222
    %v2419 = vmul.f32 %v2091, %v2226
    %v2420 = vmul.f32 %v2095, %v2102
    %v2421 = vmul.f32 %v2095, %v2106
    %v2422 = vmul.f32 %v2095, %v2110
    %v2423 = vmul.f32 %v2095, %v2114
    %v2424 = vmul.f32 %v2095, %v2118
    %v2425 = vmul.f32 %v2095, %v2122
    %v2426 = vmul.f32 %v2095, %v2126
    %v2427 = vmul.f32 %v2095, %v2130
    %v2428 = vmul.f32 %v2095, %v2134
    %v2429 = vmul.f32 %v2095, %v2138
    %v2430 = vmul.f32 %v2095, %v2142
    %v2431 = vmul.f32 %v2095, %v2146
    %v2432 = vmul.f32 %v2095, %v2150
    %v2433 = vmul.f32 %v2095, %v2154
    %v2434 = vmul.f32 %v2095, %v2158
    %v2435 = vmul.f32 %v2095, %v2162
    %v2436 = vmul.f32 %v2095, %v2166
    %v2437 = vmul.f32 %v2095, %v2170
    %v2438 = vmul.f32 %v2095, %v2174
    %v2439 = vmul.f32 %v2095, %v2178
    %v2440 = vmul.f32 %v2095, %v2182
    %v2441 = vmul.f32 %v2095, %v2186
    %v2442 = vmul.f32 %v2095, %v2190
    %v2443 = vmul.f32 %v2095, %v2194
    %v2444 = vmul.f32 %v2095, %v2198
    %v2445 = vmul.f32 %v2095, %v2202
    %v2446 = vmul.f32 %v2095, %v2206
    %v2447 = vmul.f32 %v2095, %v2210
    %v2448 = vmul.f32 %v2095, %v2214
    %v2449 = vmul.f32 %v2095, %v2218
    %v2450 = vmul.f32 %v2095, %v2222
    %v2451 = vmul.f32 %v2095, %v2226
    %v2452 = vmul.f32 %v2099, %v2102
    %v2453 = vmul.f32 %v2099, %v2106
    %v2454 = vmul.f32 %v2099, %v2110
    %v2455 = vmul.f32 %v2099, %v2114
    %v2456 = vmul.f32 %v2099, %v2118
    %v2457 = vmul.f32 %v2099, %v2122
    %v2458 = vmul.f32 %v2099, %v2126
    %v2459 = vmul.f32 %v2099, %v2130
    %v2460 = vmul.f32 %v2099, %v2134
    %v2461 = vmul.f32 %v2099, %v2138
    %v2462 = vmul.f32 %v2099, %v2142
    %v2463 = vmul.f32 %v2099, %v2146
    %v2464 = vmul.f32 %v2099, %v2150
    %v2465 = vmul.f32 %v2099, %v2154
    %v2466 = vmul.f32 %v2099, %v2158
    %v2467 = vmul.f32 %v2099, %v2162
    %v2468 = vmul.f32 %v2099, %v2166
    %v2469 = vmul.f32 %v2099, %v2170
    %v2470 = vmul.f32 %v2099, %v2174
    %v2471 = vmul.f32 %v2099, %v2178
    %v2472 = vmul.f32 %v2099, %v2182
    %v2473 = vmul.f32 %v2099, %v2186
    %v2474 = vmul.f32 %v2099, %v2190
    %v2475 = vmul.f32 %v2099, %v2194
    %v2476 = vmul.f32 %v2099, %v2198
    %v2477 = vmul.f32 %v2099, %v2202
    %v2478 = vmul.f32 %v2099, %v2206
    %v2479 = vmul.f32 %v2099, %v2210
    %v2480 = vmul.f32 %v2099, %v2214
    %v2481 = vmul.f32 %v2099, %v2218
    %v2482 = vmul.f32 %v2099, %v2222
    %v2483 = vmul.f32 %v2099, %v2226
    %v2484 = vadd.f32 %v1812, %v2228
    %v2485 = vadd.f32 %v1813, %v2229
    %v2486 = vadd.f32 %v1814, %v2230
    %v2487 = vadd.f32 %v1815, %v2231
    %v2488 = vadd.f32 %v1816, %v2232
    %v2489 = vadd.f32 %v1817, %v2233
    %v2490 = vadd.f32 %v1818, %v2234
    %v2491 = vadd.f32 %v1819, %v2235
    %v2492 = vadd.f32 %v1820, %v2236
    %v2493 = vadd.f32 %v1821, %v2237
    %v2494 = vadd.f32 %v1822, %v2238
    %v2495 = vadd.f32 %v1823, %v2239
    %v2496 = vadd.f32 %v1824, %v2240
    %v2497 = vadd.f32 %v1825, %v2241
    %v2498 = vadd.f32 %v1826, %v2242
    %v2499 = vadd.f32 %v1827, %v2243
    %v2500 = vadd.f32 %v1828, %v2244
    %v2501 = vadd.f32 %v1829, %v2245
    %v2502 = vadd.f32 %v1830, %v2246
    %v2503 = vadd.f32 %v1831, %v2247
    %v2504 = vadd.f32 %v1832, %v2248
    %v2505 = vadd.f32 %v1833, %v2249
    %v2506 = vadd.f32 %v1834, %v2250
    %v2507 = vadd.f32 %v1835, %v2251
    %v2508 = vadd.f32 %v1836, %v2252
    %v2509 = vadd.f32 %v1837, %v2253
    %v2510 = vadd.f32 %v1838, %v2254
    %v2511 = vadd.f32 %v1839, %v2255
    %v2512 = vadd.f32 %v1840, %v2256
    %v2513 = vadd.f32 %v1841, %v2257
    %v2514 = vadd.f32 %v1842, %v2258
    %v2515 = vadd.f32 %v1843, %v2259
    %v2516 = vadd.f32 %v1844, %v2260
    %v2517 = vadd.f32 %v1845, %v2261
    %v2518 = vadd.f32 %v1846, %v2262
    %v2519 = vadd.f32 %v1847, %v2263
    %v2520 = vadd.f32 %v1848, %v2264
    %v2521 = vadd.f32 %v1849, %v2265
    %v2522 = vadd.f32 %v1850, %v2266
    %v2523 = vadd.f32 %v1851, %v2267
    %v2524 = vadd.f32 %v1852, %v2268
    %v2525 = vadd.f32 %v1853, %v2269
    %v2526 = vadd.f32 %v1854, %v2270
    %v2527 = vadd.f32 %v1855, %v2271
    %v2528 = vadd.f32 %v1856, %v2272
    %v2529 = vadd.f32 %v1857, %v2273
    %v2530 = vadd.f32 %v1858, %v2274
    %v2531 = vadd.f32 %v1859, %v2275
    %v2532 = vadd.f32 %v1860, %v2276
    %v2533 = vadd.f32 %v1861, %v2277
    %v2534 = vadd.f32 %v1862, %v2278
    %v2535 = vadd.f32 %v1863, %v2279
    %v2536 = vadd.f32 %v1864, %v2280
    %v2537 = vadd.f32 %v1865, %v2281
    %v2538 = vadd.f32 %v1866, %v2282
    %v2539 = vadd.f32 %v1867, %v2283
    %v2540 = vadd.f32 %v1868, %v2284
    %v2541 = vadd.f32 %v1869, %v2285
    %v2542 = vadd.f32 %v1870, %v2286
    %v2543 = vadd.f32 %v1871, %v2287
    %v2544 = vadd.f32 %v1872, %v2288
    %v2545 = vadd.f32 %v1873, %v2289
    %v2546 = vadd.f32 %v1874, %v2290
    %v2547 = vadd.f32 %v1875, %v2291
    %v2548 = vadd.f32 %v1876, %v2292
    %v2549 = vadd.f32 %v1877, %v2293
    %v2550 = vadd.f32 %v1878, %v2294
    %v2551 = vadd.f32 %v1879, %v2295
    %v2552 = vadd.f32 %v1880, %v2296
    %v2553 = vadd.f32 %v1881, %v2297
    %v2554 = vadd.f32 %v1882, %v2298
    %v2555 = vadd.f32 %v1883, %v2299
    %v2556 = vadd.f32 %v1884, %v2300
    %v2557 = vadd.f32 %v1885, %v2301
    %v2558 = vadd.f32 %v1886, %v2302
    %v2559 = vadd.f32 %v1887, %v2303
    %v2560 = vadd.f32 %v1888, %v2304
    %v2561 = vadd.f32 %v1889, %v2305
    %v2562 = vadd.f32 %v1890, %v2306
    %v2563 = vadd.f32 %v1891, %v2307
    %v2564 = vadd.f32 %v1892, %v2308
    %v2565 = vadd.f32 %v1893, %v2309
    %v2566 = vadd.f32 %v1894, %v2310
    %v2567 = vadd.f32 %v1895, %v2311
    %v2568 = vadd.f32 %v1896, %v2312
    %v2569 = vadd.f32 %v1897, %v2313
    %v2570 = vadd.f32 %v1898, %v2314
    %v2571 = vadd.f32 %v1899, %v2315
    %v2572 = vadd.f32 %v1900, %v2316
    %v2573 = vadd.f32 %v1901, %v2317
    %v2574 = vadd.f32 %v1902, %v2318
    %v2575 = vadd.f32 %v1903, %v2319
    %v2576 = vadd.f32 %v1904, %v2320
    %v2577 = vadd.f32 %v1905, %v2321
    %v2578 = vadd.f32 %v1906, %v2322
    %v2579 = vadd.f32 %v1907, %v2323
    %v2580 = vadd.f32 %v1908, %v2324
    %v2581 = vadd.f32 %v1909, %v2325
    %v2582 = vadd.f32 %v1910, %v2326
    %v2583 = vadd.f32 %v1911, %v2327
    %v2584 = vadd.f32 %v1912, %v2328
    %v2585 = vadd.f32 %v1913, %v2329
    %v2586 = vadd.f32 %v1914, %v2330
    %v2587 = vadd.f32 %v1915, %v2331
    %v2588 = vadd.f32 %v1916, %v2332
    %v2589 = vadd.f32 %v1917, %v2333
    %v2590 = vadd.f32 %v1918, %v2334
    %v2591 = vadd.f32 %v1919, %v2335
    %v2592 = vadd.f32 %v1920, %v2336
    %v2593 = vadd.f32 %v1921, %v2337
    %v2594 = vadd.f32 %v1922, %v2338
    %v2595 = vadd.f32 %v1923, %v2339
    %v2596 = vadd.f32 %v1924, %v2340
    %v2597 = vadd.f32 %v1925, %v2341
    %v2598 = vadd.f32 %v1926, %v2342
    %v2599 = vadd.f32 %v1927, %v2343
    %v2600 = vadd.f32 %v1928, %v2344
    %v2601 = vadd.f32 %v1929, %v2345
    %v2602 = vadd.f32 %v1930, %v2346
    %v2603 = vadd.f32 %v1931, %v2347
    %v2604 = vadd.f32 %v1932, %v2348
    %v2605 = vadd.f32 %v1933, %v2349
    %v2606 = vadd.f32 %v1934, %v2350
    %v2607 = vadd.f32 %v1935, %v2351
    %v2608 = vadd.f32 %v1936, %v2352
    %v2609 = vadd.f32 %v1937, %v2353
    %v2610 = vadd.f32 %v1938, %v2354
    %v2611 = vadd.f32 %v1939, %v2355
    %v2612 = vadd.f32 %v1940, %v2356
    %v2613 = vadd.f32 %v1941, %v2357
    %v2614 = vadd.f32 %v1942, %v2358
    %v2615 = vadd.f32 %v1943, %v2359
    %v2616 = vadd.f32 %v1944, %v2360
    %v2617 = vadd.f32 %v1945, %v2361
    %v2618 = vadd.f32 %v1946, %v2362
    %v2619 = vadd.f32 %v1947, %v2363
    %v2620 = vadd.f32 %v1948, %v2364
    %v2621 = vadd.f32 %v1949, %v2365
    %v2622 = vadd.f32 %v1950, %v2366
    %v2623 = vadd.f32 %v1951, %v2367
    %v2624 = vadd.f32 %v1952, %v2368
    %v2625 = vadd.f32 %v1953, %v2369
    %v2626 = vadd.f32 %v1954, %v2370
    %v2627 = vadd.f32 %v1955, %v2371
    %v2628 = vadd.f32 %v1956, %v2372
    %v2629 = vadd.f32 %v1957, %v2373
    %v2630 = vadd.f32 %v1958, %v2374
    %v2631 = vadd.f32 %v1959, %v2375
    %v2632 = vadd.f32 %v1960, %v2376
    %v2633 = vadd.f32 %v1961, %v2377
    %v2634 = vadd.f32 %v1962, %v2378
    %v2635 = vadd.f32 %v1963, %v2379
    %v2636 = vadd.f32 %v1964, %v2380
    %v2637 = vadd.f32 %v1965, %v2381
    %v2638 = vadd.f32 %v1966, %v2382
    %v2639 = vadd.f32 %v1967, %v2383
    %v2640 = vadd.f32 %v1968, %v2384
    %v2641 = vadd.f32 %v1969, %v2385
    %v2642 = vadd.f32 %v1970, %v2386
    %v2643 = vadd.f32 %v1971, %v2387
    %v2644 = vadd.f32 %v1972, %v2388
    %v2645 = vadd.f32 %v1973, %v2389
    %v2646 = vadd.f32 %v1974, %v2390
    %v2647 = vadd.f32 %v1975, %v2391
    %v2648 = vadd.f32 %v1976, %v2392
    %v2649 = vadd.f32 %v1977, %v2393
    %v2650 = vadd.f32 %v1978, %v2394
    %v2651 = vadd.f32 %v1979, %v2395
    %v2652 = vadd.f32 %v1980, %v2396
    %v2653 = vadd.f32 %v1981, %v2397
    %v2654 = vadd.f32 %v1982, %v2398
    %v2655 = vadd.f32 %v1983, %v2399
    %v2656 = vadd.f32 %v1984, %v2400
    %v2657 = vadd.f32 %v1985, %v2401
    %v2658 = vadd.f32 %v1986, %v2402
    %v2659 = vadd.f32 %v1987, %v2403
    %v2660 = vadd.f32 %v1988, %v2404
    %v2661 = vadd.f32 %v1989, %v2405
    %v2662 = vadd.f32 %v1990, %v2406
    %v2663 = vadd.f32 %v1991, %v2407
    %v2664 = vadd.f32 %v1992, %v2408
    %v2665 = vadd.f32 %v1993, %v2409
    %v2666 = vadd.f32 %v1994, %v2410
    %v2667 = vadd.f32 %v1995, %v2411
    %v2668 = vadd.f32 %v1996, %v2412
    %v2669 = vadd.f32 %v1997, %v2413
    %v2670 = vadd.f32 %v1998, %v2414
    %v2671 = vadd.f32 %v1999, %v2415
    %v2672 = vadd.f32 %v2000, %v2416
    %v2673 = vadd.f32 %v2001, %v2417
    %v2674 = vadd.f32 %v2002, %v2418
    %v2675 = vadd.f32 %v2003, %v2419
    %v2676 = vadd.f32 %v2004, %v2420
    %v2677 = vadd.f32 %v2005, %v2421
    %v2678 = vadd.f32 %v2006, %v2422
    %v2679 = vadd.f32 %v2007, %v2423
    %v2680 = vadd.f32 %v2008, %v2424
    %v2681 = vadd.f32 %v2009, %v2425
    %v2682 = vadd.f32 %v2010, %v2426
    %v2683 = vadd.f32 %v2011, %v2427
    %v2684 = vadd.f32 %v2012, %v2428
    %v2685 = vadd.f32 %v2013, %v2429
    %v2686 = vadd.f32 %v2014, %v2430
    %v2687 = vadd.f32 %v2015, %v2431
    %v2688 = vadd.f32 %v2016, %v2432
    %v2689 = vadd.f32 %v2017, %v2433
    %v2690 = vadd.f32 %v2018, %v2434
    %v2691 = vadd.f32 %v2019, %v2435
    %v2692 = vadd.f32 %v2020, %v2436
    %v2693 = vadd.f32 %v2021, %v2437
    %v2694 = vadd.f32 %v2022, %v2438
    %v2695 = vadd.f32 %v2023, %v2439
    %v2696 = vadd.f32 %v2024, %v2440
    %v2697 = vadd.f32 %v2025, %v2441
    %v2698 = vadd.f32 %v2026, %v2442
    %v2699 = vadd.f32 %v2027, %v2443
    %v2700 = vadd.f32 %v2028, %v2444
    %v2701 = vadd.f32 %v2029, %v2445
    %v2702 = vadd.f32 %v2030, %v2446
    %v2703 = vadd.f32 %v2031, %v2447
    %v2704 = vadd.f32 %v2032, %v2448
    %v2705 = vadd.f32 %v2033, %v2449
    %v2706 = vadd.f32 %v2034, %v2450
    %v2707 = vadd.f32 %v2035, %v2451
    %v2708 = vadd.f32 %v2036, %v2452
    %v2709 = vadd.f32 %v2037, %v2453
    %v2710 = vadd.f32 %v2038, %v2454
    %v2711 = vadd.f32 %v2039, %v2455
    %v2712 = vadd.f32 %v2040, %v2456
    %v2713 = vadd.f32 %v2041, %v2457
    %v2714 = vadd.f32 %v2042, %v2458
    %v2715 = vadd.f32 %v2043, %v2459
    %v2716 = vadd.f32 %v2044, %v2460
    %v2717 = vadd.f32 %v2045, %v2461
    %v2718 = vadd.f32 %v2046, %v2462
    %v2719 = vadd.f32 %v2047, %v2463
    %v2720 = vadd.f32 %v2048, %v2464
    %v2721 = vadd.f32 %v2049, %v2465
    %v2722 = vadd.f32 %v2050, %v2466
    %v2723 = vadd.f32 %v2051, %v2467
    %v2724 = vadd.f32 %v2052, %v2468
    %v2725 = vadd.f32 %v2053, %v2469
    %v2726 = vadd.f32 %v2054, %v2470
    %v2727 = vadd.f32 %v2055, %v2471
    %v2728 = vadd.f32 %v2056, %v2472
    %v2729 = vadd.f32 %v2057, %v2473
    %v2730 = vadd.f32 %v2058, %v2474
    %v2731 = vadd.f32 %v2059, %v2475
    %v2732 = vadd.f32 %v2060, %v2476
    %v2733 = vadd.f32 %v2061, %v2477
    %v2734 = vadd.f32 %v2062, %v2478
    %v2735 = vadd.f32 %v2063, %v2479
    %v2736 = vadd.f32 %v2064, %v2480
    %v2737 = vadd.f32 %v2065, %v2481
    %v2738 = vadd.f32 %v2066, %v2482
    %v2739 = vadd.f32 %v2067, %v2483
    %v2740 = vmax.f32 %v2484, 0.0
    %v2741 = vmax.f32 %v2485, 0.0
    %v2742 = vmax.f32 %v2486, 0.0
    %v2743 = vmax.f32 %v2487, 0.0
    %v2744 = vmax.f32 %v2488, 0.0
    %v2745 = vmax.f32 %v2489, 0.0
    %v2746 = vmax.f32 %v2490, 0.0
    %v2747 = vmax.f32 %v2491, 0.0
    %v2748 = vmax.f32 %v2492, 0.0
    %v2749 = vmax.f32 %v2493, 0.0
    %v2750 = vmax.f32 %v2494, 0.0
    %v2751 = vmax.f32 %v2495, 0.0
    %v2752 = vmax.f32 %v2496, 0.0
    %v2753 = vmax.f32 %v2497, 0.0
    %v2754 = vmax.f32 %v2498, 0.0
    %v2755 = vmax.f32 %v2499, 0.0
    %v2756 = vmax.f32 %v2500, 0.0
    %v2757 = vmax.f32 %v2501, 0.0
    %v2758 = vmax.f32 %v2502, 0.0
    %v2759 = vmax.f32 %v2503, 0.0
    %v2760 = vmax.f32 %v2504, 0.0
    %v2761 = vmax.f32 %v2505, 0.0
    %v2762 = vmax.f32 %v2506, 0.0
    %v2763 = vmax.f32 %v2507, 0.0
    %v2764 = vmax.f32 %v2508, 0.0
    %v2765 = vmax.f32 %v2509, 0.0
    %v2766 = vmax.f32 %v2510, 0.0
    %v2767 = vmax.f32 %v2511, 0.0
    %v2768 = vmax.f32 %v2512, 0.0
    %v2769 = vmax.f32 %v2513, 0.0
    %v2770 = vmax.f32 %v2514, 0.0
    %v2771 = vmax.f32 %v2515, 0.0
    %v2772 = vmax.f32 %v2516, 0.0
    %v2773 = vmax.f32 %v2517, 0.0
    %v2774 = vmax.f32 %v2518, 0.0
    %v2775 = vmax.f32 %v2519, 0.0
    %v2776 = vmax.f32 %v2520, 0.0
    %v2777 = vmax.f32 %v2521, 0.0
    %v2778 = vmax.f32 %v2522, 0.0
    %v2779 = vmax.f32 %v2523, 0.0
    %v2780 = vmax.f32 %v2524, 0.0
    %v2781 = vmax.f32 %v2525, 0.0
    %v2782 = vmax.f32 %v2526, 0.0
    %v2783 = vmax.f32 %v2527, 0.0
    %v2784 = vmax.f32 %v2528, 0.0
    %v2785 = vmax.f32 %v2529, 0.0
    %v2786 = vmax.f32 %v2530, 0.0
    %v2787 = vmax.f32 %v2531, 0.0
    %v2788 = vmax.f32 %v2532, 0.0
    %v2789 = vmax.f32 %v2533, 0.0
    %v2790 = vmax.f32 %v2534, 0.0
    %v2791 = vmax.f32 %v2535, 0.0
    %v2792 = vmax.f32 %v2536, 0.0
    %v2793 = vmax.f32 %v2537, 0.0
    %v2794 = vmax.f32 %v2538, 0.0
    %v2795 = vmax.f32 %v2539, 0.0
    %v2796 = vmax.f32 %v2540, 0.0
    %v2797 = vmax.f32 %v2541, 0.0
    %v2798 = vmax.f32 %v2542, 0.0
    %v2799 = vmax.f32 %v2543, 0.0
    %v2800 = vmax.f32 %v2544, 0.0
    %v2801 = vmax.f32 %v2545, 0.0
    %v2802 = vmax.f32 %v2546, 0.0
    %v2803 = vmax.f32 %v2547, 0.0
    %v2804 = vmax.f32 %v2548, 0.0
    %v2805 = vmax.f32 %v2549, 0.0
    %v2806 = vmax.f32 %v2550, 0.0
    %v2807 = vmax.f32 %v2551, 0.0
    %v2808 = vmax.f32 %v2552, 0.0
    %v2809 = vmax.f32 %v2553, 0.0
    %v2810 = vmax.f32 %v2554, 0.0
    %v2811 = vmax.f32 %v2555, 0.0
    %v2812 = vmax.f32 %v2556, 0.0
    %v2813 = vmax.f32 %v2557, 0.0
    %v2814 = vmax.f32 %v2558, 0.0
    %v2815 = vmax.f32 %v2559, 0.0
    %v2816 = vmax.f32 %v2560, 0.0
    %v2817 = vmax.f32 %v2561, 0.0
    %v2818 = vmax.f32 %v2562, 0.0
    %v2819 = vmax.f32 %v2563, 0.0
    %v2820 = vmax.f32 %v2564, 0.0
    %v2821 = vmax.f32 %v2565, 0.0
    %v2822 = vmax.f32 %v2566, 0.0
    %v2823 = vmax.f32 %v2567, 0.0
    %v2824 = vmax.f32 %v2568, 0.0
    %v2825 = vmax.f32 %v2569, 0.0
    %v2826 = vmax.f32 %v2570, 0.0
    %v2827 = vmax.f32 %v2571, 0.0
    %v2828 = vmax.f32 %v2572, 0.0
    %v2829 = vmax.f32 %v2573, 0.0
    %v2830 = vmax.f32 %v2574, 0.0
    %v2831 = vmax.f32 %v2575, 0.0
    %v2832 = vmax.f32 %v2576, 0.0
    %v2833 = vmax.f32 %v2577, 0.0
    %v2834 = vmax.f32 %v2578, 0.0
    %v2835 = vmax.f32 %v2579, 0.0
    %v2836 = vmax.f32 %v2580, 0.0
    %v2837 = vmax.f32 %v2581, 0.0
    %v2838 = vmax.f32 %v2582, 0.0
    %v2839 = vmax.f32 %v2583, 0.0
    %v2840 = vmax.f32 %v2584, 0.0
    %v2841 = vmax.f32 %v2585, 0.0
    %v2842 = vmax.f32 %v2586, 0.0
    %v2843 = vmax.f32 %v2587, 0.0
    %v2844 = vmax.f32 %v2588, 0.0
    %v2845 = vmax.f32 %v2589, 0.0
    %v2846 = vmax.f32 %v2590, 0.0
    %v2847 = vmax.f32 %v2591, 0.0
    %v2848 = vmax.f32 %v2592, 0.0
    %v2849 = vmax.f32 %v2593, 0.0
    %v2850 = vmax.f32 %v2594, 0.0
    %v2851 = vmax.f32 %v2595, 0.0
    %v2852 = vmax.f32 %v2596, 0.0
    %v2853 = vmax.f32 %v2597, 0.0
    %v2854 = vmax.f32 %v2598, 0.0
    %v2855 = vmax.f32 %v2599, 0.0
    %v2856 = vmax.f32 %v2600, 0.0
    %v2857 = vmax.f32 %v2601, 0.0
    %v2858 = vmax.f32 %v2602, 0.0
    %v2859 = vmax.f32 %v2603, 0.0
    %v2860 = vmax.f32 %v2604, 0.0
    %v2861 = vmax.f32 %v2605, 0.0
    %v2862 = vmax.f32 %v2606, 0.0
    %v2863 = vmax.f32 %v2607, 0.0
    %v2864 = vmax.f32 %v2608, 0.0
    %v2865 = vmax.f32 %v2609, 0.0
    %v2866 = vmax.f32 %v2610, 0.0
    %v2867 = vmax.f32 %v2611, 0.0
    %v2868 = vmax.f32 %v2612, 0.0
    %v2869 = vmax.f32 %v2613, 0.0
    %v2870 = vmax.f32 %v2614, 0.0
    %v2871 = vmax.f32 %v2615, 0.0
    %v2872 = vmax.f32 %v2616, 0.0
    %v2873 = vmax.f32 %v2617, 0.0
    %v2874 = vmax.f32 %v2618, 0.0
    %v2875 = vmax.f32 %v2619, 0.0
    %v2876 = vmax.f32 %v2620, 0.0
    %v2877 = vmax.f32 %v2621, 0.0
    %v2878 = vmax.f32 %v2622, 0.0
    %v2879 = vmax.f32 %v2623, 0.0
    %v2880 = vmax.f32 %v2624, 0.0
    %v2881 = vmax.f32 %v2625, 0.0
    %v2882 = vmax.f32 %v2626, 0.0
    %v2883 = vmax.f32 %v2627, 0.0
    %v2884 = vmax.f32 %v2628, 0.0
    %v2885 = vmax.f32 %v2629, 0.0
    %v2886 = vmax.f32 %v2630, 0.0
    %v2887 = vmax.f32 %v2631, 0.0
    %v2888 = vmax.f32 %v2632, 0.0
    %v2889 = vmax.f32 %v2633, 0.0
    %v2890 = vmax.f32 %v2634, 0.0
    %v2891 = vmax.f32 %v2635, 0.0
    %v2892 = vmax.f32 %v2636, 0.0
    %v2893 = vmax.f32 %v2637, 0.0
    %v2894 = vmax.f32 %v2638, 0.0
    %v2895 = vmax.f32 %v2639, 0.0
    %v2896 = vmax.f32 %v2640, 0.0
    %v2897 = vmax.f32 %v2641, 0.0
    %v2898 = vmax.f32 %v2642, 0.0
    %v2899 = vmax.f32 %v2643, 0.0
    %v2900 = vmax.f32 %v2644, 0.0
    %v2901 = vmax.f32 %v2645, 0.0
    %v2902 = vmax.f32 %v2646, 0.0
    %v2903 = vmax.f32 %v2647, 0.0
    %v2904 = vmax.f32 %v2648, 0.0
    %v2905 = vmax.f32 %v2649, 0.0
    %v2906 = vmax.f32 %v2650, 0.0
    %v2907 = vmax.f32 %v2651, 0.0
    %v2908 = vmax.f32 %v2652, 0.0
    %v2909 = vmax.f32 %v2653, 0.0
    %v2910 = vmax.f32 %v2654, 0.0
    %v2911 = vmax.f32 %v2655, 0.0
    %v2912 = vmax.f32 %v2656, 0.0
    %v2913 = vmax.f32 %v2657, 0.0
    %v2914 = vmax.f32 %v2658, 0.0
    %v2915 = vmax.f32 %v2659, 0.0
    %v2916 = vmax.f32 %v2660, 0.0
    %v2917 = vmax.f32 %v2661, 0.0
    %v2918 = vmax.f32 %v2662, 0.0
    %v2919 = vmax.f32 %v2663, 0.0
    %v2920 = vmax.f32 %v2664, 0.0
    %v2921 = vmax.f32 %v2665, 0.0
    %v2922 = vmax.f32 %v2666, 0.0
    %v2923 = vmax.f32 %v2667, 0.0
    %v2924 = vmax.f32 %v2668, 0.0
    %v2925 = vmax.f32 %v2669, 0.0
    %v2926 = vmax.f32 %v2670, 0.0
    %v2927 = vmax.f32 %v2671, 0.0
    %v2928 = vmax.f32 %v2672, 0.0
    %v2929 = vmax.f32 %v2673, 0.0
    %v2930 = vmax.f32 %v2674, 0.0
    %v2931 = vmax.f32 %v2675, 0.0
    %v2932 = vmax.f32 %v2676, 0.0
    %v2933 = vmax.f32 %v2677, 0.0
    %v2934 = vmax.f32 %v2678, 0.0
    %v2935 = vmax.f32 %v2679, 0.0
    %v2936 = vmax.f32 %v2680, 0.0
    %v2937 = vmax.f32 %v2681, 0.0
    %v2938 = vmax.f32 %v2682, 0.0
    %v2939 = vmax.f32 %v2683, 0.0
    %v2940 = vmax.f32 %v2684, 0.0
    %v2941 = vmax.f32 %v2685, 0.0
    %v2942 = vmax.f32 %v2686, 0.0
    %v2943 = vmax.f32 %v2687, 0.0
    %v2944 = vmax.f32 %v2688, 0.0
    %v2945 = vmax.f32 %v2689, 0.0
    %v2946 = vmax.f32 %v2690, 0.0
    %v2947 = vmax.f32 %v2691, 0.0
    %v2948 = vmax.f32 %v2692, 0.0
    %v2949 = vmax.f32 %v2693, 0.0
    %v2950 = vmax.f32 %v2694, 0.0
    %v2951 = vmax.f32 %v2695, 0.0
    %v2952 = vmax.f32 %v2696, 0.0
    %v2953 = vmax.f32 %v2697, 0.0
    %v2954 = vmax.f32 %v2698, 0.0
    %v2955 = vmax.f32 %v2699, 0.0
    %v2956 = vmax.f32 %v2700, 0.0
    %v2957 = vmax.f32 %v2701, 0.0
    %v2958 = vmax.f32 %v2702, 0.0
    %v2959 = vmax.f32 %v2703, 0.0
    %v2960 = vmax.f32 %v2704, 0.0
    %v2961 = vmax.f32 %v2705, 0.0
    %v2962 = vmax.f32 %v2706, 0.0
    %v2963 = vmax.f32 %v2707, 0.0
    %v2964 = vmax.f32 %v2708, 0.0
    %v2965 = vmax.f32 %v2709, 0.0
    %v2966 = vmax.f32 %v2710, 0.0
    %v2967 = vmax.f32 %v2711, 0.0
    %v2968 = vmax.f32 %v2712, 0.0
    %v2969 = vmax.f32 %v2713, 0.0
    %v2970 = vmax.f32 %v2714, 0.0
    %v2971 = vmax.f32 %v2715, 0.0
    %v2972 = vmax.f32 %v2716, 0.0
    %v2973 = vmax.f32 %v2717, 0.0
    %v2974 = vmax.f32 %v2718, 0.0
    %v2975 = vmax.f32 %v2719, 0.0
    %v2976 = vmax.f32 %v2720, 0.0
    %v2977 = vmax.f32 %v2721, 0.0
    %v2978 = vmax.f32 %v2722, 0.0
    %v2979 = vmax.f32 %v2723, 0.0
    %v2980 = vmax.f32 %v2724, 0.0
    %v2981 = vmax.f32 %v2725, 0.0
    %v2982 = vmax.f32 %v2726, 0.0
    %v2983 = vmax.f32 %v2727, 0.0
    %v2984 = vmax.f32 %v2728, 0.0
    %v2985 = vmax.f32 %v2729, 0.0
    %v2986 = vmax.f32 %v2730, 0.0
    %v2987 = vmax.f32 %v2731, 0.0
    %v2988 = vmax.f32 %v2732, 0.0
    %v2989 = vmax.f32 %v2733, 0.0
    %v2990 = vmax.f32 %v2734, 0.0
    %v2991 = vmax.f32 %v2735, 0.0
    %v2992 = vmax.f32 %v2736, 0.0
    %v2993 = vmax.f32 %v2737, 0.0
    %v2994 = vmax.f32 %v2738, 0.0
    %v2995 = vmax.f32 %v2739, 0.0
    %v2996 = vadd.f32 %v308, %v2740
    %v2997 = vadd.f32 %v309, %v2741
    %v2998 = vadd.f32 %v310, %v2742
    %v2999 = vadd.f32 %v311, %v2743
    %v3000 = vadd.f32 %v312, %v2744
    %v3001 = vadd.f32 %v313, %v2745
    %v3002 = vadd.f32 %v314, %v2746
    %v3003 = vadd.f32 %v315, %v2747
    %v3004 = vadd.f32 %v316, %v2748
    %v3005 = vadd.f32 %v317, %v2749
    %v3006 = vadd.f32 %v318, %v2750
    %v3007 = vadd.f32 %v319, %v2751
    %v3008 = vadd.f32 %v320, %v2752
    %v3009 = vadd.f32 %v321, %v2753
    %v3010 = vadd.f32 %v322, %v2754
    %v3011 = vadd.f32 %v323, %v2755
    %v3012 = vadd.f32 %v324, %v2756
    %v3013 = vadd.f32 %v325, %v2757
    %v3014 = vadd.f32 %v326, %v2758
    %v3015 = vadd.f32 %v327, %v2759
    %v3016 = vadd.f32 %v328, %v2760
    %v3017 = vadd.f32 %v329, %v2761
    %v3018 = vadd.f32 %v330, %v2762
    %v3019 = vadd.f32 %v331, %v2763
    %v3020 = vadd.f32 %v332, %v2764
    %v3021 = vadd.f32 %v333, %v2765
    %v3022 = vadd.f32 %v334, %v2766
    %v3023 = vadd.f32 %v335, %v2767
    %v3024 = vadd.f32 %v336, %v2768
    %v3025 = vadd.f32 %v337, %v2769
    %v3026 = vadd.f32 %v338, %v2770
    %v3027 = vadd.f32 %v339, %v2771
    %v3028 = vadd.f32 %v340, %v2772
    %v3029 = vadd.f32 %v341, %v2773
    %v3030 = vadd.f32 %v342, %v2774
    %v3031 = vadd.f32 %v343, %v2775
    %v3032 = vadd.f32 %v344, %v2776
    %v3033 = vadd.f32 %v345, %v2777
    %v3034 = vadd.f32 %v346, %v2778
    %v3035 = vadd.f32 %v347, %v2779
    %v3036 = vadd.f32 %v348, %v2780
    %v3037 = vadd.f32 %v349, %v2781
    %v3038 = vadd.f32 %v350, %v2782
    %v3039 = vadd.f32 %v351, %v2783
    %v3040 = vadd.f32 %v352, %v2784
    %v3041 = vadd.f32 %v353, %v2785
    %v3042 = vadd.f32 %v354, %v2786
    %v3043 = vadd.f32 %v355, %v2787
    %v3044 = vadd.f32 %v356, %v2788
    %v3045 = vadd.f32 %v357, %v2789
    %v3046 = vadd.f32 %v358, %v2790
    %v3047 = vadd.f32 %v359, %v2791
    %v3048 = vadd.f32 %v360, %v2792
    %v3049 = vadd.f32 %v361, %v2793
    %v3050 = vadd.f32 %v362, %v2794
    %v3051 = vadd.f32 %v363, %v2795
    %v3052 = vadd.f32 %v364, %v2796
    %v3053 = vadd.f32 %v365, %v2797
    %v3054 = vadd.f32 %v366, %v2798
    %v3055 = vadd.f32 %v367, %v2799
    %v3056 = vadd.f32 %v368, %v2800
    %v3057 = vadd.f32 %v369, %v2801
    %v3058 = vadd.f32 %v370, %v2802
    %v3059 = vadd.f32 %v371, %v2803
    %v3060 = vadd.f32 %v372, %v2804
    %v3061 = vadd.f32 %v373, %v2805
    %v3062 = vadd.f32 %v374, %v2806
    %v3063 = vadd.f32 %v375, %v2807
    %v3064 = vadd.f32 %v376, %v2808
    %v3065 = vadd.f32 %v377, %v2809
    %v3066 = vadd.f32 %v378, %v2810
    %v3067 = vadd.f32 %v379, %v2811
    %v3068 = vadd.f32 %v380, %v2812
    %v3069 = vadd.f32 %v381, %v2813
    %v3070 = vadd.f32 %v382, %v2814
    %v3071 = vadd.f32 %v383, %v2815
    %v3072 = vadd.f32 %v384, %v2816
    %v3073 = vadd.f32 %v385, %v2817
    %v3074 = vadd.f32 %v386, %v2818
    %v3075 = vadd.f32 %v387, %v2819
    %v3076 = vadd.f32 %v388, %v2820
    %v3077 = vadd.f32 %v389, %v2821
    %v3078 = vadd.f32 %v390, %v2822
    %v3079 = vadd.f32 %v391, %v2823
    %v3080 = vadd.f32 %v392, %v2824
    %v3081 = vadd.f32 %v393, %v2825
    %v3082 = vadd.f32 %v394, %v2826
    %v3083 = vadd.f32 %v395, %v2827
    %v3084 = vadd.f32 %v396, %v2828
    %v3085 = vadd.f32 %v397, %v2829
    %v3086 = vadd.f32 %v398, %v2830
    %v3087 = vadd.f32 %v399, %v2831
    %v3088 = vadd.f32 %v400, %v2832
    %v3089 = vadd.f32 %v401, %v2833
    %v3090 = vadd.f32 %v402, %v2834
    %v3091 = vadd.f32 %v403, %v2835
    %v3092 = vadd.f32 %v404, %v2836
    %v3093 = vadd.f32 %v405, %v2837
    %v3094 = vadd.f32 %v406, %v2838
    %v3095 = vadd.f32 %v407, %v2839
    %v3096 = vadd.f32 %v408, %v2840
    %v3097 = vadd.f32 %v409, %v2841
    %v3098 = vadd.f32 %v410, %v2842
    %v3099 = vadd.f32 %v411, %v2843
    %v3100 = vadd.f32 %v412, %v2844
    %v3101 = vadd.f32 %v413, %v2845
    %v3102 = vadd.f32 %v414, %v2846
    %v3103 = vadd.f32 %v415, %v2847
    %v3104 = vadd.f32 %v416, %v2848
    %v3105 = vadd.f32 %v417, %v2849
    %v3106 = vadd.f32 %v418, %v2850
    %v3107 = vadd.f32 %v419, %v2851
    %v3108 = vadd.f32 %v420, %v2852
    %v3109 = vadd.f32 %v421, %v2853
    %v3110 = vadd.f32 %v422, %v2854
    %v3111 = vadd.f32 %v423, %v2855
    %v3112 = vadd.f32 %v424, %v2856
    %v3113 = vadd.f32 %v425, %v2857
    %v3114 = vadd.f32 %v426, %v2858
    %v3115 = vadd.f32 %v427, %v2859
    %v3116 = vadd.f32 %v428, %v2860
    %v3117 = vadd.f32 %v429, %v2861
    %v3118 = vadd.f32 %v430, %v2862
    %v3119 = vadd.f32 %v431, %v2863
    %v3120 = vadd.f32 %v432, %v2864
    %v3121 = vadd.f32 %v433, %v2865
    %v3122 = vadd.f32 %v434, %v2866
    %v3123 = vadd.f32 %v435, %v2867
    %v3124 = vadd.f32 %v436, %v2868
    %v3125 = vadd.f32 %v437, %v2869
    %v3126 = vadd.f32 %v438, %v2870
    %v3127 = vadd.f32 %v439, %v2871
    %v3128 = vadd.f32 %v440, %v2872
    %v3129 = vadd.f32 %v441, %v2873
    %v3130 = vadd.f32 %v442, %v2874
    %v3131 = vadd.f32 %v443, %v2875
    %v3132 = vadd.f32 %v444, %v2876
    %v3133 = vadd.f32 %v445, %v2877
    %v3134 = vadd.f32 %v446, %v2878
    %v3135 = vadd.f32 %v447, %v2879
    %v3136 = vadd.f32 %v448, %v2880
    %v3137 = vadd.f32 %v449, %v2881
    %v3138 = vadd.f32 %v450, %v2882
    %v3139 = vadd.f32 %v451, %v2883
    %v3140 = vadd.f32 %v452, %v2884
    %v3141 = vadd.f32 %v453, %v2885
    %v3142 = vadd.f32 %v454, %v2886
    %v3143 = vadd.f32 %v455, %v2887
    %v3144 = vadd.f32 %v456, %v2888
    %v3145 = vadd.f32 %v457, %v2889
    %v3146 = vadd.f32 %v458, %v2890
    %v3147 = vadd.f32 %v459, %v2891
    %v3148 = vadd.f32 %v460, %v2892
    %v3149 = vadd.f32 %v461, %v2893
    %v3150 = vadd.f32 %v462, %v2894
    %v3151 = vadd.f32 %v463, %v2895
    %v3152 = vadd.f32 %v464, %v2896
    %v3153 = vadd.f32 %v465, %v2897
    %v3154 = vadd.f32 %v466, %v2898
    %v3155 = vadd.f32 %v467, %v2899
    %v3156 = vadd.f32 %v468, %v2900
    %v3157 = vadd.f32 %v469, %v2901
    %v3158 = vadd.f32 %v470, %v2902
    %v3159 = vadd.f32 %v471, %v2903
    %v3160 = vadd.f32 %v472, %v2904
    %v3161 = vadd.f32 %v473, %v2905
    %v3162 = vadd.f32 %v474, %v2906
    %v3163 = vadd.f32 %v475, %v2907
    %v3164 = vadd.f32 %v476, %v2908
    %v3165 = vadd.f32 %v477, %v2909
    %v3166 = vadd.f32 %v478, %v2910
    %v3167 = vadd.f32 %v479, %v2911
    %v3168 = vadd.f32 %v480, %v2912
    %v3169 = vadd.f32 %v481, %v2913
    %v3170 = vadd.f32 %v482, %v2914
    %v3171 = vadd.f32 %v483, %v2915
    %v3172 = vadd.f32 %v484, %v2916
    %v3173 = vadd.f32 %v485, %v2917
    %v3174 = vadd.f32 %v486, %v2918
    %v3175 = vadd.f32 %v487, %v2919
    %v3176 = vadd.f32 %v488, %v2920
    %v3177 = vadd.f32 %v489, %v2921
    %v3178 = vadd.f32 %v490, %v2922
    %v3179 = vadd.f32 %v491, %v2923
    %v3180 = vadd.f32 %v492, %v2924
    %v3181 = vadd.f32 %v493, %v2925
    %v3182 = vadd.f32 %v494, %v2926
    %v3183 = vadd.f32 %v495, %v2927
    %v3184 = vadd.f32 %v496, %v2928
    %v3185 = vadd.f32 %v497, %v2929
    %v3186 = vadd.f32 %v498, %v2930
    %v3187 = vadd.f32 %v499, %v2931
    %v3188 = vadd.f32 %v500, %v2932
    %v3189 = vadd.f32 %v501, %v2933
    %v3190 = vadd.f32 %v502, %v2934
    %v3191 = vadd.f32 %v503, %v2935
    %v3192 = vadd.f32 %v504, %v2936
    %v3193 = vadd.f32 %v505, %v2937
    %v3194 = vadd.f32 %v506, %v2938
    %v3195 = vadd.f32 %v507, %v2939
    %v3196 = vadd.f32 %v508, %v2940
    %v3197 = vadd.f32 %v509, %v2941
    %v3198 = vadd.f32 %v510, %v2942
    %v3199 = vadd.f32 %v511, %v2943
    %v3200 = vadd.f32 %v512, %v2944
    %v3201 = vadd.f32 %v513, %v2945
    %v3202 = vadd.f32 %v514, %v2946
    %v3203 = vadd.f32 %v515, %v2947
    %v3204 = vadd.f32 %v516, %v2948
    %v3205 = vadd.f32 %v517, %v2949
    %v3206 = vadd.f32 %v518, %v2950
    %v3207 = vadd.f32 %v519, %v2951
    %v3208 = vadd.f32 %v520, %v2952
    %v3209 = vadd.f32 %v521, %v2953
    %v3210 = vadd.f32 %v522, %v2954
    %v3211 = vadd.f32 %v523, %v2955
    %v3212 = vadd.f32 %v524, %v2956
    %v3213 = vadd.f32 %v525, %v2957
    %v3214 = vadd.f32 %v526, %v2958
    %v3215 = vadd.f32 %v527, %v2959
    %v3216 = vadd.f32 %v528, %v2960
    %v3217 = vadd.f32 %v529, %v2961
    %v3218 = vadd.f32 %v530, %v2962
    %v3219 = vadd.f32 %v531, %v2963
    %v3220 = vadd.f32 %v532, %v2964
    %v3221 = vadd.f32 %v533, %v2965
    %v3222 = vadd.f32 %v534, %v2966
    %v3223 = vadd.f32 %v535, %v2967
    %v3224 = vadd.f32 %v536, %v2968
    %v3225 = vadd.f32 %v537, %v2969
    %v3226 = vadd.f32 %v538, %v2970
    %v3227 = vadd.f32 %v539, %v2971
    %v3228 = vadd.f32 %v540, %v2972
    %v3229 = vadd.f32 %v541, %v2973
    %v3230 = vadd.f32 %v542, %v2974
    %v3231 = vadd.f32 %v543, %v2975
    %v3232 = vadd.f32 %v544, %v2976
    %v3233 = vadd.f32 %v545, %v2977
    %v3234 = vadd.f32 %v546, %v2978
    %v3235 = vadd.f32 %v547, %v2979
    %v3236 = vadd.f32 %v548, %v2980
    %v3237 = vadd.f32 %v549, %v2981
    %v3238 = vadd.f32 %v550, %v2982
    %v3239 = vadd.f32 %v551, %v2983
    %v3240 = vadd.f32 %v552, %v2984
    %v3241 = vadd.f32 %v553, %v2985
    %v3242 = vadd.f32 %v554, %v2986
    %v3243 = vadd.f32 %v555, %v2987
    %v3244 = vadd.f32 %v556, %v2988
    %v3245 = vadd.f32 %v557, %v2989
    %v3246 = vadd.f32 %v558, %v2990
    %v3247 = vadd.f32 %v559, %v2991
    %v3248 = vadd.f32 %v560, %v2992
    %v3249 = vadd.f32 %v561, %v2993
    %v3250 = vadd.f32 %v562, %v2994
    %v3251 = vadd.f32 %v563, %v2995
    %3252 = vst [vmem:[#allocation2] sm:$0xff] %v2996
    %3253 = vst [vmem:[#allocation2 + $0x8] sm:$0xff] %v2997
    %3254 = vst [vmem:[#allocation2 + $0x10] sm:$0xff] %v2998
    %3255 = vst [vmem:[#allocation2 + $0x18] sm:$0xff] %v2999
    %3256 = vst [vmem:[#allocation2 + $0x20] sm:$0xff] %v3000
    %3257 = vst [vmem:[#allocation2 + $0x28] sm:$0xff] %v3001
    %3258 = vst [vmem:[#allocation2 + $0x30] sm:$0xff] %v3002
    %3259 = vst [vmem:[#allocation2 + $0x38] sm:$0xff] %v3003
    %3260 = vst [vmem:[#allocation2 + $0x40] sm:$0xff] %v3004
    %3261 = vst [vmem:[#allocation2 + $0x48] sm:$0xff] %v3005
    %3262 = vst [vmem:[#allocation2 + $0x50] sm:$0xff] %v3006
    %3263 = vst [vmem:[#allocation2 + $0x58] sm:$0xff] %v3007
    %3264 = vst [vmem:[#allocation2 + $0x60] sm:$0xff] %v3008
    %3265 = vst [vmem:[#allocation2 + $0x68] sm:$0xff] %v3009
    %3266 = vst [vmem:[#allocation2 + $0x70] sm:$0xff] %v3010
    %3267 = vst [vmem:[#allocation2 + $0x78] sm:$0xff] %v3011
    %3268 = vst [vmem:[#allocation2 + $0x80] sm:$0xff] %v3012
    %3269 = vst [vmem:[#allocation2 + $0x88] sm:$0xff] %v3013
    %3270 = vst [vmem:[#allocation2 + $0x90] sm:$0xff] %v3014
    %3271 = vst [vmem:[#allocation2 + $0x98] sm:$0xff] %v3015
    %3272 = vst [vmem:[#allocation2 + $0xa0] sm:$0xff] %v3016
    %3273 = vst [vmem:[#allocation2 + $0xa8] sm:$0xff] %v3017
    %3274 = vst [vmem:[#allocation2 + $0xb0] sm:$0xff] %v3018
    %3275 = vst [vmem:[#allocation2 + $0xb8] sm:$0xff] %v3019
    %3276 = vst [vmem:[#allocation2 + $0xc0] sm:$0xff] %v3020
    %3277 = vst [vmem:[#allocation2 + $0xc8] sm:$0xff] %v3021
    %3278 = vst [vmem:[#allocation2 + $0xd0] sm:$0xff] %v3022
    %3279 = vst [vmem:[#allocation2 + $0xd8] sm:$0xff] %v3023
    %3280 = vst [vmem:[#allocation2 + $0xe0] sm:$0xff] %v3024
    %3281 = vst [vmem:[#allocation2 + $0xe8] sm:$0xff] %v3025
    %3282 = vst [vmem:[#allocation2 + $0xf0] sm:$0xff] %v3026
    %3283 = vst [vmem:[#allocation2 + $0xf8] sm:$0xff] %v3027
    %3284 = vst [vmem:[#allocation2 + $0x100] sm:$0xff] %v3028
    %3285 = vst [vmem:[#allocation2 + $0x108] sm:$0xff] %v3029
    %3286 = vst [vmem:[#allocation2 + $0x110] sm:$0xff] %v3030
    %3287 = vst [vmem:[#allocation2 + $0x118] sm:$0xff] %v3031
    %3288 = vst [vmem:[#allocation2 + $0x120] sm:$0xff] %v3032
    %3289 = vst [vmem:[#allocation2 + $0x128] sm:$0xff] %v3033
    %3290 = vst [vmem:[#allocation2 + $0x130] sm:$0xff] %v3034
    %3291 = vst [vmem:[#allocation2 + $0x138] sm:$0xff] %v3035
    %3292 = vst [vmem:[#allocation2 + $0x140] sm:$0xff] %v3036
    %3293 = vst [vmem:[#allocation2 + $0x148] sm:$0xff] %v3037
    %3294 = vst [vmem:[#allocation2 + $0x150] sm:$0xff] %v3038
    %3295 = vst [vmem:[#allocation2 + $0x158] sm:$0xff] %v3039
    %3296 = vst [vmem:[#allocation2 + $0x160] sm:$0xff] %v3040
    %3297 = vst [vmem:[#allocation2 + $0x168] sm:$0xff] %v3041
    %3298 = vst [vmem:[#allocation2 + $0x170] sm:$0xff] %v3042
    %3299 = vst [vmem:[#allocation2 + $0x178] sm:$0xff] %v3043
    %3300 = vst [vmem:[#allocation2 + $0x180] sm:$0xff] %v3044
    %3301 = vst [vmem:[#allocation2 + $0x188] sm:$0xff] %v3045
    %3302 = vst [vmem:[#allocation2 + $0x190] sm:$0xff] %v3046
    %3303 = vst [vmem:[#allocation2 + $0x198] sm:$0xff] %v3047
    %3304 = vst [vmem:[#allocation2 + $0x1a0] sm:$0xff] %v3048
    %3305 = vst [vmem:[#allocation2 + $0x1a8] sm:$0xff] %v3049
    %3306 = vst [vmem:[#allocation2 + $0x1b0] sm:$0xff] %v3050
    %3307 = vst [vmem:[#allocation2 + $0x1b8] sm:$0xff] %v3051
    %3308 = vst [vmem:[#allocation2 + $0x1c0] sm:$0xff] %v3052
    %3309 = vst [vmem:[#allocation2 + $0x1c8] sm:$0xff] %v3053
    %3310 = vst [vmem:[#allocation2 + $0x1d0] sm:$0xff] %v3054
    %3311 = vst [vmem:[#allocation2 + $0x1d8] sm:$0xff] %v3055
    %3312 = vst [vmem:[#allocation2 + $0x1e0] sm:$0xff] %v3056
    %3313 = vst [vmem:[#allocation2 + $0x1e8] sm:$0xff] %v3057
    %3314 = vst [vmem:[#allocation2 + $0x1f0] sm:$0xff] %v3058
    %3315 = vst [vmem:[#allocation2 + $0x1f8] sm:$0xff] %v3059
    %3316 = vst [vmem:[#allocation2 + $0x200] sm:$0xff] %v3060
    %3317 = vst [vmem:[#allocation2 + $0x208] sm:$0xff] %v3061
    %3318 = vst [vmem:[#allocation2 + $0x210] sm:$0xff] %v3062
    %3319 = vst [vmem:[#allocation2 + $0x218] sm:$0xff] %v3063
    %3320 = vst [vmem:[#allocation2 + $0x220] sm:$0xff] %v3064
    %3321 = vst [vmem:[#allocation2 + $0x228] sm:$0xff] %v3065
    %3322 = vst [vmem:[#allocation2 + $0x230] sm:$0xff] %v3066
    %3323 = vst [vmem:[#allocation2 + $0x238] sm:$0xff] %v3067
    %3324 = vst [vmem:[#allocation2 + $0x240] sm:$0xff] %v3068
    %3325 = vst [vmem:[#allocation2 + $0x248] sm:$0xff] %v3069
    %3326 = vst [vmem:[#allocation2 + $0x250] sm:$0xff] %v3070
    %3327 = vst [vmem:[#allocation2 + $0x258] sm:$0xff] %v3071
    %3328 = vst [vmem:[#allocation2 + $0x260] sm:$0xff] %v3072
    %3329 = vst [vmem:[#allocation2 + $0x268] sm:$0xff] %v3073
    %3330 = vst [vmem:[#allocation2 + $0x270] sm:$0xff] %v3074
    %3331 = vst [vmem:[#allocation2 + $0x278] sm:$0xff] %v3075
    %3332 = vst [vmem:[#allocation2 + $0x280] sm:$0xff] %v3076
    %3333 = vst [vmem:[#allocation2 + $0x288] sm:$0xff] %v3077
    %3334 = vst [vmem:[#allocation2 + $0x290] sm:$0xff] %v3078
    %3335 = vst [vmem:[#allocation2 + $0x298] sm:$0xff] %v3079
    %3336 = vst [vmem:[#allocation2 + $0x2a0] sm:$0xff] %v3080
    %3337 = vst [vmem:[#allocation2 + $0x2a8] sm:$0xff] %v3081
    %3338 = vst [vmem:[#allocation2 + $0x2b0] sm:$0xff] %v3082
    %3339 = vst [vmem:[#allocation2 + $0x2b8] sm:$0xff] %v3083
    %3340 = vst [vmem:[#allocation2 + $0x2c0] sm:$0xff] %v3084
    %3341 = vst [vmem:[#allocation2 + $0x2c8] sm:$0xff] %v3085
    %3342 = vst [vmem:[#allocation2 + $0x2d0] sm:$0xff] %v3086
    %3343 = vst [vmem:[#allocation2 + $0x2d8] sm:$0xff] %v3087
    %3344 = vst [vmem:[#allocation2 + $0x2e0] sm:$0xff] %v3088
    %3345 = vst [vmem:[#allocation2 + $0x2e8] sm:$0xff] %v3089
    %3346 = vst [vmem:[#allocation2 + $0x2f0] sm:$0xff] %v3090
    %3347 = vst [vmem:[#allocation2 + $0x2f8] sm:$0xff] %v3091
    %3348 = vst [vmem:[#allocation2 + $0x300] sm:$0xff] %v3092
    %3349 = vst [vmem:[#allocation2 + $0x308] sm:$0xff] %v3093
    %3350 = vst [vmem:[#allocation2 + $0x310] sm:$0xff] %v3094
    %3351 = vst [vmem:[#allocation2 + $0x318] sm:$0xff] %v3095
    %3352 = vst [vmem:[#allocation2 + $0x320] sm:$0xff] %v3096
    %3353 = vst [vmem:[#allocation2 + $0x328] sm:$0xff] %v3097
    %3354 = vst [vmem:[#allocation2 + $0x330] sm:$0xff] %v3098
    %3355 = vst [vmem:[#allocation2 + $0x338] sm:$0xff] %v3099
    %3356 = vst [vmem:[#allocation2 + $0x340] sm:$0xff] %v3100
    %3357 = vst [vmem:[#allocation2 + $0x348] sm:$0xff] %v3101
    %3358 = vst [vmem:[#allocation2 + $0x350] sm:$0xff] %v3102
    %3359 = vst [vmem:[#allocation2 + $0x358] sm:$0xff] %v3103
    %3360 = vst [vmem:[#allocation2 + $0x360] sm:$0xff] %v3104
    %3361 = vst [vmem:[#allocation2 + $0x368] sm:$0xff] %v3105
    %3362 = vst [vmem:[#allocation2 + $0x370] sm:$0xff] %v3106
    %3363 = vst [vmem:[#allocation2 + $0x378] sm:$0xff] %v3107
    %3364 = vst [vmem:[#allocation2 + $0x380] sm:$0xff] %v3108
    %3365 = vst [vmem:[#allocation2 + $0x388] sm:$0xff] %v3109
    %3366 = vst [vmem:[#allocation2 + $0x390] sm:$0xff] %v3110
    %3367 = vst [vmem:[#allocation2 + $0x398] sm:$0xff] %v3111
    %3368 = vst [vmem:[#allocation2 + $0x3a0] sm:$0xff] %v3112
    %3369 = vst [vmem:[#allocation2 + $0x3a8] sm:$0xff] %v3113
    %3370 = vst [vmem:[#allocation2 + $0x3b0] sm:$0xff] %v3114
    %3371 = vst [vmem:[#allocation2 + $0x3b8] sm:$0xff] %v3115
    %3372 = vst [vmem:[#allocation2 + $0x3c0] sm:$0xff] %v3116
    %3373 = vst [vmem:[#allocation2 + $0x3c8] sm:$0xff] %v3117
    %3374 = vst [vmem:[#allocation2 + $0x3d0] sm:$0xff] %v3118
    %3375 = vst [vmem:[#allocation2 + $0x3d8] sm:$0xff] %v3119
    %3376 = vst [vmem:[#allocation2 + $0x3e0] sm:$0xff] %v3120
    %3377 = vst [vmem:[#allocation2 + $0x3e8] sm:$0xff] %v3121
    %3378 = vst [vmem:[#allocation2 + $0x3f0] sm:$0xff] %v3122
    %3379 = vst [vmem:[#allocation2 + $0x3f8] sm:$0xff] %v3123
    %3380 = vst [vmem:[#allocation2 + $0x400] sm:$0xff] %v3124
    %3381 = vst [vmem:[#allocation2 + $0x408] sm:$0xff] %v3125
    %3382 = vst [vmem:[#allocation2 + $0x410] sm:$0xff] %v3126
    %3383 = vst [vmem:[#allocation2 + $0x418] sm:$0xff] %v3127
    %3384 = vst [vmem:[#allocation2 + $0x420] sm:$0xff] %v3128
    %3385 = vst [vmem:[#allocation2 + $0x428] sm:$0xff] %v3129
    %3386 = vst [vmem:[#allocation2 + $0x430] sm:$0xff] %v3130
    %3387 = vst [vmem:[#allocation2 + $0x438] sm:$0xff] %v3131
    %3388 = vst [vmem:[#allocation2 + $0x440] sm:$0xff] %v3132
    %3389 = vst [vmem:[#allocation2 + $0x448] sm:$0xff] %v3133
    %3390 = vst [vmem:[#allocation2 + $0x450] sm:$0xff] %v3134
    %3391 = vst [vmem:[#allocation2 + $0x458] sm:$0xff] %v3135
    %3392 = vst [vmem:[#allocation2 + $0x460] sm:$0xff] %v3136
    %3393 = vst [vmem:[#allocation2 + $0x468] sm:$0xff] %v3137
    %3394 = vst [vmem:[#allocation2 + $0x470] sm:$0xff] %v3138
    %3395 = vst [vmem:[#allocation2 + $0x478] sm:$0xff] %v3139
    %3396 = vst [vmem:[#allocation2 + $0x480] sm:$0xff] %v3140
    %3397 = vst [vmem:[#allocation2 + $0x488] sm:$0xff] %v3141
    %3398 = vst [vmem:[#allocation2 + $0x490] sm:$0xff] %v3142
    %3399 = vst [vmem:[#allocation2 + $0x498] sm:$0xff] %v3143
    %3400 = vst [vmem:[#allocation2 + $0x4a0] sm:$0xff] %v3144
    %3401 = vst [vmem:[#allocation2 + $0x4a8] sm:$0xff] %v3145
    %3402 = vst [vmem:[#allocation2 + $0x4b0] sm:$0xff] %v3146
    %3403 = vst [vmem:[#allocation2 + $0x4b8] sm:$0xff] %v3147
    %3404 = vst [vmem:[#allocation2 + $0x4c0] sm:$0xff] %v3148
    %3405 = vst [vmem:[#allocation2 + $0x4c8] sm:$0xff] %v3149
    %3406 = vst [vmem:[#allocation2 + $0x4d0] sm:$0xff] %v3150
    %3407 = vst [vmem:[#allocation2 + $0x4d8] sm:$0xff] %v3151
    %3408 = vst [vmem:[#allocation2 + $0x4e0] sm:$0xff] %v3152
    %3409 = vst [vmem:[#allocation2 + $0x4e8] sm:$0xff] %v3153
    %3410 = vst [vmem:[#allocation2 + $0x4f0] sm:$0xff] %v3154
    %3411 = vst [vmem:[#allocation2 + $0x4f8] sm:$0xff] %v3155
    %3412 = vst [vmem:[#allocation2 + $0x500] sm:$0xff] %v3156
    %3413 = vst [vmem:[#allocation2 + $0x508] sm:$0xff] %v3157
    %3414 = vst [vmem:[#allocation2 + $0x510] sm:$0xff] %v3158
    %3415 = vst [vmem:[#allocation2 + $0x518] sm:$0xff] %v3159
    %3416 = vst [vmem:[#allocation2 + $0x520] sm:$0xff] %v3160
    %3417 = vst [vmem:[#allocation2 + $0x528] sm:$0xff] %v3161
    %3418 = vst [vmem:[#allocation2 + $0x530] sm:$0xff] %v3162
    %3419 = vst [vmem:[#allocation2 + $0x538] sm:$0xff] %v3163
    %3420 = vst [vmem:[#allocation2 + $0x540] sm:$0xff] %v3164
    %3421 = vst [vmem:[#allocation2 + $0x548] sm:$0xff] %v3165
    %3422 = vst [vmem:[#allocation2 + $0x550] sm:$0xff] %v3166
    %3423 = vst [vmem:[#allocation2 + $0x558] sm:$0xff] %v3167
    %3424 = vst [vmem:[#allocation2 + $0x560] sm:$0xff] %v3168
    %3425 = vst [vmem:[#allocation2 + $0x568] sm:$0xff] %v3169
    %3426 = vst [vmem:[#allocation2 + $0x570] sm:$0xff] %v3170
    %3427 = vst [vmem:[#allocation2 + $0x578] sm:$0xff] %v3171
    %3428 = vst [vmem:[#allocation2 + $0x580] sm:$0xff] %v3172
    %3429 = vst [vmem:[#allocation2 + $0x588] sm:$0xff] %v3173
    %3430 = vst [vmem:[#allocation2 + $0x590] sm:$0xff] %v3174
    %3431 = vst [vmem:[#allocation2 + $0x598] sm:$0xff] %v3175
    %3432 = vst [vmem:[#allocation2 + $0x5a0] sm:$0xff] %v3176
    %3433 = vst [vmem:[#allocation2 + $0x5a8] sm:$0xff] %v3177
    %3434 = vst [vmem:[#allocation2 + $0x5b0] sm:$0xff] %v3178
    %3435 = vst [vmem:[#allocation2 + $0x5b8] sm:$0xff] %v3179
    %3436 = vst [vmem:[#allocation2 + $0x5c0] sm:$0xff] %v3180
    %3437 = vst [vmem:[#allocation2 + $0x5c8] sm:$0xff] %v3181
    %3438 = vst [vmem:[#allocation2 + $0x5d0] sm:$0xff] %v3182
    %3439 = vst [vmem:[#allocation2 + $0x5d8] sm:$0xff] %v3183
    %3440 = vst [vmem:[#allocation2 + $0x5e0] sm:$0xff] %v3184
    %3441 = vst [vmem:[#allocation2 + $0x5e8] sm:$0xff] %v3185
    %3442 = vst [vmem:[#allocation2 + $0x5f0] sm:$0xff] %v3186
    %3443 = vst [vmem:[#allocation2 + $0x5f8] sm:$0xff] %v3187
    %3444 = vst [vmem:[#allocation2 + $0x600] sm:$0xff] %v3188
    %3445 = vst [vmem:[#allocation2 + $0x608] sm:$0xff] %v3189
    %3446 = vst [vmem:[#allocation2 + $0x610] sm:$0xff] %v3190
    %3447 = vst [vmem:[#allocation2 + $0x618] sm:$0xff] %v3191
    %3448 = vst [vmem:[#allocation2 + $0x620] sm:$0xff] %v3192
    %3449 = vst [vmem:[#allocation2 + $0x628] sm:$0xff] %v3193
    %3450 = vst [vmem:[#allocation2 + $0x630] sm:$0xff] %v3194
    %3451 = vst [vmem:[#allocation2 + $0x638] sm:$0xff] %v3195
    %3452 = vst [vmem:[#allocation2 + $0x640] sm:$0xff] %v3196
    %3453 = vst [vmem:[#allocation2 + $0x648] sm:$0xff] %v3197
    %3454 = vst [vmem:[#allocation2 + $0x650] sm:$0xff] %v3198
    %3455 = vst [vmem:[#allocation2 + $0x658] sm:$0xff] %v3199
    %3456 = vst [vmem:[#allocation2 + $0x660] sm:$0xff] %v3200
    %3457 = vst [vmem:[#allocation2 + $0x668] sm:$0xff] %v3201
    %3458 = vst [vmem:[#allocation2 + $0x670] sm:$0xff] %v3202
    %3459 = vst [vmem:[#allocation2 + $0x678] sm:$0xff] %v3203
    %3460 = vst [vmem:[#allocation2 + $0x680] sm:$0xff] %v3204
    %3461 = vst [vmem:[#allocation2 + $0x688] sm:$0xff] %v3205
    %3462 = vst [vmem:[#allocation2 + $0x690] sm:$0xff] %v3206
    %3463 = vst [vmem:[#allocation2 + $0x698] sm:$0xff] %v3207
    %3464 = vst [vmem:[#allocation2 + $0x6a0] sm:$0xff] %v3208
    %3465 = vst [vmem:[#allocation2 + $0x6a8] sm:$0xff] %v3209
    %3466 = vst [vmem:[#allocation2 + $0x6b0] sm:$0xff] %v3210
    %3467 = vst [vmem:[#allocation2 + $0x6b8] sm:$0xff] %v3211
    %3468 = vst [vmem:[#allocation2 + $0x6c0] sm:$0xff] %v3212
    %3469 = vst [vmem:[#allocation2 + $0x6c8] sm:$0xff] %v3213
    %3470 = vst [vmem:[#allocation2 + $0x6d0] sm:$0xff] %v3214
    %3471 = vst [vmem:[#allocation2 + $0x6d8] sm:$0xff] %v3215
    %3472 = vst [vmem:[#allocation2 + $0x6e0] sm:$0xff] %v3216
    %3473 = vst [vmem:[#allocation2 + $0x6e8] sm:$0xff] %v3217
    %3474 = vst [vmem:[#allocation2 + $0x6f0] sm:$0xff] %v3218
    %3475 = vst [vmem:[#allocation2 + $0x6f8] sm:$0xff] %v3219
    %3476 = vst [vmem:[#allocation2 + $0x700] sm:$0xff] %v3220
    %3477 = vst [vmem:[#allocation2 + $0x708] sm:$0xff] %v3221
    %3478 = vst [vmem:[#allocation2 + $0x710] sm:$0xff] %v3222
    %3479 = vst [vmem:[#allocation2 + $0x718] sm:$0xff] %v3223
    %3480 = vst [vmem:[#allocation2 + $0x720] sm:$0xff] %v3224
    %3481 = vst [vmem:[#allocation2 + $0x728] sm:$0xff] %v3225
    %3482 = vst [vmem:[#allocation2 + $0x730] sm:$0xff] %v3226
    %3483 = vst [vmem:[#allocation2 + $0x738] sm:$0xff] %v3227
    %3484 = vst [vmem:[#allocation2 + $0x740] sm:$0xff] %v3228
    %3485 = vst [vmem:[#allocation2 + $0x748] sm:$0xff] %v3229
    %3486 = vst [vmem:[#allocation2 + $0x750] sm:$0xff] %v3230
    %3487 = vst [vmem:[#allocation2 + $0x758] sm:$0xff] %v3231
    %3488 = vst [vmem:[#allocation2 + $0x760] sm:$0xff] %v3232
    %3489 = vst [vmem:[#allocation2 + $0x768] sm:$0xff] %v3233
    %3490 = vst [vmem:[#allocation2 + $0x770] sm:$0xff] %v3234
    %3491 = vst [vmem:[#allocation2 + $0x778] sm:$0xff] %v3235
    %3492 = vst [vmem:[#allocation2 + $0x780] sm:$0xff] %v3236
    %3493 = vst [vmem:[#allocation2 + $0x788] sm:$0xff] %v3237
    %3494 = vst [vmem:[#allocation2 + $0x790] sm:$0xff] %v3238
    %3495 = vst [vmem:[#allocation2 + $0x798] sm:$0xff] %v3239
    %3496 = vst [vmem:[#allocation2 + $0x7a0] sm:$0xff] %v3240
    %3497 = vst [vmem:[#allocation2 + $0x7a8] sm:$0xff] %v3241
    %3498 = vst [vmem:[#allocation2 + $0x7b0] sm:$0xff] %v3242
    %3499 = vst [vmem:[#allocation2 + $0x7b8] sm:$0xff] %v3243
    %3500 = vst [vmem:[#allocation2 + $0x7c0] sm:$0xff] %v3244
    %3501 = vst [vmem:[#allocation2 + $0x7c8] sm:$0xff] %v3245
    %3502 = vst [vmem:[#allocation2 + $0x7d0] sm:$0xff] %v3246
    %3503 = vst [vmem:[#allocation2 + $0x7d8] sm:$0xff] %v3247
    %3504 = vst [vmem:[#allocation2 + $0x7e0] sm:$0xff] %v3248
    %3505 = vst [vmem:[#allocation2 + $0x7e8] sm:$0xff] %v3249
    %3506 = vst [vmem:[#allocation2 + $0x7f0] sm:$0xff] %v3250
    %3507 = vst [vmem:[#allocation2 + $0x7f8] sm:$0xff] %v3251
    %v3508 = vld [vmem:[%s0 + $0x4] sm:$0x7]
    %v3509 = vld [vmem:[%s0 + $0xc] sm:$0x7]
    %v3510 = vld [vmem:[%s0 + $0x14] sm:$0x7]
    %v3511 = vld [vmem:[%s0 + $0x1c] sm:$0x7]
    %v3512 = vld [vmem:[%s0 + $0x24] sm:$0x7]
    %v3513 = vld [vmem:[%s0 + $0x2c] sm:$0x7]
    %v3514 = vld [vmem:[%s0 + $0x34] sm:$0x7]
    %v3515 = vld [vmem:[%s0 + $0x3c] sm:$0x7]
    %v3516 = vld [vmem:[#allocation2] sm:$0xff]
    %v3517 = vld [vmem:[#allocation2 + $0x8] sm:$0xff]
    %v3518 = vld [vmem:[#allocation2 + $0x10] sm:$0xff]
    %v3519 = vld [vmem:[#allocation2 + $0x18] sm:$0xff]
    %v3520 = vld [vmem:[#allocation2 + $0x20] sm:$0xff]
    %v3521 = vld [vmem:[#allocation2 + $0x28] sm:$0xff]
    %v3522 = vld [vmem:[#allocation2 + $0x30] sm:$0xff]
    %v3523 = vld [vmem:[#allocation2 + $0x38] sm:$0xff]
    %v3524 = vld [vmem:[#allocation2 + $0x40] sm:$0xff]
    %v3525 = vld [vmem:[#allocation2 + $0x48] sm:$0xff]
    %v3526 = vld [vmem:[#allocation2 + $0x50] sm:$0xff]
    %v3527 = vld [vmem:[#allocation2 + $0x58] sm:$0xff]
    %v3528 = vld [vmem:[#allocation2 + $0x60] sm:$0xff]
    %v3529 = vld [vmem:[#allocation2 + $0x68] sm:$0xff]
    %v3530 = vld [vmem:[#allocation2 + $0x70] sm:$0xff]
    %v3531 = vld [vmem:[#allocation2 + $0x78] sm:$0xff]
    %v3532 = vld [vmem:[#allocation2 + $0x80] sm:$0xff]
    %v3533 = vld [vmem:[#allocation2 + $0x88] sm:$0xff]
    %v3534 = vld [vmem:[#allocation2 + $0x90] sm:$0xff]
    %v3535 = vld [vmem:[#allocation2 + $0x98] sm:$0xff]
    %v3536 = vld [vmem:[#allocation2 + $0xa0] sm:$0xff]
    %v3537 = vld [vmem:[#allocation2 + $0xa8] sm:$0xff]
    %v3538 = vld [vmem:[#allocation2 + $0xb0] sm:$0xff]
    %v3539 = vld [vmem:[#allocation2 + $0xb8] sm:$0xff]
    %v3540 = vld [vmem:[#allocation2 + $0xc0] sm:$0xff]
    %v3541 = vld [vmem:[#allocation2 + $0xc8] sm:$0xff]
    %v3542 = vld [vmem:[#allocation2 + $0xd0] sm:$0xff]
    %v3543 = vld [vmem:[#allocation2 + $0xd8] sm:$0xff]
    %v3544 = vld [vmem:[#allocation2 + $0xe0] sm:$0xff]
    %v3545 = vld [vmem:[#allocation2 + $0xe8] sm:$0xff]
    %v3546 = vld [vmem:[#allocation2 + $0xf0] sm:$0xff]
    %v3547 = vld [vmem:[#allocation2 + $0xf8] sm:$0xff]
    %v3548 = vld [vmem:[#allocation2 + $0x100] sm:$0xff]
    %v3549 = vld [vmem:[#allocation2 + $0x108] sm:$0xff]
    %v3550 = vld [vmem:[#allocation2 + $0x110] sm:$0xff]
    %v3551 = vld [vmem:[#allocation2 + $0x118] sm:$0xff]
    %v3552 = vld [vmem:[#allocation2 + $0x120] sm:$0xff]
    %v3553 = vld [vmem:[#allocation2 + $0x128] sm:$0xff]
    %v3554 = vld [vmem:[#allocation2 + $0x130] sm:$0xff]
    %v3555 = vld [vmem:[#allocation2 + $0x138] sm:$0xff]
    %v3556 = vld [vmem:[#allocation2 + $0x140] sm:$0xff]
    %v3557 = vld [vmem:[#allocation2 + $0x148] sm:$0xff]
    %v3558 = vld [vmem:[#allocation2 + $0x150] sm:$0xff]
    %v3559 = vld [vmem:[#allocation2 + $0x158] sm:$0xff]
    %v3560 = vld [vmem:[#allocation2 + $0x160] sm:$0xff]
    %v3561 = vld [vmem:[#allocation2 + $0x168] sm:$0xff]
    %v3562 = vld [vmem:[#allocation2 + $0x170] sm:$0xff]
    %v3563 = vld [vmem:[#allocation2 + $0x178] sm:$0xff]
    %v3564 = vld [vmem:[#allocation2 + $0x180] sm:$0xff]
    %v3565 = vld [vmem:[#allocation2 + $0x188] sm:$0xff]
    %v3566 = vld [vmem:[#allocation2 + $0x190] sm:$0xff]
    %v3567 = vld [vmem:[#allocation2 + $0x198] sm:$0xff]
    %v3568 = vld [vmem:[#allocation2 + $0x1a0] sm:$0xff]
    %v3569 = vld [vmem:[#allocation2 + $0x1a8] sm:$0xff]
    %v3570 = vld [vmem:[#allocation2 + $0x1b0] sm:$0xff]
    %v3571 = vld [vmem:[#allocation2 + $0x1b8] sm:$0xff]
    %v3572 = vld [vmem:[#allocation2 + $0x1c0] sm:$0xff]
    %v3573 = vld [vmem:[#allocation2 + $0x1c8] sm:$0xff]
    %v3574 = vld [vmem:[#allocation2 + $0x1d0] sm:$0xff]
    %v3575 = vld [vmem:[#allocation2 + $0x1d8] sm:$0xff]
    %v3576 = vld [vmem:[#allocation2 + $0x1e0] sm:$0xff]
    %v3577 = vld [vmem:[#allocation2 + $0x1e8] sm:$0xff]
    %v3578 = vld [vmem:[#allocation2 + $0x1f0] sm:$0xff]
    %v3579 = vld [vmem:[#allocation2 + $0x1f8] sm:$0xff]
    %v3580 = vld [vmem:[#allocation2 + $0x200] sm:$0xff]
    %v3581 = vld [vmem:[#allocation2 + $0x208] sm:$0xff]
    %v3582 = vld [vmem:[#allocation2 + $0x210] sm:$0xff]
    %v3583 = vld [vmem:[#allocation2 + $0x218] sm:$0xff]
    %v3584 = vld [vmem:[#allocation2 + $0x220] sm:$0xff]
    %v3585 = vld [vmem:[#allocation2 + $0x228] sm:$0xff]
    %v3586 = vld [vmem:[#allocation2 + $0x230] sm:$0xff]
    %v3587 = vld [vmem:[#allocation2 + $0x238] sm:$0xff]
    %v3588 = vld [vmem:[#allocation2 + $0x240] sm:$0xff]
    %v3589 = vld [vmem:[#allocation2 + $0x248] sm:$0xff]
    %v3590 = vld [vmem:[#allocation2 + $0x250] sm:$0xff]
    %v3591 = vld [vmem:[#allocation2 + $0x258] sm:$0xff]
    %v3592 = vld [vmem:[#allocation2 + $0x260] sm:$0xff]
    %v3593 = vld [vmem:[#allocation2 + $0x268] sm:$0xff]
    %v3594 = vld [vmem:[#allocation2 + $0x270] sm:$0xff]
    %v3595 = vld [vmem:[#allocation2 + $0x278] sm:$0xff]
    %v3596 = vld [vmem:[#allocation2 + $0x280] sm:$0xff]
    %v3597 = vld [vmem:[#allocation2 + $0x288] sm:$0xff]
    %v3598 = vld [vmem:[#allocation2 + $0x290] sm:$0xff]
    %v3599 = vld [vmem:[#allocation2 + $0x298] sm:$0xff]
    %v3600 = vld [vmem:[#allocation2 + $0x2a0] sm:$0xff]
    %v3601 = vld [vmem:[#allocation2 + $0x2a8] sm:$0xff]
    %v3602 = vld [vmem:[#allocation2 + $0x2b0] sm:$0xff]
    %v3603 = vld [vmem:[#allocation2 + $0x2b8] sm:$0xff]
    %v3604 = vld [vmem:[#allocation2 + $0x2c0] sm:$0xff]
    %v3605 = vld [vmem:[#allocation2 + $0x2c8] sm:$0xff]
    %v3606 = vld [vmem:[#allocation2 + $0x2d0] sm:$0xff]
    %v3607 = vld [vmem:[#allocation2 + $0x2d8] sm:$0xff]
    %v3608 = vld [vmem:[#allocation2 + $0x2e0] sm:$0xff]
    %v3609 = vld [vmem:[#allocation2 + $0x2e8] sm:$0xff]
    %v3610 = vld [vmem:[#allocation2 + $0x2f0] sm:$0xff]
    %v3611 = vld [vmem:[#allocation2 + $0x2f8] sm:$0xff]
    %v3612 = vld [vmem:[#allocation2 + $0x300] sm:$0xff]
    %v3613 = vld [vmem:[#allocation2 + $0x308] sm:$0xff]
    %v3614 = vld [vmem:[#allocation2 + $0x310] sm:$0xff]
    %v3615 = vld [vmem:[#allocation2 + $0x318] sm:$0xff]
    %v3616 = vld [vmem:[#allocation2 + $0x320] sm:$0xff]
    %v3617 = vld [vmem:[#allocation2 + $0x328] sm:$0xff]
    %v3618 = vld [vmem:[#allocation2 + $0x330] sm:$0xff]
    %v3619 = vld [vmem:[#allocation2 + $0x338] sm:$0xff]
    %v3620 = vld [vmem:[#allocation2 + $0x340] sm:$0xff]
    %v3621 = vld [vmem:[#allocation2 + $0x348] sm:$0xff]
    %v3622 = vld [vmem:[#allocation2 + $0x350] sm:$0xff]
    %v3623 = vld [vmem:[#allocation2 + $0x358] sm:$0xff]
    %v3624 = vld [vmem:[#allocation2 + $0x360] sm:$0xff]
    %v3625 = vld [vmem:[#allocation2 + $0x368] sm:$0xff]
    %v3626 = vld [vmem:[#allocation2 + $0x370] sm:$0xff]
    %v3627 = vld [vmem:[#allocation2 + $0x378] sm:$0xff]
    %v3628 = vld [vmem:[#allocation2 + $0x380] sm:$0xff]
    %v3629 = vld [vmem:[#allocation2 + $0x388] sm:$0xff]
    %v3630 = vld [vmem:[#allocation2 + $0x390] sm:$0xff]
    %v3631 = vld [vmem:[#allocation2 + $0x398] sm:$0xff]
    %v3632 = vld [vmem:[#allocation2 + $0x3a0] sm:$0xff]
    %v3633 = vld [vmem:[#allocation2 + $0x3a8] sm:$0xff]
    %v3634 = vld [vmem:[#allocation2 + $0x3b0] sm:$0xff]
    %v3635 = vld [vmem:[#allocation2 + $0x3b8] sm:$0xff]
    %v3636 = vld [vmem:[#allocation2 + $0x3c0] sm:$0xff]
    %v3637 = vld [vmem:[#allocation2 + $0x3c8] sm:$0xff]
    %v3638 = vld [vmem:[#allocation2 + $0x3d0] sm:$0xff]
    %v3639 = vld [vmem:[#allocation2 + $0x3d8] sm:$0xff]
    %v3640 = vld [vmem:[#allocation2 + $0x3e0] sm:$0xff]
    %v3641 = vld [vmem:[#allocation2 + $0x3e8] sm:$0xff]
    %v3642 = vld [vmem:[#allocation2 + $0x3f0] sm:$0xff]
    %v3643 = vld [vmem:[#allocation2 + $0x3f8] sm:$0xff]
    %v3644 = vld [vmem:[#allocation2 + $0x400] sm:$0xff]
    %v3645 = vld [vmem:[#allocation2 + $0x408] sm:$0xff]
    %v3646 = vld [vmem:[#allocation2 + $0x410] sm:$0xff]
    %v3647 = vld [vmem:[#allocation2 + $0x418] sm:$0xff]
    %v3648 = vld [vmem:[#allocation2 + $0x420] sm:$0xff]
    %v3649 = vld [vmem:[#allocation2 + $0x428] sm:$0xff]
    %v3650 = vld [vmem:[#allocation2 + $0x430] sm:$0xff]
    %v3651 = vld [vmem:[#allocation2 + $0x438] sm:$0xff]
    %v3652 = vld [vmem:[#allocation2 + $0x440] sm:$0xff]
    %v3653 = vld [vmem:[#allocation2 + $0x448] sm:$0xff]
    %v3654 = vld [vmem:[#allocation2 + $0x450] sm:$0xff]
    %v3655 = vld [vmem:[#allocation2 + $0x458] sm:$0xff]
    %v3656 = vld [vmem:[#allocation2 + $0x460] sm:$0xff]
    %v3657 = vld [vmem:[#allocation2 + $0x468] sm:$0xff]
    %v3658 = vld [vmem:[#allocation2 + $0x470] sm:$0xff]
    %v3659 = vld [vmem:[#allocation2 + $0x478] sm:$0xff]
    %v3660 = vld [vmem:[#allocation2 + $0x480] sm:$0xff]
    %v3661 = vld [vmem:[#allocation2 + $0x488] sm:$0xff]
    %v3662 = vld [vmem:[#allocation2 + $0x490] sm:$0xff]
    %v3663 = vld [vmem:[#allocation2 + $0x498] sm:$0xff]
    %v3664 = vld [vmem:[#allocation2 + $0x4a0] sm:$0xff]
    %v3665 = vld [vmem:[#allocation2 + $0x4a8] sm:$0xff]
    %v3666 = vld [vmem:[#allocation2 + $0x4b0] sm:$0xff]
    %v3667 = vld [vmem:[#allocation2 + $0x4b8] sm:$0xff]
    %v3668 = vld [vmem:[#allocation2 + $0x4c0] sm:$0xff]
    %v3669 = vld [vmem:[#allocation2 + $0x4c8] sm:$0xff]
    %v3670 = vld [vmem:[#allocation2 + $0x4d0] sm:$0xff]
    %v3671 = vld [vmem:[#allocation2 + $0x4d8] sm:$0xff]
    %v3672 = vld [vmem:[#allocation2 + $0x4e0] sm:$0xff]
    %v3673 = vld [vmem:[#allocation2 + $0x4e8] sm:$0xff]
    %v3674 = vld [vmem:[#allocation2 + $0x4f0] sm:$0xff]
    %v3675 = vld [vmem:[#allocation2 + $0x4f8] sm:$0xff]
    %v3676 = vld [vmem:[#allocation2 + $0x500] sm:$0xff]
    %v3677 = vld [vmem:[#allocation2 + $0x508] sm:$0xff]
    %v3678 = vld [vmem:[#allocation2 + $0x510] sm:$0xff]
    %v3679 = vld [vmem:[#allocation2 + $0x518] sm:$0xff]
    %v3680 = vld [vmem:[#allocation2 + $0x520] sm:$0xff]
    %v3681 = vld [vmem:[#allocation2 + $0x528] sm:$0xff]
    %v3682 = vld [vmem:[#allocation2 + $0x530] sm:$0xff]
    %v3683 = vld [vmem:[#allocation2 + $0x538] sm:$0xff]
    %v3684 = vld [vmem:[#allocation2 + $0x540] sm:$0xff]
    %v3685 = vld [vmem:[#allocation2 + $0x548] sm:$0xff]
    %v3686 = vld [vmem:[#allocation2 + $0x550] sm:$0xff]
    %v3687 = vld [vmem:[#allocation2 + $0x558] sm:$0xff]
    %v3688 = vld [vmem:[#allocation2 + $0x560] sm:$0xff]
    %v3689 = vld [vmem:[#allocation2 + $0x568] sm:$0xff]
    %v3690 = vld [vmem:[#allocation2 + $0x570] sm:$0xff]
    %v3691 = vld [vmem:[#allocation2 + $0x578] sm:$0xff]
    %v3692 = vld [vmem:[#allocation2 + $0x580] sm:$0xff]
    %v3693 = vld [vmem:[#allocation2 + $0x588] sm:$0xff]
    %v3694 = vld [vmem:[#allocation2 + $0x590] sm:$0xff]
    %v3695 = vld [vmem:[#allocation2 + $0x598] sm:$0xff]
    %v3696 = vld [vmem:[#allocation2 + $0x5a0] sm:$0xff]
    %v3697 = vld [vmem:[#allocation2 + $0x5a8] sm:$0xff]
    %v3698 = vld [vmem:[#allocation2 + $0x5b0] sm:$0xff]
    %v3699 = vld [vmem:[#allocation2 + $0x5b8] sm:$0xff]
    %v3700 = vld [vmem:[#allocation2 + $0x5c0] sm:$0xff]
    %v3701 = vld [vmem:[#allocation2 + $0x5c8] sm:$0xff]
    %v3702 = vld [vmem:[#allocation2 + $0x5d0] sm:$0xff]
    %v3703 = vld [vmem:[#allocation2 + $0x5d8] sm:$0xff]
    %v3704 = vld [vmem:[#allocation2 + $0x5e0] sm:$0xff]
    %v3705 = vld [vmem:[#allocation2 + $0x5e8] sm:$0xff]
    %v3706 = vld [vmem:[#allocation2 + $0x5f0] sm:$0xff]
    %v3707 = vld [vmem:[#allocation2 + $0x5f8] sm:$0xff]
    %v3708 = vld [vmem:[#allocation2 + $0x600] sm:$0xff]
    %v3709 = vld [vmem:[#allocation2 + $0x608] sm:$0xff]
    %v3710 = vld [vmem:[#allocation2 + $0x610] sm:$0xff]
    %v3711 = vld [vmem:[#allocation2 + $0x618] sm:$0xff]
    %v3712 = vld [vmem:[#allocation2 + $0x620] sm:$0xff]
    %v3713 = vld [vmem:[#allocation2 + $0x628] sm:$0xff]
    %v3714 = vld [vmem:[#allocation2 + $0x630] sm:$0xff]
    %v3715 = vld [vmem:[#allocation2 + $0x638] sm:$0xff]
    %v3716 = vld [vmem:[#allocation2 + $0x640] sm:$0xff]
    %v3717 = vld [vmem:[#allocation2 + $0x648] sm:$0xff]
    %v3718 = vld [vmem:[#allocation2 + $0x650] sm:$0xff]
    %v3719 = vld [vmem:[#allocation2 + $0x658] sm:$0xff]
    %v3720 = vld [vmem:[#allocation2 + $0x660] sm:$0xff]
    %v3721 = vld [vmem:[#allocation2 + $0x668] sm:$0xff]
    %v3722 = vld [vmem:[#allocation2 + $0x670] sm:$0xff]
    %v3723 = vld [vmem:[#allocation2 + $0x678] sm:$0xff]
    %v3724 = vld [vmem:[#allocation2 + $0x680] sm:$0xff]
    %v3725 = vld [vmem:[#allocation2 + $0x688] sm:$0xff]
    %v3726 = vld [vmem:[#allocation2 + $0x690] sm:$0xff]
    %v3727 = vld [vmem:[#allocation2 + $0x698] sm:$0xff]
    %v3728 = vld [vmem:[#allocation2 + $0x6a0] sm:$0xff]
    %v3729 = vld [vmem:[#allocation2 + $0x6a8] sm:$0xff]
    %v3730 = vld [vmem:[#allocation2 + $0x6b0] sm:$0xff]
    %v3731 = vld [vmem:[#allocation2 + $0x6b8] sm:$0xff]
    %v3732 = vld [vmem:[#allocation2 + $0x6c0] sm:$0xff]
    %v3733 = vld [vmem:[#allocation2 + $0x6c8] sm:$0xff]
    %v3734 = vld [vmem:[#allocation2 + $0x6d0] sm:$0xff]
    %v3735 = vld [vmem:[#allocation2 + $0x6d8] sm:$0xff]
    %v3736 = vld [vmem:[#allocation2 + $0x6e0] sm:$0xff]
    %v3737 = vld [vmem:[#allocation2 + $0x6e8] sm:$0xff]
    %v3738 = vld [vmem:[#allocation2 + $0x6f0] sm:$0xff]
    %v3739 = vld [vmem:[#allocation2 + $0x6f8] sm:$0xff]
    %v3740 = vld [vmem:[#allocation2 + $0x700] sm:$0xff]
    %v3741 = vld [vmem:[#allocation2 + $0x708] sm:$0xff]
    %v3742 = vld [vmem:[#allocation2 + $0x710] sm:$0xff]
    %v3743 = vld [vmem:[#allocation2 + $0x718] sm:$0xff]
    %v3744 = vld [vmem:[#allocation2 + $0x720] sm:$0xff]
    %v3745 = vld [vmem:[#allocation2 + $0x728] sm:$0xff]
    %v3746 = vld [vmem:[#allocation2 + $0x730] sm:$0xff]
    %v3747 = vld [vmem:[#allocation2 + $0x738] sm:$0xff]
    %v3748 = vld [vmem:[#allocation2 + $0x740] sm:$0xff]
    %v3749 = vld [vmem:[#allocation2 + $0x748] sm:$0xff]
    %v3750 = vld [vmem:[#allocation2 + $0x750] sm:$0xff]
    %v3751 = vld [vmem:[#allocation2 + $0x758] sm:$0xff]
    %v3752 = vld [vmem:[#allocation2 + $0x760] sm:$0xff]
    %v3753 = vld [vmem:[#allocation2 + $0x768] sm:$0xff]
    %v3754 = vld [vmem:[#allocation2 + $0x770] sm:$0xff]
    %v3755 = vld [vmem:[#allocation2 + $0x778] sm:$0xff]
    %v3756 = vld [vmem:[#allocation2 + $0x780] sm:$0xff]
    %v3757 = vld [vmem:[#allocation2 + $0x788] sm:$0xff]
    %v3758 = vld [vmem:[#allocation2 + $0x790] sm:$0xff]
    %v3759 = vld [vmem:[#allocation2 + $0x798] sm:$0xff]
    %v3760 = vld [vmem:[#allocation2 + $0x7a0] sm:$0xff]
    %v3761 = vld [vmem:[#allocation2 + $0x7a8] sm:$0xff]
    %v3762 = vld [vmem:[#allocation2 + $0x7b0] sm:$0xff]
    %v3763 = vld [vmem:[#allocation2 + $0x7b8] sm:$0xff]
    %v3764 = vld [vmem:[#allocation2 + $0x7c0] sm:$0xff]
    %v3765 = vld [vmem:[#allocation2 + $0x7c8] sm:$0xff]
    %v3766 = vld [vmem:[#allocation2 + $0x7d0] sm:$0xff]
    %v3767 = vld [vmem:[#allocation2 + $0x7d8] sm:$0xff]
    %v3768 = vld [vmem:[#allocation2 + $0x7e0] sm:$0xff]
    %v3769 = vld [vmem:[#allocation2 + $0x7e8] sm:$0xff]
    %v3770 = vld [vmem:[#allocation2 + $0x7f0] sm:$0xff]
    %v3771 = vld [vmem:[#allocation2 + $0x7f8] sm:$0xff]
    %v3772 = vlaneseq
    %v3773 = vshrl.u32 %v3772, 7
    %v3774 = vsub.s32 0, %v3773
    %v3775 = vrot.slane %v3508, %v3774
    %v3776 = vlaneseq
    %v3777 = vshrl.u32 %v3776, 7
    %v3778 = vsub.s32 0, %v3777
    %v3779 = vrot.slane %v3509, %v3778
    %v3780 = vlaneseq
    %v3781 = vshrl.u32 %v3780, 7
    %v3782 = vsub.s32 0, %v3781
    %v3783 = vrot.slane %v3510, %v3782
    %v3784 = vlaneseq
    %v3785 = vshrl.u32 %v3784, 7
    %v3786 = vsub.s32 0, %v3785
    %v3787 = vrot.slane %v3511, %v3786
    %v3788 = vlaneseq
    %v3789 = vshrl.u32 %v3788, 7
    %v3790 = vsub.s32 0, %v3789
    %v3791 = vrot.slane %v3512, %v3790
    %v3792 = vlaneseq
    %v3793 = vshrl.u32 %v3792, 7
    %v3794 = vsub.s32 0, %v3793
    %v3795 = vrot.slane %v3513, %v3794
    %v3796 = vlaneseq
    %v3797 = vshrl.u32 %v3796, 7
    %v3798 = vsub.s32 0, %v3797
    %v3799 = vrot.slane %v3514, %v3798
    %v3800 = vlaneseq
    %v3801 = vshrl.u32 %v3800, 7
    %v3802 = vsub.s32 0, %v3801
    %v3803 = vrot.slane %v3515, %v3802
    %v3804 = vmul.f32 %v3775, %v599
    %v3805 = vmul.f32 %v3775, %v604
    %v3806 = vmul.f32 %v3775, %v609
    %v3807 = vmul.f32 %v3775, %v614
    %v3808 = vmul.f32 %v3775, %v619
    %v3809 = vmul.f32 %v3775, %v624
    %v3810 = vmul.f32 %v3775, %v629
    %v3811 = vmul.f32 %v3775, %v634
    %v3812 = vmul.f32 %v3775, %v639
    %v3813 = vmul.f32 %v3775, %v644
    %v3814 = vmul.f32 %v3775, %v649
    %v3815 = vmul.f32 %v3775, %v654
    %v3816 = vmul.f32 %v3775, %v659
    %v3817 = vmul.f32 %v3775, %v664
    %v3818 = vmul.f32 %v3775, %v669
    %v3819 = vmul.f32 %v3775, %v674
    %v3820 = vmul.f32 %v3775, %v679
    %v3821 = vmul.f32 %v3775, %v684
    %v3822 = vmul.f32 %v3775, %v689
    %v3823 = vmul.f32 %v3775, %v694
    %v3824 = vmul.f32 %v3775, %v699
    %v3825 = vmul.f32 %v3775, %v704
    %v3826 = vmul.f32 %v3775, %v709
    %v3827 = vmul.f32 %v3775, %v714
    %v3828 = vmul.f32 %v3775, %v719
    %v3829 = vmul.f32 %v3775, %v724
    %v3830 = vmul.f32 %v3775, %v729
    %v3831 = vmul.f32 %v3775, %v734
    %v3832 = vmul.f32 %v3775, %v739
    %v3833 = vmul.f32 %v3775, %v744
    %v3834 = vmul.f32 %v3775, %v749
    %v3835 = vmul.f32 %v3775, %v754
    %v3836 = vmul.f32 %v3779, %v599
    %v3837 = vmul.f32 %v3779, %v604
    %v3838 = vmul.f32 %v3779, %v609
    %v3839 = vmul.f32 %v3779, %v614
    %v3840 = vmul.f32 %v3779, %v619
    %v3841 = vmul.f32 %v3779, %v624
    %v3842 = vmul.f32 %v3779, %v629
    %v3843 = vmul.f32 %v3779, %v634
    %v3844 = vmul.f32 %v3779, %v639
    %v3845 = vmul.f32 %v3779, %v644
    %v3846 = vmul.f32 %v3779, %v649
    %v3847 = vmul.f32 %v3779, %v654
    %v3848 = vmul.f32 %v3779, %v659
    %v3849 = vmul.f32 %v3779, %v664
    %v3850 = vmul.f32 %v3779, %v669
    %v3851 = vmul.f32 %v3779, %v674
    %v3852 = vmul.f32 %v3779, %v679
    %v3853 = vmul.f32 %v3779, %v684
    %v3854 = vmul.f32 %v3779, %v689
    %v3855 = vmul.f32 %v3779, %v694
    %v3856 = vmul.f32 %v3779, %v699
    %v3857 = vmul.f32 %v3779, %v704
    %v3858 = vmul.f32 %v3779, %v709
    %v3859 = vmul.f32 %v3779, %v714
    %v3860 = vmul.f32 %v3779, %v719
    %v3861 = vmul.f32 %v3779, %v724
    %v3862 = vmul.f32 %v3779, %v729
    %v3863 = vmul.f32 %v3779, %v734
    %v3864 = vmul.f32 %v3779, %v739
    %v3865 = vmul.f32 %v3779, %v744
    %v3866 = vmul.f32 %v3779, %v749
    %v3867 = vmul.f32 %v3779, %v754
    %v3868 = vmul.f32 %v3783, %v599
    %v3869 = vmul.f32 %v3783, %v604
    %v3870 = vmul.f32 %v3783, %v609
    %v3871 = vmul.f32 %v3783, %v614
    %v3872 = vmul.f32 %v3783, %v619
    %v3873 = vmul.f32 %v3783, %v624
    %v3874 = vmul.f32 %v3783, %v629
    %v3875 = vmul.f32 %v3783, %v634
    %v3876 = vmul.f32 %v3783, %v639
    %v3877 = vmul.f32 %v3783, %v644
    %v3878 = vmul.f32 %v3783, %v649
    %v3879 = vmul.f32 %v3783, %v654
    %v3880 = vmul.f32 %v3783, %v659
    %v3881 = vmul.f32 %v3783, %v664
    %v3882 = vmul.f32 %v3783, %v669
    %v3883 = vmul.f32 %v3783, %v674
    %v3884 = vmul.f32 %v3783, %v679
    %v3885 = vmul.f32 %v3783, %v684
    %v3886 = vmul.f32 %v3783, %v689
    %v3887 = vmul.f32 %v3783, %v694
    %v3888 = vmul.f32 %v3783, %v699
    %v3889 = vmul.f32 %v3783, %v704
    %v3890 = vmul.f32 %v3783, %v709
    %v3891 = vmul.f32 %v3783, %v714
    %v3892 = vmul.f32 %v3783, %v719
    %v3893 = vmul.f32 %v3783, %v724
    %v3894 = vmul.f32 %v3783, %v729
    %v3895 = vmul.f32 %v3783, %v734
    %v3896 = vmul.f32 %v3783, %v739
    %v3897 = vmul.f32 %v3783, %v744
    %v3898 = vmul.f32 %v3783, %v749
    %v3899 = vmul.f32 %v3783, %v754
    %v3900 = vmul.f32 %v3787, %v599
    %v3901 = vmul.f32 %v3787, %v604
    %v3902 = vmul.f32 %v3787, %v609
    %v3903 = vmul.f32 %v3787, %v614
    %v3904 = vmul.f32 %v3787, %v619
    %v3905 = vmul.f32 %v3787, %v624
    %v3906 = vmul.f32 %v3787, %v629
    %v3907 = vmul.f32 %v3787, %v634
    %v3908 = vmul.f32 %v3787, %v639
    %v3909 = vmul.f32 %v3787, %v644
    %v3910 = vmul.f32 %v3787, %v649
    %v3911 = vmul.f32 %v3787, %v654
    %v3912 = vmul.f32 %v3787, %v659
    %v3913 = vmul.f32 %v3787, %v664
    %v3914 = vmul.f32 %v3787, %v669
    %v3915 = vmul.f32 %v3787, %v674
    %v3916 = vmul.f32 %v3787, %v679
    %v3917 = vmul.f32 %v3787, %v684
    %v3918 = vmul.f32 %v3787, %v689
    %v3919 = vmul.f32 %v3787, %v694
    %v3920 = vmul.f32 %v3787, %v699
    %v3921 = vmul.f32 %v3787, %v704
    %v3922 = vmul.f32 %v3787, %v709
    %v3923 = vmul.f32 %v3787, %v714
    %v3924 = vmul.f32 %v3787, %v719
    %v3925 = vmul.f32 %v3787, %v724
    %v3926 = vmul.f32 %v3787, %v729
    %v3927 = vmul.f32 %v3787, %v734
    %v3928 = vmul.f32 %v3787, %v739
    %v3929 = vmul.f32 %v3787, %v744
    %v3930 = vmul.f32 %v3787, %v749
    %v3931 = vmul.f32 %v3787, %v754
    %v3932 = vmul.f32 %v3791, %v599
    %v3933 = vmul.f32 %v3791, %v604
    %v3934 = vmul.f32 %v3791, %v609
    %v3935 = vmul.f32 %v3791, %v614
    %v3936 = vmul.f32 %v3791, %v619
    %v3937 = vmul.f32 %v3791, %v624
    %v3938 = vmul.f32 %v3791, %v629
    %v3939 = vmul.f32 %v3791, %v634
    %v3940 = vmul.f32 %v3791, %v639
    %v3941 = vmul.f32 %v3791, %v644
    %v3942 = vmul.f32 %v3791, %v649
    %v3943 = vmul.f32 %v3791, %v654
    %v3944 = vmul.f32 %v3791, %v659
    %v3945 = vmul.f32 %v3791, %v664
    %v3946 = vmul.f32 %v3791, %v669
    %v3947 = vmul.f32 %v3791, %v674
    %v3948 = vmul.f32 %v3791, %v679
    %v3949 = vmul.f32 %v3791, %v684
    %v3950 = vmul.f32 %v3791, %v689
    %v3951 = vmul.f32 %v3791, %v694
    %v3952 = vmul.f32 %v3791, %v699
    %v3953 = vmul.f32 %v3791, %v704
    %v3954 = vmul.f32 %v3791, %v709
    %v3955 = vmul.f32 %v3791, %v714
    %v3956 = vmul.f32 %v3791, %v719
    %v3957 = vmul.f32 %v3791, %v724
    %v3958 = vmul.f32 %v3791, %v729
    %v3959 = vmul.f32 %v3791, %v734
    %v3960 = vmul.f32 %v3791, %v739
    %v3961 = vmul.f32 %v3791, %v744
    %v3962 = vmul.f32 %v3791, %v749
    %v3963 = vmul.f32 %v3791, %v754
    %v3964 = vmul.f32 %v3795, %v599
    %v3965 = vmul.f32 %v3795, %v604
    %v3966 = vmul.f32 %v3795, %v609
    %v3967 = vmul.f32 %v3795, %v614
    %v3968 = vmul.f32 %v3795, %v619
    %v3969 = vmul.f32 %v3795, %v624
    %v3970 = vmul.f32 %v3795, %v629
    %v3971 = vmul.f32 %v3795, %v634
    %v3972 = vmul.f32 %v3795, %v639
    %v3973 = vmul.f32 %v3795, %v644
    %v3974 = vmul.f32 %v3795, %v649
    %v3975 = vmul.f32 %v3795, %v654
    %v3976 = vmul.f32 %v3795, %v659
    %v3977 = vmul.f32 %v3795, %v664
    %v3978 = vmul.f32 %v3795, %v669
    %v3979 = vmul.f32 %v3795, %v674
    %v3980 = vmul.f32 %v3795, %v679
    %v3981 = vmul.f32 %v3795, %v684
    %v3982 = vmul.f32 %v3795, %v689
    %v3983 = vmul.f32 %v3795, %v694
    %v3984 = vmul.f32 %v3795, %v699
    %v3985 = vmul.f32 %v3795, %v704
    %v3986 = vmul.f32 %v3795, %v709
    %v3987 = vmul.f32 %v3795, %v714
    %v3988 = vmul.f32 %v3795, %v719
    %v3989 = vmul.f32 %v3795, %v724
    %v3990 = vmul.f32 %v3795, %v729
    %v3991 = vmul.f32 %v3795, %v734
    %v3992 = vmul.f32 %v3795, %v739
    %v3993 = vmul.f32 %v3795, %v744
    %v3994 = vmul.f32 %v3795, %v749
    %v3995 = vmul.f32 %v3795, %v754
    %v3996 = vmul.f32 %v3799, %v599
    %v3997 = vmul.f32 %v3799, %v604
    %v3998 = vmul.f32 %v3799, %v609
    %v3999 = vmul.f32 %v3799, %v614
    %v4000 = vmul.f32 %v3799, %v619
    %v4001 = vmul.f32 %v3799, %v624
    %v4002 = vmul.f32 %v3799, %v629
    %v4003 = vmul.f32 %v3799, %v634
    %v4004 = vmul.f32 %v3799, %v639
    %v4005 = vmul.f32 %v3799, %v644
    %v4006 = vmul.f32 %v3799, %v649
    %v4007 = vmul.f32 %v3799, %v654
    %v4008 = vmul.f32 %v3799, %v659
    %v4009 = vmul.f32 %v3799, %v664
    %v4010 = vmul.f32 %v3799, %v669
    %v4011 = vmul.f32 %v3799, %v674
    %v4012 = vmul.f32 %v3799, %v679
    %v4013 = vmul.f32 %v3799, %v684
    %v4014 = vmul.f32 %v3799, %v689
    %v4015 = vmul.f32 %v3799, %v694
    %v4016 = vmul.f32 %v3799, %v699
    %v4017 = vmul.f32 %v3799, %v704
    %v4018 = vmul.f32 %v3799, %v709
    %v4019 = vmul.f32 %v3799, %v714
    %v4020 = vmul.f32 %v3799, %v719
    %v4021 = vmul.f32 %v3799, %v724
    %v4022 = vmul.f32 %v3799, %v729
    %v4023 = vmul.f32 %v3799, %v734
    %v4024 = vmul.f32 %v3799, %v739
    %v4025 = vmul.f32 %v3799, %v744
    %v4026 = vmul.f32 %v3799, %v749
    %v4027 = vmul.f32 %v3799, %v754
    %v4028 = vmul.f32 %v3803, %v599
    %v4029 = vmul.f32 %v3803, %v604
    %v4030 = vmul.f32 %v3803, %v609
    %v4031 = vmul.f32 %v3803, %v614
    %v4032 = vmul.f32 %v3803, %v619
    %v4033 = vmul.f32 %v3803, %v624
    %v4034 = vmul.f32 %v3803, %v629
    %v4035 = vmul.f32 %v3803, %v634
    %v4036 = vmul.f32 %v3803, %v639
    %v4037 = vmul.f32 %v3803, %v644
    %v4038 = vmul.f32 %v3803, %v649
    %v4039 = vmul.f32 %v3803, %v654
    %v4040 = vmul.f32 %v3803, %v659
    %v4041 = vmul.f32 %v3803, %v664
    %v4042 = vmul.f32 %v3803, %v669
    %v4043 = vmul.f32 %v3803, %v674
    %v4044 = vmul.f32 %v3803, %v679
    %v4045 = vmul.f32 %v3803, %v684
    %v4046 = vmul.f32 %v3803, %v689
    %v4047 = vmul.f32 %v3803, %v694
    %v4048 = vmul.f32 %v3803, %v699
    %v4049 = vmul.f32 %v3803, %v704
    %v4050 = vmul.f32 %v3803, %v709
    %v4051 = vmul.f32 %v3803, %v714
    %v4052 = vmul.f32 %v3803, %v719
    %v4053 = vmul.f32 %v3803, %v724
    %v4054 = vmul.f32 %v3803, %v729
    %v4055 = vmul.f32 %v3803, %v734
    %v4056 = vmul.f32 %v3803, %v739
    %v4057 = vmul.f32 %v3803, %v744
    %v4058 = vmul.f32 %v3803, %v749
    %v4059 = vmul.f32 %v3803, %v754
    %v4060 = vadd.f32 %v1014, %v3804
    %v4061 = vadd.f32 %v1018, %v3805
    %v4062 = vadd.f32 %v1022, %v3806
    %v4063 = vadd.f32 %v1026, %v3807
    %v4064 = vadd.f32 %v1030, %v3808
    %v4065 = vadd.f32 %v1034, %v3809
    %v4066 = vadd.f32 %v1038, %v3810
    %v4067 = vadd.f32 %v1042, %v3811
    %v4068 = vadd.f32 %v1046, %v3812
    %v4069 = vadd.f32 %v1050, %v3813
    %v4070 = vadd.f32 %v1054, %v3814
    %v4071 = vadd.f32 %v1058, %v3815
    %v4072 = vadd.f32 %v1062, %v3816
    %v4073 = vadd.f32 %v1066, %v3817
    %v4074 = vadd.f32 %v1070, %v3818
    %v4075 = vadd.f32 %v1074, %v3819
    %v4076 = vadd.f32 %v1078, %v3820
    %v4077 = vadd.f32 %v1082, %v3821
    %v4078 = vadd.f32 %v1086, %v3822
    %v4079 = vadd.f32 %v1090, %v3823
    %v4080 = vadd.f32 %v1094, %v3824
    %v4081 = vadd.f32 %v1098, %v3825
    %v4082 = vadd.f32 %v1102, %v3826
    %v4083 = vadd.f32 %v1106, %v3827
    %v4084 = vadd.f32 %v1110, %v3828
    %v4085 = vadd.f32 %v1114, %v3829
    %v4086 = vadd.f32 %v1118, %v3830
    %v4087 = vadd.f32 %v1122, %v3831
    %v4088 = vadd.f32 %v1126, %v3832
    %v4089 = vadd.f32 %v1130, %v3833
    %v4090 = vadd.f32 %v1134, %v3834
    %v4091 = vadd.f32 %v1138, %v3835
    %v4092 = vadd.f32 %v1014, %v3836
    %v4093 = vadd.f32 %v1018, %v3837
    %v4094 = vadd.f32 %v1022, %v3838
    %v4095 = vadd.f32 %v1026, %v3839
    %v4096 = vadd.f32 %v1030, %v3840
    %v4097 = vadd.f32 %v1034, %v3841
    %v4098 = vadd.f32 %v1038, %v3842
    %v4099 = vadd.f32 %v1042, %v3843
    %v4100 = vadd.f32 %v1046, %v3844
    %v4101 = vadd.f32 %v1050, %v3845
    %v4102 = vadd.f32 %v1054, %v3846
    %v4103 = vadd.f32 %v1058, %v3847
    %v4104 = vadd.f32 %v1062, %v3848
    %v4105 = vadd.f32 %v1066, %v3849
    %v4106 = vadd.f32 %v1070, %v3850
    %v4107 = vadd.f32 %v1074, %v3851
    %v4108 = vadd.f32 %v1078, %v3852
    %v4109 = vadd.f32 %v1082, %v3853
    %v4110 = vadd.f32 %v1086, %v3854
    %v4111 = vadd.f32 %v1090, %v3855
    %v4112 = vadd.f32 %v1094, %v3856
    %v4113 = vadd.f32 %v1098, %v3857
    %v4114 = vadd.f32 %v1102, %v3858
    %v4115 = vadd.f32 %v1106, %v3859
    %v4116 = vadd.f32 %v1110, %v3860
    %v4117 = vadd.f32 %v1114, %v3861
    %v4118 = vadd.f32 %v1118, %v3862
    %v4119 = vadd.f32 %v1122, %v3863
    %v4120 = vadd.f32 %v1126, %v3864
    %v4121 = vadd.f32 %v1130, %v3865
    %v4122 = vadd.f32 %v1134, %v3866
    %v4123 = vadd.f32 %v1138, %v3867
    %v4124 = vadd.f32 %v1014, %v3868
    %v4125 = vadd.f32 %v1018, %v3869
    %v4126 = vadd.f32 %v1022, %v3870
    %v4127 = vadd.f32 %v1026, %v3871
    %v4128 = vadd.f32 %v1030, %v3872
    %v4129 = vadd.f32 %v1034, %v3873
    %v4130 = vadd.f32 %v1038, %v3874
    %v4131 = vadd.f32 %v1042, %v3875
    %v4132 = vadd.f32 %v1046, %v3876
    %v4133 = vadd.f32 %v1050, %v3877
    %v4134 = vadd.f32 %v1054, %v3878
    %v4135 = vadd.f32 %v1058, %v3879
    %v4136 = vadd.f32 %v1062, %v3880
    %v4137 = vadd.f32 %v1066, %v3881
    %v4138 = vadd.f32 %v1070, %v3882
    %v4139 = vadd.f32 %v1074, %v3883
    %v4140 = vadd.f32 %v1078, %v3884
    %v4141 = vadd.f32 %v1082, %v3885
    %v4142 = vadd.f32 %v1086, %v3886
    %v4143 = vadd.f32 %v1090, %v3887
    %v4144 = vadd.f32 %v1094, %v3888
    %v4145 = vadd.f32 %v1098, %v3889
    %v4146 = vadd.f32 %v1102, %v3890
    %v4147 = vadd.f32 %v1106, %v3891
    %v4148 = vadd.f32 %v1110, %v3892
    %v4149 = vadd.f32 %v1114, %v3893
    %v4150 = vadd.f32 %v1118, %v3894
    %v4151 = vadd.f32 %v1122, %v3895
    %v4152 = vadd.f32 %v1126, %v3896
    %v4153 = vadd.f32 %v1130, %v3897
    %v4154 = vadd.f32 %v1134, %v3898
    %v4155 = vadd.f32 %v1138, %v3899
    %v4156 = vadd.f32 %v1014, %v3900
    %v4157 = vadd.f32 %v1018, %v3901
    %v4158 = vadd.f32 %v1022, %v3902
    %v4159 = vadd.f32 %v1026, %v3903
    %v4160 = vadd.f32 %v1030, %v3904
    %v4161 = vadd.f32 %v1034, %v3905
    %v4162 = vadd.f32 %v1038, %v3906
    %v4163 = vadd.f32 %v1042, %v3907
    %v4164 = vadd.f32 %v1046, %v3908
    %v4165 = vadd.f32 %v1050, %v3909
    %v4166 = vadd.f32 %v1054, %v3910
    %v4167 = vadd.f32 %v1058, %v3911
    %v4168 = vadd.f32 %v1062, %v3912
    %v4169 = vadd.f32 %v1066, %v3913
    %v4170 = vadd.f32 %v1070, %v3914
    %v4171 = vadd.f32 %v1074, %v3915
    %v4172 = vadd.f32 %v1078, %v3916
    %v4173 = vadd.f32 %v1082, %v3917
    %v4174 = vadd.f32 %v1086, %v3918
    %v4175 = vadd.f32 %v1090, %v3919
    %v4176 = vadd.f32 %v1094, %v3920
    %v4177 = vadd.f32 %v1098, %v3921
    %v4178 = vadd.f32 %v1102, %v3922
    %v4179 = vadd.f32 %v1106, %v3923
    %v4180 = vadd.f32 %v1110, %v3924
    %v4181 = vadd.f32 %v1114, %v3925
    %v4182 = vadd.f32 %v1118, %v3926
    %v4183 = vadd.f32 %v1122, %v3927
    %v4184 = vadd.f32 %v1126, %v3928
    %v4185 = vadd.f32 %v1130, %v3929
    %v4186 = vadd.f32 %v1134, %v3930
    %v4187 = vadd.f32 %v1138, %v3931
    %v4188 = vadd.f32 %v1014, %v3932
    %v4189 = vadd.f32 %v1018, %v3933
    %v4190 = vadd.f32 %v1022, %v3934
    %v4191 = vadd.f32 %v1026, %v3935
    %v4192 = vadd.f32 %v1030, %v3936
    %v4193 = vadd.f32 %v1034, %v3937
    %v4194 = vadd.f32 %v1038, %v3938
    %v4195 = vadd.f32 %v1042, %v3939
    %v4196 = vadd.f32 %v1046, %v3940
    %v4197 = vadd.f32 %v1050, %v3941
    %v4198 = vadd.f32 %v1054, %v3942
    %v4199 = vadd.f32 %v1058, %v3943
    %v4200 = vadd.f32 %v1062, %v3944
    %v4201 = vadd.f32 %v1066, %v3945
    %v4202 = vadd.f32 %v1070, %v3946
    %v4203 = vadd.f32 %v1074, %v3947
    %v4204 = vadd.f32 %v1078, %v3948
    %v4205 = vadd.f32 %v1082, %v3949
    %v4206 = vadd.f32 %v1086, %v3950
    %v4207 = vadd.f32 %v1090, %v3951
    %v4208 = vadd.f32 %v1094, %v3952
    %v4209 = vadd.f32 %v1098, %v3953
    %v4210 = vadd.f32 %v1102, %v3954
    %v4211 = vadd.f32 %v1106, %v3955
    %v4212 = vadd.f32 %v1110, %v3956
    %v4213 = vadd.f32 %v1114, %v3957
    %v4214 = vadd.f32 %v1118, %v3958
    %v4215 = vadd.f32 %v1122, %v3959
    %v4216 = vadd.f32 %v1126, %v3960
    %v4217 = vadd.f32 %v1130, %v3961
    %v4218 = vadd.f32 %v1134, %v3962
    %v4219 = vadd.f32 %v1138, %v3963
    %v4220 = vadd.f32 %v1014, %v3964
    %v4221 = vadd.f32 %v1018, %v3965
    %v4222 = vadd.f32 %v1022, %v3966
    %v4223 = vadd.f32 %v1026, %v3967
    %v4224 = vadd.f32 %v1030, %v3968
    %v4225 = vadd.f32 %v1034, %v3969
    %v4226 = vadd.f32 %v1038, %v3970
    %v4227 = vadd.f32 %v1042, %v3971
    %v4228 = vadd.f32 %v1046, %v3972
    %v4229 = vadd.f32 %v1050, %v3973
    %v4230 = vadd.f32 %v1054, %v3974
    %v4231 = vadd.f32 %v1058, %v3975
    %v4232 = vadd.f32 %v1062, %v3976
    %v4233 = vadd.f32 %v1066, %v3977
    %v4234 = vadd.f32 %v1070, %v3978
    %v4235 = vadd.f32 %v1074, %v3979
    %v4236 = vadd.f32 %v1078, %v3980
    %v4237 = vadd.f32 %v1082, %v3981
    %v4238 = vadd.f32 %v1086, %v3982
    %v4239 = vadd.f32 %v1090, %v3983
    %v4240 = vadd.f32 %v1094, %v3984
    %v4241 = vadd.f32 %v1098, %v3985
    %v4242 = vadd.f32 %v1102, %v3986
    %v4243 = vadd.f32 %v1106, %v3987
    %v4244 = vadd.f32 %v1110, %v3988
    %v4245 = vadd.f32 %v1114, %v3989
    %v4246 = vadd.f32 %v1118, %v3990
    %v4247 = vadd.f32 %v1122, %v3991
    %v4248 = vadd.f32 %v1126, %v3992
    %v4249 = vadd.f32 %v1130, %v3993
    %v4250 = vadd.f32 %v1134, %v3994
    %v4251 = vadd.f32 %v1138, %v3995
    %v4252 = vadd.f32 %v1014, %v3996
    %v4253 = vadd.f32 %v1018, %v3997
    %v4254 = vadd.f32 %v1022, %v3998
    %v4255 = vadd.f32 %v1026, %v3999
    %v4256 = vadd.f32 %v1030, %v4000
    %v4257 = vadd.f32 %v1034, %v4001
    %v4258 = vadd.f32 %v1038, %v4002
    %v4259 = vadd.f32 %v1042, %v4003
    %v4260 = vadd.f32 %v1046, %v4004
    %v4261 = vadd.f32 %v1050, %v4005
    %v4262 = vadd.f32 %v1054, %v4006
    %v4263 = vadd.f32 %v1058, %v4007
    %v4264 = vadd.f32 %v1062, %v4008
    %v4265 = vadd.f32 %v1066, %v4009
    %v4266 = vadd.f32 %v1070, %v4010
    %v4267 = vadd.f32 %v1074, %v4011
    %v4268 = vadd.f32 %v1078, %v4012
    %v4269 = vadd.f32 %v1082, %v4013
    %v4270 = vadd.f32 %v1086, %v4014
    %v4271 = vadd.f32 %v1090, %v4015
    %v4272 = vadd.f32 %v1094, %v4016
    %v4273 = vadd.f32 %v1098, %v4017
    %v4274 = vadd.f32 %v1102, %v4018
    %v4275 = vadd.f32 %v1106, %v4019
    %v4276 = vadd.f32 %v1110, %v4020
    %v4277 = vadd.f32 %v1114, %v4021
    %v4278 = vadd.f32 %v1118, %v4022
    %v4279 = vadd.f32 %v1122, %v4023
    %v4280 = vadd.f32 %v1126, %v4024
    %v4281 = vadd.f32 %v1130, %v4025
    %v4282 = vadd.f32 %v1134, %v4026
    %v4283 = vadd.f32 %v1138, %v4027
    %v4284 = vadd.f32 %v1014, %v4028
    %v4285 = vadd.f32 %v1018, %v4029
    %v4286 = vadd.f32 %v1022, %v4030
    %v4287 = vadd.f32 %v1026, %v4031
    %v4288 = vadd.f32 %v1030, %v4032
    %v4289 = vadd.f32 %v1034, %v4033
    %v4290 = vadd.f32 %v1038, %v4034
    %v4291 = vadd.f32 %v1042, %v4035
    %v4292 = vadd.f32 %v1046, %v4036
    %v4293 = vadd.f32 %v1050, %v4037
    %v4294 = vadd.f32 %v1054, %v4038
    %v4295 = vadd.f32 %v1058, %v4039
    %v4296 = vadd.f32 %v1062, %v4040
    %v4297 = vadd.f32 %v1066, %v4041
    %v4298 = vadd.f32 %v1070, %v4042
    %v4299 = vadd.f32 %v1074, %v4043
    %v4300 = vadd.f32 %v1078, %v4044
    %v4301 = vadd.f32 %v1082, %v4045
    %v4302 = vadd.f32 %v1086, %v4046
    %v4303 = vadd.f32 %v1090, %v4047
    %v4304 = vadd.f32 %v1094, %v4048
    %v4305 = vadd.f32 %v1098, %v4049
    %v4306 = vadd.f32 %v1102, %v4050
    %v4307 = vadd.f32 %v1106, %v4051
    %v4308 = vadd.f32 %v1110, %v4052
    %v4309 = vadd.f32 %v1114, %v4053
    %v4310 = vadd.f32 %v1118, %v4054
    %v4311 = vadd.f32 %v1122, %v4055
    %v4312 = vadd.f32 %v1126, %v4056
    %v4313 = vadd.f32 %v1130, %v4057
    %v4314 = vadd.f32 %v1134, %v4058
    %v4315 = vadd.f32 %v1138, %v4059
    %v4316 = vlaneseq
    %v4317 = vshrl.u32 %v4316, 7
    %v4318 = vsub.s32 1, %v4317
    %v4319 = vrot.slane %v3508, %v4318
    %v4320 = vlaneseq
    %v4321 = vshrl.u32 %v4320, 7
    %v4322 = vsub.s32 1, %v4321
    %v4323 = vrot.slane %v3509, %v4322
    %v4324 = vlaneseq
    %v4325 = vshrl.u32 %v4324, 7
    %v4326 = vsub.s32 1, %v4325
    %v4327 = vrot.slane %v3510, %v4326
    %v4328 = vlaneseq
    %v4329 = vshrl.u32 %v4328, 7
    %v4330 = vsub.s32 1, %v4329
    %v4331 = vrot.slane %v3511, %v4330
    %v4332 = vlaneseq
    %v4333 = vshrl.u32 %v4332, 7
    %v4334 = vsub.s32 1, %v4333
    %v4335 = vrot.slane %v3512, %v4334
    %v4336 = vlaneseq
    %v4337 = vshrl.u32 %v4336, 7
    %v4338 = vsub.s32 1, %v4337
    %v4339 = vrot.slane %v3513, %v4338
    %v4340 = vlaneseq
    %v4341 = vshrl.u32 %v4340, 7
    %v4342 = vsub.s32 1, %v4341
    %v4343 = vrot.slane %v3514, %v4342
    %v4344 = vlaneseq
    %v4345 = vshrl.u32 %v4344, 7
    %v4346 = vsub.s32 1, %v4345
    %v4347 = vrot.slane %v3515, %v4346
    %v4348 = vmul.f32 %v4319, %v1430
    %v4349 = vmul.f32 %v4319, %v1434
    %v4350 = vmul.f32 %v4319, %v1438
    %v4351 = vmul.f32 %v4319, %v1442
    %v4352 = vmul.f32 %v4319, %v1446
    %v4353 = vmul.f32 %v4319, %v1450
    %v4354 = vmul.f32 %v4319, %v1454
    %v4355 = vmul.f32 %v4319, %v1458
    %v4356 = vmul.f32 %v4319, %v1462
    %v4357 = vmul.f32 %v4319, %v1466
    %v4358 = vmul.f32 %v4319, %v1470
    %v4359 = vmul.f32 %v4319, %v1474
    %v4360 = vmul.f32 %v4319, %v1478
    %v4361 = vmul.f32 %v4319, %v1482
    %v4362 = vmul.f32 %v4319, %v1486
    %v4363 = vmul.f32 %v4319, %v1490
    %v4364 = vmul.f32 %v4319, %v1494
    %v4365 = vmul.f32 %v4319, %v1498
    %v4366 = vmul.f32 %v4319, %v1502
    %v4367 = vmul.f32 %v4319, %v1506
    %v4368 = vmul.f32 %v4319, %v1510
    %v4369 = vmul.f32 %v4319, %v1514
    %v4370 = vmul.f32 %v4319, %v1518
    %v4371 = vmul.f32 %v4319, %v1522
    %v4372 = vmul.f32 %v4319, %v1526
    %v4373 = vmul.f32 %v4319, %v1530
    %v4374 = vmul.f32 %v4319, %v1534
    %v4375 = vmul.f32 %v4319, %v1538
    %v4376 = vmul.f32 %v4319, %v1542
    %v4377 = vmul.f32 %v4319, %v1546
    %v4378 = vmul.f32 %v4319, %v1550
    %v4379 = vmul.f32 %v4319, %v1554
    %v4380 = vmul.f32 %v4323, %v1430
    %v4381 = vmul.f32 %v4323, %v1434
    %v4382 = vmul.f32 %v4323, %v1438
    %v4383 = vmul.f32 %v4323, %v1442
    %v4384 = vmul.f32 %v4323, %v1446
    %v4385 = vmul.f32 %v4323, %v1450
    %v4386 = vmul.f32 %v4323, %v1454
    %v4387 = vmul.f32 %v4323, %v1458
    %v4388 = vmul.f32 %v4323, %v1462
    %v4389 = vmul.f32 %v4323, %v1466
    %v4390 = vmul.f32 %v4323, %v1470
    %v4391 = vmul.f32 %v4323, %v1474
    %v4392 = vmul.f32 %v4323, %v1478
    %v4393 = vmul.f32 %v4323, %v1482
    %v4394 = vmul.f32 %v4323, %v1486
    %v4395 = vmul.f32 %v4323, %v1490
    %v4396 = vmul.f32 %v4323, %v1494
    %v4397 = vmul.f32 %v4323, %v1498
    %v4398 = vmul.f32 %v4323, %v1502
    %v4399 = vmul.f32 %v4323, %v1506
    %v4400 = vmul.f32 %v4323, %v1510
    %v4401 = vmul.f32 %v4323, %v1514
    %v4402 = vmul.f32 %v4323, %v1518
    %v4403 = vmul.f32 %v4323, %v1522
    %v4404 = vmul.f32 %v4323, %v1526
    %v4405 = vmul.f32 %v4323, %v1530
    %v4406 = vmul.f32 %v4323, %v1534
    %v4407 = vmul.f32 %v4323, %v1538
    %v4408 = vmul.f32 %v4323, %v1542
    %v4409 = vmul.f32 %v4323, %v1546
    %v4410 = vmul.f32 %v4323, %v1550
    %v4411 = vmul.f32 %v4323, %v1554
    %v4412 = vmul.f32 %v4327, %v1430
    %v4413 = vmul.f32 %v4327, %v1434
    %v4414 = vmul.f32 %v4327, %v1438
    %v4415 = vmul.f32 %v4327, %v1442
    %v4416 = vmul.f32 %v4327, %v1446
    %v4417 = vmul.f32 %v4327, %v1450
    %v4418 = vmul.f32 %v4327, %v1454
    %v4419 = vmul.f32 %v4327, %v1458
    %v4420 = vmul.f32 %v4327, %v1462
    %v4421 = vmul.f32 %v4327, %v1466
    %v4422 = vmul.f32 %v4327, %v1470
    %v4423 = vmul.f32 %v4327, %v1474
    %v4424 = vmul.f32 %v4327, %v1478
    %v4425 = vmul.f32 %v4327, %v1482
    %v4426 = vmul.f32 %v4327, %v1486
    %v4427 = vmul.f32 %v4327, %v1490
    %v4428 = vmul.f32 %v4327, %v1494
    %v4429 = vmul.f32 %v4327, %v1498
    %v4430 = vmul.f32 %v4327, %v1502
    %v4431 = vmul.f32 %v4327, %v1506
    %v4432 = vmul.f32 %v4327, %v1510
    %v4433 = vmul.f32 %v4327, %v1514
    %v4434 = vmul.f32 %v4327, %v1518
    %v4435 = vmul.f32 %v4327, %v1522
    %v4436 = vmul.f32 %v4327, %v1526
    %v4437 = vmul.f32 %v4327, %v1530
    %v4438 = vmul.f32 %v4327, %v1534
    %v4439 = vmul.f32 %v4327, %v1538
    %v4440 = vmul.f32 %v4327, %v1542
    %v4441 = vmul.f32 %v4327, %v1546
    %v4442 = vmul.f32 %v4327, %v1550
    %v4443 = vmul.f32 %v4327, %v1554
    %v4444 = vmul.f32 %v4331, %v1430
    %v4445 = vmul.f32 %v4331, %v1434
    %v4446 = vmul.f32 %v4331, %v1438
    %v4447 = vmul.f32 %v4331, %v1442
    %v4448 = vmul.f32 %v4331, %v1446
    %v4449 = vmul.f32 %v4331, %v1450
    %v4450 = vmul.f32 %v4331, %v1454
    %v4451 = vmul.f32 %v4331, %v1458
    %v4452 = vmul.f32 %v4331, %v1462
    %v4453 = vmul.f32 %v4331, %v1466
    %v4454 = vmul.f32 %v4331, %v1470
    %v4455 = vmul.f32 %v4331, %v1474
    %v4456 = vmul.f32 %v4331, %v1478
    %v4457 = vmul.f32 %v4331, %v1482
    %v4458 = vmul.f32 %v4331, %v1486
    %v4459 = vmul.f32 %v4331, %v1490
    %v4460 = vmul.f32 %v4331, %v1494
    %v4461 = vmul.f32 %v4331, %v1498
    %v4462 = vmul.f32 %v4331, %v1502
    %v4463 = vmul.f32 %v4331, %v1506
    %v4464 = vmul.f32 %v4331, %v1510
    %v4465 = vmul.f32 %v4331, %v1514
    %v4466 = vmul.f32 %v4331, %v1518
    %v4467 = vmul.f32 %v4331, %v1522
    %v4468 = vmul.f32 %v4331, %v1526
    %v4469 = vmul.f32 %v4331, %v1530
    %v4470 = vmul.f32 %v4331, %v1534
    %v4471 = vmul.f32 %v4331, %v1538
    %v4472 = vmul.f32 %v4331, %v1542
    %v4473 = vmul.f32 %v4331, %v1546
    %v4474 = vmul.f32 %v4331, %v1550
    %v4475 = vmul.f32 %v4331, %v1554
    %v4476 = vmul.f32 %v4335, %v1430
    %v4477 = vmul.f32 %v4335, %v1434
    %v4478 = vmul.f32 %v4335, %v1438
    %v4479 = vmul.f32 %v4335, %v1442
    %v4480 = vmul.f32 %v4335, %v1446
    %v4481 = vmul.f32 %v4335, %v1450
    %v4482 = vmul.f32 %v4335, %v1454
    %v4483 = vmul.f32 %v4335, %v1458
    %v4484 = vmul.f32 %v4335, %v1462
    %v4485 = vmul.f32 %v4335, %v1466
    %v4486 = vmul.f32 %v4335, %v1470
    %v4487 = vmul.f32 %v4335, %v1474
    %v4488 = vmul.f32 %v4335, %v1478
    %v4489 = vmul.f32 %v4335, %v1482
    %v4490 = vmul.f32 %v4335, %v1486
    %v4491 = vmul.f32 %v4335, %v1490
    %v4492 = vmul.f32 %v4335, %v1494
    %v4493 = vmul.f32 %v4335, %v1498
    %v4494 = vmul.f32 %v4335, %v1502
    %v4495 = vmul.f32 %v4335, %v1506
    %v4496 = vmul.f32 %v4335, %v1510
    %v4497 = vmul.f32 %v4335, %v1514
    %v4498 = vmul.f32 %v4335, %v1518
    %v4499 = vmul.f32 %v4335, %v1522
    %v4500 = vmul.f32 %v4335, %v1526
    %v4501 = vmul.f32 %v4335, %v1530
    %v4502 = vmul.f32 %v4335, %v1534
    %v4503 = vmul.f32 %v4335, %v1538
    %v4504 = vmul.f32 %v4335, %v1542
    %v4505 = vmul.f32 %v4335, %v1546
    %v4506 = vmul.f32 %v4335, %v1550
    %v4507 = vmul.f32 %v4335, %v1554
    %v4508 = vmul.f32 %v4339, %v1430
    %v4509 = vmul.f32 %v4339, %v1434
    %v4510 = vmul.f32 %v4339, %v1438
    %v4511 = vmul.f32 %v4339, %v1442
    %v4512 = vmul.f32 %v4339, %v1446
    %v4513 = vmul.f32 %v4339, %v1450
    %v4514 = vmul.f32 %v4339, %v1454
    %v4515 = vmul.f32 %v4339, %v1458
    %v4516 = vmul.f32 %v4339, %v1462
    %v4517 = vmul.f32 %v4339, %v1466
    %v4518 = vmul.f32 %v4339, %v1470
    %v4519 = vmul.f32 %v4339, %v1474
    %v4520 = vmul.f32 %v4339, %v1478
    %v4521 = vmul.f32 %v4339, %v1482
    %v4522 = vmul.f32 %v4339, %v1486
    %v4523 = vmul.f32 %v4339, %v1490
    %v4524 = vmul.f32 %v4339, %v1494
    %v4525 = vmul.f32 %v4339, %v1498
    %v4526 = vmul.f32 %v4339, %v1502
    %v4527 = vmul.f32 %v4339, %v1506
    %v4528 = vmul.f32 %v4339, %v1510
    %v4529 = vmul.f32 %v4339, %v1514
    %v4530 = vmul.f32 %v4339, %v1518
    %v4531 = vmul.f32 %v4339, %v1522
    %v4532 = vmul.f32 %v4339, %v1526
    %v4533 = vmul.f32 %v4339, %v1530
    %v4534 = vmul.f32 %v4339, %v1534
    %v4535 = vmul.f32 %v4339, %v1538
    %v4536 = vmul.f32 %v4339, %v1542
    %v4537 = vmul.f32 %v4339, %v1546
    %v4538 = vmul.f32 %v4339, %v1550
    %v4539 = vmul.f32 %v4339, %v1554
    %v4540 = vmul.f32 %v4343, %v1430
    %v4541 = vmul.f32 %v4343, %v1434
    %v4542 = vmul.f32 %v4343, %v1438
    %v4543 = vmul.f32 %v4343, %v1442
    %v4544 = vmul.f32 %v4343, %v1446
    %v4545 = vmul.f32 %v4343, %v1450
    %v4546 = vmul.f32 %v4343, %v1454
    %v4547 = vmul.f32 %v4343, %v1458
    %v4548 = vmul.f32 %v4343, %v1462
    %v4549 = vmul.f32 %v4343, %v1466
    %v4550 = vmul.f32 %v4343, %v1470
    %v4551 = vmul.f32 %v4343, %v1474
    %v4552 = vmul.f32 %v4343, %v1478
    %v4553 = vmul.f32 %v4343, %v1482
    %v4554 = vmul.f32 %v4343, %v1486
    %v4555 = vmul.f32 %v4343, %v1490
    %v4556 = vmul.f32 %v4343, %v1494
    %v4557 = vmul.f32 %v4343, %v1498
    %v4558 = vmul.f32 %v4343, %v1502
    %v4559 = vmul.f32 %v4343, %v1506
    %v4560 = vmul.f32 %v4343, %v1510
    %v4561 = vmul.f32 %v4343, %v1514
    %v4562 = vmul.f32 %v4343, %v1518
    %v4563 = vmul.f32 %v4343, %v1522
    %v4564 = vmul.f32 %v4343, %v1526
    %v4565 = vmul.f32 %v4343, %v1530
    %v4566 = vmul.f32 %v4343, %v1534
    %v4567 = vmul.f32 %v4343, %v1538
    %v4568 = vmul.f32 %v4343, %v1542
    %v4569 = vmul.f32 %v4343, %v1546
    %v4570 = vmul.f32 %v4343, %v1550
    %v4571 = vmul.f32 %v4343, %v1554
    %v4572 = vmul.f32 %v4347, %v1430
    %v4573 = vmul.f32 %v4347, %v1434
    %v4574 = vmul.f32 %v4347, %v1438
    %v4575 = vmul.f32 %v4347, %v1442
    %v4576 = vmul.f32 %v4347, %v1446
    %v4577 = vmul.f32 %v4347, %v1450
    %v4578 = vmul.f32 %v4347, %v1454
    %v4579 = vmul.f32 %v4347, %v1458
    %v4580 = vmul.f32 %v4347, %v1462
    %v4581 = vmul.f32 %v4347, %v1466
    %v4582 = vmul.f32 %v4347, %v1470
    %v4583 = vmul.f32 %v4347, %v1474
    %v4584 = vmul.f32 %v4347, %v1478
    %v4585 = vmul.f32 %v4347, %v1482
    %v4586 = vmul.f32 %v4347, %v1486
    %v4587 = vmul.f32 %v4347, %v1490
    %v4588 = vmul.f32 %v4347, %v1494
    %v4589 = vmul.f32 %v4347, %v1498
    %v4590 = vmul.f32 %v4347, %v1502
    %v4591 = vmul.f32 %v4347, %v1506
    %v4592 = vmul.f32 %v4347, %v1510
    %v4593 = vmul.f32 %v4347, %v1514
    %v4594 = vmul.f32 %v4347, %v1518
    %v4595 = vmul.f32 %v4347, %v1522
    %v4596 = vmul.f32 %v4347, %v1526
    %v4597 = vmul.f32 %v4347, %v1530
    %v4598 = vmul.f32 %v4347, %v1534
    %v4599 = vmul.f32 %v4347, %v1538
    %v4600 = vmul.f32 %v4347, %v1542
    %v4601 = vmul.f32 %v4347, %v1546
    %v4602 = vmul.f32 %v4347, %v1550
    %v4603 = vmul.f32 %v4347, %v1554
    %v4604 = vadd.f32 %v4060, %v4348
    %v4605 = vadd.f32 %v4061, %v4349
    %v4606 = vadd.f32 %v4062, %v4350
    %v4607 = vadd.f32 %v4063, %v4351
    %v4608 = vadd.f32 %v4064, %v4352
    %v4609 = vadd.f32 %v4065, %v4353
    %v4610 = vadd.f32 %v4066, %v4354
    %v4611 = vadd.f32 %v4067, %v4355
    %v4612 = vadd.f32 %v4068, %v4356
    %v4613 = vadd.f32 %v4069, %v4357
    %v4614 = vadd.f32 %v4070, %v4358
    %v4615 = vadd.f32 %v4071, %v4359
    %v4616 = vadd.f32 %v4072, %v4360
    %v4617 = vadd.f32 %v4073, %v4361
    %v4618 = vadd.f32 %v4074, %v4362
    %v4619 = vadd.f32 %v4075, %v4363
    %v4620 = vadd.f32 %v4076, %v4364
    %v4621 = vadd.f32 %v4077, %v4365
    %v4622 = vadd.f32 %v4078, %v4366
    %v4623 = vadd.f32 %v4079, %v4367
    %v4624 = vadd.f32 %v4080, %v4368
    %v4625 = vadd.f32 %v4081, %v4369
    %v4626 = vadd.f32 %v4082, %v4370
    %v4627 = vadd.f32 %v4083, %v4371
    %v4628 = vadd.f32 %v4084, %v4372
    %v4629 = vadd.f32 %v4085, %v4373
    %v4630 = vadd.f32 %v4086, %v4374
    %v4631 = vadd.f32 %v4087, %v4375
    %v4632 = vadd.f32 %v4088, %v4376
    %v4633 = vadd.f32 %v4089, %v4377
    %v4634 = vadd.f32 %v4090, %v4378
    %v4635 = vadd.f32 %v4091, %v4379
    %v4636 = vadd.f32 %v4092, %v4380
    %v4637 = vadd.f32 %v4093, %v4381
    %v4638 = vadd.f32 %v4094, %v4382
    %v4639 = vadd.f32 %v4095, %v4383
    %v4640 = vadd.f32 %v4096, %v4384
    %v4641 = vadd.f32 %v4097, %v4385
    %v4642 = vadd.f32 %v4098, %v4386
    %v4643 = vadd.f32 %v4099, %v4387
    %v4644 = vadd.f32 %v4100, %v4388
    %v4645 = vadd.f32 %v4101, %v4389
    %v4646 = vadd.f32 %v4102, %v4390
    %v4647 = vadd.f32 %v4103, %v4391
    %v4648 = vadd.f32 %v4104, %v4392
    %v4649 = vadd.f32 %v4105, %v4393
    %v4650 = vadd.f32 %v4106, %v4394
    %v4651 = vadd.f32 %v4107, %v4395
    %v4652 = vadd.f32 %v4108, %v4396
    %v4653 = vadd.f32 %v4109, %v4397
    %v4654 = vadd.f32 %v4110, %v4398
    %v4655 = vadd.f32 %v4111, %v4399
    %v4656 = vadd.f32 %v4112, %v4400
    %v4657 = vadd.f32 %v4113, %v4401
    %v4658 = vadd.f32 %v4114, %v4402
    %v4659 = vadd.f32 %v4115, %v4403
    %v4660 = vadd.f32 %v4116, %v4404
    %v4661 = vadd.f32 %v4117, %v4405
    %v4662 = vadd.f32 %v4118, %v4406
    %v4663 = vadd.f32 %v4119, %v4407
    %v4664 = vadd.f32 %v4120, %v4408
    %v4665 = vadd.f32 %v4121, %v4409
    %v4666 = vadd.f32 %v4122, %v4410
    %v4667 = vadd.f32 %v4123, %v4411
    %v4668 = vadd.f32 %v4124, %v4412
    %v4669 = vadd.f32 %v4125, %v4413
    %v4670 = vadd.f32 %v4126, %v4414
    %v4671 = vadd.f32 %v4127, %v4415
    %v4672 = vadd.f32 %v4128, %v4416
    %v4673 = vadd.f32 %v4129, %v4417
    %v4674 = vadd.f32 %v4130, %v4418
    %v4675 = vadd.f32 %v4131, %v4419
    %v4676 = vadd.f32 %v4132, %v4420
    %v4677 = vadd.f32 %v4133, %v4421
    %v4678 = vadd.f32 %v4134, %v4422
    %v4679 = vadd.f32 %v4135, %v4423
    %v4680 = vadd.f32 %v4136, %v4424
    %v4681 = vadd.f32 %v4137, %v4425
    %v4682 = vadd.f32 %v4138, %v4426
    %v4683 = vadd.f32 %v4139, %v4427
    %v4684 = vadd.f32 %v4140, %v4428
    %v4685 = vadd.f32 %v4141, %v4429
    %v4686 = vadd.f32 %v4142, %v4430
    %v4687 = vadd.f32 %v4143, %v4431
    %v4688 = vadd.f32 %v4144, %v4432
    %v4689 = vadd.f32 %v4145, %v4433
    %v4690 = vadd.f32 %v4146, %v4434
    %v4691 = vadd.f32 %v4147, %v4435
    %v4692 = vadd.f32 %v4148, %v4436
    %v4693 = vadd.f32 %v4149, %v4437
    %v4694 = vadd.f32 %v4150, %v4438
    %v4695 = vadd.f32 %v4151, %v4439
    %v4696 = vadd.f32 %v4152, %v4440
    %v4697 = vadd.f32 %v4153, %v4441
    %v4698 = vadd.f32 %v4154, %v4442
    %v4699 = vadd.f32 %v4155, %v4443
    %v4700 = vadd.f32 %v4156, %v4444
    %v4701 = vadd.f32 %v4157, %v4445
    %v4702 = vadd.f32 %v4158, %v4446
    %v4703 = vadd.f32 %v4159, %v4447
    %v4704 = vadd.f32 %v4160, %v4448
    %v4705 = vadd.f32 %v4161, %v4449
    %v4706 = vadd.f32 %v4162, %v4450
    %v4707 = vadd.f32 %v4163, %v4451
    %v4708 = vadd.f32 %v4164, %v4452
    %v4709 = vadd.f32 %v4165, %v4453
    %v4710 = vadd.f32 %v4166, %v4454
    %v4711 = vadd.f32 %v4167, %v4455
    %v4712 = vadd.f32 %v4168, %v4456
    %v4713 = vadd.f32 %v4169, %v4457
    %v4714 = vadd.f32 %v4170, %v4458
    %v4715 = vadd.f32 %v4171, %v4459
    %v4716 = vadd.f32 %v4172, %v4460
    %v4717 = vadd.f32 %v4173, %v4461
    %v4718 = vadd.f32 %v4174, %v4462
    %v4719 = vadd.f32 %v4175, %v4463
    %v4720 = vadd.f32 %v4176, %v4464
    %v4721 = vadd.f32 %v4177, %v4465
    %v4722 = vadd.f32 %v4178, %v4466
    %v4723 = vadd.f32 %v4179, %v4467
    %v4724 = vadd.f32 %v4180, %v4468
    %v4725 = vadd.f32 %v4181, %v4469
    %v4726 = vadd.f32 %v4182, %v4470
    %v4727 = vadd.f32 %v4183, %v4471
    %v4728 = vadd.f32 %v4184, %v4472
    %v4729 = vadd.f32 %v4185, %v4473
    %v4730 = vadd.f32 %v4186, %v4474
    %v4731 = vadd.f32 %v4187, %v4475
    %v4732 = vadd.f32 %v4188, %v4476
    %v4733 = vadd.f32 %v4189, %v4477
    %v4734 = vadd.f32 %v4190, %v4478
    %v4735 = vadd.f32 %v4191, %v4479
    %v4736 = vadd.f32 %v4192, %v4480
    %v4737 = vadd.f32 %v4193, %v4481
    %v4738 = vadd.f32 %v4194, %v4482
    %v4739 = vadd.f32 %v4195, %v4483
    %v4740 = vadd.f32 %v4196, %v4484
    %v4741 = vadd.f32 %v4197, %v4485
    %v4742 = vadd.f32 %v4198, %v4486
    %v4743 = vadd.f32 %v4199, %v4487
    %v4744 = vadd.f32 %v4200, %v4488
    %v4745 = vadd.f32 %v4201, %v4489
    %v4746 = vadd.f32 %v4202, %v4490
    %v4747 = vadd.f32 %v4203, %v4491
    %v4748 = vadd.f32 %v4204, %v4492
    %v4749 = vadd.f32 %v4205, %v4493
    %v4750 = vadd.f32 %v4206, %v4494
    %v4751 = vadd.f32 %v4207, %v4495
    %v4752 = vadd.f32 %v4208, %v4496
    %v4753 = vadd.f32 %v4209, %v4497
    %v4754 = vadd.f32 %v4210, %v4498
    %v4755 = vadd.f32 %v4211, %v4499
    %v4756 = vadd.f32 %v4212, %v4500
    %v4757 = vadd.f32 %v4213, %v4501
    %v4758 = vadd.f32 %v4214, %v4502
    %v4759 = vadd.f32 %v4215, %v4503
    %v4760 = vadd.f32 %v4216, %v4504
    %v4761 = vadd.f32 %v4217, %v4505
    %v4762 = vadd.f32 %v4218, %v4506
    %v4763 = vadd.f32 %v4219, %v4507
    %v4764 = vadd.f32 %v4220, %v4508
    %v4765 = vadd.f32 %v4221, %v4509
    %v4766 = vadd.f32 %v4222, %v4510
    %v4767 = vadd.f32 %v4223, %v4511
    %v4768 = vadd.f32 %v4224, %v4512
    %v4769 = vadd.f32 %v4225, %v4513
    %v4770 = vadd.f32 %v4226, %v4514
    %v4771 = vadd.f32 %v4227, %v4515
    %v4772 = vadd.f32 %v4228, %v4516
    %v4773 = vadd.f32 %v4229, %v4517
    %v4774 = vadd.f32 %v4230, %v4518
    %v4775 = vadd.f32 %v4231, %v4519
    %v4776 = vadd.f32 %v4232, %v4520
    %v4777 = vadd.f32 %v4233, %v4521
    %v4778 = vadd.f32 %v4234, %v4522
    %v4779 = vadd.f32 %v4235, %v4523
    %v4780 = vadd.f32 %v4236, %v4524
    %v4781 = vadd.f32 %v4237, %v4525
    %v4782 = vadd.f32 %v4238, %v4526
    %v4783 = vadd.f32 %v4239, %v4527
    %v4784 = vadd.f32 %v4240, %v4528
    %v4785 = vadd.f32 %v4241, %v4529
    %v4786 = vadd.f32 %v4242, %v4530
    %v4787 = vadd.f32 %v4243, %v4531
    %v4788 = vadd.f32 %v4244, %v4532
    %v4789 = vadd.f32 %v4245, %v4533
    %v4790 = vadd.f32 %v4246, %v4534
    %v4791 = vadd.f32 %v4247, %v4535
    %v4792 = vadd.f32 %v4248, %v4536
    %v4793 = vadd.f32 %v4249, %v4537
    %v4794 = vadd.f32 %v4250, %v4538
    %v4795 = vadd.f32 %v4251, %v4539
    %v4796 = vadd.f32 %v4252, %v4540
    %v4797 = vadd.f32 %v4253, %v4541
    %v4798 = vadd.f32 %v4254, %v4542
    %v4799 = vadd.f32 %v4255, %v4543
    %v4800 = vadd.f32 %v4256, %v4544
    %v4801 = vadd.f32 %v4257, %v4545
    %v4802 = vadd.f32 %v4258, %v4546
    %v4803 = vadd.f32 %v4259, %v4547
    %v4804 = vadd.f32 %v4260, %v4548
    %v4805 = vadd.f32 %v4261, %v4549
    %v4806 = vadd.f32 %v4262, %v4550
    %v4807 = vadd.f32 %v4263, %v4551
    %v4808 = vadd.f32 %v4264, %v4552
    %v4809 = vadd.f32 %v4265, %v4553
    %v4810 = vadd.f32 %v4266, %v4554
    %v4811 = vadd.f32 %v4267, %v4555
    %v4812 = vadd.f32 %v4268, %v4556
    %v4813 = vadd.f32 %v4269, %v4557
    %v4814 = vadd.f32 %v4270, %v4558
    %v4815 = vadd.f32 %v4271, %v4559
    %v4816 = vadd.f32 %v4272, %v4560
    %v4817 = vadd.f32 %v4273, %v4561
    %v4818 = vadd.f32 %v4274, %v4562
    %v4819 = vadd.f32 %v4275, %v4563
    %v4820 = vadd.f32 %v4276, %v4564
    %v4821 = vadd.f32 %v4277, %v4565
    %v4822 = vadd.f32 %v4278, %v4566
    %v4823 = vadd.f32 %v4279, %v4567
    %v4824 = vadd.f32 %v4280, %v4568
    %v4825 = vadd.f32 %v4281, %v4569
    %v4826 = vadd.f32 %v4282, %v4570
    %v4827 = vadd.f32 %v4283, %v4571
    %v4828 = vadd.f32 %v4284, %v4572
    %v4829 = vadd.f32 %v4285, %v4573
    %v4830 = vadd.f32 %v4286, %v4574
    %v4831 = vadd.f32 %v4287, %v4575
    %v4832 = vadd.f32 %v4288, %v4576
    %v4833 = vadd.f32 %v4289, %v4577
    %v4834 = vadd.f32 %v4290, %v4578
    %v4835 = vadd.f32 %v4291, %v4579
    %v4836 = vadd.f32 %v4292, %v4580
    %v4837 = vadd.f32 %v4293, %v4581
    %v4838 = vadd.f32 %v4294, %v4582
    %v4839 = vadd.f32 %v4295, %v4583
    %v4840 = vadd.f32 %v4296, %v4584
    %v4841 = vadd.f32 %v4297, %v4585
    %v4842 = vadd.f32 %v4298, %v4586
    %v4843 = vadd.f32 %v4299, %v4587
    %v4844 = vadd.f32 %v4300, %v4588
    %v4845 = vadd.f32 %v4301, %v4589
    %v4846 = vadd.f32 %v4302, %v4590
    %v4847 = vadd.f32 %v4303, %v4591
    %v4848 = vadd.f32 %v4304, %v4592
    %v4849 = vadd.f32 %v4305, %v4593
    %v4850 = vadd.f32 %v4306, %v4594
    %v4851 = vadd.f32 %v4307, %v4595
    %v4852 = vadd.f32 %v4308, %v4596
    %v4853 = vadd.f32 %v4309, %v4597
    %v4854 = vadd.f32 %v4310, %v4598
    %v4855 = vadd.f32 %v4311, %v4599
    %v4856 = vadd.f32 %v4312, %v4600
    %v4857 = vadd.f32 %v4313, %v4601
    %v4858 = vadd.f32 %v4314, %v4602
    %v4859 = vadd.f32 %v4315, %v4603
    %v4860 = vlaneseq
    %v4861 = vshrl.u32 %v4860, 7
    %v4862 = vsub.s32 2, %v4861
    %v4863 = vrot.slane %v3508, %v4862
    %v4864 = vlaneseq
    %v4865 = vshrl.u32 %v4864, 7
    %v4866 = vsub.s32 2, %v4865
    %v4867 = vrot.slane %v3509, %v4866
    %v4868 = vlaneseq
    %v4869 = vshrl.u32 %v4868, 7
    %v4870 = vsub.s32 2, %v4869
    %v4871 = vrot.slane %v3510, %v4870
    %v4872 = vlaneseq
    %v4873 = vshrl.u32 %v4872, 7
    %v4874 = vsub.s32 2, %v4873
    %v4875 = vrot.slane %v3511, %v4874
    %v4876 = vlaneseq
    %v4877 = vshrl.u32 %v4876, 7
    %v4878 = vsub.s32 2, %v4877
    %v4879 = vrot.slane %v3512, %v4878
    %v4880 = vlaneseq
    %v4881 = vshrl.u32 %v4880, 7
    %v4882 = vsub.s32 2, %v4881
    %v4883 = vrot.slane %v3513, %v4882
    %v4884 = vlaneseq
    %v4885 = vshrl.u32 %v4884, 7
    %v4886 = vsub.s32 2, %v4885
    %v4887 = vrot.slane %v3514, %v4886
    %v4888 = vlaneseq
    %v4889 = vshrl.u32 %v4888, 7
    %v4890 = vsub.s32 2, %v4889
    %v4891 = vrot.slane %v3515, %v4890
    %v4892 = vmul.f32 %v4863, %v2102
    %v4893 = vmul.f32 %v4863, %v2106
    %v4894 = vmul.f32 %v4863, %v2110
    %v4895 = vmul.f32 %v4863, %v2114
    %v4896 = vmul.f32 %v4863, %v2118
    %v4897 = vmul.f32 %v4863, %v2122
    %v4898 = vmul.f32 %v4863, %v2126
    %v4899 = vmul.f32 %v4863, %v2130
    %v4900 = vmul.f32 %v4863, %v2134
    %v4901 = vmul.f32 %v4863, %v2138
    %v4902 = vmul.f32 %v4863, %v2142
    %v4903 = vmul.f32 %v4863, %v2146
    %v4904 = vmul.f32 %v4863, %v2150
    %v4905 = vmul.f32 %v4863, %v2154
    %v4906 = vmul.f32 %v4863, %v2158
    %v4907 = vmul.f32 %v4863, %v2162
    %v4908 = vmul.f32 %v4863, %v2166
    %v4909 = vmul.f32 %v4863, %v2170
    %v4910 = vmul.f32 %v4863, %v2174
    %v4911 = vmul.f32 %v4863, %v2178
    %v4912 = vmul.f32 %v4863, %v2182
    %v4913 = vmul.f32 %v4863, %v2186
    %v4914 = vmul.f32 %v4863, %v2190
    %v4915 = vmul.f32 %v4863, %v2194
    %v4916 = vmul.f32 %v4863, %v2198
    %v4917 = vmul.f32 %v4863, %v2202
    %v4918 = vmul.f32 %v4863, %v2206
    %v4919 = vmul.f32 %v4863, %v2210
    %v4920 = vmul.f32 %v4863, %v2214
    %v4921 = vmul.f32 %v4863, %v2218
    %v4922 = vmul.f32 %v4863, %v2222
    %v4923 = vmul.f32 %v4863, %v2226
    %v4924 = vmul.f32 %v4867, %v2102
    %v4925 = vmul.f32 %v4867, %v2106
    %v4926 = vmul.f32 %v4867, %v2110
    %v4927 = vmul.f32 %v4867, %v2114
    %v4928 = vmul.f32 %v4867, %v2118
    %v4929 = vmul.f32 %v4867, %v2122
    %v4930 = vmul.f32 %v4867, %v2126
    %v4931 = vmul.f32 %v4867, %v2130
    %v4932 = vmul.f32 %v4867, %v2134
    %v4933 = vmul.f32 %v4867, %v2138
    %v4934 = vmul.f32 %v4867, %v2142
    %v4935 = vmul.f32 %v4867, %v2146
    %v4936 = vmul.f32 %v4867, %v2150
    %v4937 = vmul.f32 %v4867, %v2154
    %v4938 = vmul.f32 %v4867, %v2158
    %v4939 = vmul.f32 %v4867, %v2162
    %v4940 = vmul.f32 %v4867, %v2166
    %v4941 = vmul.f32 %v4867, %v2170
    %v4942 = vmul.f32 %v4867, %v2174
    %v4943 = vmul.f32 %v4867, %v2178
    %v4944 = vmul.f32 %v4867, %v2182
    %v4945 = vmul.f32 %v4867, %v2186
    %v4946 = vmul.f32 %v4867, %v2190
    %v4947 = vmul.f32 %v4867, %v2194
    %v4948 = vmul.f32 %v4867, %v2198
    %v4949 = vmul.f32 %v4867, %v2202
    %v4950 = vmul.f32 %v4867, %v2206
    %v4951 = vmul.f32 %v4867, %v2210
    %v4952 = vmul.f32 %v4867, %v2214
    %v4953 = vmul.f32 %v4867, %v2218
    %v4954 = vmul.f32 %v4867, %v2222
    %v4955 = vmul.f32 %v4867, %v2226
    %v4956 = vmul.f32 %v4871, %v2102
    %v4957 = vmul.f32 %v4871, %v2106
    %v4958 = vmul.f32 %v4871, %v2110
    %v4959 = vmul.f32 %v4871, %v2114
    %v4960 = vmul.f32 %v4871, %v2118
    %v4961 = vmul.f32 %v4871, %v2122
    %v4962 = vmul.f32 %v4871, %v2126
    %v4963 = vmul.f32 %v4871, %v2130
    %v4964 = vmul.f32 %v4871, %v2134
    %v4965 = vmul.f32 %v4871, %v2138
    %v4966 = vmul.f32 %v4871, %v2142
    %v4967 = vmul.f32 %v4871, %v2146
    %v4968 = vmul.f32 %v4871, %v2150
    %v4969 = vmul.f32 %v4871, %v2154
    %v4970 = vmul.f32 %v4871, %v2158
    %v4971 = vmul.f32 %v4871, %v2162
    %v4972 = vmul.f32 %v4871, %v2166
    %v4973 = vmul.f32 %v4871, %v2170
    %v4974 = vmul.f32 %v4871, %v2174
    %v4975 = vmul.f32 %v4871, %v2178
    %v4976 = vmul.f32 %v4871, %v2182
    %v4977 = vmul.f32 %v4871, %v2186
    %v4978 = vmul.f32 %v4871, %v2190
    %v4979 = vmul.f32 %v4871, %v2194
    %v4980 = vmul.f32 %v4871, %v2198
    %v4981 = vmul.f32 %v4871, %v2202
    %v4982 = vmul.f32 %v4871, %v2206
    %v4983 = vmul.f32 %v4871, %v2210
    %v4984 = vmul.f32 %v4871, %v2214
    %v4985 = vmul.f32 %v4871, %v2218
    %v4986 = vmul.f32 %v4871, %v2222
    %v4987 = vmul.f32 %v4871, %v2226
    %v4988 = vmul.f32 %v4875, %v2102
    %v4989 = vmul.f32 %v4875, %v2106
    %v4990 = vmul.f32 %v4875, %v2110
    %v4991 = vmul.f32 %v4875, %v2114
    %v4992 = vmul.f32 %v4875, %v2118
    %v4993 = vmul.f32 %v4875, %v2122
    %v4994 = vmul.f32 %v4875, %v2126
    %v4995 = vmul.f32 %v4875, %v2130
    %v4996 = vmul.f32 %v4875, %v2134
    %v4997 = vmul.f32 %v4875, %v2138
    %v4998 = vmul.f32 %v4875, %v2142
    %v4999 = vmul.f32 %v4875, %v2146
    %v5000 = vmul.f32 %v4875, %v2150
    %v5001 = vmul.f32 %v4875, %v2154
    %v5002 = vmul.f32 %v4875, %v2158
    %v5003 = vmul.f32 %v4875, %v2162
    %v5004 = vmul.f32 %v4875, %v2166
    %v5005 = vmul.f32 %v4875, %v2170
    %v5006 = vmul.f32 %v4875, %v2174
    %v5007 = vmul.f32 %v4875, %v2178
    %v5008 = vmul.f32 %v4875, %v2182
    %v5009 = vmul.f32 %v4875, %v2186
    %v5010 = vmul.f32 %v4875, %v2190
    %v5011 = vmul.f32 %v4875, %v2194
    %v5012 = vmul.f32 %v4875, %v2198
    %v5013 = vmul.f32 %v4875, %v2202
    %v5014 = vmul.f32 %v4875, %v2206
    %v5015 = vmul.f32 %v4875, %v2210
    %v5016 = vmul.f32 %v4875, %v2214
    %v5017 = vmul.f32 %v4875, %v2218
    %v5018 = vmul.f32 %v4875, %v2222
    %v5019 = vmul.f32 %v4875, %v2226
    %v5020 = vmul.f32 %v4879, %v2102
    %v5021 = vmul.f32 %v4879, %v2106
    %v5022 = vmul.f32 %v4879, %v2110
    %v5023 = vmul.f32 %v4879, %v2114
    %v5024 = vmul.f32 %v4879, %v2118
    %v5025 = vmul.f32 %v4879, %v2122
    %v5026 = vmul.f32 %v4879, %v2126
    %v5027 = vmul.f32 %v4879, %v2130
    %v5028 = vmul.f32 %v4879, %v2134
    %v5029 = vmul.f32 %v4879, %v2138
    %v5030 = vmul.f32 %v4879, %v2142
    %v5031 = vmul.f32 %v4879, %v2146
    %v5032 = vmul.f32 %v4879, %v2150
    %v5033 = vmul.f32 %v4879, %v2154
    %v5034 = vmul.f32 %v4879, %v2158
    %v5035 = vmul.f32 %v4879, %v2162
    %v5036 = vmul.f32 %v4879, %v2166
    %v5037 = vmul.f32 %v4879, %v2170
    %v5038 = vmul.f32 %v4879, %v2174
    %v5039 = vmul.f32 %v4879, %v2178
    %v5040 = vmul.f32 %v4879, %v2182
    %v5041 = vmul.f32 %v4879, %v2186
    %v5042 = vmul.f32 %v4879, %v2190
    %v5043 = vmul.f32 %v4879, %v2194
    %v5044 = vmul.f32 %v4879, %v2198
    %v5045 = vmul.f32 %v4879, %v2202
    %v5046 = vmul.f32 %v4879, %v2206
    %v5047 = vmul.f32 %v4879, %v2210
    %v5048 = vmul.f32 %v4879, %v2214
    %v5049 = vmul.f32 %v4879, %v2218
    %v5050 = vmul.f32 %v4879, %v2222
    %v5051 = vmul.f32 %v4879, %v2226
    %v5052 = vmul.f32 %v4883, %v2102
    %v5053 = vmul.f32 %v4883, %v2106
    %v5054 = vmul.f32 %v4883, %v2110
    %v5055 = vmul.f32 %v4883, %v2114
    %v5056 = vmul.f32 %v4883, %v2118
    %v5057 = vmul.f32 %v4883, %v2122
    %v5058 = vmul.f32 %v4883, %v2126
    %v5059 = vmul.f32 %v4883, %v2130
    %v5060 = vmul.f32 %v4883, %v2134
    %v5061 = vmul.f32 %v4883, %v2138
    %v5062 = vmul.f32 %v4883, %v2142
    %v5063 = vmul.f32 %v4883, %v2146
    %v5064 = vmul.f32 %v4883, %v2150
    %v5065 = vmul.f32 %v4883, %v2154
    %v5066 = vmul.f32 %v4883, %v2158
    %v5067 = vmul.f32 %v4883, %v2162
    %v5068 = vmul.f32 %v4883, %v2166
    %v5069 = vmul.f32 %v4883, %v2170
    %v5070 = vmul.f32 %v4883, %v2174
    %v5071 = vmul.f32 %v4883, %v2178
    %v5072 = vmul.f32 %v4883, %v2182
    %v5073 = vmul.f32 %v4883, %v2186
    %v5074 = vmul.f32 %v4883, %v2190
    %v5075 = vmul.f32 %v4883, %v2194
    %v5076 = vmul.f32 %v4883, %v2198
    %v5077 = vmul.f32 %v4883, %v2202
    %v5078 = vmul.f32 %v4883, %v2206
    %v5079 = vmul.f32 %v4883, %v2210
    %v5080 = vmul.f32 %v4883, %v2214
    %v5081 = vmul.f32 %v4883, %v2218
    %v5082 = vmul.f32 %v4883, %v2222
    %v5083 = vmul.f32 %v4883, %v2226
    %v5084 = vmul.f32 %v4887, %v2102
    %v5085 = vmul.f32 %v4887, %v2106
    %v5086 = vmul.f32 %v4887, %v2110
    %v5087 = vmul.f32 %v4887, %v2114
    %v5088 = vmul.f32 %v4887, %v2118
    %v5089 = vmul.f32 %v4887, %v2122
    %v5090 = vmul.f32 %v4887, %v2126
    %v5091 = vmul.f32 %v4887, %v2130
    %v5092 = vmul.f32 %v4887, %v2134
    %v5093 = vmul.f32 %v4887, %v2138
    %v5094 = vmul.f32 %v4887, %v2142
    %v5095 = vmul.f32 %v4887, %v2146
    %v5096 = vmul.f32 %v4887, %v2150
    %v5097 = vmul.f32 %v4887, %v2154
    %v5098 = vmul.f32 %v4887, %v2158
    %v5099 = vmul.f32 %v4887, %v2162
    %v5100 = vmul.f32 %v4887, %v2166
    %v5101 = vmul.f32 %v4887, %v2170
    %v5102 = vmul.f32 %v4887, %v2174
    %v5103 = vmul.f32 %v4887, %v2178
    %v5104 = vmul.f32 %v4887, %v2182
    %v5105 = vmul.f32 %v4887, %v2186
    %v5106 = vmul.f32 %v4887, %v2190
    %v5107 = vmul.f32 %v4887, %v2194
    %v5108 = vmul.f32 %v4887, %v2198
    %v5109 = vmul.f32 %v4887, %v2202
    %v5110 = vmul.f32 %v4887, %v2206
    %v5111 = vmul.f32 %v4887, %v2210
    %v5112 = vmul.f32 %v4887, %v2214
    %v5113 = vmul.f32 %v4887, %v2218
    %v5114 = vmul.f32 %v4887, %v2222
    %v5115 = vmul.f32 %v4887, %v2226
    %v5116 = vmul.f32 %v4891, %v2102
    %v5117 = vmul.f32 %v4891, %v2106
    %v5118 = vmul.f32 %v4891, %v2110
    %v5119 = vmul.f32 %v4891, %v2114
    %v5120 = vmul.f32 %v4891, %v2118
    %v5121 = vmul.f32 %v4891, %v2122
    %v5122 = vmul.f32 %v4891, %v2126
    %v5123 = vmul.f32 %v4891, %v2130
    %v5124 = vmul.f32 %v4891, %v2134
    %v5125 = vmul.f32 %v4891, %v2138
    %v5126 = vmul.f32 %v4891, %v2142
    %v5127 = vmul.f32 %v4891, %v2146
    %v5128 = vmul.f32 %v4891, %v2150
    %v5129 = vmul.f32 %v4891, %v2154
    %v5130 = vmul.f32 %v4891, %v2158
    %v5131 = vmul.f32 %v4891, %v2162
    %v5132 = vmul.f32 %v4891, %v2166
    %v5133 = vmul.f32 %v4891, %v2170
    %v5134 = vmul.f32 %v4891, %v2174
    %v5135 = vmul.f32 %v4891, %v2178
    %v5136 = vmul.f32 %v4891, %v2182
    %v5137 = vmul.f32 %v4891, %v2186
    %v5138 = vmul.f32 %v4891, %v2190
    %v5139 = vmul.f32 %v4891, %v2194
    %v5140 = vmul.f32 %v4891, %v2198
    %v5141 = vmul.f32 %v4891, %v2202
    %v5142 = vmul.f32 %v4891, %v2206
    %v5143 = vmul.f32 %v4891, %v2210
    %v5144 = vmul.f32 %v4891, %v2214
    %v5145 = vmul.f32 %v4891, %v2218
    %v5146 = vmul.f32 %v4891, %v2222
    %v5147 = vmul.f32 %v4891, %v2226
    %v5148 = vadd.f32 %v4604, %v4892
    %v5149 = vadd.f32 %v4605, %v4893
    %v5150 = vadd.f32 %v4606, %v4894
    %v5151 = vadd.f32 %v4607, %v4895
    %v5152 = vadd.f32 %v4608, %v4896
    %v5153 = vadd.f32 %v4609, %v4897
    %v5154 = vadd.f32 %v4610, %v4898
    %v5155 = vadd.f32 %v4611, %v4899
    %v5156 = vadd.f32 %v4612, %v4900
    %v5157 = vadd.f32 %v4613, %v4901
    %v5158 = vadd.f32 %v4614, %v4902
    %v5159 = vadd.f32 %v4615, %v4903
    %v5160 = vadd.f32 %v4616, %v4904
    %v5161 = vadd.f32 %v4617, %v4905
    %v5162 = vadd.f32 %v4618, %v4906
    %v5163 = vadd.f32 %v4619, %v4907
    %v5164 = vadd.f32 %v4620, %v4908
    %v5165 = vadd.f32 %v4621, %v4909
    %v5166 = vadd.f32 %v4622, %v4910
    %v5167 = vadd.f32 %v4623, %v4911
    %v5168 = vadd.f32 %v4624, %v4912
    %v5169 = vadd.f32 %v4625, %v4913
    %v5170 = vadd.f32 %v4626, %v4914
    %v5171 = vadd.f32 %v4627, %v4915
    %v5172 = vadd.f32 %v4628, %v4916
    %v5173 = vadd.f32 %v4629, %v4917
    %v5174 = vadd.f32 %v4630, %v4918
    %v5175 = vadd.f32 %v4631, %v4919
    %v5176 = vadd.f32 %v4632, %v4920
    %v5177 = vadd.f32 %v4633, %v4921
    %v5178 = vadd.f32 %v4634, %v4922
    %v5179 = vadd.f32 %v4635, %v4923
    %v5180 = vadd.f32 %v4636, %v4924
    %v5181 = vadd.f32 %v4637, %v4925
    %v5182 = vadd.f32 %v4638, %v4926
    %v5183 = vadd.f32 %v4639, %v4927
    %v5184 = vadd.f32 %v4640, %v4928
    %v5185 = vadd.f32 %v4641, %v4929
    %v5186 = vadd.f32 %v4642, %v4930
    %v5187 = vadd.f32 %v4643, %v4931
    %v5188 = vadd.f32 %v4644, %v4932
    %v5189 = vadd.f32 %v4645, %v4933
    %v5190 = vadd.f32 %v4646, %v4934
    %v5191 = vadd.f32 %v4647, %v4935
    %v5192 = vadd.f32 %v4648, %v4936
    %v5193 = vadd.f32 %v4649, %v4937
    %v5194 = vadd.f32 %v4650, %v4938
    %v5195 = vadd.f32 %v4651, %v4939
    %v5196 = vadd.f32 %v4652, %v4940
    %v5197 = vadd.f32 %v4653, %v4941
    %v5198 = vadd.f32 %v4654, %v4942
    %v5199 = vadd.f32 %v4655, %v4943
    %v5200 = vadd.f32 %v4656, %v4944
    %v5201 = vadd.f32 %v4657, %v4945
    %v5202 = vadd.f32 %v4658, %v4946
    %v5203 = vadd.f32 %v4659, %v4947
    %v5204 = vadd.f32 %v4660, %v4948
    %v5205 = vadd.f32 %v4661, %v4949
    %v5206 = vadd.f32 %v4662, %v4950
    %v5207 = vadd.f32 %v4663, %v4951
    %v5208 = vadd.f32 %v4664, %v4952
    %v5209 = vadd.f32 %v4665, %v4953
    %v5210 = vadd.f32 %v4666, %v4954
    %v5211 = vadd.f32 %v4667, %v4955
    %v5212 = vadd.f32 %v4668, %v4956
    %v5213 = vadd.f32 %v4669, %v4957
    %v5214 = vadd.f32 %v4670, %v4958
    %v5215 = vadd.f32 %v4671, %v4959
    %v5216 = vadd.f32 %v4672, %v4960
    %v5217 = vadd.f32 %v4673, %v4961
    %v5218 = vadd.f32 %v4674, %v4962
    %v5219 = vadd.f32 %v4675, %v4963
    %v5220 = vadd.f32 %v4676, %v4964
    %v5221 = vadd.f32 %v4677, %v4965
    %v5222 = vadd.f32 %v4678, %v4966
    %v5223 = vadd.f32 %v4679, %v4967
    %v5224 = vadd.f32 %v4680, %v4968
    %v5225 = vadd.f32 %v4681, %v4969
    %v5226 = vadd.f32 %v4682, %v4970
    %v5227 = vadd.f32 %v4683, %v4971
    %v5228 = vadd.f32 %v4684, %v4972
    %v5229 = vadd.f32 %v4685, %v4973
    %v5230 = vadd.f32 %v4686, %v4974
    %v5231 = vadd.f32 %v4687, %v4975
    %v5232 = vadd.f32 %v4688, %v4976
    %v5233 = vadd.f32 %v4689, %v4977
    %v5234 = vadd.f32 %v4690, %v4978
    %v5235 = vadd.f32 %v4691, %v4979
    %v5236 = vadd.f32 %v4692, %v4980
    %v5237 = vadd.f32 %v4693, %v4981
    %v5238 = vadd.f32 %v4694, %v4982
    %v5239 = vadd.f32 %v4695, %v4983
    %v5240 = vadd.f32 %v4696, %v4984
    %v5241 = vadd.f32 %v4697, %v4985
    %v5242 = vadd.f32 %v4698, %v4986
    %v5243 = vadd.f32 %v4699, %v4987
    %v5244 = vadd.f32 %v4700, %v4988
    %v5245 = vadd.f32 %v4701, %v4989
    %v5246 = vadd.f32 %v4702, %v4990
    %v5247 = vadd.f32 %v4703, %v4991
    %v5248 = vadd.f32 %v4704, %v4992
    %v5249 = vadd.f32 %v4705, %v4993
    %v5250 = vadd.f32 %v4706, %v4994
    %v5251 = vadd.f32 %v4707, %v4995
    %v5252 = vadd.f32 %v4708, %v4996
    %v5253 = vadd.f32 %v4709, %v4997
    %v5254 = vadd.f32 %v4710, %v4998
    %v5255 = vadd.f32 %v4711, %v4999
    %v5256 = vadd.f32 %v4712, %v5000
    %v5257 = vadd.f32 %v4713, %v5001
    %v5258 = vadd.f32 %v4714, %v5002
    %v5259 = vadd.f32 %v4715, %v5003
    %v5260 = vadd.f32 %v4716, %v5004
    %v5261 = vadd.f32 %v4717, %v5005
    %v5262 = vadd.f32 %v4718, %v5006
    %v5263 = vadd.f32 %v4719, %v5007
    %v5264 = vadd.f32 %v4720, %v5008
    %v5265 = vadd.f32 %v4721, %v5009
    %v5266 = vadd.f32 %v4722, %v5010
    %v5267 = vadd.f32 %v4723, %v5011
    %v5268 = vadd.f32 %v4724, %v5012
    %v5269 = vadd.f32 %v4725, %v5013
    %v5270 = vadd.f32 %v4726, %v5014
    %v5271 = vadd.f32 %v4727, %v5015
    %v5272 = vadd.f32 %v4728, %v5016
    %v5273 = vadd.f32 %v4729, %v5017
    %v5274 = vadd.f32 %v4730, %v5018
    %v5275 = vadd.f32 %v4731, %v5019
    %v5276 = vadd.f32 %v4732, %v5020
    %v5277 = vadd.f32 %v4733, %v5021
    %v5278 = vadd.f32 %v4734, %v5022
    %v5279 = vadd.f32 %v4735, %v5023
    %v5280 = vadd.f32 %v4736, %v5024
    %v5281 = vadd.f32 %v4737, %v5025
    %v5282 = vadd.f32 %v4738, %v5026
    %v5283 = vadd.f32 %v4739, %v5027
    %v5284 = vadd.f32 %v4740, %v5028
    %v5285 = vadd.f32 %v4741, %v5029
    %v5286 = vadd.f32 %v4742, %v5030
    %v5287 = vadd.f32 %v4743, %v5031
    %v5288 = vadd.f32 %v4744, %v5032
    %v5289 = vadd.f32 %v4745, %v5033
    %v5290 = vadd.f32 %v4746, %v5034
    %v5291 = vadd.f32 %v4747, %v5035
    %v5292 = vadd.f32 %v4748, %v5036
    %v5293 = vadd.f32 %v4749, %v5037
    %v5294 = vadd.f32 %v4750, %v5038
    %v5295 = vadd.f32 %v4751, %v5039
    %v5296 = vadd.f32 %v4752, %v5040
    %v5297 = vadd.f32 %v4753, %v5041
    %v5298 = vadd.f32 %v4754, %v5042
    %v5299 = vadd.f32 %v4755, %v5043
    %v5300 = vadd.f32 %v4756, %v5044
    %v5301 = vadd.f32 %v4757, %v5045
    %v5302 = vadd.f32 %v4758, %v5046
    %v5303 = vadd.f32 %v4759, %v5047
    %v5304 = vadd.f32 %v4760, %v5048
    %v5305 = vadd.f32 %v4761, %v5049
    %v5306 = vadd.f32 %v4762, %v5050
    %v5307 = vadd.f32 %v4763, %v5051
    %v5308 = vadd.f32 %v4764, %v5052
    %v5309 = vadd.f32 %v4765, %v5053
    %v5310 = vadd.f32 %v4766, %v5054
    %v5311 = vadd.f32 %v4767, %v5055
    %v5312 = vadd.f32 %v4768, %v5056
    %v5313 = vadd.f32 %v4769, %v5057
    %v5314 = vadd.f32 %v4770, %v5058
    %v5315 = vadd.f32 %v4771, %v5059
    %v5316 = vadd.f32 %v4772, %v5060
    %v5317 = vadd.f32 %v4773, %v5061
    %v5318 = vadd.f32 %v4774, %v5062
    %v5319 = vadd.f32 %v4775, %v5063
    %v5320 = vadd.f32 %v4776, %v5064
    %v5321 = vadd.f32 %v4777, %v5065
    %v5322 = vadd.f32 %v4778, %v5066
    %v5323 = vadd.f32 %v4779, %v5067
    %v5324 = vadd.f32 %v4780, %v5068
    %v5325 = vadd.f32 %v4781, %v5069
    %v5326 = vadd.f32 %v4782, %v5070
    %v5327 = vadd.f32 %v4783, %v5071
    %v5328 = vadd.f32 %v4784, %v5072
    %v5329 = vadd.f32 %v4785, %v5073
    %v5330 = vadd.f32 %v4786, %v5074
    %v5331 = vadd.f32 %v4787, %v5075
    %v5332 = vadd.f32 %v4788, %v5076
    %v5333 = vadd.f32 %v4789, %v5077
    %v5334 = vadd.f32 %v4790, %v5078
    %v5335 = vadd.f32 %v4791, %v5079
    %v5336 = vadd.f32 %v4792, %v5080
    %v5337 = vadd.f32 %v4793, %v5081
    %v5338 = vadd.f32 %v4794, %v5082
    %v5339 = vadd.f32 %v4795, %v5083
    %v5340 = vadd.f32 %v4796, %v5084
    %v5341 = vadd.f32 %v4797, %v5085
    %v5342 = vadd.f32 %v4798, %v5086
    %v5343 = vadd.f32 %v4799, %v5087
    %v5344 = vadd.f32 %v4800, %v5088
    %v5345 = vadd.f32 %v4801, %v5089
    %v5346 = vadd.f32 %v4802, %v5090
    %v5347 = vadd.f32 %v4803, %v5091
    %v5348 = vadd.f32 %v4804, %v5092
    %v5349 = vadd.f32 %v4805, %v5093
    %v5350 = vadd.f32 %v4806, %v5094
    %v5351 = vadd.f32 %v4807, %v5095
    %v5352 = vadd.f32 %v4808, %v5096
    %v5353 = vadd.f32 %v4809, %v5097
    %v5354 = vadd.f32 %v4810, %v5098
    %v5355 = vadd.f32 %v4811, %v5099
    %v5356 = vadd.f32 %v4812, %v5100
    %v5357 = vadd.f32 %v4813, %v5101
    %v5358 = vadd.f32 %v4814, %v5102
    %v5359 = vadd.f32 %v4815, %v5103
    %v5360 = vadd.f32 %v4816, %v5104
    %v5361 = vadd.f32 %v4817, %v5105
    %v5362 = vadd.f32 %v4818, %v5106
    %v5363 = vadd.f32 %v4819, %v5107
    %v5364 = vadd.f32 %v4820, %v5108
    %v5365 = vadd.f32 %v4821, %v5109
    %v5366 = vadd.f32 %v4822, %v5110
    %v5367 = vadd.f32 %v4823, %v5111
    %v5368 = vadd.f32 %v4824, %v5112
    %v5369 = vadd.f32 %v4825, %v5113
    %v5370 = vadd.f32 %v4826, %v5114
    %v5371 = vadd.f32 %v4827, %v5115
    %v5372 = vadd.f32 %v4828, %v5116
    %v5373 = vadd.f32 %v4829, %v5117
    %v5374 = vadd.f32 %v4830, %v5118
    %v5375 = vadd.f32 %v4831, %v5119
    %v5376 = vadd.f32 %v4832, %v5120
    %v5377 = vadd.f32 %v4833, %v5121
    %v5378 = vadd.f32 %v4834, %v5122
    %v5379 = vadd.f32 %v4835, %v5123
    %v5380 = vadd.f32 %v4836, %v5124
    %v5381 = vadd.f32 %v4837, %v5125
    %v5382 = vadd.f32 %v4838, %v5126
    %v5383 = vadd.f32 %v4839, %v5127
    %v5384 = vadd.f32 %v4840, %v5128
    %v5385 = vadd.f32 %v4841, %v5129
    %v5386 = vadd.f32 %v4842, %v5130
    %v5387 = vadd.f32 %v4843, %v5131
    %v5388 = vadd.f32 %v4844, %v5132
    %v5389 = vadd.f32 %v4845, %v5133
    %v5390 = vadd.f32 %v4846, %v5134
    %v5391 = vadd.f32 %v4847, %v5135
    %v5392 = vadd.f32 %v4848, %v5136
    %v5393 = vadd.f32 %v4849, %v5137
    %v5394 = vadd.f32 %v4850, %v5138
    %v5395 = vadd.f32 %v4851, %v5139
    %v5396 = vadd.f32 %v4852, %v5140
    %v5397 = vadd.f32 %v4853, %v5141
    %v5398 = vadd.f32 %v4854, %v5142
    %v5399 = vadd.f32 %v4855, %v5143
    %v5400 = vadd.f32 %v4856, %v5144
    %v5401 = vadd.f32 %v4857, %v5145
    %v5402 = vadd.f32 %v4858, %v5146
    %v5403 = vadd.f32 %v4859, %v5147
    %v5404 = vmax.f32 %v5148, 0.0
    %v5405 = vmax.f32 %v5149, 0.0
    %v5406 = vmax.f32 %v5150, 0.0
    %v5407 = vmax.f32 %v5151, 0.0
    %v5408 = vmax.f32 %v5152, 0.0
    %v5409 = vmax.f32 %v5153, 0.0
    %v5410 = vmax.f32 %v5154, 0.0
    %v5411 = vmax.f32 %v5155, 0.0
    %v5412 = vmax.f32 %v5156, 0.0
    %v5413 = vmax.f32 %v5157, 0.0
    %v5414 = vmax.f32 %v5158, 0.0
    %v5415 = vmax.f32 %v5159, 0.0
    %v5416 = vmax.f32 %v5160, 0.0
    %v5417 = vmax.f32 %v5161, 0.0
    %v5418 = vmax.f32 %v5162, 0.0
    %v5419 = vmax.f32 %v5163, 0.0
    %v5420 = vmax.f32 %v5164, 0.0
    %v5421 = vmax.f32 %v5165, 0.0
    %v5422 = vmax.f32 %v5166, 0.0
    %v5423 = vmax.f32 %v5167, 0.0
    %v5424 = vmax.f32 %v5168, 0.0
    %v5425 = vmax.f32 %v5169, 0.0
    %v5426 = vmax.f32 %v5170, 0.0
    %v5427 = vmax.f32 %v5171, 0.0
    %v5428 = vmax.f32 %v5172, 0.0
    %v5429 = vmax.f32 %v5173, 0.0
    %v5430 = vmax.f32 %v5174, 0.0
    %v5431 = vmax.f32 %v5175, 0.0
    %v5432 = vmax.f32 %v5176, 0.0
    %v5433 = vmax.f32 %v5177, 0.0
    %v5434 = vmax.f32 %v5178, 0.0
    %v5435 = vmax.f32 %v5179, 0.0
    %v5436 = vmax.f32 %v5180, 0.0
    %v5437 = vmax.f32 %v5181, 0.0
    %v5438 = vmax.f32 %v5182, 0.0
    %v5439 = vmax.f32 %v5183, 0.0
    %v5440 = vmax.f32 %v5184, 0.0
    %v5441 = vmax.f32 %v5185, 0.0
    %v5442 = vmax.f32 %v5186, 0.0
    %v5443 = vmax.f32 %v5187, 0.0
    %v5444 = vmax.f32 %v5188, 0.0
    %v5445 = vmax.f32 %v5189, 0.0
    %v5446 = vmax.f32 %v5190, 0.0
    %v5447 = vmax.f32 %v5191, 0.0
    %v5448 = vmax.f32 %v5192, 0.0
    %v5449 = vmax.f32 %v5193, 0.0
    %v5450 = vmax.f32 %v5194, 0.0
    %v5451 = vmax.f32 %v5195, 0.0
    %v5452 = vmax.f32 %v5196, 0.0
    %v5453 = vmax.f32 %v5197, 0.0
    %v5454 = vmax.f32 %v5198, 0.0
    %v5455 = vmax.f32 %v5199, 0.0
    %v5456 = vmax.f32 %v5200, 0.0
    %v5457 = vmax.f32 %v5201, 0.0
    %v5458 = vmax.f32 %v5202, 0.0
    %v5459 = vmax.f32 %v5203, 0.0
    %v5460 = vmax.f32 %v5204, 0.0
    %v5461 = vmax.f32 %v5205, 0.0
    %v5462 = vmax.f32 %v5206, 0.0
    %v5463 = vmax.f32 %v5207, 0.0
    %v5464 = vmax.f32 %v5208, 0.0
    %v5465 = vmax.f32 %v5209, 0.0
    %v5466 = vmax.f32 %v5210, 0.0
    %v5467 = vmax.f32 %v5211, 0.0
    %v5468 = vmax.f32 %v5212, 0.0
    %v5469 = vmax.f32 %v5213, 0.0
    %v5470 = vmax.f32 %v5214, 0.0
    %v5471 = vmax.f32 %v5215, 0.0
    %v5472 = vmax.f32 %v5216, 0.0
    %v5473 = vmax.f32 %v5217, 0.0
    %v5474 = vmax.f32 %v5218, 0.0
    %v5475 = vmax.f32 %v5219, 0.0
    %v5476 = vmax.f32 %v5220, 0.0
    %v5477 = vmax.f32 %v5221, 0.0
    %v5478 = vmax.f32 %v5222, 0.0
    %v5479 = vmax.f32 %v5223, 0.0
    %v5480 = vmax.f32 %v5224, 0.0
    %v5481 = vmax.f32 %v5225, 0.0
    %v5482 = vmax.f32 %v5226, 0.0
    %v5483 = vmax.f32 %v5227, 0.0
    %v5484 = vmax.f32 %v5228, 0.0
    %v5485 = vmax.f32 %v5229, 0.0
    %v5486 = vmax.f32 %v5230, 0.0
    %v5487 = vmax.f32 %v5231, 0.0
    %v5488 = vmax.f32 %v5232, 0.0
    %v5489 = vmax.f32 %v5233, 0.0
    %v5490 = vmax.f32 %v5234, 0.0
    %v5491 = vmax.f32 %v5235, 0.0
    %v5492 = vmax.f32 %v5236, 0.0
    %v5493 = vmax.f32 %v5237, 0.0
    %v5494 = vmax.f32 %v5238, 0.0
    %v5495 = vmax.f32 %v5239, 0.0
    %v5496 = vmax.f32 %v5240, 0.0
    %v5497 = vmax.f32 %v5241, 0.0
    %v5498 = vmax.f32 %v5242, 0.0
    %v5499 = vmax.f32 %v5243, 0.0
    %v5500 = vmax.f32 %v5244, 0.0
    %v5501 = vmax.f32 %v5245, 0.0
    %v5502 = vmax.f32 %v5246, 0.0
    %v5503 = vmax.f32 %v5247, 0.0
    %v5504 = vmax.f32 %v5248, 0.0
    %v5505 = vmax.f32 %v5249, 0.0
    %v5506 = vmax.f32 %v5250, 0.0
    %v5507 = vmax.f32 %v5251, 0.0
    %v5508 = vmax.f32 %v5252, 0.0
    %v5509 = vmax.f32 %v5253, 0.0
    %v5510 = vmax.f32 %v5254, 0.0
    %v5511 = vmax.f32 %v5255, 0.0
    %v5512 = vmax.f32 %v5256, 0.0
    %v5513 = vmax.f32 %v5257, 0.0
    %v5514 = vmax.f32 %v5258, 0.0
    %v5515 = vmax.f32 %v5259, 0.0
    %v5516 = vmax.f32 %v5260, 0.0
    %v5517 = vmax.f32 %v5261, 0.0
    %v5518 = vmax.f32 %v5262, 0.0
    %v5519 = vmax.f32 %v5263, 0.0
    %v5520 = vmax.f32 %v5264, 0.0
    %v5521 = vmax.f32 %v5265, 0.0
    %v5522 = vmax.f32 %v5266, 0.0
    %v5523 = vmax.f32 %v5267, 0.0
    %v5524 = vmax.f32 %v5268, 0.0
    %v5525 = vmax.f32 %v5269, 0.0
    %v5526 = vmax.f32 %v5270, 0.0
    %v5527 = vmax.f32 %v5271, 0.0
    %v5528 = vmax.f32 %v5272, 0.0
    %v5529 = vmax.f32 %v5273, 0.0
    %v5530 = vmax.f32 %v5274, 0.0
    %v5531 = vmax.f32 %v5275, 0.0
    %v5532 = vmax.f32 %v5276, 0.0
    %v5533 = vmax.f32 %v5277, 0.0
    %v5534 = vmax.f32 %v5278, 0.0
    %v5535 = vmax.f32 %v5279, 0.0
    %v5536 = vmax.f32 %v5280, 0.0
    %v5537 = vmax.f32 %v5281, 0.0
    %v5538 = vmax.f32 %v5282, 0.0
    %v5539 = vmax.f32 %v5283, 0.0
    %v5540 = vmax.f32 %v5284, 0.0
    %v5541 = vmax.f32 %v5285, 0.0
    %v5542 = vmax.f32 %v5286, 0.0
    %v5543 = vmax.f32 %v5287, 0.0
    %v5544 = vmax.f32 %v5288, 0.0
    %v5545 = vmax.f32 %v5289, 0.0
    %v5546 = vmax.f32 %v5290, 0.0
    %v5547 = vmax.f32 %v5291, 0.0
    %v5548 = vmax.f32 %v5292, 0.0
    %v5549 = vmax.f32 %v5293, 0.0
    %v5550 = vmax.f32 %v5294, 0.0
    %v5551 = vmax.f32 %v5295, 0.0
    %v5552 = vmax.f32 %v5296, 0.0
    %v5553 = vmax.f32 %v5297, 0.0
    %v5554 = vmax.f32 %v5298, 0.0
    %v5555 = vmax.f32 %v5299, 0.0
    %v5556 = vmax.f32 %v5300, 0.0
    %v5557 = vmax.f32 %v5301, 0.0
    %v5558 = vmax.f32 %v5302, 0.0
    %v5559 = vmax.f32 %v5303, 0.0
    %v5560 = vmax.f32 %v5304, 0.0
    %v5561 = vmax.f32 %v5305, 0.0
    %v5562 = vmax.f32 %v5306, 0.0
    %v5563 = vmax.f32 %v5307, 0.0
    %v5564 = vmax.f32 %v5308, 0.0
    %v5565 = vmax.f32 %v5309, 0.0
    %v5566 = vmax.f32 %v5310, 0.0
    %v5567 = vmax.f32 %v5311, 0.0
    %v5568 = vmax.f32 %v5312, 0.0
    %v5569 = vmax.f32 %v5313, 0.0
    %v5570 = vmax.f32 %v5314, 0.0
    %v5571 = vmax.f32 %v5315, 0.0
    %v5572 = vmax.f32 %v5316, 0.0
    %v5573 = vmax.f32 %v5317, 0.0
    %v5574 = vmax.f32 %v5318, 0.0
    %v5575 = vmax.f32 %v5319, 0.0
    %v5576 = vmax.f32 %v5320, 0.0
    %v5577 = vmax.f32 %v5321, 0.0
    %v5578 = vmax.f32 %v5322, 0.0
    %v5579 = vmax.f32 %v5323, 0.0
    %v5580 = vmax.f32 %v5324, 0.0
    %v5581 = vmax.f32 %v5325, 0.0
    %v5582 = vmax.f32 %v5326, 0.0
    %v5583 = vmax.f32 %v5327, 0.0
    %v5584 = vmax.f32 %v5328, 0.0
    %v5585 = vmax.f32 %v5329, 0.0
    %v5586 = vmax.f32 %v5330, 0.0
    %v5587 = vmax.f32 %v5331, 0.0
    %v5588 = vmax.f32 %v5332, 0.0
    %v5589 = vmax.f32 %v5333, 0.0
    %v5590 = vmax.f32 %v5334, 0.0
    %v5591 = vmax.f32 %v5335, 0.0
    %v5592 = vmax.f32 %v5336, 0.0
    %v5593 = vmax.f32 %v5337, 0.0
    %v5594 = vmax.f32 %v5338, 0.0
    %v5595 = vmax.f32 %v5339, 0.0
    %v5596 = vmax.f32 %v5340, 0.0
    %v5597 = vmax.f32 %v5341, 0.0
    %v5598 = vmax.f32 %v5342, 0.0
    %v5599 = vmax.f32 %v5343, 0.0
    %v5600 = vmax.f32 %v5344, 0.0
    %v5601 = vmax.f32 %v5345, 0.0
    %v5602 = vmax.f32 %v5346, 0.0
    %v5603 = vmax.f32 %v5347, 0.0
    %v5604 = vmax.f32 %v5348, 0.0
    %v5605 = vmax.f32 %v5349, 0.0
    %v5606 = vmax.f32 %v5350, 0.0
    %v5607 = vmax.f32 %v5351, 0.0
    %v5608 = vmax.f32 %v5352, 0.0
    %v5609 = vmax.f32 %v5353, 0.0
    %v5610 = vmax.f32 %v5354, 0.0
    %v5611 = vmax.f32 %v5355, 0.0
    %v5612 = vmax.f32 %v5356, 0.0
    %v5613 = vmax.f32 %v5357, 0.0
    %v5614 = vmax.f32 %v5358, 0.0
    %v5615 = vmax.f32 %v5359, 0.0
    %v5616 = vmax.f32 %v5360, 0.0
    %v5617 = vmax.f32 %v5361, 0.0
    %v5618 = vmax.f32 %v5362, 0.0
    %v5619 = vmax.f32 %v5363, 0.0
    %v5620 = vmax.f32 %v5364, 0.0
    %v5621 = vmax.f32 %v5365, 0.0
    %v5622 = vmax.f32 %v5366, 0.0
    %v5623 = vmax.f32 %v5367, 0.0
    %v5624 = vmax.f32 %v5368, 0.0
    %v5625 = vmax.f32 %v5369, 0.0
    %v5626 = vmax.f32 %v5370, 0.0
    %v5627 = vmax.f32 %v5371, 0.0
    %v5628 = vmax.f32 %v5372, 0.0
    %v5629 = vmax.f32 %v5373, 0.0
    %v5630 = vmax.f32 %v5374, 0.0
    %v5631 = vmax.f32 %v5375, 0.0
    %v5632 = vmax.f32 %v5376, 0.0
    %v5633 = vmax.f32 %v5377, 0.0
    %v5634 = vmax.f32 %v5378, 0.0
    %v5635 = vmax.f32 %v5379, 0.0
    %v5636 = vmax.f32 %v5380, 0.0
    %v5637 = vmax.f32 %v5381, 0.0
    %v5638 = vmax.f32 %v5382, 0.0
    %v5639 = vmax.f32 %v5383, 0.0
    %v5640 = vmax.f32 %v5384, 0.0
    %v5641 = vmax.f32 %v5385, 0.0
    %v5642 = vmax.f32 %v5386, 0.0
    %v5643 = vmax.f32 %v5387, 0.0
    %v5644 = vmax.f32 %v5388, 0.0
    %v5645 = vmax.f32 %v5389, 0.0
    %v5646 = vmax.f32 %v5390, 0.0
    %v5647 = vmax.f32 %v5391, 0.0
    %v5648 = vmax.f32 %v5392, 0.0
    %v5649 = vmax.f32 %v5393, 0.0
    %v5650 = vmax.f32 %v5394, 0.0
    %v5651 = vmax.f32 %v5395, 0.0
    %v5652 = vmax.f32 %v5396, 0.0
    %v5653 = vmax.f32 %v5397, 0.0
    %v5654 = vmax.f32 %v5398, 0.0
    %v5655 = vmax.f32 %v5399, 0.0
    %v5656 = vmax.f32 %v5400, 0.0
    %v5657 = vmax.f32 %v5401, 0.0
    %v5658 = vmax.f32 %v5402, 0.0
    %v5659 = vmax.f32 %v5403, 0.0
    %v5660 = vadd.f32 %v3516, %v5404
    %v5661 = vadd.f32 %v3517, %v5405
    %v5662 = vadd.f32 %v3518, %v5406
    %v5663 = vadd.f32 %v3519, %v5407
    %v5664 = vadd.f32 %v3520, %v5408
    %v5665 = vadd.f32 %v3521, %v5409
    %v5666 = vadd.f32 %v3522, %v5410
    %v5667 = vadd.f32 %v3523, %v5411
    %v5668 = vadd.f32 %v3524, %v5412
    %v5669 = vadd.f32 %v3525, %v5413
    %v5670 = vadd.f32 %v3526, %v5414
    %v5671 = vadd.f32 %v3527, %v5415
    %v5672 = vadd.f32 %v3528, %v5416
    %v5673 = vadd.f32 %v3529, %v5417
    %v5674 = vadd.f32 %v3530, %v5418
    %v5675 = vadd.f32 %v3531, %v5419
    %v5676 = vadd.f32 %v3532, %v5420
    %v5677 = vadd.f32 %v3533, %v5421
    %v5678 = vadd.f32 %v3534, %v5422
    %v5679 = vadd.f32 %v3535, %v5423
    %v5680 = vadd.f32 %v3536, %v5424
    %v5681 = vadd.f32 %v3537, %v5425
    %v5682 = vadd.f32 %v3538, %v5426
    %v5683 = vadd.f32 %v3539, %v5427
    %v5684 = vadd.f32 %v3540, %v5428
    %v5685 = vadd.f32 %v3541, %v5429
    %v5686 = vadd.f32 %v3542, %v5430
    %v5687 = vadd.f32 %v3543, %v5431
    %v5688 = vadd.f32 %v3544, %v5432
    %v5689 = vadd.f32 %v3545, %v5433
    %v5690 = vadd.f32 %v3546, %v5434
    %v5691 = vadd.f32 %v3547, %v5435
    %v5692 = vadd.f32 %v3548, %v5436
    %v5693 = vadd.f32 %v3549, %v5437
    %v5694 = vadd.f32 %v3550, %v5438
    %v5695 = vadd.f32 %v3551, %v5439
    %v5696 = vadd.f32 %v3552, %v5440
    %v5697 = vadd.f32 %v3553, %v5441
    %v5698 = vadd.f32 %v3554, %v5442
    %v5699 = vadd.f32 %v3555, %v5443
    %v5700 = vadd.f32 %v3556, %v5444
    %v5701 = vadd.f32 %v3557, %v5445
    %v5702 = vadd.f32 %v3558, %v5446
    %v5703 = vadd.f32 %v3559, %v5447
    %v5704 = vadd.f32 %v3560, %v5448
    %v5705 = vadd.f32 %v3561, %v5449
    %v5706 = vadd.f32 %v3562, %v5450
    %v5707 = vadd.f32 %v3563, %v5451
    %v5708 = vadd.f32 %v3564, %v5452
    %v5709 = vadd.f32 %v3565, %v5453
    %v5710 = vadd.f32 %v3566, %v5454
    %v5711 = vadd.f32 %v3567, %v5455
    %v5712 = vadd.f32 %v3568, %v5456
    %v5713 = vadd.f32 %v3569, %v5457
    %v5714 = vadd.f32 %v3570, %v5458
    %v5715 = vadd.f32 %v3571, %v5459
    %v5716 = vadd.f32 %v3572, %v5460
    %v5717 = vadd.f32 %v3573, %v5461
    %v5718 = vadd.f32 %v3574, %v5462
    %v5719 = vadd.f32 %v3575, %v5463
    %v5720 = vadd.f32 %v3576, %v5464
    %v5721 = vadd.f32 %v3577, %v5465
    %v5722 = vadd.f32 %v3578, %v5466
    %v5723 = vadd.f32 %v3579, %v5467
    %v5724 = vadd.f32 %v3580, %v5468
    %v5725 = vadd.f32 %v3581, %v5469
    %v5726 = vadd.f32 %v3582, %v5470
    %v5727 = vadd.f32 %v3583, %v5471
    %v5728 = vadd.f32 %v3584, %v5472
    %v5729 = vadd.f32 %v3585, %v5473
    %v5730 = vadd.f32 %v3586, %v5474
    %v5731 = vadd.f32 %v3587, %v5475
    %v5732 = vadd.f32 %v3588, %v5476
    %v5733 = vadd.f32 %v3589, %v5477
    %v5734 = vadd.f32 %v3590, %v5478
    %v5735 = vadd.f32 %v3591, %v5479
    %v5736 = vadd.f32 %v3592, %v5480
    %v5737 = vadd.f32 %v3593, %v5481
    %v5738 = vadd.f32 %v3594, %v5482
    %v5739 = vadd.f32 %v3595, %v5483
    %v5740 = vadd.f32 %v3596, %v5484
    %v5741 = vadd.f32 %v3597, %v5485
    %v5742 = vadd.f32 %v3598, %v5486
    %v5743 = vadd.f32 %v3599, %v5487
    %v5744 = vadd.f32 %v3600, %v5488
    %v5745 = vadd.f32 %v3601, %v5489
    %v5746 = vadd.f32 %v3602, %v5490
    %v5747 = vadd.f32 %v3603, %v5491
    %v5748 = vadd.f32 %v3604, %v5492
    %v5749 = vadd.f32 %v3605, %v5493
    %v5750 = vadd.f32 %v3606, %v5494
    %v5751 = vadd.f32 %v3607, %v5495
    %v5752 = vadd.f32 %v3608, %v5496
    %v5753 = vadd.f32 %v3609, %v5497
    %v5754 = vadd.f32 %v3610, %v5498
    %v5755 = vadd.f32 %v3611, %v5499
    %v5756 = vadd.f32 %v3612, %v5500
    %v5757 = vadd.f32 %v3613, %v5501
    %v5758 = vadd.f32 %v3614, %v5502
    %v5759 = vadd.f32 %v3615, %v5503
    %v5760 = vadd.f32 %v3616, %v5504
    %v5761 = vadd.f32 %v3617, %v5505
    %v5762 = vadd.f32 %v3618, %v5506
    %v5763 = vadd.f32 %v3619, %v5507
    %v5764 = vadd.f32 %v3620, %v5508
    %v5765 = vadd.f32 %v3621, %v5509
    %v5766 = vadd.f32 %v3622, %v5510
    %v5767 = vadd.f32 %v3623, %v5511
    %v5768 = vadd.f32 %v3624, %v5512
    %v5769 = vadd.f32 %v3625, %v5513
    %v5770 = vadd.f32 %v3626, %v5514
    %v5771 = vadd.f32 %v3627, %v5515
    %v5772 = vadd.f32 %v3628, %v5516
    %v5773 = vadd.f32 %v3629, %v5517
    %v5774 = vadd.f32 %v3630, %v5518
    %v5775 = vadd.f32 %v3631, %v5519
    %v5776 = vadd.f32 %v3632, %v5520
    %v5777 = vadd.f32 %v3633, %v5521
    %v5778 = vadd.f32 %v3634, %v5522
    %v5779 = vadd.f32 %v3635, %v5523
    %v5780 = vadd.f32 %v3636, %v5524
    %v5781 = vadd.f32 %v3637, %v5525
    %v5782 = vadd.f32 %v3638, %v5526
    %v5783 = vadd.f32 %v3639, %v5527
    %v5784 = vadd.f32 %v3640, %v5528
    %v5785 = vadd.f32 %v3641, %v5529
    %v5786 = vadd.f32 %v3642, %v5530
    %v5787 = vadd.f32 %v3643, %v5531
    %v5788 = vadd.f32 %v3644, %v5532
    %v5789 = vadd.f32 %v3645, %v5533
    %v5790 = vadd.f32 %v3646, %v5534
    %v5791 = vadd.f32 %v3647, %v5535
    %v5792 = vadd.f32 %v3648, %v5536
    %v5793 = vadd.f32 %v3649, %v5537
    %v5794 = vadd.f32 %v3650, %v5538
    %v5795 = vadd.f32 %v3651, %v5539
    %v5796 = vadd.f32 %v3652, %v5540
    %v5797 = vadd.f32 %v3653, %v5541
    %v5798 = vadd.f32 %v3654, %v5542
    %v5799 = vadd.f32 %v3655, %v5543
    %v5800 = vadd.f32 %v3656, %v5544
    %v5801 = vadd.f32 %v3657, %v5545
    %v5802 = vadd.f32 %v3658, %v5546
    %v5803 = vadd.f32 %v3659, %v5547
    %v5804 = vadd.f32 %v3660, %v5548
    %v5805 = vadd.f32 %v3661, %v5549
    %v5806 = vadd.f32 %v3662, %v5550
    %v5807 = vadd.f32 %v3663, %v5551
    %v5808 = vadd.f32 %v3664, %v5552
    %v5809 = vadd.f32 %v3665, %v5553
    %v5810 = vadd.f32 %v3666, %v5554
    %v5811 = vadd.f32 %v3667, %v5555
    %v5812 = vadd.f32 %v3668, %v5556
    %v5813 = vadd.f32 %v3669, %v5557
    %v5814 = vadd.f32 %v3670, %v5558
    %v5815 = vadd.f32 %v3671, %v5559
    %v5816 = vadd.f32 %v3672, %v5560
    %v5817 = vadd.f32 %v3673, %v5561
    %v5818 = vadd.f32 %v3674, %v5562
    %v5819 = vadd.f32 %v3675, %v5563
    %v5820 = vadd.f32 %v3676, %v5564
    %v5821 = vadd.f32 %v3677, %v5565
    %v5822 = vadd.f32 %v3678, %v5566
    %v5823 = vadd.f32 %v3679, %v5567
    %v5824 = vadd.f32 %v3680, %v5568
    %v5825 = vadd.f32 %v3681, %v5569
    %v5826 = vadd.f32 %v3682, %v5570
    %v5827 = vadd.f32 %v3683, %v5571
    %v5828 = vadd.f32 %v3684, %v5572
    %v5829 = vadd.f32 %v3685, %v5573
    %v5830 = vadd.f32 %v3686, %v5574
    %v5831 = vadd.f32 %v3687, %v5575
    %v5832 = vadd.f32 %v3688, %v5576
    %v5833 = vadd.f32 %v3689, %v5577
    %v5834 = vadd.f32 %v3690, %v5578
    %v5835 = vadd.f32 %v3691, %v5579
    %v5836 = vadd.f32 %v3692, %v5580
    %v5837 = vadd.f32 %v3693, %v5581
    %v5838 = vadd.f32 %v3694, %v5582
    %v5839 = vadd.f32 %v3695, %v5583
    %v5840 = vadd.f32 %v3696, %v5584
    %v5841 = vadd.f32 %v3697, %v5585
    %v5842 = vadd.f32 %v3698, %v5586
    %v5843 = vadd.f32 %v3699, %v5587
    %v5844 = vadd.f32 %v3700, %v5588
    %v5845 = vadd.f32 %v3701, %v5589
    %v5846 = vadd.f32 %v3702, %v5590
    %v5847 = vadd.f32 %v3703, %v5591
    %v5848 = vadd.f32 %v3704, %v5592
    %v5849 = vadd.f32 %v3705, %v5593
    %v5850 = vadd.f32 %v3706, %v5594
    %v5851 = vadd.f32 %v3707, %v5595
    %v5852 = vadd.f32 %v3708, %v5596
    %v5853 = vadd.f32 %v3709, %v5597
    %v5854 = vadd.f32 %v3710, %v5598
    %v5855 = vadd.f32 %v3711, %v5599
    %v5856 = vadd.f32 %v3712, %v5600
    %v5857 = vadd.f32 %v3713, %v5601
    %v5858 = vadd.f32 %v3714, %v5602
    %v5859 = vadd.f32 %v3715, %v5603
    %v5860 = vadd.f32 %v3716, %v5604
    %v5861 = vadd.f32 %v3717, %v5605
    %v5862 = vadd.f32 %v3718, %v5606
    %v5863 = vadd.f32 %v3719, %v5607
    %v5864 = vadd.f32 %v3720, %v5608
    %v5865 = vadd.f32 %v3721, %v5609
    %v5866 = vadd.f32 %v3722, %v5610
    %v5867 = vadd.f32 %v3723, %v5611
    %v5868 = vadd.f32 %v3724, %v5612
    %v5869 = vadd.f32 %v3725, %v5613
    %v5870 = vadd.f32 %v3726, %v5614
    %v5871 = vadd.f32 %v3727, %v5615
    %v5872 = vadd.f32 %v3728, %v5616
    %v5873 = vadd.f32 %v3729, %v5617
    %v5874 = vadd.f32 %v3730, %v5618
    %v5875 = vadd.f32 %v3731, %v5619
    %v5876 = vadd.f32 %v3732, %v5620
    %v5877 = vadd.f32 %v3733, %v5621
    %v5878 = vadd.f32 %v3734, %v5622
    %v5879 = vadd.f32 %v3735, %v5623
    %v5880 = vadd.f32 %v3736, %v5624
    %v5881 = vadd.f32 %v3737, %v5625
    %v5882 = vadd.f32 %v3738, %v5626
    %v5883 = vadd.f32 %v3739, %v5627
    %v5884 = vadd.f32 %v3740, %v5628
    %v5885 = vadd.f32 %v3741, %v5629
    %v5886 = vadd.f32 %v3742, %v5630
    %v5887 = vadd.f32 %v3743, %v5631
    %v5888 = vadd.f32 %v3744, %v5632
    %v5889 = vadd.f32 %v3745, %v5633
    %v5890 = vadd.f32 %v3746, %v5634
    %v5891 = vadd.f32 %v3747, %v5635
    %v5892 = vadd.f32 %v3748, %v5636
    %v5893 = vadd.f32 %v3749, %v5637
    %v5894 = vadd.f32 %v3750, %v5638
    %v5895 = vadd.f32 %v3751, %v5639
    %v5896 = vadd.f32 %v3752, %v5640
    %v5897 = vadd.f32 %v3753, %v5641
    %v5898 = vadd.f32 %v3754, %v5642
    %v5899 = vadd.f32 %v3755, %v5643
    %v5900 = vadd.f32 %v3756, %v5644
    %v5901 = vadd.f32 %v3757, %v5645
    %v5902 = vadd.f32 %v3758, %v5646
    %v5903 = vadd.f32 %v3759, %v5647
    %v5904 = vadd.f32 %v3760, %v5648
    %v5905 = vadd.f32 %v3761, %v5649
    %v5906 = vadd.f32 %v3762, %v5650
    %v5907 = vadd.f32 %v3763, %v5651
    %v5908 = vadd.f32 %v3764, %v5652
    %v5909 = vadd.f32 %v3765, %v5653
    %v5910 = vadd.f32 %v3766, %v5654
    %v5911 = vadd.f32 %v3767, %v5655
    %v5912 = vadd.f32 %v3768, %v5656
    %v5913 = vadd.f32 %v3769, %v5657
    %v5914 = vadd.f32 %v3770, %v5658
    %v5915 = vadd.f32 %v3771, %v5659
    %5916 = vst [vmem:[#allocation2] sm:$0xff] %v5660
    %5917 = vst [vmem:[#allocation2 + $0x8] sm:$0xff] %v5661
    %5918 = vst [vmem:[#allocation2 + $0x10] sm:$0xff] %v5662
    %5919 = vst [vmem:[#allocation2 + $0x18] sm:$0xff] %v5663
    %5920 = vst [vmem:[#allocation2 + $0x20] sm:$0xff] %v5664
    %5921 = vst [vmem:[#allocation2 + $0x28] sm:$0xff] %v5665
    %5922 = vst [vmem:[#allocation2 + $0x30] sm:$0xff] %v5666
    %5923 = vst [vmem:[#allocation2 + $0x38] sm:$0xff] %v5667
    %5924 = vst [vmem:[#allocation2 + $0x40] sm:$0xff] %v5668
    %5925 = vst [vmem:[#allocation2 + $0x48] sm:$0xff] %v5669
    %5926 = vst [vmem:[#allocation2 + $0x50] sm:$0xff] %v5670
    %5927 = vst [vmem:[#allocation2 + $0x58] sm:$0xff] %v5671
    %5928 = vst [vmem:[#allocation2 + $0x60] sm:$0xff] %v5672
    %5929 = vst [vmem:[#allocation2 + $0x68] sm:$0xff] %v5673
    %5930 = vst [vmem:[#allocation2 + $0x70] sm:$0xff] %v5674
    %5931 = vst [vmem:[#allocation2 + $0x78] sm:$0xff] %v5675
    %5932 = vst [vmem:[#allocation2 + $0x80] sm:$0xff] %v5676
    %5933 = vst [vmem:[#allocation2 + $0x88] sm:$0xff] %v5677
    %5934 = vst [vmem:[#allocation2 + $0x90] sm:$0xff] %v5678
    %5935 = vst [vmem:[#allocation2 + $0x98] sm:$0xff] %v5679
    %5936 = vst [vmem:[#allocation2 + $0xa0] sm:$0xff] %v5680
    %5937 = vst [vmem:[#allocation2 + $0xa8] sm:$0xff] %v5681
    %5938 = vst [vmem:[#allocation2 + $0xb0] sm:$0xff] %v5682
    %5939 = vst [vmem:[#allocation2 + $0xb8] sm:$0xff] %v5683
    %5940 = vst [vmem:[#allocation2 + $0xc0] sm:$0xff] %v5684
    %5941 = vst [vmem:[#allocation2 + $0xc8] sm:$0xff] %v5685
    %5942 = vst [vmem:[#allocation2 + $0xd0] sm:$0xff] %v5686
    %5943 = vst [vmem:[#allocation2 + $0xd8] sm:$0xff] %v5687
    %5944 = vst [vmem:[#allocation2 + $0xe0] sm:$0xff] %v5688
    %5945 = vst [vmem:[#allocation2 + $0xe8] sm:$0xff] %v5689
    %5946 = vst [vmem:[#allocation2 + $0xf0] sm:$0xff] %v5690
    %5947 = vst [vmem:[#allocation2 + $0xf8] sm:$0xff] %v5691
    %5948 = vst [vmem:[#allocation2 + $0x100] sm:$0xff] %v5692
    %5949 = vst [vmem:[#allocation2 + $0x108] sm:$0xff] %v5693
    %5950 = vst [vmem:[#allocation2 + $0x110] sm:$0xff] %v5694
    %5951 = vst [vmem:[#allocation2 + $0x118] sm:$0xff] %v5695
    %5952 = vst [vmem:[#allocation2 + $0x120] sm:$0xff] %v5696
    %5953 = vst [vmem:[#allocation2 + $0x128] sm:$0xff] %v5697
    %5954 = vst [vmem:[#allocation2 + $0x130] sm:$0xff] %v5698
    %5955 = vst [vmem:[#allocation2 + $0x138] sm:$0xff] %v5699
    %5956 = vst [vmem:[#allocation2 + $0x140] sm:$0xff] %v5700
    %5957 = vst [vmem:[#allocation2 + $0x148] sm:$0xff] %v5701
    %5958 = vst [vmem:[#allocation2 + $0x150] sm:$0xff] %v5702
    %5959 = vst [vmem:[#allocation2 + $0x158] sm:$0xff] %v5703
    %5960 = vst [vmem:[#allocation2 + $0x160] sm:$0xff] %v5704
    %5961 = vst [vmem:[#allocation2 + $0x168] sm:$0xff] %v5705
    %5962 = vst [vmem:[#allocation2 + $0x170] sm:$0xff] %v5706
    %5963 = vst [vmem:[#allocation2 + $0x178] sm:$0xff] %v5707
    %5964 = vst [vmem:[#allocation2 + $0x180] sm:$0xff] %v5708
    %5965 = vst [vmem:[#allocation2 + $0x188] sm:$0xff] %v5709
    %5966 = vst [vmem:[#allocation2 + $0x190] sm:$0xff] %v5710
    %5967 = vst [vmem:[#allocation2 + $0x198] sm:$0xff] %v5711
    %5968 = vst [vmem:[#allocation2 + $0x1a0] sm:$0xff] %v5712
    %5969 = vst [vmem:[#allocation2 + $0x1a8] sm:$0xff] %v5713
    %5970 = vst [vmem:[#allocation2 + $0x1b0] sm:$0xff] %v5714
    %5971 = vst [vmem:[#allocation2 + $0x1b8] sm:$0xff] %v5715
    %5972 = vst [vmem:[#allocation2 + $0x1c0] sm:$0xff] %v5716
    %5973 = vst [vmem:[#allocation2 + $0x1c8] sm:$0xff] %v5717
    %5974 = vst [vmem:[#allocation2 + $0x1d0] sm:$0xff] %v5718
    %5975 = vst [vmem:[#allocation2 + $0x1d8] sm:$0xff] %v5719
    %5976 = vst [vmem:[#allocation2 + $0x1e0] sm:$0xff] %v5720
    %5977 = vst [vmem:[#allocation2 + $0x1e8] sm:$0xff] %v5721
    %5978 = vst [vmem:[#allocation2 + $0x1f0] sm:$0xff] %v5722
    %5979 = vst [vmem:[#allocation2 + $0x1f8] sm:$0xff] %v5723
    %5980 = vst [vmem:[#allocation2 + $0x200] sm:$0xff] %v5724
    %5981 = vst [vmem:[#allocation2 + $0x208] sm:$0xff] %v5725
    %5982 = vst [vmem:[#allocation2 + $0x210] sm:$0xff] %v5726
    %5983 = vst [vmem:[#allocation2 + $0x218] sm:$0xff] %v5727
    %5984 = vst [vmem:[#allocation2 + $0x220] sm:$0xff] %v5728
    %5985 = vst [vmem:[#allocation2 + $0x228] sm:$0xff] %v5729
    %5986 = vst [vmem:[#allocation2 + $0x230] sm:$0xff] %v5730
    %5987 = vst [vmem:[#allocation2 + $0x238] sm:$0xff] %v5731
    %5988 = vst [vmem:[#allocation2 + $0x240] sm:$0xff] %v5732
    %5989 = vst [vmem:[#allocation2 + $0x248] sm:$0xff] %v5733
    %5990 = vst [vmem:[#allocation2 + $0x250] sm:$0xff] %v5734
    %5991 = vst [vmem:[#allocation2 + $0x258] sm:$0xff] %v5735
    %5992 = vst [vmem:[#allocation2 + $0x260] sm:$0xff] %v5736
    %5993 = vst [vmem:[#allocation2 + $0x268] sm:$0xff] %v5737
    %5994 = vst [vmem:[#allocation2 + $0x270] sm:$0xff] %v5738
    %5995 = vst [vmem:[#allocation2 + $0x278] sm:$0xff] %v5739
    %5996 = vst [vmem:[#allocation2 + $0x280] sm:$0xff] %v5740
    %5997 = vst [vmem:[#allocation2 + $0x288] sm:$0xff] %v5741
    %5998 = vst [vmem:[#allocation2 + $0x290] sm:$0xff] %v5742
    %5999 = vst [vmem:[#allocation2 + $0x298] sm:$0xff] %v5743
    %6000 = vst [vmem:[#allocation2 + $0x2a0] sm:$0xff] %v5744
    %6001 = vst [vmem:[#allocation2 + $0x2a8] sm:$0xff] %v5745
    %6002 = vst [vmem:[#allocation2 + $0x2b0] sm:$0xff] %v5746
    %6003 = vst [vmem:[#allocation2 + $0x2b8] sm:$0xff] %v5747
    %6004 = vst [vmem:[#allocation2 + $0x2c0] sm:$0xff] %v5748
    %6005 = vst [vmem:[#allocation2 + $0x2c8] sm:$0xff] %v5749
    %6006 = vst [vmem:[#allocation2 + $0x2d0] sm:$0xff] %v5750
    %6007 = vst [vmem:[#allocation2 + $0x2d8] sm:$0xff] %v5751
    %6008 = vst [vmem:[#allocation2 + $0x2e0] sm:$0xff] %v5752
    %6009 = vst [vmem:[#allocation2 + $0x2e8] sm:$0xff] %v5753
    %6010 = vst [vmem:[#allocation2 + $0x2f0] sm:$0xff] %v5754
    %6011 = vst [vmem:[#allocation2 + $0x2f8] sm:$0xff] %v5755
    %6012 = vst [vmem:[#allocation2 + $0x300] sm:$0xff] %v5756
    %6013 = vst [vmem:[#allocation2 + $0x308] sm:$0xff] %v5757
    %6014 = vst [vmem:[#allocation2 + $0x310] sm:$0xff] %v5758
    %6015 = vst [vmem:[#allocation2 + $0x318] sm:$0xff] %v5759
    %6016 = vst [vmem:[#allocation2 + $0x320] sm:$0xff] %v5760
    %6017 = vst [vmem:[#allocation2 + $0x328] sm:$0xff] %v5761
    %6018 = vst [vmem:[#allocation2 + $0x330] sm:$0xff] %v5762
    %6019 = vst [vmem:[#allocation2 + $0x338] sm:$0xff] %v5763
    %6020 = vst [vmem:[#allocation2 + $0x340] sm:$0xff] %v5764
    %6021 = vst [vmem:[#allocation2 + $0x348] sm:$0xff] %v5765
    %6022 = vst [vmem:[#allocation2 + $0x350] sm:$0xff] %v5766
    %6023 = vst [vmem:[#allocation2 + $0x358] sm:$0xff] %v5767
    %6024 = vst [vmem:[#allocation2 + $0x360] sm:$0xff] %v5768
    %6025 = vst [vmem:[#allocation2 + $0x368] sm:$0xff] %v5769
    %6026 = vst [vmem:[#allocation2 + $0x370] sm:$0xff] %v5770
    %6027 = vst [vmem:[#allocation2 + $0x378] sm:$0xff] %v5771
    %6028 = vst [vmem:[#allocation2 + $0x380] sm:$0xff] %v5772
    %6029 = vst [vmem:[#allocation2 + $0x388] sm:$0xff] %v5773
    %6030 = vst [vmem:[#allocation2 + $0x390] sm:$0xff] %v5774
    %6031 = vst [vmem:[#allocation2 + $0x398] sm:$0xff] %v5775
    %6032 = vst [vmem:[#allocation2 + $0x3a0] sm:$0xff] %v5776
    %6033 = vst [vmem:[#allocation2 + $0x3a8] sm:$0xff] %v5777
    %6034 = vst [vmem:[#allocation2 + $0x3b0] sm:$0xff] %v5778
    %6035 = vst [vmem:[#allocation2 + $0x3b8] sm:$0xff] %v5779
    %6036 = vst [vmem:[#allocation2 + $0x3c0] sm:$0xff] %v5780
    %6037 = vst [vmem:[#allocation2 + $0x3c8] sm:$0xff] %v5781
    %6038 = vst [vmem:[#allocation2 + $0x3d0] sm:$0xff] %v5782
    %6039 = vst [vmem:[#allocation2 + $0x3d8] sm:$0xff] %v5783
    %6040 = vst [vmem:[#allocation2 + $0x3e0] sm:$0xff] %v5784
    %6041 = vst [vmem:[#allocation2 + $0x3e8] sm:$0xff] %v5785
    %6042 = vst [vmem:[#allocation2 + $0x3f0] sm:$0xff] %v5786
    %6043 = vst [vmem:[#allocation2 + $0x3f8] sm:$0xff] %v5787
    %6044 = vst [vmem:[#allocation2 + $0x400] sm:$0xff] %v5788
    %6045 = vst [vmem:[#allocation2 + $0x408] sm:$0xff] %v5789
    %6046 = vst [vmem:[#allocation2 + $0x410] sm:$0xff] %v5790
    %6047 = vst [vmem:[#allocation2 + $0x418] sm:$0xff] %v5791
    %6048 = vst [vmem:[#allocation2 + $0x420] sm:$0xff] %v5792
    %6049 = vst [vmem:[#allocation2 + $0x428] sm:$0xff] %v5793
    %6050 = vst [vmem:[#allocation2 + $0x430] sm:$0xff] %v5794
    %6051 = vst [vmem:[#allocation2 + $0x438] sm:$0xff] %v5795
    %6052 = vst [vmem:[#allocation2 + $0x440] sm:$0xff] %v5796
    %6053 = vst [vmem:[#allocation2 + $0x448] sm:$0xff] %v5797
    %6054 = vst [vmem:[#allocation2 + $0x450] sm:$0xff] %v5798
    %6055 = vst [vmem:[#allocation2 + $0x458] sm:$0xff] %v5799
    %6056 = vst [vmem:[#allocation2 + $0x460] sm:$0xff] %v5800
    %6057 = vst [vmem:[#allocation2 + $0x468] sm:$0xff] %v5801
    %6058 = vst [vmem:[#allocation2 + $0x470] sm:$0xff] %v5802
    %6059 = vst [vmem:[#allocation2 + $0x478] sm:$0xff] %v5803
    %6060 = vst [vmem:[#allocation2 + $0x480] sm:$0xff] %v5804
    %6061 = vst [vmem:[#allocation2 + $0x488] sm:$0xff] %v5805
    %6062 = vst [vmem:[#allocation2 + $0x490] sm:$0xff] %v5806
    %6063 = vst [vmem:[#allocation2 + $0x498] sm:$0xff] %v5807
    %6064 = vst [vmem:[#allocation2 + $0x4a0] sm:$0xff] %v5808
    %6065 = vst [vmem:[#allocation2 + $0x4a8] sm:$0xff] %v5809
    %6066 = vst [vmem:[#allocation2 + $0x4b0] sm:$0xff] %v5810
    %6067 = vst [vmem:[#allocation2 + $0x4b8] sm:$0xff] %v5811
    %6068 = vst [vmem:[#allocation2 + $0x4c0] sm:$0xff] %v5812
    %6069 = vst [vmem:[#allocation2 + $0x4c8] sm:$0xff] %v5813
    %6070 = vst [vmem:[#allocation2 + $0x4d0] sm:$0xff] %v5814
    %6071 = vst [vmem:[#allocation2 + $0x4d8] sm:$0xff] %v5815
    %6072 = vst [vmem:[#allocation2 + $0x4e0] sm:$0xff] %v5816
    %6073 = vst [vmem:[#allocation2 + $0x4e8] sm:$0xff] %v5817
    %6074 = vst [vmem:[#allocation2 + $0x4f0] sm:$0xff] %v5818
    %6075 = vst [vmem:[#allocation2 + $0x4f8] sm:$0xff] %v5819
    %6076 = vst [vmem:[#allocation2 + $0x500] sm:$0xff] %v5820
    %6077 = vst [vmem:[#allocation2 + $0x508] sm:$0xff] %v5821
    %6078 = vst [vmem:[#allocation2 + $0x510] sm:$0xff] %v5822
    %6079 = vst [vmem:[#allocation2 + $0x518] sm:$0xff] %v5823
    %6080 = vst [vmem:[#allocation2 + $0x520] sm:$0xff] %v5824
    %6081 = vst [vmem:[#allocation2 + $0x528] sm:$0xff] %v5825
    %6082 = vst [vmem:[#allocation2 + $0x530] sm:$0xff] %v5826
    %6083 = vst [vmem:[#allocation2 + $0x538] sm:$0xff] %v5827
    %6084 = vst [vmem:[#allocation2 + $0x540] sm:$0xff] %v5828
    %6085 = vst [vmem:[#allocation2 + $0x548] sm:$0xff] %v5829
    %6086 = vst [vmem:[#allocation2 + $0x550] sm:$0xff] %v5830
    %6087 = vst [vmem:[#allocation2 + $0x558] sm:$0xff] %v5831
    %6088 = vst [vmem:[#allocation2 + $0x560] sm:$0xff] %v5832
    %6089 = vst [vmem:[#allocation2 + $0x568] sm:$0xff] %v5833
    %6090 = vst [vmem:[#allocation2 + $0x570] sm:$0xff] %v5834
    %6091 = vst [vmem:[#allocation2 + $0x578] sm:$0xff] %v5835
    %6092 = vst [vmem:[#allocation2 + $0x580] sm:$0xff] %v5836
    %6093 = vst [vmem:[#allocation2 + $0x588] sm:$0xff] %v5837
    %6094 = vst [vmem:[#allocation2 + $0x590] sm:$0xff] %v5838
    %6095 = vst [vmem:[#allocation2 + $0x598] sm:$0xff] %v5839
    %6096 = vst [vmem:[#allocation2 + $0x5a0] sm:$0xff] %v5840
    %6097 = vst [vmem:[#allocation2 + $0x5a8] sm:$0xff] %v5841
    %6098 = vst [vmem:[#allocation2 + $0x5b0] sm:$0xff] %v5842
    %6099 = vst [vmem:[#allocation2 + $0x5b8] sm:$0xff] %v5843
    %6100 = vst [vmem:[#allocation2 + $0x5c0] sm:$0xff] %v5844
    %6101 = vst [vmem:[#allocation2 + $0x5c8] sm:$0xff] %v5845
    %6102 = vst [vmem:[#allocation2 + $0x5d0] sm:$0xff] %v5846
    %6103 = vst [vmem:[#allocation2 + $0x5d8] sm:$0xff] %v5847
    %6104 = vst [vmem:[#allocation2 + $0x5e0] sm:$0xff] %v5848
    %6105 = vst [vmem:[#allocation2 + $0x5e8] sm:$0xff] %v5849
    %6106 = vst [vmem:[#allocation2 + $0x5f0] sm:$0xff] %v5850
    %6107 = vst [vmem:[#allocation2 + $0x5f8] sm:$0xff] %v5851
    %6108 = vst [vmem:[#allocation2 + $0x600] sm:$0xff] %v5852
    %6109 = vst [vmem:[#allocation2 + $0x608] sm:$0xff] %v5853
    %6110 = vst [vmem:[#allocation2 + $0x610] sm:$0xff] %v5854
    %6111 = vst [vmem:[#allocation2 + $0x618] sm:$0xff] %v5855
    %6112 = vst [vmem:[#allocation2 + $0x620] sm:$0xff] %v5856
    %6113 = vst [vmem:[#allocation2 + $0x628] sm:$0xff] %v5857
    %6114 = vst [vmem:[#allocation2 + $0x630] sm:$0xff] %v5858
    %6115 = vst [vmem:[#allocation2 + $0x638] sm:$0xff] %v5859
    %6116 = vst [vmem:[#allocation2 + $0x640] sm:$0xff] %v5860
    %6117 = vst [vmem:[#allocation2 + $0x648] sm:$0xff] %v5861
    %6118 = vst [vmem:[#allocation2 + $0x650] sm:$0xff] %v5862
    %6119 = vst [vmem:[#allocation2 + $0x658] sm:$0xff] %v5863
    %6120 = vst [vmem:[#allocation2 + $0x660] sm:$0xff] %v5864
    %6121 = vst [vmem:[#allocation2 + $0x668] sm:$0xff] %v5865
    %6122 = vst [vmem:[#allocation2 + $0x670] sm:$0xff] %v5866
    %6123 = vst [vmem:[#allocation2 + $0x678] sm:$0xff] %v5867
    %6124 = vst [vmem:[#allocation2 + $0x680] sm:$0xff] %v5868
    %6125 = vst [vmem:[#allocation2 + $0x688] sm:$0xff] %v5869
    %6126 = vst [vmem:[#allocation2 + $0x690] sm:$0xff] %v5870
    %6127 = vst [vmem:[#allocation2 + $0x698] sm:$0xff] %v5871
    %6128 = vst [vmem:[#allocation2 + $0x6a0] sm:$0xff] %v5872
    %6129 = vst [vmem:[#allocation2 + $0x6a8] sm:$0xff] %v5873
    %6130 = vst [vmem:[#allocation2 + $0x6b0] sm:$0xff] %v5874
    %6131 = vst [vmem:[#allocation2 + $0x6b8] sm:$0xff] %v5875
    %6132 = vst [vmem:[#allocation2 + $0x6c0] sm:$0xff] %v5876
    %6133 = vst [vmem:[#allocation2 + $0x6c8] sm:$0xff] %v5877
    %6134 = vst [vmem:[#allocation2 + $0x6d0] sm:$0xff] %v5878
    %6135 = vst [vmem:[#allocation2 + $0x6d8] sm:$0xff] %v5879
    %6136 = vst [vmem:[#allocation2 + $0x6e0] sm:$0xff] %v5880
    %6137 = vst [vmem:[#allocation2 + $0x6e8] sm:$0xff] %v5881
    %6138 = vst [vmem:[#allocation2 + $0x6f0] sm:$0xff] %v5882
    %6139 = vst [vmem:[#allocation2 + $0x6f8] sm:$0xff] %v5883
    %6140 = vst [vmem:[#allocation2 + $0x700] sm:$0xff] %v5884
    %6141 = vst [vmem:[#allocation2 + $0x708] sm:$0xff] %v5885
    %6142 = vst [vmem:[#allocation2 + $0x710] sm:$0xff] %v5886
    %6143 = vst [vmem:[#allocation2 + $0x718] sm:$0xff] %v5887
    %6144 = vst [vmem:[#allocation2 + $0x720] sm:$0xff] %v5888
    %6145 = vst [vmem:[#allocation2 + $0x728] sm:$0xff] %v5889
    %6146 = vst [vmem:[#allocation2 + $0x730] sm:$0xff] %v5890
    %6147 = vst [vmem:[#allocation2 + $0x738] sm:$0xff] %v5891
    %6148 = vst [vmem:[#allocation2 + $0x740] sm:$0xff] %v5892
    %6149 = vst [vmem:[#allocation2 + $0x748] sm:$0xff] %v5893
    %6150 = vst [vmem:[#allocation2 + $0x750] sm:$0xff] %v5894
    %6151 = vst [vmem:[#allocation2 + $0x758] sm:$0xff] %v5895
    %6152 = vst [vmem:[#allocation2 + $0x760] sm:$0xff] %v5896
    %6153 = vst [vmem:[#allocation2 + $0x768] sm:$0xff] %v5897
    %6154 = vst [vmem:[#allocation2 + $0x770] sm:$0xff] %v5898
    %6155 = vst [vmem:[#allocation2 + $0x778] sm:$0xff] %v5899
    %6156 = vst [vmem:[#allocation2 + $0x780] sm:$0xff] %v5900
    %6157 = vst [vmem:[#allocation2 + $0x788] sm:$0xff] %v5901
    %6158 = vst [vmem:[#allocation2 + $0x790] sm:$0xff] %v5902
    %6159 = vst [vmem:[#allocation2 + $0x798] sm:$0xff] %v5903
    %6160 = vst [vmem:[#allocation2 + $0x7a0] sm:$0xff] %v5904
    %6161 = vst [vmem:[#allocation2 + $0x7a8] sm:$0xff] %v5905
    %6162 = vst [vmem:[#allocation2 + $0x7b0] sm:$0xff] %v5906
    %6163 = vst [vmem:[#allocation2 + $0x7b8] sm:$0xff] %v5907
    %6164 = vst [vmem:[#allocation2 + $0x7c0] sm:$0xff] %v5908
    %6165 = vst [vmem:[#allocation2 + $0x7c8] sm:$0xff] %v5909
    %6166 = vst [vmem:[#allocation2 + $0x7d0] sm:$0xff] %v5910
    %6167 = vst [vmem:[#allocation2 + $0x7d8] sm:$0xff] %v5911
    %6168 = vst [vmem:[#allocation2 + $0x7e0] sm:$0xff] %v5912
    %6169 = vst [vmem:[#allocation2 + $0x7e8] sm:$0xff] %v5913
    %6170 = vst [vmem:[#allocation2 + $0x7f0] sm:$0xff] %v5914
    %6171 = vst [vmem:[#allocation2 + $0x7f8] sm:$0xff] %v5915
    %v6172 = vld [vmem:[#allocation2] sm:$0xff]
    %v6173 = vld [vmem:[#allocation2 + $0x8] sm:$0xff]
    %v6174 = vld [vmem:[#allocation2 + $0x10] sm:$0xff]
    %v6175 = vld [vmem:[#allocation2 + $0x18] sm:$0xff]
    %v6176 = vld [vmem:[#allocation2 + $0x20] sm:$0xff]
    %v6177 = vld [vmem:[#allocation2 + $0x28] sm:$0xff]
    %v6178 = vld [vmem:[#allocation2 + $0x30] sm:$0xff]
    %v6179 = vld [vmem:[#allocation2 + $0x38] sm:$0xff]
    %v6180 = vld [vmem:[#allocation2 + $0x40] sm:$0xff]
    %v6181 = vld [vmem:[#allocation2 + $0x48] sm:$0xff]
    %v6182 = vld [vmem:[#allocation2 + $0x50] sm:$0xff]
    %v6183 = vld [vmem:[#allocation2 + $0x58] sm:$0xff]
    %v6184 = vld [vmem:[#allocation2 + $0x60] sm:$0xff]
    %v6185 = vld [vmem:[#allocation2 + $0x68] sm:$0xff]
    %v6186 = vld [vmem:[#allocation2 + $0x70] sm:$0xff]
    %v6187 = vld [vmem:[#allocation2 + $0x78] sm:$0xff]
    %v6188 = vld [vmem:[#allocation2 + $0x80] sm:$0xff]
    %v6189 = vld [vmem:[#allocation2 + $0x88] sm:$0xff]
    %v6190 = vld [vmem:[#allocation2 + $0x90] sm:$0xff]
    %v6191 = vld [vmem:[#allocation2 + $0x98] sm:$0xff]
    %v6192 = vld [vmem:[#allocation2 + $0xa0] sm:$0xff]
    %v6193 = vld [vmem:[#allocation2 + $0xa8] sm:$0xff]
    %v6194 = vld [vmem:[#allocation2 + $0xb0] sm:$0xff]
    %v6195 = vld [vmem:[#allocation2 + $0xb8] sm:$0xff]
    %v6196 = vld [vmem:[#allocation2 + $0xc0] sm:$0xff]
    %v6197 = vld [vmem:[#allocation2 + $0xc8] sm:$0xff]
    %v6198 = vld [vmem:[#allocation2 + $0xd0] sm:$0xff]
    %v6199 = vld [vmem:[#allocation2 + $0xd8] sm:$0xff]
    %v6200 = vld [vmem:[#allocation2 + $0xe0] sm:$0xff]
    %v6201 = vld [vmem:[#allocation2 + $0xe8] sm:$0xff]
    %v6202 = vld [vmem:[#allocation2 + $0xf0] sm:$0xff]
    %v6203 = vld [vmem:[#allocation2 + $0xf8] sm:$0xff]
    %v6204 = vld [vmem:[#allocation2 + $0x100] sm:$0xff]
    %v6205 = vld [vmem:[#allocation2 + $0x108] sm:$0xff]
    %v6206 = vld [vmem:[#allocation2 + $0x110] sm:$0xff]
    %v6207 = vld [vmem:[#allocation2 + $0x118] sm:$0xff]
    %v6208 = vld [vmem:[#allocation2 + $0x120] sm:$0xff]
    %v6209 = vld [vmem:[#allocation2 + $0x128] sm:$0xff]
    %v6210 = vld [vmem:[#allocation2 + $0x130] sm:$0xff]
    %v6211 = vld [vmem:[#allocation2 + $0x138] sm:$0xff]
    %v6212 = vld [vmem:[#allocation2 + $0x140] sm:$0xff]
    %v6213 = vld [vmem:[#allocation2 + $0x148] sm:$0xff]
    %v6214 = vld [vmem:[#allocation2 + $0x150] sm:$0xff]
    %v6215 = vld [vmem:[#allocation2 + $0x158] sm:$0xff]
    %v6216 = vld [vmem:[#allocation2 + $0x160] sm:$0xff]
    %v6217 = vld [vmem:[#allocation2 + $0x168] sm:$0xff]
    %v6218 = vld [vmem:[#allocation2 + $0x170] sm:$0xff]
    %v6219 = vld [vmem:[#allocation2 + $0x178] sm:$0xff]
    %v6220 = vld [vmem:[#allocation2 + $0x180] sm:$0xff]
    %v6221 = vld [vmem:[#allocation2 + $0x188] sm:$0xff]
    %v6222 = vld [vmem:[#allocation2 + $0x190] sm:$0xff]
    %v6223 = vld [vmem:[#allocation2 + $0x198] sm:$0xff]
    %v6224 = vld [vmem:[#allocation2 + $0x1a0] sm:$0xff]
    %v6225 = vld [vmem:[#allocation2 + $0x1a8] sm:$0xff]
    %v6226 = vld [vmem:[#allocation2 + $0x1b0] sm:$0xff]
    %v6227 = vld [vmem:[#allocation2 + $0x1b8] sm:$0xff]
    %v6228 = vld [vmem:[#allocation2 + $0x1c0] sm:$0xff]
    %v6229 = vld [vmem:[#allocation2 + $0x1c8] sm:$0xff]
    %v6230 = vld [vmem:[#allocation2 + $0x1d0] sm:$0xff]
    %v6231 = vld [vmem:[#allocation2 + $0x1d8] sm:$0xff]
    %v6232 = vld [vmem:[#allocation2 + $0x1e0] sm:$0xff]
    %v6233 = vld [vmem:[#allocation2 + $0x1e8] sm:$0xff]
    %v6234 = vld [vmem:[#allocation2 + $0x1f0] sm:$0xff]
    %v6235 = vld [vmem:[#allocation2 + $0x1f8] sm:$0xff]
    %v6236 = vld [vmem:[#allocation2 + $0x200] sm:$0xff]
    %v6237 = vld [vmem:[#allocation2 + $0x208] sm:$0xff]
    %v6238 = vld [vmem:[#allocation2 + $0x210] sm:$0xff]
    %v6239 = vld [vmem:[#allocation2 + $0x218] sm:$0xff]
    %v6240 = vld [vmem:[#allocation2 + $0x220] sm:$0xff]
    %v6241 = vld [vmem:[#allocation2 + $0x228] sm:$0xff]
    %v6242 = vld [vmem:[#allocation2 + $0x230] sm:$0xff]
    %v6243 = vld [vmem:[#allocation2 + $0x238] sm:$0xff]
    %v6244 = vld [vmem:[#allocation2 + $0x240] sm:$0xff]
    %v6245 = vld [vmem:[#allocation2 + $0x248] sm:$0xff]
    %v6246 = vld [vmem:[#allocation2 + $0x250] sm:$0xff]
    %v6247 = vld [vmem:[#allocation2 + $0x258] sm:$0xff]
    %v6248 = vld [vmem:[#allocation2 + $0x260] sm:$0xff]
    %v6249 = vld [vmem:[#allocation2 + $0x268] sm:$0xff]
    %v6250 = vld [vmem:[#allocation2 + $0x270] sm:$0xff]
    %v6251 = vld [vmem:[#allocation2 + $0x278] sm:$0xff]
    %v6252 = vld [vmem:[#allocation2 + $0x280] sm:$0xff]
    %v6253 = vld [vmem:[#allocation2 + $0x288] sm:$0xff]
    %v6254 = vld [vmem:[#allocation2 + $0x290] sm:$0xff]
    %v6255 = vld [vmem:[#allocation2 + $0x298] sm:$0xff]
    %v6256 = vld [vmem:[#allocation2 + $0x2a0] sm:$0xff]
    %v6257 = vld [vmem:[#allocation2 + $0x2a8] sm:$0xff]
    %v6258 = vld [vmem:[#allocation2 + $0x2b0] sm:$0xff]
    %v6259 = vld [vmem:[#allocation2 + $0x2b8] sm:$0xff]
    %v6260 = vld [vmem:[#allocation2 + $0x2c0] sm:$0xff]
    %v6261 = vld [vmem:[#allocation2 + $0x2c8] sm:$0xff]
    %v6262 = vld [vmem:[#allocation2 + $0x2d0] sm:$0xff]
    %v6263 = vld [vmem:[#allocation2 + $0x2d8] sm:$0xff]
    %v6264 = vld [vmem:[#allocation2 + $0x2e0] sm:$0xff]
    %v6265 = vld [vmem:[#allocation2 + $0x2e8] sm:$0xff]
    %v6266 = vld [vmem:[#allocation2 + $0x2f0] sm:$0xff]
    %v6267 = vld [vmem:[#allocation2 + $0x2f8] sm:$0xff]
    %v6268 = vld [vmem:[#allocation2 + $0x300] sm:$0xff]
    %v6269 = vld [vmem:[#allocation2 + $0x308] sm:$0xff]
    %v6270 = vld [vmem:[#allocation2 + $0x310] sm:$0xff]
    %v6271 = vld [vmem:[#allocation2 + $0x318] sm:$0xff]
    %v6272 = vld [vmem:[#allocation2 + $0x320] sm:$0xff]
    %v6273 = vld [vmem:[#allocation2 + $0x328] sm:$0xff]
    %v6274 = vld [vmem:[#allocation2 + $0x330] sm:$0xff]
    %v6275 = vld [vmem:[#allocation2 + $0x338] sm:$0xff]
    %v6276 = vld [vmem:[#allocation2 + $0x340] sm:$0xff]
    %v6277 = vld [vmem:[#allocation2 + $0x348] sm:$0xff]
    %v6278 = vld [vmem:[#allocation2 + $0x350] sm:$0xff]
    %v6279 = vld [vmem:[#allocation2 + $0x358] sm:$0xff]
    %v6280 = vld [vmem:[#allocation2 + $0x360] sm:$0xff]
    %v6281 = vld [vmem:[#allocation2 + $0x368] sm:$0xff]
    %v6282 = vld [vmem:[#allocation2 + $0x370] sm:$0xff]
    %v6283 = vld [vmem:[#allocation2 + $0x378] sm:$0xff]
    %v6284 = vld [vmem:[#allocation2 + $0x380] sm:$0xff]
    %v6285 = vld [vmem:[#allocation2 + $0x388] sm:$0xff]
    %v6286 = vld [vmem:[#allocation2 + $0x390] sm:$0xff]
    %v6287 = vld [vmem:[#allocation2 + $0x398] sm:$0xff]
    %v6288 = vld [vmem:[#allocation2 + $0x3a0] sm:$0xff]
    %v6289 = vld [vmem:[#allocation2 + $0x3a8] sm:$0xff]
    %v6290 = vld [vmem:[#allocation2 + $0x3b0] sm:$0xff]
    %v6291 = vld [vmem:[#allocation2 + $0x3b8] sm:$0xff]
    %v6292 = vld [vmem:[#allocation2 + $0x3c0] sm:$0xff]
    %v6293 = vld [vmem:[#allocation2 + $0x3c8] sm:$0xff]
    %v6294 = vld [vmem:[#allocation2 + $0x3d0] sm:$0xff]
    %v6295 = vld [vmem:[#allocation2 + $0x3d8] sm:$0xff]
    %v6296 = vld [vmem:[#allocation2 + $0x3e0] sm:$0xff]
    %v6297 = vld [vmem:[#allocation2 + $0x3e8] sm:$0xff]
    %v6298 = vld [vmem:[#allocation2 + $0x3f0] sm:$0xff]
    %v6299 = vld [vmem:[#allocation2 + $0x3f8] sm:$0xff]
    %v6300 = vld [vmem:[#allocation2 + $0x400] sm:$0xff]
    %v6301 = vld [vmem:[#allocation2 + $0x408] sm:$0xff]
    %v6302 = vld [vmem:[#allocation2 + $0x410] sm:$0xff]
    %v6303 = vld [vmem:[#allocation2 + $0x418] sm:$0xff]
    %v6304 = vld [vmem:[#allocation2 + $0x420] sm:$0xff]
    %v6305 = vld [vmem:[#allocation2 + $0x428] sm:$0xff]
    %v6306 = vld [vmem:[#allocation2 + $0x430] sm:$0xff]
    %v6307 = vld [vmem:[#allocation2 + $0x438] sm:$0xff]
    %v6308 = vld [vmem:[#allocation2 + $0x440] sm:$0xff]
    %v6309 = vld [vmem:[#allocation2 + $0x448] sm:$0xff]
    %v6310 = vld [vmem:[#allocation2 + $0x450] sm:$0xff]
    %v6311 = vld [vmem:[#allocation2 + $0x458] sm:$0xff]
    %v6312 = vld [vmem:[#allocation2 + $0x460] sm:$0xff]
    %v6313 = vld [vmem:[#allocation2 + $0x468] sm:$0xff]
    %v6314 = vld [vmem:[#allocation2 + $0x470] sm:$0xff]
    %v6315 = vld [vmem:[#allocation2 + $0x478] sm:$0xff]
    %v6316 = vld [vmem:[#allocation2 + $0x480] sm:$0xff]
    %v6317 = vld [vmem:[#allocation2 + $0x488] sm:$0xff]
    %v6318 = vld [vmem:[#allocation2 + $0x490] sm:$0xff]
    %v6319 = vld [vmem:[#allocation2 + $0x498] sm:$0xff]
    %v6320 = vld [vmem:[#allocation2 + $0x4a0] sm:$0xff]
    %v6321 = vld [vmem:[#allocation2 + $0x4a8] sm:$0xff]
    %v6322 = vld [vmem:[#allocation2 + $0x4b0] sm:$0xff]
    %v6323 = vld [vmem:[#allocation2 + $0x4b8] sm:$0xff]
    %v6324 = vld [vmem:[#allocation2 + $0x4c0] sm:$0xff]
    %v6325 = vld [vmem:[#allocation2 + $0x4c8] sm:$0xff]
    %v6326 = vld [vmem:[#allocation2 + $0x4d0] sm:$0xff]
    %v6327 = vld [vmem:[#allocation2 + $0x4d8] sm:$0xff]
    %v6328 = vld [vmem:[#allocation2 + $0x4e0] sm:$0xff]
    %v6329 = vld [vmem:[#allocation2 + $0x4e8] sm:$0xff]
    %v6330 = vld [vmem:[#allocation2 + $0x4f0] sm:$0xff]
    %v6331 = vld [vmem:[#allocation2 + $0x4f8] sm:$0xff]
    %v6332 = vld [vmem:[#allocation2 + $0x500] sm:$0xff]
    %v6333 = vld [vmem:[#allocation2 + $0x508] sm:$0xff]
    %v6334 = vld [vmem:[#allocation2 + $0x510] sm:$0xff]
    %v6335 = vld [vmem:[#allocation2 + $0x518] sm:$0xff]
    %v6336 = vld [vmem:[#allocation2 + $0x520] sm:$0xff]
    %v6337 = vld [vmem:[#allocation2 + $0x528] sm:$0xff]
    %v6338 = vld [vmem:[#allocation2 + $0x530] sm:$0xff]
    %v6339 = vld [vmem:[#allocation2 + $0x538] sm:$0xff]
    %v6340 = vld [vmem:[#allocation2 + $0x540] sm:$0xff]
    %v6341 = vld [vmem:[#allocation2 + $0x548] sm:$0xff]
    %v6342 = vld [vmem:[#allocation2 + $0x550] sm:$0xff]
    %v6343 = vld [vmem:[#allocation2 + $0x558] sm:$0xff]
    %v6344 = vld [vmem:[#allocation2 + $0x560] sm:$0xff]
    %v6345 = vld [vmem:[#allocation2 + $0x568] sm:$0xff]
    %v6346 = vld [vmem:[#allocation2 + $0x570] sm:$0xff]
    %v6347 = vld [vmem:[#allocation2 + $0x578] sm:$0xff]
    %v6348 = vld [vmem:[#allocation2 + $0x580] sm:$0xff]
    %v6349 = vld [vmem:[#allocation2 + $0x588] sm:$0xff]
    %v6350 = vld [vmem:[#allocation2 + $0x590] sm:$0xff]
    %v6351 = vld [vmem:[#allocation2 + $0x598] sm:$0xff]
    %v6352 = vld [vmem:[#allocation2 + $0x5a0] sm:$0xff]
    %v6353 = vld [vmem:[#allocation2 + $0x5a8] sm:$0xff]
    %v6354 = vld [vmem:[#allocation2 + $0x5b0] sm:$0xff]
    %v6355 = vld [vmem:[#allocation2 + $0x5b8] sm:$0xff]
    %v6356 = vld [vmem:[#allocation2 + $0x5c0] sm:$0xff]
    %v6357 = vld [vmem:[#allocation2 + $0x5c8] sm:$0xff]
    %v6358 = vld [vmem:[#allocation2 + $0x5d0] sm:$0xff]
    %v6359 = vld [vmem:[#allocation2 + $0x5d8] sm:$0xff]
    %v6360 = vld [vmem:[#allocation2 + $0x5e0] sm:$0xff]
    %v6361 = vld [vmem:[#allocation2 + $0x5e8] sm:$0xff]
    %v6362 = vld [vmem:[#allocation2 + $0x5f0] sm:$0xff]
    %v6363 = vld [vmem:[#allocation2 + $0x5f8] sm:$0xff]
    %v6364 = vld [vmem:[#allocation2 + $0x600] sm:$0xff]
    %v6365 = vld [vmem:[#allocation2 + $0x608] sm:$0xff]
    %v6366 = vld [vmem:[#allocation2 + $0x610] sm:$0xff]
    %v6367 = vld [vmem:[#allocation2 + $0x618] sm:$0xff]
    %v6368 = vld [vmem:[#allocation2 + $0x620] sm:$0xff]
    %v6369 = vld [vmem:[#allocation2 + $0x628] sm:$0xff]
    %v6370 = vld [vmem:[#allocation2 + $0x630] sm:$0xff]
    %v6371 = vld [vmem:[#allocation2 + $0x638] sm:$0xff]
    %v6372 = vld [vmem:[#allocation2 + $0x640] sm:$0xff]
    %v6373 = vld [vmem:[#allocation2 + $0x648] sm:$0xff]
    %v6374 = vld [vmem:[#allocation2 + $0x650] sm:$0xff]
    %v6375 = vld [vmem:[#allocation2 + $0x658] sm:$0xff]
    %v6376 = vld [vmem:[#allocation2 + $0x660] sm:$0xff]
    %v6377 = vld [vmem:[#allocation2 + $0x668] sm:$0xff]
    %v6378 = vld [vmem:[#allocation2 + $0x670] sm:$0xff]
    %v6379 = vld [vmem:[#allocation2 + $0x678] sm:$0xff]
    %v6380 = vld [vmem:[#allocation2 + $0x680] sm:$0xff]
    %v6381 = vld [vmem:[#allocation2 + $0x688] sm:$0xff]
    %v6382 = vld [vmem:[#allocation2 + $0x690] sm:$0xff]
    %v6383 = vld [vmem:[#allocation2 + $0x698] sm:$0xff]
    %v6384 = vld [vmem:[#allocation2 + $0x6a0] sm:$0xff]
    %v6385 = vld [vmem:[#allocation2 + $0x6a8] sm:$0xff]
    %v6386 = vld [vmem:[#allocation2 + $0x6b0] sm:$0xff]
    %v6387 = vld [vmem:[#allocation2 + $0x6b8] sm:$0xff]
    %v6388 = vld [vmem:[#allocation2 + $0x6c0] sm:$0xff]
    %v6389 = vld [vmem:[#allocation2 + $0x6c8] sm:$0xff]
    %v6390 = vld [vmem:[#allocation2 + $0x6d0] sm:$0xff]
    %v6391 = vld [vmem:[#allocation2 + $0x6d8] sm:$0xff]
    %v6392 = vld [vmem:[#allocation2 + $0x6e0] sm:$0xff]
    %v6393 = vld [vmem:[#allocation2 + $0x6e8] sm:$0xff]
    %v6394 = vld [vmem:[#allocation2 + $0x6f0] sm:$0xff]
    %v6395 = vld [vmem:[#allocation2 + $0x6f8] sm:$0xff]
    %v6396 = vld [vmem:[#allocation2 + $0x700] sm:$0xff]
    %v6397 = vld [vmem:[#allocation2 + $0x708] sm:$0xff]
    %v6398 = vld [vmem:[#allocation2 + $0x710] sm:$0xff]
    %v6399 = vld [vmem:[#allocation2 + $0x718] sm:$0xff]
    %v6400 = vld [vmem:[#allocation2 + $0x720] sm:$0xff]
    %v6401 = vld [vmem:[#allocation2 + $0x728] sm:$0xff]
    %v6402 = vld [vmem:[#allocation2 + $0x730] sm:$0xff]
    %v6403 = vld [vmem:[#allocation2 + $0x738] sm:$0xff]
    %v6404 = vld [vmem:[#allocation2 + $0x740] sm:$0xff]
    %v6405 = vld [vmem:[#allocation2 + $0x748] sm:$0xff]
    %v6406 = vld [vmem:[#allocation2 + $0x750] sm:$0xff]
    %v6407 = vld [vmem:[#allocation2 + $0x758] sm:$0xff]
    %v6408 = vld [vmem:[#allocation2 + $0x760] sm:$0xff]
    %v6409 = vld [vmem:[#allocation2 + $0x768] sm:$0xff]
    %v6410 = vld [vmem:[#allocation2 + $0x770] sm:$0xff]
    %v6411 = vld [vmem:[#allocation2 + $0x778] sm:$0xff]
    %v6412 = vld [vmem:[#allocation2 + $0x780] sm:$0xff]
    %v6413 = vld [vmem:[#allocation2 + $0x788] sm:$0xff]
    %v6414 = vld [vmem:[#allocation2 + $0x790] sm:$0xff]
    %v6415 = vld [vmem:[#allocation2 + $0x798] sm:$0xff]
    %v6416 = vld [vmem:[#allocation2 + $0x7a0] sm:$0xff]
    %v6417 = vld [vmem:[#allocation2 + $0x7a8] sm:$0xff]
    %v6418 = vld [vmem:[#allocation2 + $0x7b0] sm:$0xff]
    %v6419 = vld [vmem:[#allocation2 + $0x7b8] sm:$0xff]
    %v6420 = vld [vmem:[#allocation2 + $0x7c0] sm:$0xff]
    %v6421 = vld [vmem:[#allocation2 + $0x7c8] sm:$0xff]
    %v6422 = vld [vmem:[#allocation2 + $0x7d0] sm:$0xff]
    %v6423 = vld [vmem:[#allocation2 + $0x7d8] sm:$0xff]
    %v6424 = vld [vmem:[#allocation2 + $0x7e0] sm:$0xff]
    %v6425 = vld [vmem:[#allocation2 + $0x7e8] sm:$0xff]
    %v6426 = vld [vmem:[#allocation2 + $0x7f0] sm:$0xff]
    %v6427 = vld [vmem:[#allocation2 + $0x7f8] sm:$0xff]
    %6428 = vadd.xlane.f32.xlu0 %v6172
    %v6429 = vpop.xlane.xlu0 %6428
    %6430 = vadd.xlane.f32.xlu0 %v6173
    %v6431 = vpop.xlane.xlu0 %6430
    %6432 = vadd.xlane.f32.xlu0 %v6174
    %v6433 = vpop.xlane.xlu0 %6432
    %6434 = vadd.xlane.f32.xlu0 %v6175
    %v6435 = vpop.xlane.xlu0 %6434
    %6436 = vadd.xlane.f32.xlu0 %v6176
    %v6437 = vpop.xlane.xlu0 %6436
    %6438 = vadd.xlane.f32.xlu0 %v6177
    %v6439 = vpop.xlane.xlu0 %6438
    %6440 = vadd.xlane.f32.xlu0 %v6178
    %v6441 = vpop.xlane.xlu0 %6440
    %6442 = vadd.xlane.f32.xlu0 %v6179
    %v6443 = vpop.xlane.xlu0 %6442
    %6444 = vadd.xlane.f32.xlu0 %v6180
    %v6445 = vpop.xlane.xlu0 %6444
    %6446 = vadd.xlane.f32.xlu0 %v6181
    %v6447 = vpop.xlane.xlu0 %6446
    %6448 = vadd.xlane.f32.xlu0 %v6182
    %v6449 = vpop.xlane.xlu0 %6448
    %6450 = vadd.xlane.f32.xlu0 %v6183
    %v6451 = vpop.xlane.xlu0 %6450
    %6452 = vadd.xlane.f32.xlu0 %v6184
    %v6453 = vpop.xlane.xlu0 %6452
    %6454 = vadd.xlane.f32.xlu0 %v6185
    %v6455 = vpop.xlane.xlu0 %6454
    %6456 = vadd.xlane.f32.xlu0 %v6186
    %v6457 = vpop.xlane.xlu0 %6456
    %6458 = vadd.xlane.f32.xlu0 %v6187
    %v6459 = vpop.xlane.xlu0 %6458
    %6460 = vadd.xlane.f32.xlu0 %v6188
    %v6461 = vpop.xlane.xlu0 %6460
    %6462 = vadd.xlane.f32.xlu0 %v6189
    %v6463 = vpop.xlane.xlu0 %6462
    %6464 = vadd.xlane.f32.xlu0 %v6190
    %v6465 = vpop.xlane.xlu0 %6464
    %6466 = vadd.xlane.f32.xlu0 %v6191
    %v6467 = vpop.xlane.xlu0 %6466
    %6468 = vadd.xlane.f32.xlu0 %v6192
    %v6469 = vpop.xlane.xlu0 %6468
    %6470 = vadd.xlane.f32.xlu0 %v6193
    %v6471 = vpop.xlane.xlu0 %6470
    %6472 = vadd.xlane.f32.xlu0 %v6194
    %v6473 = vpop.xlane.xlu0 %6472
    %6474 = vadd.xlane.f32.xlu0 %v6195
    %v6475 = vpop.xlane.xlu0 %6474
    %6476 = vadd.xlane.f32.xlu0 %v6196
    %v6477 = vpop.xlane.xlu0 %6476
    %6478 = vadd.xlane.f32.xlu0 %v6197
    %v6479 = vpop.xlane.xlu0 %6478
    %6480 = vadd.xlane.f32.xlu0 %v6198
    %v6481 = vpop.xlane.xlu0 %6480
    %6482 = vadd.xlane.f32.xlu0 %v6199
    %v6483 = vpop.xlane.xlu0 %6482
    %6484 = vadd.xlane.f32.xlu0 %v6200
    %v6485 = vpop.xlane.xlu0 %6484
    %6486 = vadd.xlane.f32.xlu0 %v6201
    %v6487 = vpop.xlane.xlu0 %6486
    %6488 = vadd.xlane.f32.xlu0 %v6202
    %v6489 = vpop.xlane.xlu0 %6488
    %6490 = vadd.xlane.f32.xlu0 %v6203
    %v6491 = vpop.xlane.xlu0 %6490
    %6492 = vadd.xlane.f32.xlu0 %v6204
    %v6493 = vpop.xlane.xlu0 %6492
    %6494 = vadd.xlane.f32.xlu0 %v6205
    %v6495 = vpop.xlane.xlu0 %6494
    %6496 = vadd.xlane.f32.xlu0 %v6206
    %v6497 = vpop.xlane.xlu0 %6496
    %6498 = vadd.xlane.f32.xlu0 %v6207
    %v6499 = vpop.xlane.xlu0 %6498
    %6500 = vadd.xlane.f32.xlu0 %v6208
    %v6501 = vpop.xlane.xlu0 %6500
    %6502 = vadd.xlane.f32.xlu0 %v6209
    %v6503 = vpop.xlane.xlu0 %6502
    %6504 = vadd.xlane.f32.xlu0 %v6210
    %v6505 = vpop.xlane.xlu0 %6504
    %6506 = vadd.xlane.f32.xlu0 %v6211
    %v6507 = vpop.xlane.xlu0 %6506
    %6508 = vadd.xlane.f32.xlu0 %v6212
    %v6509 = vpop.xlane.xlu0 %6508
    %6510 = vadd.xlane.f32.xlu0 %v6213
    %v6511 = vpop.xlane.xlu0 %6510
    %6512 = vadd.xlane.f32.xlu0 %v6214
    %v6513 = vpop.xlane.xlu0 %6512
    %6514 = vadd.xlane.f32.xlu0 %v6215
    %v6515 = vpop.xlane.xlu0 %6514
    %6516 = vadd.xlane.f32.xlu0 %v6216
    %v6517 = vpop.xlane.xlu0 %6516
    %6518 = vadd.xlane.f32.xlu0 %v6217
    %v6519 = vpop.xlane.xlu0 %6518
    %6520 = vadd.xlane.f32.xlu0 %v6218
    %v6521 = vpop.xlane.xlu0 %6520
    %6522 = vadd.xlane.f32.xlu0 %v6219
    %v6523 = vpop.xlane.xlu0 %6522
    %6524 = vadd.xlane.f32.xlu0 %v6220
    %v6525 = vpop.xlane.xlu0 %6524
    %6526 = vadd.xlane.f32.xlu0 %v6221
    %v6527 = vpop.xlane.xlu0 %6526
    %6528 = vadd.xlane.f32.xlu0 %v6222
    %v6529 = vpop.xlane.xlu0 %6528
    %6530 = vadd.xlane.f32.xlu0 %v6223
    %v6531 = vpop.xlane.xlu0 %6530
    %6532 = vadd.xlane.f32.xlu0 %v6224
    %v6533 = vpop.xlane.xlu0 %6532
    %6534 = vadd.xlane.f32.xlu0 %v6225
    %v6535 = vpop.xlane.xlu0 %6534
    %6536 = vadd.xlane.f32.xlu0 %v6226
    %v6537 = vpop.xlane.xlu0 %6536
    %6538 = vadd.xlane.f32.xlu0 %v6227
    %v6539 = vpop.xlane.xlu0 %6538
    %6540 = vadd.xlane.f32.xlu0 %v6228
    %v6541 = vpop.xlane.xlu0 %6540
    %6542 = vadd.xlane.f32.xlu0 %v6229
    %v6543 = vpop.xlane.xlu0 %6542
    %6544 = vadd.xlane.f32.xlu0 %v6230
    %v6545 = vpop.xlane.xlu0 %6544
    %6546 = vadd.xlane.f32.xlu0 %v6231
    %v6547 = vpop.xlane.xlu0 %6546
    %6548 = vadd.xlane.f32.xlu0 %v6232
    %v6549 = vpop.xlane.xlu0 %6548
    %6550 = vadd.xlane.f32.xlu0 %v6233
    %v6551 = vpop.xlane.xlu0 %6550
    %6552 = vadd.xlane.f32.xlu0 %v6234
    %v6553 = vpop.xlane.xlu0 %6552
    %6554 = vadd.xlane.f32.xlu0 %v6235
    %v6555 = vpop.xlane.xlu0 %6554
    %6556 = vadd.xlane.f32.xlu0 %v6236
    %v6557 = vpop.xlane.xlu0 %6556
    %6558 = vadd.xlane.f32.xlu0 %v6237
    %v6559 = vpop.xlane.xlu0 %6558
    %6560 = vadd.xlane.f32.xlu0 %v6238
    %v6561 = vpop.xlane.xlu0 %6560
    %6562 = vadd.xlane.f32.xlu0 %v6239
    %v6563 = vpop.xlane.xlu0 %6562
    %6564 = vadd.xlane.f32.xlu0 %v6240
    %v6565 = vpop.xlane.xlu0 %6564
    %6566 = vadd.xlane.f32.xlu0 %v6241
    %v6567 = vpop.xlane.xlu0 %6566
    %6568 = vadd.xlane.f32.xlu0 %v6242
    %v6569 = vpop.xlane.xlu0 %6568
    %6570 = vadd.xlane.f32.xlu0 %v6243
    %v6571 = vpop.xlane.xlu0 %6570
    %6572 = vadd.xlane.f32.xlu0 %v6244
    %v6573 = vpop.xlane.xlu0 %6572
    %6574 = vadd.xlane.f32.xlu0 %v6245
    %v6575 = vpop.xlane.xlu0 %6574
    %6576 = vadd.xlane.f32.xlu0 %v6246
    %v6577 = vpop.xlane.xlu0 %6576
    %6578 = vadd.xlane.f32.xlu0 %v6247
    %v6579 = vpop.xlane.xlu0 %6578
    %6580 = vadd.xlane.f32.xlu0 %v6248
    %v6581 = vpop.xlane.xlu0 %6580
    %6582 = vadd.xlane.f32.xlu0 %v6249
    %v6583 = vpop.xlane.xlu0 %6582
    %6584 = vadd.xlane.f32.xlu0 %v6250
    %v6585 = vpop.xlane.xlu0 %6584
    %6586 = vadd.xlane.f32.xlu0 %v6251
    %v6587 = vpop.xlane.xlu0 %6586
    %6588 = vadd.xlane.f32.xlu0 %v6252
    %v6589 = vpop.xlane.xlu0 %6588
    %6590 = vadd.xlane.f32.xlu0 %v6253
    %v6591 = vpop.xlane.xlu0 %6590
    %6592 = vadd.xlane.f32.xlu0 %v6254
    %v6593 = vpop.xlane.xlu0 %6592
    %6594 = vadd.xlane.f32.xlu0 %v6255
    %v6595 = vpop.xlane.xlu0 %6594
    %6596 = vadd.xlane.f32.xlu0 %v6256
    %v6597 = vpop.xlane.xlu0 %6596
    %6598 = vadd.xlane.f32.xlu0 %v6257
    %v6599 = vpop.xlane.xlu0 %6598
    %6600 = vadd.xlane.f32.xlu0 %v6258
    %v6601 = vpop.xlane.xlu0 %6600
    %6602 = vadd.xlane.f32.xlu0 %v6259
    %v6603 = vpop.xlane.xlu0 %6602
    %6604 = vadd.xlane.f32.xlu0 %v6260
    %v6605 = vpop.xlane.xlu0 %6604
    %6606 = vadd.xlane.f32.xlu0 %v6261
    %v6607 = vpop.xlane.xlu0 %6606
    %6608 = vadd.xlane.f32.xlu0 %v6262
    %v6609 = vpop.xlane.xlu0 %6608
    %6610 = vadd.xlane.f32.xlu0 %v6263
    %v6611 = vpop.xlane.xlu0 %6610
    %6612 = vadd.xlane.f32.xlu0 %v6264
    %v6613 = vpop.xlane.xlu0 %6612
    %6614 = vadd.xlane.f32.xlu0 %v6265
    %v6615 = vpop.xlane.xlu0 %6614
    %6616 = vadd.xlane.f32.xlu0 %v6266
    %v6617 = vpop.xlane.xlu0 %6616
    %6618 = vadd.xlane.f32.xlu0 %v6267
    %v6619 = vpop.xlane.xlu0 %6618
    %6620 = vadd.xlane.f32.xlu0 %v6268
    %v6621 = vpop.xlane.xlu0 %6620
    %6622 = vadd.xlane.f32.xlu0 %v6269
    %v6623 = vpop.xlane.xlu0 %6622
    %6624 = vadd.xlane.f32.xlu0 %v6270
    %v6625 = vpop.xlane.xlu0 %6624
    %6626 = vadd.xlane.f32.xlu0 %v6271
    %v6627 = vpop.xlane.xlu0 %6626
    %6628 = vadd.xlane.f32.xlu0 %v6272
    %v6629 = vpop.xlane.xlu0 %6628
    %6630 = vadd.xlane.f32.xlu0 %v6273
    %v6631 = vpop.xlane.xlu0 %6630
    %6632 = vadd.xlane.f32.xlu0 %v6274
    %v6633 = vpop.xlane.xlu0 %6632
    %6634 = vadd.xlane.f32.xlu0 %v6275
    %v6635 = vpop.xlane.xlu0 %6634
    %6636 = vadd.xlane.f32.xlu0 %v6276
    %v6637 = vpop.xlane.xlu0 %6636
    %6638 = vadd.xlane.f32.xlu0 %v6277
    %v6639 = vpop.xlane.xlu0 %6638
    %6640 = vadd.xlane.f32.xlu0 %v6278
    %v6641 = vpop.xlane.xlu0 %6640
    %6642 = vadd.xlane.f32.xlu0 %v6279
    %v6643 = vpop.xlane.xlu0 %6642
    %6644 = vadd.xlane.f32.xlu0 %v6280
    %v6645 = vpop.xlane.xlu0 %6644
    %6646 = vadd.xlane.f32.xlu0 %v6281
    %v6647 = vpop.xlane.xlu0 %6646
    %6648 = vadd.xlane.f32.xlu0 %v6282
    %v6649 = vpop.xlane.xlu0 %6648
    %6650 = vadd.xlane.f32.xlu0 %v6283
    %v6651 = vpop.xlane.xlu0 %6650
    %6652 = vadd.xlane.f32.xlu0 %v6284
    %v6653 = vpop.xlane.xlu0 %6652
    %6654 = vadd.xlane.f32.xlu0 %v6285
    %v6655 = vpop.xlane.xlu0 %6654
    %6656 = vadd.xlane.f32.xlu0 %v6286
    %v6657 = vpop.xlane.xlu0 %6656
    %6658 = vadd.xlane.f32.xlu0 %v6287
    %v6659 = vpop.xlane.xlu0 %6658
    %6660 = vadd.xlane.f32.xlu0 %v6288
    %v6661 = vpop.xlane.xlu0 %6660
    %6662 = vadd.xlane.f32.xlu0 %v6289
    %v6663 = vpop.xlane.xlu0 %6662
    %6664 = vadd.xlane.f32.xlu0 %v6290
    %v6665 = vpop.xlane.xlu0 %6664
    %6666 = vadd.xlane.f32.xlu0 %v6291
    %v6667 = vpop.xlane.xlu0 %6666
    %6668 = vadd.xlane.f32.xlu0 %v6292
    %v6669 = vpop.xlane.xlu0 %6668
    %6670 = vadd.xlane.f32.xlu0 %v6293
    %v6671 = vpop.xlane.xlu0 %6670
    %6672 = vadd.xlane.f32.xlu0 %v6294
    %v6673 = vpop.xlane.xlu0 %6672
    %6674 = vadd.xlane.f32.xlu0 %v6295
    %v6675 = vpop.xlane.xlu0 %6674
    %6676 = vadd.xlane.f32.xlu0 %v6296
    %v6677 = vpop.xlane.xlu0 %6676
    %6678 = vadd.xlane.f32.xlu0 %v6297
    %v6679 = vpop.xlane.xlu0 %6678
    %6680 = vadd.xlane.f32.xlu0 %v6298
    %v6681 = vpop.xlane.xlu0 %6680
    %6682 = vadd.xlane.f32.xlu0 %v6299
    %v6683 = vpop.xlane.xlu0 %6682
    %6684 = vadd.xlane.f32.xlu0 %v6300
    %v6685 = vpop.xlane.xlu0 %6684
    %6686 = vadd.xlane.f32.xlu0 %v6301
    %v6687 = vpop.xlane.xlu0 %6686
    %6688 = vadd.xlane.f32.xlu0 %v6302
    %v6689 = vpop.xlane.xlu0 %6688
    %6690 = vadd.xlane.f32.xlu0 %v6303
    %v6691 = vpop.xlane.xlu0 %6690
    %6692 = vadd.xlane.f32.xlu0 %v6304
    %v6693 = vpop.xlane.xlu0 %6692
    %6694 = vadd.xlane.f32.xlu0 %v6305
    %v6695 = vpop.xlane.xlu0 %6694
    %6696 = vadd.xlane.f32.xlu0 %v6306
    %v6697 = vpop.xlane.xlu0 %6696
    %6698 = vadd.xlane.f32.xlu0 %v6307
    %v6699 = vpop.xlane.xlu0 %6698
    %6700 = vadd.xlane.f32.xlu0 %v6308
    %v6701 = vpop.xlane.xlu0 %6700
    %6702 = vadd.xlane.f32.xlu0 %v6309
    %v6703 = vpop.xlane.xlu0 %6702
    %6704 = vadd.xlane.f32.xlu0 %v6310
    %v6705 = vpop.xlane.xlu0 %6704
    %6706 = vadd.xlane.f32.xlu0 %v6311
    %v6707 = vpop.xlane.xlu0 %6706
    %6708 = vadd.xlane.f32.xlu0 %v6312
    %v6709 = vpop.xlane.xlu0 %6708
    %6710 = vadd.xlane.f32.xlu0 %v6313
    %v6711 = vpop.xlane.xlu0 %6710
    %6712 = vadd.xlane.f32.xlu0 %v6314
    %v6713 = vpop.xlane.xlu0 %6712
    %6714 = vadd.xlane.f32.xlu0 %v6315
    %v6715 = vpop.xlane.xlu0 %6714
    %6716 = vadd.xlane.f32.xlu0 %v6316
    %v6717 = vpop.xlane.xlu0 %6716
    %6718 = vadd.xlane.f32.xlu0 %v6317
    %v6719 = vpop.xlane.xlu0 %6718
    %6720 = vadd.xlane.f32.xlu0 %v6318
    %v6721 = vpop.xlane.xlu0 %6720
    %6722 = vadd.xlane.f32.xlu0 %v6319
    %v6723 = vpop.xlane.xlu0 %6722
    %6724 = vadd.xlane.f32.xlu0 %v6320
    %v6725 = vpop.xlane.xlu0 %6724
    %6726 = vadd.xlane.f32.xlu0 %v6321
    %v6727 = vpop.xlane.xlu0 %6726
    %6728 = vadd.xlane.f32.xlu0 %v6322
    %v6729 = vpop.xlane.xlu0 %6728
    %6730 = vadd.xlane.f32.xlu0 %v6323
    %v6731 = vpop.xlane.xlu0 %6730
    %6732 = vadd.xlane.f32.xlu0 %v6324
    %v6733 = vpop.xlane.xlu0 %6732
    %6734 = vadd.xlane.f32.xlu0 %v6325
    %v6735 = vpop.xlane.xlu0 %6734
    %6736 = vadd.xlane.f32.xlu0 %v6326
    %v6737 = vpop.xlane.xlu0 %6736
    %6738 = vadd.xlane.f32.xlu0 %v6327
    %v6739 = vpop.xlane.xlu0 %6738
    %6740 = vadd.xlane.f32.xlu0 %v6328
    %v6741 = vpop.xlane.xlu0 %6740
    %6742 = vadd.xlane.f32.xlu0 %v6329
    %v6743 = vpop.xlane.xlu0 %6742
    %6744 = vadd.xlane.f32.xlu0 %v6330
    %v6745 = vpop.xlane.xlu0 %6744
    %6746 = vadd.xlane.f32.xlu0 %v6331
    %v6747 = vpop.xlane.xlu0 %6746
    %6748 = vadd.xlane.f32.xlu0 %v6332
    %v6749 = vpop.xlane.xlu0 %6748
    %6750 = vadd.xlane.f32.xlu0 %v6333
    %v6751 = vpop.xlane.xlu0 %6750
    %6752 = vadd.xlane.f32.xlu0 %v6334
    %v6753 = vpop.xlane.xlu0 %6752
    %6754 = vadd.xlane.f32.xlu0 %v6335
    %v6755 = vpop.xlane.xlu0 %6754
    %6756 = vadd.xlane.f32.xlu0 %v6336
    %v6757 = vpop.xlane.xlu0 %6756
    %6758 = vadd.xlane.f32.xlu0 %v6337
    %v6759 = vpop.xlane.xlu0 %6758
    %6760 = vadd.xlane.f32.xlu0 %v6338
    %v6761 = vpop.xlane.xlu0 %6760
    %6762 = vadd.xlane.f32.xlu0 %v6339
    %v6763 = vpop.xlane.xlu0 %6762
    %6764 = vadd.xlane.f32.xlu0 %v6340
    %v6765 = vpop.xlane.xlu0 %6764
    %6766 = vadd.xlane.f32.xlu0 %v6341
    %v6767 = vpop.xlane.xlu0 %6766
    %6768 = vadd.xlane.f32.xlu0 %v6342
    %v6769 = vpop.xlane.xlu0 %6768
    %6770 = vadd.xlane.f32.xlu0 %v6343
    %v6771 = vpop.xlane.xlu0 %6770
    %6772 = vadd.xlane.f32.xlu0 %v6344
    %v6773 = vpop.xlane.xlu0 %6772
    %6774 = vadd.xlane.f32.xlu0 %v6345
    %v6775 = vpop.xlane.xlu0 %6774
    %6776 = vadd.xlane.f32.xlu0 %v6346
    %v6777 = vpop.xlane.xlu0 %6776
    %6778 = vadd.xlane.f32.xlu0 %v6347
    %v6779 = vpop.xlane.xlu0 %6778
    %6780 = vadd.xlane.f32.xlu0 %v6348
    %v6781 = vpop.xlane.xlu0 %6780
    %6782 = vadd.xlane.f32.xlu0 %v6349
    %v6783 = vpop.xlane.xlu0 %6782
    %6784 = vadd.xlane.f32.xlu0 %v6350
    %v6785 = vpop.xlane.xlu0 %6784
    %6786 = vadd.xlane.f32.xlu0 %v6351
    %v6787 = vpop.xlane.xlu0 %6786
    %6788 = vadd.xlane.f32.xlu0 %v6352
    %v6789 = vpop.xlane.xlu0 %6788
    %6790 = vadd.xlane.f32.xlu0 %v6353
    %v6791 = vpop.xlane.xlu0 %6790
    %6792 = vadd.xlane.f32.xlu0 %v6354
    %v6793 = vpop.xlane.xlu0 %6792
    %6794 = vadd.xlane.f32.xlu0 %v6355
    %v6795 = vpop.xlane.xlu0 %6794
    %6796 = vadd.xlane.f32.xlu0 %v6356
    %v6797 = vpop.xlane.xlu0 %6796
    %6798 = vadd.xlane.f32.xlu0 %v6357
    %v6799 = vpop.xlane.xlu0 %6798
    %6800 = vadd.xlane.f32.xlu0 %v6358
    %v6801 = vpop.xlane.xlu0 %6800
    %6802 = vadd.xlane.f32.xlu0 %v6359
    %v6803 = vpop.xlane.xlu0 %6802
    %6804 = vadd.xlane.f32.xlu0 %v6360
    %v6805 = vpop.xlane.xlu0 %6804
    %6806 = vadd.xlane.f32.xlu0 %v6361
    %v6807 = vpop.xlane.xlu0 %6806
    %6808 = vadd.xlane.f32.xlu0 %v6362
    %v6809 = vpop.xlane.xlu0 %6808
    %6810 = vadd.xlane.f32.xlu0 %v6363
    %v6811 = vpop.xlane.xlu0 %6810
    %6812 = vadd.xlane.f32.xlu0 %v6364
    %v6813 = vpop.xlane.xlu0 %6812
    %6814 = vadd.xlane.f32.xlu0 %v6365
    %v6815 = vpop.xlane.xlu0 %6814
    %6816 = vadd.xlane.f32.xlu0 %v6366
    %v6817 = vpop.xlane.xlu0 %6816
    %6818 = vadd.xlane.f32.xlu0 %v6367
    %v6819 = vpop.xlane.xlu0 %6818
    %6820 = vadd.xlane.f32.xlu0 %v6368
    %v6821 = vpop.xlane.xlu0 %6820
    %6822 = vadd.xlane.f32.xlu0 %v6369
    %v6823 = vpop.xlane.xlu0 %6822
    %6824 = vadd.xlane.f32.xlu0 %v6370
    %v6825 = vpop.xlane.xlu0 %6824
    %6826 = vadd.xlane.f32.xlu0 %v6371
    %v6827 = vpop.xlane.xlu0 %6826
    %6828 = vadd.xlane.f32.xlu0 %v6372
    %v6829 = vpop.xlane.xlu0 %6828
    %6830 = vadd.xlane.f32.xlu0 %v6373
    %v6831 = vpop.xlane.xlu0 %6830
    %6832 = vadd.xlane.f32.xlu0 %v6374
    %v6833 = vpop.xlane.xlu0 %6832
    %6834 = vadd.xlane.f32.xlu0 %v6375
    %v6835 = vpop.xlane.xlu0 %6834
    %6836 = vadd.xlane.f32.xlu0 %v6376
    %v6837 = vpop.xlane.xlu0 %6836
    %6838 = vadd.xlane.f32.xlu0 %v6377
    %v6839 = vpop.xlane.xlu0 %6838
    %6840 = vadd.xlane.f32.xlu0 %v6378
    %v6841 = vpop.xlane.xlu0 %6840
    %6842 = vadd.xlane.f32.xlu0 %v6379
    %v6843 = vpop.xlane.xlu0 %6842
    %6844 = vadd.xlane.f32.xlu0 %v6380
    %v6845 = vpop.xlane.xlu0 %6844
    %6846 = vadd.xlane.f32.xlu0 %v6381
    %v6847 = vpop.xlane.xlu0 %6846
    %6848 = vadd.xlane.f32.xlu0 %v6382
    %v6849 = vpop.xlane.xlu0 %6848
    %6850 = vadd.xlane.f32.xlu0 %v6383
    %v6851 = vpop.xlane.xlu0 %6850
    %6852 = vadd.xlane.f32.xlu0 %v6384
    %v6853 = vpop.xlane.xlu0 %6852
    %6854 = vadd.xlane.f32.xlu0 %v6385
    %v6855 = vpop.xlane.xlu0 %6854
    %6856 = vadd.xlane.f32.xlu0 %v6386
    %v6857 = vpop.xlane.xlu0 %6856
    %6858 = vadd.xlane.f32.xlu0 %v6387
    %v6859 = vpop.xlane.xlu0 %6858
    %6860 = vadd.xlane.f32.xlu0 %v6388
    %v6861 = vpop.xlane.xlu0 %6860
    %6862 = vadd.xlane.f32.xlu0 %v6389
    %v6863 = vpop.xlane.xlu0 %6862
    %6864 = vadd.xlane.f32.xlu0 %v6390
    %v6865 = vpop.xlane.xlu0 %6864
    %6866 = vadd.xlane.f32.xlu0 %v6391
    %v6867 = vpop.xlane.xlu0 %6866
    %6868 = vadd.xlane.f32.xlu0 %v6392
    %v6869 = vpop.xlane.xlu0 %6868
    %6870 = vadd.xlane.f32.xlu0 %v6393
    %v6871 = vpop.xlane.xlu0 %6870
    %6872 = vadd.xlane.f32.xlu0 %v6394
    %v6873 = vpop.xlane.xlu0 %6872
    %6874 = vadd.xlane.f32.xlu0 %v6395
    %v6875 = vpop.xlane.xlu0 %6874
    %6876 = vadd.xlane.f32.xlu0 %v6396
    %v6877 = vpop.xlane.xlu0 %6876
    %6878 = vadd.xlane.f32.xlu0 %v6397
    %v6879 = vpop.xlane.xlu0 %6878
    %6880 = vadd.xlane.f32.xlu0 %v6398
    %v6881 = vpop.xlane.xlu0 %6880
    %6882 = vadd.xlane.f32.xlu0 %v6399
    %v6883 = vpop.xlane.xlu0 %6882
    %6884 = vadd.xlane.f32.xlu0 %v6400
    %v6885 = vpop.xlane.xlu0 %6884
    %6886 = vadd.xlane.f32.xlu0 %v6401
    %v6887 = vpop.xlane.xlu0 %6886
    %6888 = vadd.xlane.f32.xlu0 %v6402
    %v6889 = vpop.xlane.xlu0 %6888
    %6890 = vadd.xlane.f32.xlu0 %v6403
    %v6891 = vpop.xlane.xlu0 %6890
    %6892 = vadd.xlane.f32.xlu0 %v6404
    %v6893 = vpop.xlane.xlu0 %6892
    %6894 = vadd.xlane.f32.xlu0 %v6405
    %v6895 = vpop.xlane.xlu0 %6894
    %6896 = vadd.xlane.f32.xlu0 %v6406
    %v6897 = vpop.xlane.xlu0 %6896
    %6898 = vadd.xlane.f32.xlu0 %v6407
    %v6899 = vpop.xlane.xlu0 %6898
    %6900 = vadd.xlane.f32.xlu0 %v6408
    %v6901 = vpop.xlane.xlu0 %6900
    %6902 = vadd.xlane.f32.xlu0 %v6409
    %v6903 = vpop.xlane.xlu0 %6902
    %6904 = vadd.xlane.f32.xlu0 %v6410
    %v6905 = vpop.xlane.xlu0 %6904
    %6906 = vadd.xlane.f32.xlu0 %v6411
    %v6907 = vpop.xlane.xlu0 %6906
    %6908 = vadd.xlane.f32.xlu0 %v6412
    %v6909 = vpop.xlane.xlu0 %6908
    %6910 = vadd.xlane.f32.xlu0 %v6413
    %v6911 = vpop.xlane.xlu0 %6910
    %6912 = vadd.xlane.f32.xlu0 %v6414
    %v6913 = vpop.xlane.xlu0 %6912
    %6914 = vadd.xlane.f32.xlu0 %v6415
    %v6915 = vpop.xlane.xlu0 %6914
    %6916 = vadd.xlane.f32.xlu0 %v6416
    %v6917 = vpop.xlane.xlu0 %6916
    %6918 = vadd.xlane.f32.xlu0 %v6417
    %v6919 = vpop.xlane.xlu0 %6918
    %6920 = vadd.xlane.f32.xlu0 %v6418
    %v6921 = vpop.xlane.xlu0 %6920
    %6922 = vadd.xlane.f32.xlu0 %v6419
    %v6923 = vpop.xlane.xlu0 %6922
    %6924 = vadd.xlane.f32.xlu0 %v6420
    %v6925 = vpop.xlane.xlu0 %6924
    %6926 = vadd.xlane.f32.xlu0 %v6421
    %v6927 = vpop.xlane.xlu0 %6926
    %6928 = vadd.xlane.f32.xlu0 %v6422
    %v6929 = vpop.xlane.xlu0 %6928
    %6930 = vadd.xlane.f32.xlu0 %v6423
    %v6931 = vpop.xlane.xlu0 %6930
    %6932 = vadd.xlane.f32.xlu0 %v6424
    %v6933 = vpop.xlane.xlu0 %6932
    %6934 = vadd.xlane.f32.xlu0 %v6425
    %v6935 = vpop.xlane.xlu0 %6934
    %6936 = vadd.xlane.f32.xlu0 %v6426
    %v6937 = vpop.xlane.xlu0 %6936
    %6938 = vadd.xlane.f32.xlu0 %v6427
    %v6939 = vpop.xlane.xlu0 %6938
    %v6940 = vmul.f32 %v6429, 0.00390625
    %v6941 = vmul.f32 %v6431, 0.00390625
    %v6942 = vmul.f32 %v6433, 0.00390625
    %v6943 = vmul.f32 %v6435, 0.00390625
    %v6944 = vmul.f32 %v6437, 0.00390625
    %v6945 = vmul.f32 %v6439, 0.00390625
    %v6946 = vmul.f32 %v6441, 0.00390625
    %v6947 = vmul.f32 %v6443, 0.00390625
    %v6948 = vmul.f32 %v6445, 0.00390625
    %v6949 = vmul.f32 %v6447, 0.00390625
    %v6950 = vmul.f32 %v6449, 0.00390625
    %v6951 = vmul.f32 %v6451, 0.00390625
    %v6952 = vmul.f32 %v6453, 0.00390625
    %v6953 = vmul.f32 %v6455, 0.00390625
    %v6954 = vmul.f32 %v6457, 0.00390625
    %v6955 = vmul.f32 %v6459, 0.00390625
    %v6956 = vmul.f32 %v6461, 0.00390625
    %v6957 = vmul.f32 %v6463, 0.00390625
    %v6958 = vmul.f32 %v6465, 0.00390625
    %v6959 = vmul.f32 %v6467, 0.00390625
    %v6960 = vmul.f32 %v6469, 0.00390625
    %v6961 = vmul.f32 %v6471, 0.00390625
    %v6962 = vmul.f32 %v6473, 0.00390625
    %v6963 = vmul.f32 %v6475, 0.00390625
    %v6964 = vmul.f32 %v6477, 0.00390625
    %v6965 = vmul.f32 %v6479, 0.00390625
    %v6966 = vmul.f32 %v6481, 0.00390625
    %v6967 = vmul.f32 %v6483, 0.00390625
    %v6968 = vmul.f32 %v6485, 0.00390625
    %v6969 = vmul.f32 %v6487, 0.00390625
    %v6970 = vmul.f32 %v6489, 0.00390625
    %v6971 = vmul.f32 %v6491, 0.00390625
    %v6972 = vmul.f32 %v6493, 0.00390625
    %v6973 = vmul.f32 %v6495, 0.00390625
    %v6974 = vmul.f32 %v6497, 0.00390625
    %v6975 = vmul.f32 %v6499, 0.00390625
    %v6976 = vmul.f32 %v6501, 0.00390625
    %v6977 = vmul.f32 %v6503, 0.00390625
    %v6978 = vmul.f32 %v6505, 0.00390625
    %v6979 = vmul.f32 %v6507, 0.00390625
    %v6980 = vmul.f32 %v6509, 0.00390625
    %v6981 = vmul.f32 %v6511, 0.00390625
    %v6982 = vmul.f32 %v6513, 0.00390625
    %v6983 = vmul.f32 %v6515, 0.00390625
    %v6984 = vmul.f32 %v6517, 0.00390625
    %v6985 = vmul.f32 %v6519, 0.00390625
    %v6986 = vmul.f32 %v6521, 0.00390625
    %v6987 = vmul.f32 %v6523, 0.00390625
    %v6988 = vmul.f32 %v6525, 0.00390625
    %v6989 = vmul.f32 %v6527, 0.00390625
    %v6990 = vmul.f32 %v6529, 0.00390625
    %v6991 = vmul.f32 %v6531, 0.00390625
    %v6992 = vmul.f32 %v6533, 0.00390625
    %v6993 = vmul.f32 %v6535, 0.00390625
    %v6994 = vmul.f32 %v6537, 0.00390625
    %v6995 = vmul.f32 %v6539, 0.00390625
    %v6996 = vmul.f32 %v6541, 0.00390625
    %v6997 = vmul.f32 %v6543, 0.00390625
    %v6998 = vmul.f32 %v6545, 0.00390625
    %v6999 = vmul.f32 %v6547, 0.00390625
    %v7000 = vmul.f32 %v6549, 0.00390625
    %v7001 = vmul.f32 %v6551, 0.00390625
    %v7002 = vmul.f32 %v6553, 0.00390625
    %v7003 = vmul.f32 %v6555, 0.00390625
    %v7004 = vmul.f32 %v6557, 0.00390625
    %v7005 = vmul.f32 %v6559, 0.00390625
    %v7006 = vmul.f32 %v6561, 0.00390625
    %v7007 = vmul.f32 %v6563, 0.00390625
    %v7008 = vmul.f32 %v6565, 0.00390625
    %v7009 = vmul.f32 %v6567, 0.00390625
    %v7010 = vmul.f32 %v6569, 0.00390625
    %v7011 = vmul.f32 %v6571, 0.00390625
    %v7012 = vmul.f32 %v6573, 0.00390625
    %v7013 = vmul.f32 %v6575, 0.00390625
    %v7014 = vmul.f32 %v6577, 0.00390625
    %v7015 = vmul.f32 %v6579, 0.00390625
    %v7016 = vmul.f32 %v6581, 0.00390625
    %v7017 = vmul.f32 %v6583, 0.00390625
    %v7018 = vmul.f32 %v6585, 0.00390625
    %v7019 = vmul.f32 %v6587, 0.00390625
    %v7020 = vmul.f32 %v6589, 0.00390625
    %v7021 = vmul.f32 %v6591, 0.00390625
    %v7022 = vmul.f32 %v6593, 0.00390625
    %v7023 = vmul.f32 %v6595, 0.00390625
    %v7024 = vmul.f32 %v6597, 0.00390625
    %v7025 = vmul.f32 %v6599, 0.00390625
    %v7026 = vmul.f32 %v6601, 0.00390625
    %v7027 = vmul.f32 %v6603, 0.00390625
    %v7028 = vmul.f32 %v6605, 0.00390625
    %v7029 = vmul.f32 %v6607, 0.00390625
    %v7030 = vmul.f32 %v6609, 0.00390625
    %v7031 = vmul.f32 %v6611, 0.00390625
    %v7032 = vmul.f32 %v6613, 0.00390625
    %v7033 = vmul.f32 %v6615, 0.00390625
    %v7034 = vmul.f32 %v6617, 0.00390625
    %v7035 = vmul.f32 %v6619, 0.00390625
    %v7036 = vmul.f32 %v6621, 0.00390625
    %v7037 = vmul.f32 %v6623, 0.00390625
    %v7038 = vmul.f32 %v6625, 0.00390625
    %v7039 = vmul.f32 %v6627, 0.00390625
    %v7040 = vmul.f32 %v6629, 0.00390625
    %v7041 = vmul.f32 %v6631, 0.00390625
    %v7042 = vmul.f32 %v6633, 0.00390625
    %v7043 = vmul.f32 %v6635, 0.00390625
    %v7044 = vmul.f32 %v6637, 0.00390625
    %v7045 = vmul.f32 %v6639, 0.00390625
    %v7046 = vmul.f32 %v6641, 0.00390625
    %v7047 = vmul.f32 %v6643, 0.00390625
    %v7048 = vmul.f32 %v6645, 0.00390625
    %v7049 = vmul.f32 %v6647, 0.00390625
    %v7050 = vmul.f32 %v6649, 0.00390625
    %v7051 = vmul.f32 %v6651, 0.00390625
    %v7052 = vmul.f32 %v6653, 0.00390625
    %v7053 = vmul.f32 %v6655, 0.00390625
    %v7054 = vmul.f32 %v6657, 0.00390625
    %v7055 = vmul.f32 %v6659, 0.00390625
    %v7056 = vmul.f32 %v6661, 0.00390625
    %v7057 = vmul.f32 %v6663, 0.00390625
    %v7058 = vmul.f32 %v6665, 0.00390625
    %v7059 = vmul.f32 %v6667, 0.00390625
    %v7060 = vmul.f32 %v6669, 0.00390625
    %v7061 = vmul.f32 %v6671, 0.00390625
    %v7062 = vmul.f32 %v6673, 0.00390625
    %v7063 = vmul.f32 %v6675, 0.00390625
    %v7064 = vmul.f32 %v6677, 0.00390625
    %v7065 = vmul.f32 %v6679, 0.00390625
    %v7066 = vmul.f32 %v6681, 0.00390625
    %v7067 = vmul.f32 %v6683, 0.00390625
    %v7068 = vmul.f32 %v6685, 0.00390625
    %v7069 = vmul.f32 %v6687, 0.00390625
    %v7070 = vmul.f32 %v6689, 0.00390625
    %v7071 = vmul.f32 %v6691, 0.00390625
    %v7072 = vmul.f32 %v6693, 0.00390625
    %v7073 = vmul.f32 %v6695, 0.00390625
    %v7074 = vmul.f32 %v6697, 0.00390625
    %v7075 = vmul.f32 %v6699, 0.00390625
    %v7076 = vmul.f32 %v6701, 0.00390625
    %v7077 = vmul.f32 %v6703, 0.00390625
    %v7078 = vmul.f32 %v6705, 0.00390625
    %v7079 = vmul.f32 %v6707, 0.00390625
    %v7080 = vmul.f32 %v6709, 0.00390625
    %v7081 = vmul.f32 %v6711, 0.00390625
    %v7082 = vmul.f32 %v6713, 0.00390625
    %v7083 = vmul.f32 %v6715, 0.00390625
    %v7084 = vmul.f32 %v6717, 0.00390625
    %v7085 = vmul.f32 %v6719, 0.00390625
    %v7086 = vmul.f32 %v6721, 0.00390625
    %v7087 = vmul.f32 %v6723, 0.00390625
    %v7088 = vmul.f32 %v6725, 0.00390625
    %v7089 = vmul.f32 %v6727, 0.00390625
    %v7090 = vmul.f32 %v6729, 0.00390625
    %v7091 = vmul.f32 %v6731, 0.00390625
    %v7092 = vmul.f32 %v6733, 0.00390625
    %v7093 = vmul.f32 %v6735, 0.00390625
    %v7094 = vmul.f32 %v6737, 0.00390625
    %v7095 = vmul.f32 %v6739, 0.00390625
    %v7096 = vmul.f32 %v6741, 0.00390625
    %v7097 = vmul.f32 %v6743, 0.00390625
    %v7098 = vmul.f32 %v6745, 0.00390625
    %v7099 = vmul.f32 %v6747, 0.00390625
    %v7100 = vmul.f32 %v6749, 0.00390625
    %v7101 = vmul.f32 %v6751, 0.00390625
    %v7102 = vmul.f32 %v6753, 0.00390625
    %v7103 = vmul.f32 %v6755, 0.00390625
    %v7104 = vmul.f32 %v6757, 0.00390625
    %v7105 = vmul.f32 %v6759, 0.00390625
    %v7106 = vmul.f32 %v6761, 0.00390625
    %v7107 = vmul.f32 %v6763, 0.00390625
    %v7108 = vmul.f32 %v6765, 0.00390625
    %v7109 = vmul.f32 %v6767, 0.00390625
    %v7110 = vmul.f32 %v6769, 0.00390625
    %v7111 = vmul.f32 %v6771, 0.00390625
    %v7112 = vmul.f32 %v6773, 0.00390625
    %v7113 = vmul.f32 %v6775, 0.00390625
    %v7114 = vmul.f32 %v6777, 0.00390625
    %v7115 = vmul.f32 %v6779, 0.00390625
    %v7116 = vmul.f32 %v6781, 0.00390625
    %v7117 = vmul.f32 %v6783, 0.00390625
    %v7118 = vmul.f32 %v6785, 0.00390625
    %v7119 = vmul.f32 %v6787, 0.00390625
    %v7120 = vmul.f32 %v6789, 0.00390625
    %v7121 = vmul.f32 %v6791, 0.00390625
    %v7122 = vmul.f32 %v6793, 0.00390625
    %v7123 = vmul.f32 %v6795, 0.00390625
    %v7124 = vmul.f32 %v6797, 0.00390625
    %v7125 = vmul.f32 %v6799, 0.00390625
    %v7126 = vmul.f32 %v6801, 0.00390625
    %v7127 = vmul.f32 %v6803, 0.00390625
    %v7128 = vmul.f32 %v6805, 0.00390625
    %v7129 = vmul.f32 %v6807, 0.00390625
    %v7130 = vmul.f32 %v6809, 0.00390625
    %v7131 = vmul.f32 %v6811, 0.00390625
    %v7132 = vmul.f32 %v6813, 0.00390625
    %v7133 = vmul.f32 %v6815, 0.00390625
    %v7134 = vmul.f32 %v6817, 0.00390625
    %v7135 = vmul.f32 %v6819, 0.00390625
    %v7136 = vmul.f32 %v6821, 0.00390625
    %v7137 = vmul.f32 %v6823, 0.00390625
    %v7138 = vmul.f32 %v6825, 0.00390625
    %v7139 = vmul.f32 %v6827, 0.00390625
    %v7140 = vmul.f32 %v6829, 0.00390625
    %v7141 = vmul.f32 %v6831, 0.00390625
    %v7142 = vmul.f32 %v6833, 0.00390625
    %v7143 = vmul.f32 %v6835, 0.00390625
    %v7144 = vmul.f32 %v6837, 0.00390625
    %v7145 = vmul.f32 %v6839, 0.00390625
    %v7146 = vmul.f32 %v6841, 0.00390625
    %v7147 = vmul.f32 %v6843, 0.00390625
    %v7148 = vmul.f32 %v6845, 0.00390625
    %v7149 = vmul.f32 %v6847, 0.00390625
    %v7150 = vmul.f32 %v6849, 0.00390625
    %v7151 = vmul.f32 %v6851, 0.00390625
    %v7152 = vmul.f32 %v6853, 0.00390625
    %v7153 = vmul.f32 %v6855, 0.00390625
    %v7154 = vmul.f32 %v6857, 0.00390625
    %v7155 = vmul.f32 %v6859, 0.00390625
    %v7156 = vmul.f32 %v6861, 0.00390625
    %v7157 = vmul.f32 %v6863, 0.00390625
    %v7158 = vmul.f32 %v6865, 0.00390625
    %v7159 = vmul.f32 %v6867, 0.00390625
    %v7160 = vmul.f32 %v6869, 0.00390625
    %v7161 = vmul.f32 %v6871, 0.00390625
    %v7162 = vmul.f32 %v6873, 0.00390625
    %v7163 = vmul.f32 %v6875, 0.00390625
    %v7164 = vmul.f32 %v6877, 0.00390625
    %v7165 = vmul.f32 %v6879, 0.00390625
    %v7166 = vmul.f32 %v6881, 0.00390625
    %v7167 = vmul.f32 %v6883, 0.00390625
    %v7168 = vmul.f32 %v6885, 0.00390625
    %v7169 = vmul.f32 %v6887, 0.00390625
    %v7170 = vmul.f32 %v6889, 0.00390625
    %v7171 = vmul.f32 %v6891, 0.00390625
    %v7172 = vmul.f32 %v6893, 0.00390625
    %v7173 = vmul.f32 %v6895, 0.00390625
    %v7174 = vmul.f32 %v6897, 0.00390625
    %v7175 = vmul.f32 %v6899, 0.00390625
    %v7176 = vmul.f32 %v6901, 0.00390625
    %v7177 = vmul.f32 %v6903, 0.00390625
    %v7178 = vmul.f32 %v6905, 0.00390625
    %v7179 = vmul.f32 %v6907, 0.00390625
    %v7180 = vmul.f32 %v6909, 0.00390625
    %v7181 = vmul.f32 %v6911, 0.00390625
    %v7182 = vmul.f32 %v6913, 0.00390625
    %v7183 = vmul.f32 %v6915, 0.00390625
    %v7184 = vmul.f32 %v6917, 0.00390625
    %v7185 = vmul.f32 %v6919, 0.00390625
    %v7186 = vmul.f32 %v6921, 0.00390625
    %v7187 = vmul.f32 %v6923, 0.00390625
    %v7188 = vmul.f32 %v6925, 0.00390625
    %v7189 = vmul.f32 %v6927, 0.00390625
    %v7190 = vmul.f32 %v6929, 0.00390625
    %v7191 = vmul.f32 %v6931, 0.00390625
    %v7192 = vmul.f32 %v6933, 0.00390625
    %v7193 = vmul.f32 %v6935, 0.00390625
    %v7194 = vmul.f32 %v6937, 0.00390625
    %v7195 = vmul.f32 %v6939, 0.00390625
    %v7452 = vlaneseq
    %v7453 = vand.u32 %v7452, 127
    %v7454 = vlaneseq
    %v7455 = vshrl.u32 %v7454, 7
    %v7456 = vsub.s32 %v7453, %v7455
    %v7457 = vrot.slane %v6940, %v7456
    %v7458 = vadd.s32 %v7453, 4294967288
    %v7459 = vlaneseq
    %v7460 = vshrl.u32 %v7459, 7
    %v7461 = vsub.s32 %v7458, %v7460
    %v7462 = vrot.slane %v6941, %v7461
    %vm7463 = vcmask 130112
    %v7464 = vsel %vm7463, %v7462, %v7457
    %v7465 = vadd.s32 %v7453, 4294967280
    %v7466 = vlaneseq
    %v7467 = vshrl.u32 %v7466, 7
    %v7468 = vsub.s32 %v7465, %v7467
    %v7469 = vrot.slane %v6942, %v7468
    %vm7470 = vcmask 195712
    %v7471 = vsel %vm7470, %v7469, %v7464
    %v7472 = vadd.s32 %v7453, 4294967272
    %v7473 = vlaneseq
    %v7474 = vshrl.u32 %v7473, 7
    %v7475 = vsub.s32 %v7472, %v7474
    %v7476 = vrot.slane %v6943, %v7475
    %vm7477 = vcmask 261312
    %v7478 = vsel %vm7477, %v7476, %v7471
    %v7479 = vadd.s32 %v7453, 4294967264
    %v7480 = vlaneseq
    %v7481 = vshrl.u32 %v7480, 7
    %v7482 = vsub.s32 %v7479, %v7481
    %v7483 = vrot.slane %v6944, %v7482
    %vm7484 = vcmask 326912
    %v7485 = vsel %vm7484, %v7483, %v7478
    %v7486 = vadd.s32 %v7453, 4294967256
    %v7487 = vlaneseq
    %v7488 = vshrl.u32 %v7487, 7
    %v7489 = vsub.s32 %v7486, %v7488
    %v7490 = vrot.slane %v6945, %v7489
    %vm7491 = vcmask 392512
    %v7492 = vsel %vm7491, %v7490, %v7485
    %v7493 = vadd.s32 %v7453, 4294967248
    %v7494 = vlaneseq
    %v7495 = vshrl.u32 %v7494, 7
    %v7496 = vsub.s32 %v7493, %v7495
    %v7497 = vrot.slane %v6946, %v7496
    %vm7498 = vcmask 458112
    %v7499 = vsel %vm7498, %v7497, %v7492
    %v7500 = vadd.s32 %v7453, 4294967240
    %v7501 = vlaneseq
    %v7502 = vshrl.u32 %v7501, 7
    %v7503 = vsub.s32 %v7500, %v7502
    %v7504 = vrot.slane %v6947, %v7503
    %vm7505 = vcmask 523712
    %v7506 = vsel %vm7505, %v7504, %v7499
    %v7507 = vadd.s32 %v7453, 4294967232
    %v7508 = vlaneseq
    %v7509 = vshrl.u32 %v7508, 7
    %v7510 = vsub.s32 %v7507, %v7509
    %v7511 = vrot.slane %v6948, %v7510
    %vm7512 = vcmask 589312
    %v7513 = vsel %vm7512, %v7511, %v7506
    %v7514 = vadd.s32 %v7453, 4294967224
    %v7515 = vlaneseq
    %v7516 = vshrl.u32 %v7515, 7
    %v7517 = vsub.s32 %v7514, %v7516
    %v7518 = vrot.slane %v6949, %v7517
    %vm7519 = vcmask 654912
    %v7520 = vsel %vm7519, %v7518, %v7513
    %v7521 = vadd.s32 %v7453, 4294967216
    %v7522 = vlaneseq
    %v7523 = vshrl.u32 %v7522, 7
    %v7524 = vsub.s32 %v7521, %v7523
    %v7525 = vrot.slane %v6950, %v7524
    %vm7526 = vcmask 720512
    %v7527 = vsel %vm7526, %v7525, %v7520
    %v7528 = vadd.s32 %v7453, 4294967208
    %v7529 = vlaneseq
    %v7530 = vshrl.u32 %v7529, 7
    %v7531 = vsub.s32 %v7528, %v7530
    %v7532 = vrot.slane %v6951, %v7531
    %vm7533 = vcmask 786112
    %v7534 = vsel %vm7533, %v7532, %v7527
    %v7535 = vadd.s32 %v7453, 4294967200
    %v7536 = vlaneseq
    %v7537 = vshrl.u32 %v7536, 7
    %v7538 = vsub.s32 %v7535, %v7537
    %v7539 = vrot.slane %v6952, %v7538
    %vm7540 = vcmask 851712
    %v7541 = vsel %vm7540, %v7539, %v7534
    %v7542 = vadd.s32 %v7453, 4294967192
    %v7543 = vlaneseq
    %v7544 = vshrl.u32 %v7543, 7
    %v7545 = vsub.s32 %v7542, %v7544
    %v7546 = vrot.slane %v6953, %v7545
    %vm7547 = vcmask 917312
    %v7548 = vsel %vm7547, %v7546, %v7541
    %v7549 = vadd.s32 %v7453, 4294967184
    %v7550 = vlaneseq
    %v7551 = vshrl.u32 %v7550, 7
    %v7552 = vsub.s32 %v7549, %v7551
    %v7553 = vrot.slane %v6954, %v7552
    %vm7554 = vcmask 982912
    %v7555 = vsel %vm7554, %v7553, %v7548
    %v7556 = vadd.s32 %v7453, 4294967176
    %v7557 = vlaneseq
    %v7558 = vshrl.u32 %v7557, 7
    %v7559 = vsub.s32 %v7556, %v7558
    %v7560 = vrot.slane %v6955, %v7559
    %vm7561 = vcmask 1048512
    %v7562 = vsel %vm7561, %v7560, %v7555
    %v7563 = vlaneseq
    %v7564 = vshrl.u32 %v7563, 7
    %v7565 = vsub.s32 %v7453, %v7564
    %v7566 = vrot.slane %v6956, %v7565
    %v7567 = vlaneseq
    %v7568 = vshrl.u32 %v7567, 7
    %v7569 = vsub.s32 %v7458, %v7568
    %v7570 = vrot.slane %v6957, %v7569
    %v7571 = vsel %vm7463, %v7570, %v7566
    %v7572 = vlaneseq
    %v7573 = vshrl.u32 %v7572, 7
    %v7574 = vsub.s32 %v7465, %v7573
    %v7575 = vrot.slane %v6958, %v7574
    %v7576 = vsel %vm7470, %v7575, %v7571
    %v7577 = vlaneseq
    %v7578 = vshrl.u32 %v7577, 7
    %v7579 = vsub.s32 %v7472, %v7578
    %v7580 = vrot.slane %v6959, %v7579
    %v7581 = vsel %vm7477, %v7580, %v7576
    %v7582 = vlaneseq
    %v7583 = vshrl.u32 %v7582, 7
    %v7584 = vsub.s32 %v7479, %v7583
    %v7585 = vrot.slane %v6960, %v7584
    %v7586 = vsel %vm7484, %v7585, %v7581
    %v7587 = vlaneseq
    %v7588 = vshrl.u32 %v7587, 7
    %v7589 = vsub.s32 %v7486, %v7588
    %v7590 = vrot.slane %v6961, %v7589
    %v7591 = vsel %vm7491, %v7590, %v7586
    %v7592 = vlaneseq
    %v7593 = vshrl.u32 %v7592, 7
    %v7594 = vsub.s32 %v7493, %v7593
    %v7595 = vrot.slane %v6962, %v7594
    %v7596 = vsel %vm7498, %v7595, %v7591
    %v7597 = vlaneseq
    %v7598 = vshrl.u32 %v7597, 7
    %v7599 = vsub.s32 %v7500, %v7598
    %v7600 = vrot.slane %v6963, %v7599
    %v7601 = vsel %vm7505, %v7600, %v7596
    %v7602 = vlaneseq
    %v7603 = vshrl.u32 %v7602, 7
    %v7604 = vsub.s32 %v7507, %v7603
    %v7605 = vrot.slane %v6964, %v7604
    %v7606 = vsel %vm7512, %v7605, %v7601
    %v7607 = vlaneseq
    %v7608 = vshrl.u32 %v7607, 7
    %v7609 = vsub.s32 %v7514, %v7608
    %v7610 = vrot.slane %v6965, %v7609
    %v7611 = vsel %vm7519, %v7610, %v7606
    %v7612 = vlaneseq
    %v7613 = vshrl.u32 %v7612, 7
    %v7614 = vsub.s32 %v7521, %v7613
    %v7615 = vrot.slane %v6966, %v7614
    %v7616 = vsel %vm7526, %v7615, %v7611
    %v7617 = vlaneseq
    %v7618 = vshrl.u32 %v7617, 7
    %v7619 = vsub.s32 %v7528, %v7618
    %v7620 = vrot.slane %v6967, %v7619
    %v7621 = vsel %vm7533, %v7620, %v7616
    %v7622 = vlaneseq
    %v7623 = vshrl.u32 %v7622, 7
    %v7624 = vsub.s32 %v7535, %v7623
    %v7625 = vrot.slane %v6968, %v7624
    %v7626 = vsel %vm7540, %v7625, %v7621
    %v7627 = vlaneseq
    %v7628 = vshrl.u32 %v7627, 7
    %v7629 = vsub.s32 %v7542, %v7628
    %v7630 = vrot.slane %v6969, %v7629
    %v7631 = vsel %vm7547, %v7630, %v7626
    %v7632 = vlaneseq
    %v7633 = vshrl.u32 %v7632, 7
    %v7634 = vsub.s32 %v7549, %v7633
    %v7635 = vrot.slane %v6970, %v7634
    %v7636 = vsel %vm7554, %v7635, %v7631
    %v7637 = vlaneseq
    %v7638 = vshrl.u32 %v7637, 7
    %v7639 = vsub.s32 %v7556, %v7638
    %v7640 = vrot.slane %v6971, %v7639
    %v7641 = vsel %vm7561, %v7640, %v7636
    %v7642 = vlaneseq
    %v7643 = vshrl.u32 %v7642, 7
    %v7644 = vsub.s32 %v7453, %v7643
    %v7645 = vrot.slane %v6972, %v7644
    %v7646 = vlaneseq
    %v7647 = vshrl.u32 %v7646, 7
    %v7648 = vsub.s32 %v7458, %v7647
    %v7649 = vrot.slane %v6973, %v7648
    %v7650 = vsel %vm7463, %v7649, %v7645
    %v7651 = vlaneseq
    %v7652 = vshrl.u32 %v7651, 7
    %v7653 = vsub.s32 %v7465, %v7652
    %v7654 = vrot.slane %v6974, %v7653
    %v7655 = vsel %vm7470, %v7654, %v7650
    %v7656 = vlaneseq
    %v7657 = vshrl.u32 %v7656, 7
    %v7658 = vsub.s32 %v7472, %v7657
    %v7659 = vrot.slane %v6975, %v7658
    %v7660 = vsel %vm7477, %v7659, %v7655
    %v7661 = vlaneseq
    %v7662 = vshrl.u32 %v7661, 7
    %v7663 = vsub.s32 %v7479, %v7662
    %v7664 = vrot.slane %v6976, %v7663
    %v7665 = vsel %vm7484, %v7664, %v7660
    %v7666 = vlaneseq
    %v7667 = vshrl.u32 %v7666, 7
    %v7668 = vsub.s32 %v7486, %v7667
    %v7669 = vrot.slane %v6977, %v7668
    %v7670 = vsel %vm7491, %v7669, %v7665
    %v7671 = vlaneseq
    %v7672 = vshrl.u32 %v7671, 7
    %v7673 = vsub.s32 %v7493, %v7672
    %v7674 = vrot.slane %v6978, %v7673
    %v7675 = vsel %vm7498, %v7674, %v7670
    %v7676 = vlaneseq
    %v7677 = vshrl.u32 %v7676, 7
    %v7678 = vsub.s32 %v7500, %v7677
    %v7679 = vrot.slane %v6979, %v7678
    %v7680 = vsel %vm7505, %v7679, %v7675
    %v7681 = vlaneseq
    %v7682 = vshrl.u32 %v7681, 7
    %v7683 = vsub.s32 %v7507, %v7682
    %v7684 = vrot.slane %v6980, %v7683
    %v7685 = vsel %vm7512, %v7684, %v7680
    %v7686 = vlaneseq
    %v7687 = vshrl.u32 %v7686, 7
    %v7688 = vsub.s32 %v7514, %v7687
    %v7689 = vrot.slane %v6981, %v7688
    %v7690 = vsel %vm7519, %v7689, %v7685
    %v7691 = vlaneseq
    %v7692 = vshrl.u32 %v7691, 7
    %v7693 = vsub.s32 %v7521, %v7692
    %v7694 = vrot.slane %v6982, %v7693
    %v7695 = vsel %vm7526, %v7694, %v7690
    %v7696 = vlaneseq
    %v7697 = vshrl.u32 %v7696, 7
    %v7698 = vsub.s32 %v7528, %v7697
    %v7699 = vrot.slane %v6983, %v7698
    %v7700 = vsel %vm7533, %v7699, %v7695
    %v7701 = vlaneseq
    %v7702 = vshrl.u32 %v7701, 7
    %v7703 = vsub.s32 %v7535, %v7702
    %v7704 = vrot.slane %v6984, %v7703
    %v7705 = vsel %vm7540, %v7704, %v7700
    %v7706 = vlaneseq
    %v7707 = vshrl.u32 %v7706, 7
    %v7708 = vsub.s32 %v7542, %v7707
    %v7709 = vrot.slane %v6985, %v7708
    %v7710 = vsel %vm7547, %v7709, %v7705
    %v7711 = vlaneseq
    %v7712 = vshrl.u32 %v7711, 7
    %v7713 = vsub.s32 %v7549, %v7712
    %v7714 = vrot.slane %v6986, %v7713
    %v7715 = vsel %vm7554, %v7714, %v7710
    %v7716 = vlaneseq
    %v7717 = vshrl.u32 %v7716, 7
    %v7718 = vsub.s32 %v7556, %v7717
    %v7719 = vrot.slane %v6987, %v7718
    %v7720 = vsel %vm7561, %v7719, %v7715
    %v7721 = vlaneseq
    %v7722 = vshrl.u32 %v7721, 7
    %v7723 = vsub.s32 %v7453, %v7722
    %v7724 = vrot.slane %v6988, %v7723
    %v7725 = vlaneseq
    %v7726 = vshrl.u32 %v7725, 7
    %v7727 = vsub.s32 %v7458, %v7726
    %v7728 = vrot.slane %v6989, %v7727
    %v7729 = vsel %vm7463, %v7728, %v7724
    %v7730 = vlaneseq
    %v7731 = vshrl.u32 %v7730, 7
    %v7732 = vsub.s32 %v7465, %v7731
    %v7733 = vrot.slane %v6990, %v7732
    %v7734 = vsel %vm7470, %v7733, %v7729
    %v7735 = vlaneseq
    %v7736 = vshrl.u32 %v7735, 7
    %v7737 = vsub.s32 %v7472, %v7736
    %v7738 = vrot.slane %v6991, %v7737
    %v7739 = vsel %vm7477, %v7738, %v7734
    %v7740 = vlaneseq
    %v7741 = vshrl.u32 %v7740, 7
    %v7742 = vsub.s32 %v7479, %v7741
    %v7743 = vrot.slane %v6992, %v7742
    %v7744 = vsel %vm7484, %v7743, %v7739
    %v7745 = vlaneseq
    %v7746 = vshrl.u32 %v7745, 7
    %v7747 = vsub.s32 %v7486, %v7746
    %v7748 = vrot.slane %v6993, %v7747
    %v7749 = vsel %vm7491, %v7748, %v7744
    %v7750 = vlaneseq
    %v7751 = vshrl.u32 %v7750, 7
    %v7752 = vsub.s32 %v7493, %v7751
    %v7753 = vrot.slane %v6994, %v7752
    %v7754 = vsel %vm7498, %v7753, %v7749
    %v7755 = vlaneseq
    %v7756 = vshrl.u32 %v7755, 7
    %v7757 = vsub.s32 %v7500, %v7756
    %v7758 = vrot.slane %v6995, %v7757
    %v7759 = vsel %vm7505, %v7758, %v7754
    %v7760 = vlaneseq
    %v7761 = vshrl.u32 %v7760, 7
    %v7762 = vsub.s32 %v7507, %v7761
    %v7763 = vrot.slane %v6996, %v7762
    %v7764 = vsel %vm7512, %v7763, %v7759
    %v7765 = vlaneseq
    %v7766 = vshrl.u32 %v7765, 7
    %v7767 = vsub.s32 %v7514, %v7766
    %v7768 = vrot.slane %v6997, %v7767
    %v7769 = vsel %vm7519, %v7768, %v7764
    %v7770 = vlaneseq
    %v7771 = vshrl.u32 %v7770, 7
    %v7772 = vsub.s32 %v7521, %v7771
    %v7773 = vrot.slane %v6998, %v7772
    %v7774 = vsel %vm7526, %v7773, %v7769
    %v7775 = vlaneseq
    %v7776 = vshrl.u32 %v7775, 7
    %v7777 = vsub.s32 %v7528, %v7776
    %v7778 = vrot.slane %v6999, %v7777
    %v7779 = vsel %vm7533, %v7778, %v7774
    %v7780 = vlaneseq
    %v7781 = vshrl.u32 %v7780, 7
    %v7782 = vsub.s32 %v7535, %v7781
    %v7783 = vrot.slane %v7000, %v7782
    %v7784 = vsel %vm7540, %v7783, %v7779
    %v7785 = vlaneseq
    %v7786 = vshrl.u32 %v7785, 7
    %v7787 = vsub.s32 %v7542, %v7786
    %v7788 = vrot.slane %v7001, %v7787
    %v7789 = vsel %vm7547, %v7788, %v7784
    %v7790 = vlaneseq
    %v7791 = vshrl.u32 %v7790, 7
    %v7792 = vsub.s32 %v7549, %v7791
    %v7793 = vrot.slane %v7002, %v7792
    %v7794 = vsel %vm7554, %v7793, %v7789
    %v7795 = vlaneseq
    %v7796 = vshrl.u32 %v7795, 7
    %v7797 = vsub.s32 %v7556, %v7796
    %v7798 = vrot.slane %v7003, %v7797
    %v7799 = vsel %vm7561, %v7798, %v7794
    %v7800 = vlaneseq
    %v7801 = vshrl.u32 %v7800, 7
    %v7802 = vsub.s32 %v7453, %v7801
    %v7803 = vrot.slane %v7004, %v7802
    %v7804 = vlaneseq
    %v7805 = vshrl.u32 %v7804, 7
    %v7806 = vsub.s32 %v7458, %v7805
    %v7807 = vrot.slane %v7005, %v7806
    %v7808 = vsel %vm7463, %v7807, %v7803
    %v7809 = vlaneseq
    %v7810 = vshrl.u32 %v7809, 7
    %v7811 = vsub.s32 %v7465, %v7810
    %v7812 = vrot.slane %v7006, %v7811
    %v7813 = vsel %vm7470, %v7812, %v7808
    %v7814 = vlaneseq
    %v7815 = vshrl.u32 %v7814, 7
    %v7816 = vsub.s32 %v7472, %v7815
    %v7817 = vrot.slane %v7007, %v7816
    %v7818 = vsel %vm7477, %v7817, %v7813
    %v7819 = vlaneseq
    %v7820 = vshrl.u32 %v7819, 7
    %v7821 = vsub.s32 %v7479, %v7820
    %v7822 = vrot.slane %v7008, %v7821
    %v7823 = vsel %vm7484, %v7822, %v7818
    %v7824 = vlaneseq
    %v7825 = vshrl.u32 %v7824, 7
    %v7826 = vsub.s32 %v7486, %v7825
    %v7827 = vrot.slane %v7009, %v7826
    %v7828 = vsel %vm7491, %v7827, %v7823
    %v7829 = vlaneseq
    %v7830 = vshrl.u32 %v7829, 7
    %v7831 = vsub.s32 %v7493, %v7830
    %v7832 = vrot.slane %v7010, %v7831
    %v7833 = vsel %vm7498, %v7832, %v7828
    %v7834 = vlaneseq
    %v7835 = vshrl.u32 %v7834, 7
    %v7836 = vsub.s32 %v7500, %v7835
    %v7837 = vrot.slane %v7011, %v7836
    %v7838 = vsel %vm7505, %v7837, %v7833
    %v7839 = vlaneseq
    %v7840 = vshrl.u32 %v7839, 7
    %v7841 = vsub.s32 %v7507, %v7840
    %v7842 = vrot.slane %v7012, %v7841
    %v7843 = vsel %vm7512, %v7842, %v7838
    %v7844 = vlaneseq
    %v7845 = vshrl.u32 %v7844, 7
    %v7846 = vsub.s32 %v7514, %v7845
    %v7847 = vrot.slane %v7013, %v7846
    %v7848 = vsel %vm7519, %v7847, %v7843
    %v7849 = vlaneseq
    %v7850 = vshrl.u32 %v7849, 7
    %v7851 = vsub.s32 %v7521, %v7850
    %v7852 = vrot.slane %v7014, %v7851
    %v7853 = vsel %vm7526, %v7852, %v7848
    %v7854 = vlaneseq
    %v7855 = vshrl.u32 %v7854, 7
    %v7856 = vsub.s32 %v7528, %v7855
    %v7857 = vrot.slane %v7015, %v7856
    %v7858 = vsel %vm7533, %v7857, %v7853
    %v7859 = vlaneseq
    %v7860 = vshrl.u32 %v7859, 7
    %v7861 = vsub.s32 %v7535, %v7860
    %v7862 = vrot.slane %v7016, %v7861
    %v7863 = vsel %vm7540, %v7862, %v7858
    %v7864 = vlaneseq
    %v7865 = vshrl.u32 %v7864, 7
    %v7866 = vsub.s32 %v7542, %v7865
    %v7867 = vrot.slane %v7017, %v7866
    %v7868 = vsel %vm7547, %v7867, %v7863
    %v7869 = vlaneseq
    %v7870 = vshrl.u32 %v7869, 7
    %v7871 = vsub.s32 %v7549, %v7870
    %v7872 = vrot.slane %v7018, %v7871
    %v7873 = vsel %vm7554, %v7872, %v7868
    %v7874 = vlaneseq
    %v7875 = vshrl.u32 %v7874, 7
    %v7876 = vsub.s32 %v7556, %v7875
    %v7877 = vrot.slane %v7019, %v7876
    %v7878 = vsel %vm7561, %v7877, %v7873
    %v7879 = vlaneseq
    %v7880 = vshrl.u32 %v7879, 7
    %v7881 = vsub.s32 %v7453, %v7880
    %v7882 = vrot.slane %v7020, %v7881
    %v7883 = vlaneseq
    %v7884 = vshrl.u32 %v7883, 7
    %v7885 = vsub.s32 %v7458, %v7884
    %v7886 = vrot.slane %v7021, %v7885
    %v7887 = vsel %vm7463, %v7886, %v7882
    %v7888 = vlaneseq
    %v7889 = vshrl.u32 %v7888, 7
    %v7890 = vsub.s32 %v7465, %v7889
    %v7891 = vrot.slane %v7022, %v7890
    %v7892 = vsel %vm7470, %v7891, %v7887
    %v7893 = vlaneseq
    %v7894 = vshrl.u32 %v7893, 7
    %v7895 = vsub.s32 %v7472, %v7894
    %v7896 = vrot.slane %v7023, %v7895
    %v7897 = vsel %vm7477, %v7896, %v7892
    %v7898 = vlaneseq
    %v7899 = vshrl.u32 %v7898, 7
    %v7900 = vsub.s32 %v7479, %v7899
    %v7901 = vrot.slane %v7024, %v7900
    %v7902 = vsel %vm7484, %v7901, %v7897
    %v7903 = vlaneseq
    %v7904 = vshrl.u32 %v7903, 7
    %v7905 = vsub.s32 %v7486, %v7904
    %v7906 = vrot.slane %v7025, %v7905
    %v7907 = vsel %vm7491, %v7906, %v7902
    %v7908 = vlaneseq
    %v7909 = vshrl.u32 %v7908, 7
    %v7910 = vsub.s32 %v7493, %v7909
    %v7911 = vrot.slane %v7026, %v7910
    %v7912 = vsel %vm7498, %v7911, %v7907
    %v7913 = vlaneseq
    %v7914 = vshrl.u32 %v7913, 7
    %v7915 = vsub.s32 %v7500, %v7914
    %v7916 = vrot.slane %v7027, %v7915
    %v7917 = vsel %vm7505, %v7916, %v7912
    %v7918 = vlaneseq
    %v7919 = vshrl.u32 %v7918, 7
    %v7920 = vsub.s32 %v7507, %v7919
    %v7921 = vrot.slane %v7028, %v7920
    %v7922 = vsel %vm7512, %v7921, %v7917
    %v7923 = vlaneseq
    %v7924 = vshrl.u32 %v7923, 7
    %v7925 = vsub.s32 %v7514, %v7924
    %v7926 = vrot.slane %v7029, %v7925
    %v7927 = vsel %vm7519, %v7926, %v7922
    %v7928 = vlaneseq
    %v7929 = vshrl.u32 %v7928, 7
    %v7930 = vsub.s32 %v7521, %v7929
    %v7931 = vrot.slane %v7030, %v7930
    %v7932 = vsel %vm7526, %v7931, %v7927
    %v7933 = vlaneseq
    %v7934 = vshrl.u32 %v7933, 7
    %v7935 = vsub.s32 %v7528, %v7934
    %v7936 = vrot.slane %v7031, %v7935
    %v7937 = vsel %vm7533, %v7936, %v7932
    %v7938 = vlaneseq
    %v7939 = vshrl.u32 %v7938, 7
    %v7940 = vsub.s32 %v7535, %v7939
    %v7941 = vrot.slane %v7032, %v7940
    %v7942 = vsel %vm7540, %v7941, %v7937
    %v7943 = vlaneseq
    %v7944 = vshrl.u32 %v7943, 7
    %v7945 = vsub.s32 %v7542, %v7944
    %v7946 = vrot.slane %v7033, %v7945
    %v7947 = vsel %vm7547, %v7946, %v7942
    %v7948 = vlaneseq
    %v7949 = vshrl.u32 %v7948, 7
    %v7950 = vsub.s32 %v7549, %v7949
    %v7951 = vrot.slane %v7034, %v7950
    %v7952 = vsel %vm7554, %v7951, %v7947
    %v7953 = vlaneseq
    %v7954 = vshrl.u32 %v7953, 7
    %v7955 = vsub.s32 %v7556, %v7954
    %v7956 = vrot.slane %v7035, %v7955
    %v7957 = vsel %vm7561, %v7956, %v7952
    %v7958 = vlaneseq
    %v7959 = vshrl.u32 %v7958, 7
    %v7960 = vsub.s32 %v7453, %v7959
    %v7961 = vrot.slane %v7036, %v7960
    %v7962 = vlaneseq
    %v7963 = vshrl.u32 %v7962, 7
    %v7964 = vsub.s32 %v7458, %v7963
    %v7965 = vrot.slane %v7037, %v7964
    %v7966 = vsel %vm7463, %v7965, %v7961
    %v7967 = vlaneseq
    %v7968 = vshrl.u32 %v7967, 7
    %v7969 = vsub.s32 %v7465, %v7968
    %v7970 = vrot.slane %v7038, %v7969
    %v7971 = vsel %vm7470, %v7970, %v7966
    %v7972 = vlaneseq
    %v7973 = vshrl.u32 %v7972, 7
    %v7974 = vsub.s32 %v7472, %v7973
    %v7975 = vrot.slane %v7039, %v7974
    %v7976 = vsel %vm7477, %v7975, %v7971
    %v7977 = vlaneseq
    %v7978 = vshrl.u32 %v7977, 7
    %v7979 = vsub.s32 %v7479, %v7978
    %v7980 = vrot.slane %v7040, %v7979
    %v7981 = vsel %vm7484, %v7980, %v7976
    %v7982 = vlaneseq
    %v7983 = vshrl.u32 %v7982, 7
    %v7984 = vsub.s32 %v7486, %v7983
    %v7985 = vrot.slane %v7041, %v7984
    %v7986 = vsel %vm7491, %v7985, %v7981
    %v7987 = vlaneseq
    %v7988 = vshrl.u32 %v7987, 7
    %v7989 = vsub.s32 %v7493, %v7988
    %v7990 = vrot.slane %v7042, %v7989
    %v7991 = vsel %vm7498, %v7990, %v7986
    %v7992 = vlaneseq
    %v7993 = vshrl.u32 %v7992, 7
    %v7994 = vsub.s32 %v7500, %v7993
    %v7995 = vrot.slane %v7043, %v7994
    %v7996 = vsel %vm7505, %v7995, %v7991
    %v7997 = vlaneseq
    %v7998 = vshrl.u32 %v7997, 7
    %v7999 = vsub.s32 %v7507, %v7998
    %v8000 = vrot.slane %v7044, %v7999
    %v8001 = vsel %vm7512, %v8000, %v7996
    %v8002 = vlaneseq
    %v8003 = vshrl.u32 %v8002, 7
    %v8004 = vsub.s32 %v7514, %v8003
    %v8005 = vrot.slane %v7045, %v8004
    %v8006 = vsel %vm7519, %v8005, %v8001
    %v8007 = vlaneseq
    %v8008 = vshrl.u32 %v8007, 7
    %v8009 = vsub.s32 %v7521, %v8008
    %v8010 = vrot.slane %v7046, %v8009
    %v8011 = vsel %vm7526, %v8010, %v8006
    %v8012 = vlaneseq
    %v8013 = vshrl.u32 %v8012, 7
    %v8014 = vsub.s32 %v7528, %v8013
    %v8015 = vrot.slane %v7047, %v8014
    %v8016 = vsel %vm7533, %v8015, %v8011
    %v8017 = vlaneseq
    %v8018 = vshrl.u32 %v8017, 7
    %v8019 = vsub.s32 %v7535, %v8018
    %v8020 = vrot.slane %v7048, %v8019
    %v8021 = vsel %vm7540, %v8020, %v8016
    %v8022 = vlaneseq
    %v8023 = vshrl.u32 %v8022, 7
    %v8024 = vsub.s32 %v7542, %v8023
    %v8025 = vrot.slane %v7049, %v8024
    %v8026 = vsel %vm7547, %v8025, %v8021
    %v8027 = vlaneseq
    %v8028 = vshrl.u32 %v8027, 7
    %v8029 = vsub.s32 %v7549, %v8028
    %v8030 = vrot.slane %v7050, %v8029
    %v8031 = vsel %vm7554, %v8030, %v8026
    %v8032 = vlaneseq
    %v8033 = vshrl.u32 %v8032, 7
    %v8034 = vsub.s32 %v7556, %v8033
    %v8035 = vrot.slane %v7051, %v8034
    %v8036 = vsel %vm7561, %v8035, %v8031
    %v8037 = vlaneseq
    %v8038 = vshrl.u32 %v8037, 7
    %v8039 = vsub.s32 %v7453, %v8038
    %v8040 = vrot.slane %v7052, %v8039
    %v8041 = vlaneseq
    %v8042 = vshrl.u32 %v8041, 7
    %v8043 = vsub.s32 %v7458, %v8042
    %v8044 = vrot.slane %v7053, %v8043
    %v8045 = vsel %vm7463, %v8044, %v8040
    %v8046 = vlaneseq
    %v8047 = vshrl.u32 %v8046, 7
    %v8048 = vsub.s32 %v7465, %v8047
    %v8049 = vrot.slane %v7054, %v8048
    %v8050 = vsel %vm7470, %v8049, %v8045
    %v8051 = vlaneseq
    %v8052 = vshrl.u32 %v8051, 7
    %v8053 = vsub.s32 %v7472, %v8052
    %v8054 = vrot.slane %v7055, %v8053
    %v8055 = vsel %vm7477, %v8054, %v8050
    %v8056 = vlaneseq
    %v8057 = vshrl.u32 %v8056, 7
    %v8058 = vsub.s32 %v7479, %v8057
    %v8059 = vrot.slane %v7056, %v8058
    %v8060 = vsel %vm7484, %v8059, %v8055
    %v8061 = vlaneseq
    %v8062 = vshrl.u32 %v8061, 7
    %v8063 = vsub.s32 %v7486, %v8062
    %v8064 = vrot.slane %v7057, %v8063
    %v8065 = vsel %vm7491, %v8064, %v8060
    %v8066 = vlaneseq
    %v8067 = vshrl.u32 %v8066, 7
    %v8068 = vsub.s32 %v7493, %v8067
    %v8069 = vrot.slane %v7058, %v8068
    %v8070 = vsel %vm7498, %v8069, %v8065
    %v8071 = vlaneseq
    %v8072 = vshrl.u32 %v8071, 7
    %v8073 = vsub.s32 %v7500, %v8072
    %v8074 = vrot.slane %v7059, %v8073
    %v8075 = vsel %vm7505, %v8074, %v8070
    %v8076 = vlaneseq
    %v8077 = vshrl.u32 %v8076, 7
    %v8078 = vsub.s32 %v7507, %v8077
    %v8079 = vrot.slane %v7060, %v8078
    %v8080 = vsel %vm7512, %v8079, %v8075
    %v8081 = vlaneseq
    %v8082 = vshrl.u32 %v8081, 7
    %v8083 = vsub.s32 %v7514, %v8082
    %v8084 = vrot.slane %v7061, %v8083
    %v8085 = vsel %vm7519, %v8084, %v8080
    %v8086 = vlaneseq
    %v8087 = vshrl.u32 %v8086, 7
    %v8088 = vsub.s32 %v7521, %v8087
    %v8089 = vrot.slane %v7062, %v8088
    %v8090 = vsel %vm7526, %v8089, %v8085
    %v8091 = vlaneseq
    %v8092 = vshrl.u32 %v8091, 7
    %v8093 = vsub.s32 %v7528, %v8092
    %v8094 = vrot.slane %v7063, %v8093
    %v8095 = vsel %vm7533, %v8094, %v8090
    %v8096 = vlaneseq
    %v8097 = vshrl.u32 %v8096, 7
    %v8098 = vsub.s32 %v7535, %v8097
    %v8099 = vrot.slane %v7064, %v8098
    %v8100 = vsel %vm7540, %v8099, %v8095
    %v8101 = vlaneseq
    %v8102 = vshrl.u32 %v8101, 7
    %v8103 = vsub.s32 %v7542, %v8102
    %v8104 = vrot.slane %v7065, %v8103
    %v8105 = vsel %vm7547, %v8104, %v8100
    %v8106 = vlaneseq
    %v8107 = vshrl.u32 %v8106, 7
    %v8108 = vsub.s32 %v7549, %v8107
    %v8109 = vrot.slane %v7066, %v8108
    %v8110 = vsel %vm7554, %v8109, %v8105
    %v8111 = vlaneseq
    %v8112 = vshrl.u32 %v8111, 7
    %v8113 = vsub.s32 %v7556, %v8112
    %v8114 = vrot.slane %v7067, %v8113
    %v8115 = vsel %vm7561, %v8114, %v8110
    %v8116 = vlaneseq
    %v8117 = vshrl.u32 %v8116, 7
    %v8118 = vsub.s32 %v7453, %v8117
    %v8119 = vrot.slane %v7068, %v8118
    %v8120 = vlaneseq
    %v8121 = vshrl.u32 %v8120, 7
    %v8122 = vsub.s32 %v7458, %v8121
    %v8123 = vrot.slane %v7069, %v8122
    %v8124 = vsel %vm7463, %v8123, %v8119
    %v8125 = vlaneseq
    %v8126 = vshrl.u32 %v8125, 7
    %v8127 = vsub.s32 %v7465, %v8126
    %v8128 = vrot.slane %v7070, %v8127
    %v8129 = vsel %vm7470, %v8128, %v8124
    %v8130 = vlaneseq
    %v8131 = vshrl.u32 %v8130, 7
    %v8132 = vsub.s32 %v7472, %v8131
    %v8133 = vrot.slane %v7071, %v8132
    %v8134 = vsel %vm7477, %v8133, %v8129
    %v8135 = vlaneseq
    %v8136 = vshrl.u32 %v8135, 7
    %v8137 = vsub.s32 %v7479, %v8136
    %v8138 = vrot.slane %v7072, %v8137
    %v8139 = vsel %vm7484, %v8138, %v8134
    %v8140 = vlaneseq
    %v8141 = vshrl.u32 %v8140, 7
    %v8142 = vsub.s32 %v7486, %v8141
    %v8143 = vrot.slane %v7073, %v8142
    %v8144 = vsel %vm7491, %v8143, %v8139
    %v8145 = vlaneseq
    %v8146 = vshrl.u32 %v8145, 7
    %v8147 = vsub.s32 %v7493, %v8146
    %v8148 = vrot.slane %v7074, %v8147
    %v8149 = vsel %vm7498, %v8148, %v8144
    %v8150 = vlaneseq
    %v8151 = vshrl.u32 %v8150, 7
    %v8152 = vsub.s32 %v7500, %v8151
    %v8153 = vrot.slane %v7075, %v8152
    %v8154 = vsel %vm7505, %v8153, %v8149
    %v8155 = vlaneseq
    %v8156 = vshrl.u32 %v8155, 7
    %v8157 = vsub.s32 %v7507, %v8156
    %v8158 = vrot.slane %v7076, %v8157
    %v8159 = vsel %vm7512, %v8158, %v8154
    %v8160 = vlaneseq
    %v8161 = vshrl.u32 %v8160, 7
    %v8162 = vsub.s32 %v7514, %v8161
    %v8163 = vrot.slane %v7077, %v8162
    %v8164 = vsel %vm7519, %v8163, %v8159
    %v8165 = vlaneseq
    %v8166 = vshrl.u32 %v8165, 7
    %v8167 = vsub.s32 %v7521, %v8166
    %v8168 = vrot.slane %v7078, %v8167
    %v8169 = vsel %vm7526, %v8168, %v8164
    %v8170 = vlaneseq
    %v8171 = vshrl.u32 %v8170, 7
    %v8172 = vsub.s32 %v7528, %v8171
    %v8173 = vrot.slane %v7079, %v8172
    %v8174 = vsel %vm7533, %v8173, %v8169
    %v8175 = vlaneseq
    %v8176 = vshrl.u32 %v8175, 7
    %v8177 = vsub.s32 %v7535, %v8176
    %v8178 = vrot.slane %v7080, %v8177
    %v8179 = vsel %vm7540, %v8178, %v8174
    %v8180 = vlaneseq
    %v8181 = vshrl.u32 %v8180, 7
    %v8182 = vsub.s32 %v7542, %v8181
    %v8183 = vrot.slane %v7081, %v8182
    %v8184 = vsel %vm7547, %v8183, %v8179
    %v8185 = vlaneseq
    %v8186 = vshrl.u32 %v8185, 7
    %v8187 = vsub.s32 %v7549, %v8186
    %v8188 = vrot.slane %v7082, %v8187
    %v8189 = vsel %vm7554, %v8188, %v8184
    %v8190 = vlaneseq
    %v8191 = vshrl.u32 %v8190, 7
    %v8192 = vsub.s32 %v7556, %v8191
    %v8193 = vrot.slane %v7083, %v8192
    %v8194 = vsel %vm7561, %v8193, %v8189
    %v8195 = vlaneseq
    %v8196 = vshrl.u32 %v8195, 7
    %v8197 = vsub.s32 %v7453, %v8196
    %v8198 = vrot.slane %v7084, %v8197
    %v8199 = vlaneseq
    %v8200 = vshrl.u32 %v8199, 7
    %v8201 = vsub.s32 %v7458, %v8200
    %v8202 = vrot.slane %v7085, %v8201
    %v8203 = vsel %vm7463, %v8202, %v8198
    %v8204 = vlaneseq
    %v8205 = vshrl.u32 %v8204, 7
    %v8206 = vsub.s32 %v7465, %v8205
    %v8207 = vrot.slane %v7086, %v8206
    %v8208 = vsel %vm7470, %v8207, %v8203
    %v8209 = vlaneseq
    %v8210 = vshrl.u32 %v8209, 7
    %v8211 = vsub.s32 %v7472, %v8210
    %v8212 = vrot.slane %v7087, %v8211
    %v8213 = vsel %vm7477, %v8212, %v8208
    %v8214 = vlaneseq
    %v8215 = vshrl.u32 %v8214, 7
    %v8216 = vsub.s32 %v7479, %v8215
    %v8217 = vrot.slane %v7088, %v8216
    %v8218 = vsel %vm7484, %v8217, %v8213
    %v8219 = vlaneseq
    %v8220 = vshrl.u32 %v8219, 7
    %v8221 = vsub.s32 %v7486, %v8220
    %v8222 = vrot.slane %v7089, %v8221
    %v8223 = vsel %vm7491, %v8222, %v8218
    %v8224 = vlaneseq
    %v8225 = vshrl.u32 %v8224, 7
    %v8226 = vsub.s32 %v7493, %v8225
    %v8227 = vrot.slane %v7090, %v8226
    %v8228 = vsel %vm7498, %v8227, %v8223
    %v8229 = vlaneseq
    %v8230 = vshrl.u32 %v8229, 7
    %v8231 = vsub.s32 %v7500, %v8230
    %v8232 = vrot.slane %v7091, %v8231
    %v8233 = vsel %vm7505, %v8232, %v8228
    %v8234 = vlaneseq
    %v8235 = vshrl.u32 %v8234, 7
    %v8236 = vsub.s32 %v7507, %v8235
    %v8237 = vrot.slane %v7092, %v8236
    %v8238 = vsel %vm7512, %v8237, %v8233
    %v8239 = vlaneseq
    %v8240 = vshrl.u32 %v8239, 7
    %v8241 = vsub.s32 %v7514, %v8240
    %v8242 = vrot.slane %v7093, %v8241
    %v8243 = vsel %vm7519, %v8242, %v8238
    %v8244 = vlaneseq
    %v8245 = vshrl.u32 %v8244, 7
    %v8246 = vsub.s32 %v7521, %v8245
    %v8247 = vrot.slane %v7094, %v8246
    %v8248 = vsel %vm7526, %v8247, %v8243
    %v8249 = vlaneseq
    %v8250 = vshrl.u32 %v8249, 7
    %v8251 = vsub.s32 %v7528, %v8250
    %v8252 = vrot.slane %v7095, %v8251
    %v8253 = vsel %vm7533, %v8252, %v8248
    %v8254 = vlaneseq
    %v8255 = vshrl.u32 %v8254, 7
    %v8256 = vsub.s32 %v7535, %v8255
    %v8257 = vrot.slane %v7096, %v8256
    %v8258 = vsel %vm7540, %v8257, %v8253
    %v8259 = vlaneseq
    %v8260 = vshrl.u32 %v8259, 7
    %v8261 = vsub.s32 %v7542, %v8260
    %v8262 = vrot.slane %v7097, %v8261
    %v8263 = vsel %vm7547, %v8262, %v8258
    %v8264 = vlaneseq
    %v8265 = vshrl.u32 %v8264, 7
    %v8266 = vsub.s32 %v7549, %v8265
    %v8267 = vrot.slane %v7098, %v8266
    %v8268 = vsel %vm7554, %v8267, %v8263
    %v8269 = vlaneseq
    %v8270 = vshrl.u32 %v8269, 7
    %v8271 = vsub.s32 %v7556, %v8270
    %v8272 = vrot.slane %v7099, %v8271
    %v8273 = vsel %vm7561, %v8272, %v8268
    %v8274 = vlaneseq
    %v8275 = vshrl.u32 %v8274, 7
    %v8276 = vsub.s32 %v7453, %v8275
    %v8277 = vrot.slane %v7100, %v8276
    %v8278 = vlaneseq
    %v8279 = vshrl.u32 %v8278, 7
    %v8280 = vsub.s32 %v7458, %v8279
    %v8281 = vrot.slane %v7101, %v8280
    %v8282 = vsel %vm7463, %v8281, %v8277
    %v8283 = vlaneseq
    %v8284 = vshrl.u32 %v8283, 7
    %v8285 = vsub.s32 %v7465, %v8284
    %v8286 = vrot.slane %v7102, %v8285
    %v8287 = vsel %vm7470, %v8286, %v8282
    %v8288 = vlaneseq
    %v8289 = vshrl.u32 %v8288, 7
    %v8290 = vsub.s32 %v7472, %v8289
    %v8291 = vrot.slane %v7103, %v8290
    %v8292 = vsel %vm7477, %v8291, %v8287
    %v8293 = vlaneseq
    %v8294 = vshrl.u32 %v8293, 7
    %v8295 = vsub.s32 %v7479, %v8294
    %v8296 = vrot.slane %v7104, %v8295
    %v8297 = vsel %vm7484, %v8296, %v8292
    %v8298 = vlaneseq
    %v8299 = vshrl.u32 %v8298, 7
    %v8300 = vsub.s32 %v7486, %v8299
    %v8301 = vrot.slane %v7105, %v8300
    %v8302 = vsel %vm7491, %v8301, %v8297
    %v8303 = vlaneseq
    %v8304 = vshrl.u32 %v8303, 7
    %v8305 = vsub.s32 %v7493, %v8304
    %v8306 = vrot.slane %v7106, %v8305
    %v8307 = vsel %vm7498, %v8306, %v8302
    %v8308 = vlaneseq
    %v8309 = vshrl.u32 %v8308, 7
    %v8310 = vsub.s32 %v7500, %v8309
    %v8311 = vrot.slane %v7107, %v8310
    %v8312 = vsel %vm7505, %v8311, %v8307
    %v8313 = vlaneseq
    %v8314 = vshrl.u32 %v8313, 7
    %v8315 = vsub.s32 %v7507, %v8314
    %v8316 = vrot.slane %v7108, %v8315
    %v8317 = vsel %vm7512, %v8316, %v8312
    %v8318 = vlaneseq
    %v8319 = vshrl.u32 %v8318, 7
    %v8320 = vsub.s32 %v7514, %v8319
    %v8321 = vrot.slane %v7109, %v8320
    %v8322 = vsel %vm7519, %v8321, %v8317
    %v8323 = vlaneseq
    %v8324 = vshrl.u32 %v8323, 7
    %v8325 = vsub.s32 %v7521, %v8324
    %v8326 = vrot.slane %v7110, %v8325
    %v8327 = vsel %vm7526, %v8326, %v8322
    %v8328 = vlaneseq
    %v8329 = vshrl.u32 %v8328, 7
    %v8330 = vsub.s32 %v7528, %v8329
    %v8331 = vrot.slane %v7111, %v8330
    %v8332 = vsel %vm7533, %v8331, %v8327
    %v8333 = vlaneseq
    %v8334 = vshrl.u32 %v8333, 7
    %v8335 = vsub.s32 %v7535, %v8334
    %v8336 = vrot.slane %v7112, %v8335
    %v8337 = vsel %vm7540, %v8336, %v8332
    %v8338 = vlaneseq
    %v8339 = vshrl.u32 %v8338, 7
    %v8340 = vsub.s32 %v7542, %v8339
    %v8341 = vrot.slane %v7113, %v8340
    %v8342 = vsel %vm7547, %v8341, %v8337
    %v8343 = vlaneseq
    %v8344 = vshrl.u32 %v8343, 7
    %v8345 = vsub.s32 %v7549, %v8344
    %v8346 = vrot.slane %v7114, %v8345
    %v8347 = vsel %vm7554, %v8346, %v8342
    %v8348 = vlaneseq
    %v8349 = vshrl.u32 %v8348, 7
    %v8350 = vsub.s32 %v7556, %v8349
    %v8351 = vrot.slane %v7115, %v8350
    %v8352 = vsel %vm7561, %v8351, %v8347
    %v8353 = vlaneseq
    %v8354 = vshrl.u32 %v8353, 7
    %v8355 = vsub.s32 %v7453, %v8354
    %v8356 = vrot.slane %v7116, %v8355
    %v8357 = vlaneseq
    %v8358 = vshrl.u32 %v8357, 7
    %v8359 = vsub.s32 %v7458, %v8358
    %v8360 = vrot.slane %v7117, %v8359
    %v8361 = vsel %vm7463, %v8360, %v8356
    %v8362 = vlaneseq
    %v8363 = vshrl.u32 %v8362, 7
    %v8364 = vsub.s32 %v7465, %v8363
    %v8365 = vrot.slane %v7118, %v8364
    %v8366 = vsel %vm7470, %v8365, %v8361
    %v8367 = vlaneseq
    %v8368 = vshrl.u32 %v8367, 7
    %v8369 = vsub.s32 %v7472, %v8368
    %v8370 = vrot.slane %v7119, %v8369
    %v8371 = vsel %vm7477, %v8370, %v8366
    %v8372 = vlaneseq
    %v8373 = vshrl.u32 %v8372, 7
    %v8374 = vsub.s32 %v7479, %v8373
    %v8375 = vrot.slane %v7120, %v8374
    %v8376 = vsel %vm7484, %v8375, %v8371
    %v8377 = vlaneseq
    %v8378 = vshrl.u32 %v8377, 7
    %v8379 = vsub.s32 %v7486, %v8378
    %v8380 = vrot.slane %v7121, %v8379
    %v8381 = vsel %vm7491, %v8380, %v8376
    %v8382 = vlaneseq
    %v8383 = vshrl.u32 %v8382, 7
    %v8384 = vsub.s32 %v7493, %v8383
    %v8385 = vrot.slane %v7122, %v8384
    %v8386 = vsel %vm7498, %v8385, %v8381
    %v8387 = vlaneseq
    %v8388 = vshrl.u32 %v8387, 7
    %v8389 = vsub.s32 %v7500, %v8388
    %v8390 = vrot.slane %v7123, %v8389
    %v8391 = vsel %vm7505, %v8390, %v8386
    %v8392 = vlaneseq
    %v8393 = vshrl.u32 %v8392, 7
    %v8394 = vsub.s32 %v7507, %v8393
    %v8395 = vrot.slane %v7124, %v8394
    %v8396 = vsel %vm7512, %v8395, %v8391
    %v8397 = vlaneseq
    %v8398 = vshrl.u32 %v8397, 7
    %v8399 = vsub.s32 %v7514, %v8398
    %v8400 = vrot.slane %v7125, %v8399
    %v8401 = vsel %vm7519, %v8400, %v8396
    %v8402 = vlaneseq
    %v8403 = vshrl.u32 %v8402, 7
    %v8404 = vsub.s32 %v7521, %v8403
    %v8405 = vrot.slane %v7126, %v8404
    %v8406 = vsel %vm7526, %v8405, %v8401
    %v8407 = vlaneseq
    %v8408 = vshrl.u32 %v8407, 7
    %v8409 = vsub.s32 %v7528, %v8408
    %v8410 = vrot.slane %v7127, %v8409
    %v8411 = vsel %vm7533, %v8410, %v8406
    %v8412 = vlaneseq
    %v8413 = vshrl.u32 %v8412, 7
    %v8414 = vsub.s32 %v7535, %v8413
    %v8415 = vrot.slane %v7128, %v8414
    %v8416 = vsel %vm7540, %v8415, %v8411
    %v8417 = vlaneseq
    %v8418 = vshrl.u32 %v8417, 7
    %v8419 = vsub.s32 %v7542, %v8418
    %v8420 = vrot.slane %v7129, %v8419
    %v8421 = vsel %vm7547, %v8420, %v8416
    %v8422 = vlaneseq
    %v8423 = vshrl.u32 %v8422, 7
    %v8424 = vsub.s32 %v7549, %v8423
    %v8425 = vrot.slane %v7130, %v8424
    %v8426 = vsel %vm7554, %v8425, %v8421
    %v8427 = vlaneseq
    %v8428 = vshrl.u32 %v8427, 7
    %v8429 = vsub.s32 %v7556, %v8428
    %v8430 = vrot.slane %v7131, %v8429
    %v8431 = vsel %vm7561, %v8430, %v8426
    %v8432 = vlaneseq
    %v8433 = vshrl.u32 %v8432, 7
    %v8434 = vsub.s32 %v7453, %v8433
    %v8435 = vrot.slane %v7132, %v8434
    %v8436 = vlaneseq
    %v8437 = vshrl.u32 %v8436, 7
    %v8438 = vsub.s32 %v7458, %v8437
    %v8439 = vrot.slane %v7133, %v8438
    %v8440 = vsel %vm7463, %v8439, %v8435
    %v8441 = vlaneseq
    %v8442 = vshrl.u32 %v8441, 7
    %v8443 = vsub.s32 %v7465, %v8442
    %v8444 = vrot.slane %v7134, %v8443
    %v8445 = vsel %vm7470, %v8444, %v8440
    %v8446 = vlaneseq
    %v8447 = vshrl.u32 %v8446, 7
    %v8448 = vsub.s32 %v7472, %v8447
    %v8449 = vrot.slane %v7135, %v8448
    %v8450 = vsel %vm7477, %v8449, %v8445
    %v8451 = vlaneseq
    %v8452 = vshrl.u32 %v8451, 7
    %v8453 = vsub.s32 %v7479, %v8452
    %v8454 = vrot.slane %v7136, %v8453
    %v8455 = vsel %vm7484, %v8454, %v8450
    %v8456 = vlaneseq
    %v8457 = vshrl.u32 %v8456, 7
    %v8458 = vsub.s32 %v7486, %v8457
    %v8459 = vrot.slane %v7137, %v8458
    %v8460 = vsel %vm7491, %v8459, %v8455
    %v8461 = vlaneseq
    %v8462 = vshrl.u32 %v8461, 7
    %v8463 = vsub.s32 %v7493, %v8462
    %v8464 = vrot.slane %v7138, %v8463
    %v8465 = vsel %vm7498, %v8464, %v8460
    %v8466 = vlaneseq
    %v8467 = vshrl.u32 %v8466, 7
    %v8468 = vsub.s32 %v7500, %v8467
    %v8469 = vrot.slane %v7139, %v8468
    %v8470 = vsel %vm7505, %v8469, %v8465
    %v8471 = vlaneseq
    %v8472 = vshrl.u32 %v8471, 7
    %v8473 = vsub.s32 %v7507, %v8472
    %v8474 = vrot.slane %v7140, %v8473
    %v8475 = vsel %vm7512, %v8474, %v8470
    %v8476 = vlaneseq
    %v8477 = vshrl.u32 %v8476, 7
    %v8478 = vsub.s32 %v7514, %v8477
    %v8479 = vrot.slane %v7141, %v8478
    %v8480 = vsel %vm7519, %v8479, %v8475
    %v8481 = vlaneseq
    %v8482 = vshrl.u32 %v8481, 7
    %v8483 = vsub.s32 %v7521, %v8482
    %v8484 = vrot.slane %v7142, %v8483
    %v8485 = vsel %vm7526, %v8484, %v8480
    %v8486 = vlaneseq
    %v8487 = vshrl.u32 %v8486, 7
    %v8488 = vsub.s32 %v7528, %v8487
    %v8489 = vrot.slane %v7143, %v8488
    %v8490 = vsel %vm7533, %v8489, %v8485
    %v8491 = vlaneseq
    %v8492 = vshrl.u32 %v8491, 7
    %v8493 = vsub.s32 %v7535, %v8492
    %v8494 = vrot.slane %v7144, %v8493
    %v8495 = vsel %vm7540, %v8494, %v8490
    %v8496 = vlaneseq
    %v8497 = vshrl.u32 %v8496, 7
    %v8498 = vsub.s32 %v7542, %v8497
    %v8499 = vrot.slane %v7145, %v8498
    %v8500 = vsel %vm7547, %v8499, %v8495
    %v8501 = vlaneseq
    %v8502 = vshrl.u32 %v8501, 7
    %v8503 = vsub.s32 %v7549, %v8502
    %v8504 = vrot.slane %v7146, %v8503
    %v8505 = vsel %vm7554, %v8504, %v8500
    %v8506 = vlaneseq
    %v8507 = vshrl.u32 %v8506, 7
    %v8508 = vsub.s32 %v7556, %v8507
    %v8509 = vrot.slane %v7147, %v8508
    %v8510 = vsel %vm7561, %v8509, %v8505
    %v8511 = vlaneseq
    %v8512 = vshrl.u32 %v8511, 7
    %v8513 = vsub.s32 %v7453, %v8512
    %v8514 = vrot.slane %v7148, %v8513
    %v8515 = vlaneseq
    %v8516 = vshrl.u32 %v8515, 7
    %v8517 = vsub.s32 %v7458, %v8516
    %v8518 = vrot.slane %v7149, %v8517
    %v8519 = vsel %vm7463, %v8518, %v8514
    %v8520 = vlaneseq
    %v8521 = vshrl.u32 %v8520, 7
    %v8522 = vsub.s32 %v7465, %v8521
    %v8523 = vrot.slane %v7150, %v8522
    %v8524 = vsel %vm7470, %v8523, %v8519
    %v8525 = vlaneseq
    %v8526 = vshrl.u32 %v8525, 7
    %v8527 = vsub.s32 %v7472, %v8526
    %v8528 = vrot.slane %v7151, %v8527
    %v8529 = vsel %vm7477, %v8528, %v8524
    %v8530 = vlaneseq
    %v8531 = vshrl.u32 %v8530, 7
    %v8532 = vsub.s32 %v7479, %v8531
    %v8533 = vrot.slane %v7152, %v8532
    %v8534 = vsel %vm7484, %v8533, %v8529
    %v8535 = vlaneseq
    %v8536 = vshrl.u32 %v8535, 7
    %v8537 = vsub.s32 %v7486, %v8536
    %v8538 = vrot.slane %v7153, %v8537
    %v8539 = vsel %vm7491, %v8538, %v8534
    %v8540 = vlaneseq
    %v8541 = vshrl.u32 %v8540, 7
    %v8542 = vsub.s32 %v7493, %v8541
    %v8543 = vrot.slane %v7154, %v8542
    %v8544 = vsel %vm7498, %v8543, %v8539
    %v8545 = vlaneseq
    %v8546 = vshrl.u32 %v8545, 7
    %v8547 = vsub.s32 %v7500, %v8546
    %v8548 = vrot.slane %v7155, %v8547
    %v8549 = vsel %vm7505, %v8548, %v8544
    %v8550 = vlaneseq
    %v8551 = vshrl.u32 %v8550, 7
    %v8552 = vsub.s32 %v7507, %v8551
    %v8553 = vrot.slane %v7156, %v8552
    %v8554 = vsel %vm7512, %v8553, %v8549
    %v8555 = vlaneseq
    %v8556 = vshrl.u32 %v8555, 7
    %v8557 = vsub.s32 %v7514, %v8556
    %v8558 = vrot.slane %v7157, %v8557
    %v8559 = vsel %vm7519, %v8558, %v8554
    %v8560 = vlaneseq
    %v8561 = vshrl.u32 %v8560, 7
    %v8562 = vsub.s32 %v7521, %v8561
    %v8563 = vrot.slane %v7158, %v8562
    %v8564 = vsel %vm7526, %v8563, %v8559
    %v8565 = vlaneseq
    %v8566 = vshrl.u32 %v8565, 7
    %v8567 = vsub.s32 %v7528, %v8566
    %v8568 = vrot.slane %v7159, %v8567
    %v8569 = vsel %vm7533, %v8568, %v8564
    %v8570 = vlaneseq
    %v8571 = vshrl.u32 %v8570, 7
    %v8572 = vsub.s32 %v7535, %v8571
    %v8573 = vrot.slane %v7160, %v8572
    %v8574 = vsel %vm7540, %v8573, %v8569
    %v8575 = vlaneseq
    %v8576 = vshrl.u32 %v8575, 7
    %v8577 = vsub.s32 %v7542, %v8576
    %v8578 = vrot.slane %v7161, %v8577
    %v8579 = vsel %vm7547, %v8578, %v8574
    %v8580 = vlaneseq
    %v8581 = vshrl.u32 %v8580, 7
    %v8582 = vsub.s32 %v7549, %v8581
    %v8583 = vrot.slane %v7162, %v8582
    %v8584 = vsel %vm7554, %v8583, %v8579
    %v8585 = vlaneseq
    %v8586 = vshrl.u32 %v8585, 7
    %v8587 = vsub.s32 %v7556, %v8586
    %v8588 = vrot.slane %v7163, %v8587
    %v8589 = vsel %vm7561, %v8588, %v8584
    %v8590 = vlaneseq
    %v8591 = vshrl.u32 %v8590, 7
    %v8592 = vsub.s32 %v7453, %v8591
    %v8593 = vrot.slane %v7164, %v8592
    %v8594 = vlaneseq
    %v8595 = vshrl.u32 %v8594, 7
    %v8596 = vsub.s32 %v7458, %v8595
    %v8597 = vrot.slane %v7165, %v8596
    %v8598 = vsel %vm7463, %v8597, %v8593
    %v8599 = vlaneseq
    %v8600 = vshrl.u32 %v8599, 7
    %v8601 = vsub.s32 %v7465, %v8600
    %v8602 = vrot.slane %v7166, %v8601
    %v8603 = vsel %vm7470, %v8602, %v8598
    %v8604 = vlaneseq
    %v8605 = vshrl.u32 %v8604, 7
    %v8606 = vsub.s32 %v7472, %v8605
    %v8607 = vrot.slane %v7167, %v8606
    %v8608 = vsel %vm7477, %v8607, %v8603
    %v8609 = vlaneseq
    %v8610 = vshrl.u32 %v8609, 7
    %v8611 = vsub.s32 %v7479, %v8610
    %v8612 = vrot.slane %v7168, %v8611
    %v8613 = vsel %vm7484, %v8612, %v8608
    %v8614 = vlaneseq
    %v8615 = vshrl.u32 %v8614, 7
    %v8616 = vsub.s32 %v7486, %v8615
    %v8617 = vrot.slane %v7169, %v8616
    %v8618 = vsel %vm7491, %v8617, %v8613
    %v8619 = vlaneseq
    %v8620 = vshrl.u32 %v8619, 7
    %v8621 = vsub.s32 %v7493, %v8620
    %v8622 = vrot.slane %v7170, %v8621
    %v8623 = vsel %vm7498, %v8622, %v8618
    %v8624 = vlaneseq
    %v8625 = vshrl.u32 %v8624, 7
    %v8626 = vsub.s32 %v7500, %v8625
    %v8627 = vrot.slane %v7171, %v8626
    %v8628 = vsel %vm7505, %v8627, %v8623
    %v8629 = vlaneseq
    %v8630 = vshrl.u32 %v8629, 7
    %v8631 = vsub.s32 %v7507, %v8630
    %v8632 = vrot.slane %v7172, %v8631
    %v8633 = vsel %vm7512, %v8632, %v8628
    %v8634 = vlaneseq
    %v8635 = vshrl.u32 %v8634, 7
    %v8636 = vsub.s32 %v7514, %v8635
    %v8637 = vrot.slane %v7173, %v8636
    %v8638 = vsel %vm7519, %v8637, %v8633
    %v8639 = vlaneseq
    %v8640 = vshrl.u32 %v8639, 7
    %v8641 = vsub.s32 %v7521, %v8640
    %v8642 = vrot.slane %v7174, %v8641
    %v8643 = vsel %vm7526, %v8642, %v8638
    %v8644 = vlaneseq
    %v8645 = vshrl.u32 %v8644, 7
    %v8646 = vsub.s32 %v7528, %v8645
    %v8647 = vrot.slane %v7175, %v8646
    %v8648 = vsel %vm7533, %v8647, %v8643
    %v8649 = vlaneseq
    %v8650 = vshrl.u32 %v8649, 7
    %v8651 = vsub.s32 %v7535, %v8650
    %v8652 = vrot.slane %v7176, %v8651
    %v8653 = vsel %vm7540, %v8652, %v8648
    %v8654 = vlaneseq
    %v8655 = vshrl.u32 %v8654, 7
    %v8656 = vsub.s32 %v7542, %v8655
    %v8657 = vrot.slane %v7177, %v8656
    %v8658 = vsel %vm7547, %v8657, %v8653
    %v8659 = vlaneseq
    %v8660 = vshrl.u32 %v8659, 7
    %v8661 = vsub.s32 %v7549, %v8660
    %v8662 = vrot.slane %v7178, %v8661
    %v8663 = vsel %vm7554, %v8662, %v8658
    %v8664 = vlaneseq
    %v8665 = vshrl.u32 %v8664, 7
    %v8666 = vsub.s32 %v7556, %v8665
    %v8667 = vrot.slane %v7179, %v8666
    %v8668 = vsel %vm7561, %v8667, %v8663
    %v8669 = vlaneseq
    %v8670 = vshrl.u32 %v8669, 7
    %v8671 = vsub.s32 %v7453, %v8670
    %v8672 = vrot.slane %v7180, %v8671
    %v8673 = vlaneseq
    %v8674 = vshrl.u32 %v8673, 7
    %v8675 = vsub.s32 %v7458, %v8674
    %v8676 = vrot.slane %v7181, %v8675
    %v8677 = vsel %vm7463, %v8676, %v8672
    %v8678 = vlaneseq
    %v8679 = vshrl.u32 %v8678, 7
    %v8680 = vsub.s32 %v7465, %v8679
    %v8681 = vrot.slane %v7182, %v8680
    %v8682 = vsel %vm7470, %v8681, %v8677
    %v8683 = vlaneseq
    %v8684 = vshrl.u32 %v8683, 7
    %v8685 = vsub.s32 %v7472, %v8684
    %v8686 = vrot.slane %v7183, %v8685
    %v8687 = vsel %vm7477, %v8686, %v8682
    %v8688 = vlaneseq
    %v8689 = vshrl.u32 %v8688, 7
    %v8690 = vsub.s32 %v7479, %v8689
    %v8691 = vrot.slane %v7184, %v8690
    %v8692 = vsel %vm7484, %v8691, %v8687
    %v8693 = vlaneseq
    %v8694 = vshrl.u32 %v8693, 7
    %v8695 = vsub.s32 %v7486, %v8694
    %v8696 = vrot.slane %v7185, %v8695
    %v8697 = vsel %vm7491, %v8696, %v8692
    %v8698 = vlaneseq
    %v8699 = vshrl.u32 %v8698, 7
    %v8700 = vsub.s32 %v7493, %v8699
    %v8701 = vrot.slane %v7186, %v8700
    %v8702 = vsel %vm7498, %v8701, %v8697
    %v8703 = vlaneseq
    %v8704 = vshrl.u32 %v8703, 7
    %v8705 = vsub.s32 %v7500, %v8704
    %v8706 = vrot.slane %v7187, %v8705
    %v8707 = vsel %vm7505, %v8706, %v8702
    %v8708 = vlaneseq
    %v8709 = vshrl.u32 %v8708, 7
    %v8710 = vsub.s32 %v7507, %v8709
    %v8711 = vrot.slane %v7188, %v8710
    %v8712 = vsel %vm7512, %v8711, %v8707
    %v8713 = vlaneseq
    %v8714 = vshrl.u32 %v8713, 7
    %v8715 = vsub.s32 %v7514, %v8714
    %v8716 = vrot.slane %v7189, %v8715
    %v8717 = vsel %vm7519, %v8716, %v8712
    %v8718 = vlaneseq
    %v8719 = vshrl.u32 %v8718, 7
    %v8720 = vsub.s32 %v7521, %v8719
    %v8721 = vrot.slane %v7190, %v8720
    %v8722 = vsel %vm7526, %v8721, %v8717
    %v8723 = vlaneseq
    %v8724 = vshrl.u32 %v8723, 7
    %v8725 = vsub.s32 %v7528, %v8724
    %v8726 = vrot.slane %v7191, %v8725
    %v8727 = vsel %vm7533, %v8726, %v8722
    %v8728 = vlaneseq
    %v8729 = vshrl.u32 %v8728, 7
    %v8730 = vsub.s32 %v7535, %v8729
    %v8731 = vrot.slane %v7192, %v8730
    %v8732 = vsel %vm7540, %v8731, %v8727
    %v8733 = vlaneseq
    %v8734 = vshrl.u32 %v8733, 7
    %v8735 = vsub.s32 %v7542, %v8734
    %v8736 = vrot.slane %v7193, %v8735
    %v8737 = vsel %vm7547, %v8736, %v8732
    %v8738 = vlaneseq
    %v8739 = vshrl.u32 %v8738, 7
    %v8740 = vsub.s32 %v7549, %v8739
    %v8741 = vrot.slane %v7194, %v8740
    %v8742 = vsel %vm7554, %v8741, %v8737
    %v8743 = vlaneseq
    %v8744 = vshrl.u32 %v8743, 7
    %v8745 = vsub.s32 %v7556, %v8744
    %v8746 = vrot.slane %v7195, %v8745
    %v8747 = vsel %vm7561, %v8746, %v8742
    %vm8748 = vcmask 1041409
    %v8749 = vsel %vm8748, %v7720, %v7562
    %vm8750 = vcmask 1042434
    %v8751 = vsel %vm8750, %v7878, %v8749
    %vm8752 = vcmask 1043459
    %v8753 = vsel %vm8752, %v8036, %v8751
    %vm8754 = vcmask 1044484
    %v8755 = vsel %vm8754, %v8194, %v8753
    %vm8756 = vcmask 1045509
    %v8757 = vsel %vm8756, %v8352, %v8755
    %vm8758 = vcmask 1046534
    %v8759 = vsel %vm8758, %v8510, %v8757
    %vm8760 = vcmask 1047559
    %v8761 = vsel %vm8760, %v8668, %v8759
    %v8762 = vsel %vm8748, %v7799, %v7641
    %v8763 = vsel %vm8750, %v7957, %v8762
    %v8764 = vsel %vm8752, %v8115, %v8763
    %v8765 = vsel %vm8754, %v8273, %v8764
    %v8766 = vsel %vm8756, %v8431, %v8765
    %v8767 = vsel %vm8758, %v8589, %v8766
    %v8768 = vsel %vm8760, %v8747, %v8767
    %8771 = vst [vmem:[#allocation3] sm:$0xff] %v8761
    %8772 = vst [vmem:[#allocation3 + $0x8] sm:$0xff] %v8768
    // Predicated region
    $region10: #{slowfast_forward.1} parent=1 // pred_check
      _
    $region11: #{slowfast_forward.1} parent=1 // pred_check_branch
      %8774 = sbr.rel (0) target = $region13
    $region12: #{slowfast_forward.1} parent=1 // pred_region
      %s8776 = ssub.s32 256, 256
      %8777 = vsyncadd [#allocation4], %s8776
      %s8779 = sshll.u32 [#allocation3], 4
      %s8780 = int_to_ptr.vmem [resolvable:$true] %s8779
      %8782 = dma.vmem_to_hbm [thread:$0]  %s8780, 256, %s2, [#allocation4]
    $region13: #{slowfast_forward.1} parent=1 // pred_fallthru
      _
    // Predicated region
    $region14: #{slowfast_forward.1} parent=1 // pred_check
      _
    $region15: #{slowfast_forward.1} parent=1 // pred_check_branch
      %8784 = sbr.rel (0) target = $region17
    $region16: #{slowfast_forward.1} parent=1 // pred_region
      %8785 = dma.done [#allocation4], 256
    $region17: #{slowfast_forward.1} parent=1 // pred_fallthru
      _
    %8786 = vsyncpa [#allocation4], 1

</llo_original>
